<compile_context>
chip_gen: v6e
topology: v6e:2x2x1
jax: 0.10.0
libtpu: 0.0.40
codegen_flags: <defaults>
</compile_context>

<pallas_src>
import functools

import jax
import jax.numpy as jnp
from jax.experimental import pallas as pl
from jax.experimental.pallas import tpu as pltpu

_TARGET_PATCH_ROWS = 1024          # ~512-2048 matmul rows per grid step
_VMEM_LIMIT_BYTES = 32 * 1024 * 1024


# --------------------------- core Pallas kernel ------------------------------

def _conv2x2_kernel(xb_ref, w_ref, b_ref, o_ref, *, tr, wo, k, activation):
    """One grid step: (tr x wo) block of 2x2-window patches -> single MXU matmul.

    xb_ref: (1, 1, tr+1, wo+1, k)  input block incl. +1 halo row / col
    w_ref : (4*k, cout)            bf16 weights, taps folded into contraction
    b_ref : (1, cout)              f32 bias
    o_ref : (1, 1, tr*wo, cout)    f32 output (rows x cols flattened)
    """
    xb = xb_ref[0, 0]                          # (tr+1, wo+1, k)
    x00 = xb[:tr, :wo, :]
    x01 = xb[:tr, 1:, :]
    x10 = xb[1:, :wo, :]
    x11 = xb[1:, 1:, :]
    # Patches assembled in VMEM (no HBM im2col); K folded to 4*k.
    p = jnp.concatenate([x00, x01, x10, x11], axis=-1).reshape(tr * wo, 4 * k)
    acc = jnp.dot(p.astype(jnp.bfloat16), w_ref[...],
                  preferred_element_type=jnp.float32)
    acc = acc + b_ref[...]
    if activation == "relu":
        acc = jnp.maximum(acc, 0.0)
    elif activation == "elu":
        # TODO(synk): expm1 would be marginally more accurate near 0; exp-1 kept
        # (guaranteed Mosaic lowering, f32 accumulator so error is ~1e-8).
        acc = jnp.where(acc > 0.0, acc, jnp.exp(jnp.minimum(acc, 0.0)) - 1.0)
    o_ref[0, 0] = acc


def conv2x2_pallas(xp, w_flat, bias, *, activation):
    """2x2-window, stride-1 conv with fused bias + activation.

    xp:     (N, Hp, Wp, K) padded/restructured input, f32
    w_flat: (4*K, Cout)    bf16
    bias:   (Cout,)        f32
    returns (N, Hp-1, Wp-1, Cout) f32
    """
    N, Hp, Wp, K = xp.shape
    Cout = w_flat.shape[1]
    Ho, Wo = Hp - 1, Wp - 1

    # Row-block tiling targeting ~_TARGET_PATCH_ROWS matmul rows per grid step;
    # blocks stay far below v7x's 64 MiB VMEM (channels are small in this net).
    tr = max(1, min(Ho, -(-_TARGET_PATCH_ROWS // Wo)))
    num_rb = -(-Ho // tr)
    pad_rows = num_rb * tr + 1 - Hp
    if pad_rows:
        xp = jnp.pad(xp, ((0, 0), (0, pad_rows), (0, 0), (0, 0)))

    # Blocked view with a +1 halo row per tile (~1/tr extra bytes, not 9-16x
    # im2col).  XLA fuses this gather with the pad / space-to-depth / skip-add
    # producers into a single HBM pass.
    if num_rb == 1:
        x_blk = xp[:, None]                                   # (N,1,tr+1,Wp,K)
    else:
        idx = jnp.arange(num_rb)[:, None] * tr + jnp.arange(tr + 1)[None, :]
        x_blk = jnp.take(xp, idx, axis=1)                     # (N,rb,tr+1,Wp,K)

    b2 = bias.reshape(1, Cout).astype(jnp.float32)
    kernel = functools.partial(_conv2x2_kernel, tr=tr, wo=Wo, k=K,
                               activation=activation)

    out = pl.pallas_call(
        kernel,
        grid=(N, num_rb),
        in_specs=[
            pl.BlockSpec((1, 1, tr + 1, Wp, K), lambda n, i: (n, i, 0, 0, 0)),
            pl.BlockSpec((4 * K, Cout), lambda n, i: (0, 0)),
            pl.BlockSpec((1, Cout), lambda n, i: (0, 0)),
        ],
        out_specs=pl.BlockSpec((1, 1, tr * Wo, Cout), lambda n, i: (n, i, 0, 0)),
        out_shape=jax.ShapeDtypeStruct((N, num_rb, tr * Wo, Cout), jnp.float32),
        compiler_params=pltpu.CompilerParams(
            dimension_semantics=("parallel", "parallel"),
            vmem_limit_bytes=_VMEM_LIMIT_BYTES),
    )(x_blk, w_flat, b2)

    out = out.reshape(N, num_rb * tr, Wo, Cout)     # free, contiguous reshape
    if num_rb * tr != Ho:
        out = out[:, :Ho]
    return out


# --------------------------- layer wrappers ----------------------------------

def complex_down(h, params):
    """ComplexDownBlock: complex conv k=3 s=2 p=1 + complex_relu.
    h: (N, H, W, 2*cin_c) -> (N, H/2, W/2, 2*cout_c)."""
    w_flat, bias = params
    N, H, W, C = h.shape
    # space-to-depth (factor 2) turns the strided conv into the 2x2 primitive
    hs = h.reshape(N, H // 2, 2, W // 2, 2, C).transpose(0, 1, 3, 2, 4, 5)
    hs = hs.reshape(N, H // 2, W // 2, 4 * C)
    hs = jnp.pad(hs, ((0, 0), (1, 0), (1, 0), (0, 0)))        # top/left pad 1
    return conv2x2_pallas(hs, w_flat, bias, activation="relu")


def complex_up(h, params, activation):
    """ComplexUpBlock: complex transposed conv k=4 s=2 p=1 + relu/elu.
    Sub-pixel decomposition: 2x2 windows on the undilated input, 4 output
    parities packed into channels, depth-to-space + crop afterwards.
    h: (N, hh, ww, 2*cin_c) -> (N, 2hh, 2ww, 2*cout_c)."""
    w_flat, bias = params
    N, hh, ww, C = h.shape
    cout = w_flat.shape[1] // 4
    hp = jnp.pad(h, ((0, 0), (1, 1), (1, 1), (0, 0)))
    y = conv2x2_pallas(hp, w_flat, bias, activation=activation)  # (N,hh+1,ww+1,4*cout)
    y = y.reshape(N, hh + 1, ww + 1, 2, 2, cout).transpose(0, 1, 3, 2, 4, 5)
    y = y.reshape(N, 2 * hh + 2, 2 * ww + 2, cout)
    return y[:, 1:2 * hh + 1, 1:2 * ww + 1, :]


# --------------------------- parameter packing --------------------------------

def _down_params(key, cin_c, cout_c):
    k1, k2, k3, k4 = jax.random.split(key, 4)
    s = 1.0 / (cin_c * 9) ** 0.5
    wr = jax.random.uniform(k1, (cout_c, cin_c, 3, 3), jnp.float32, -s, s)
    wi = jax.random.uniform(k2, (cout_c, cin_c, 3, 3), jnp.float32, -s, s)
    br = jax.random.uniform(k3, (cout_c,), jnp.float32, -s, s)
    bi = jax.random.uniform(k4, (cout_c,), jnp.float32, -s, s)
    # OIHW -> HWIO, complex -> real block weight [[Wr, Wi], [-Wi, Wr]]
    wr_h = jnp.transpose(wr, (2, 3, 1, 0))
    wi_h = jnp.transpose(wi, (2, 3, 1, 0))
    w_eff = jnp.concatenate([jnp.concatenate([wr_h, wi_h], -1),
                             jnp.concatenate([-wi_h, wr_h], -1)], axis=2)
    b_eff = jnp.concatenate([br - bi, br + bi])
    C, Cout = 2 * cin_c, 2 * cout_c
    # Re-index for the space-to-depth 2x2 formulation:
    #   row = (dy*2+dx)*4C + (py*2+px)*C + ci ;  (dy,py)->ky: (0,1)->0,(1,0)->1,(1,1)->2
    w2 = jnp.zeros((2, 2, 2, 2, C, Cout), jnp.float32)
    trip = ((0, 1, 0), (1, 0, 1), (1, 1, 2))
    for dy, py, ky in trip:
        for dx, px, kx in trip:
            w2 = w2.at[dy, dx, py, px].set(w_eff[ky, kx])
    return w2.reshape(16 * C, Cout).astype(jnp.bfloat16), b_eff


def _up_params(key, cin_c, cout_c):
    k1, k2, k3, k4 = jax.random.split(key, 4)
    s = 1.0 / (cin_c * 16) ** 0.5
    wr = jax.random.uniform(k1, (cin_c, cout_c, 4, 4), jnp.float32, -s, s)
    wi = jax.random.uniform(k2, (cin_c, cout_c, 4, 4), jnp.float32, -s, s)
    br = jax.random.uniform(k3, (cout_c,), jnp.float32, -s, s)
    bi = jax.random.uniform(k4, (cout_c,), jnp.float32, -s, s)
    # ConvTranspose2d weight layout (cin, cout, kH, kW); block combine over (ci,co)
    wt_eff = jnp.concatenate([jnp.concatenate([wr, wi], axis=1),
                              jnp.concatenate([-wi, wr], axis=1)], axis=0)
    b_eff = jnp.concatenate([br - bi, br + bi])
    C, Cout = 2 * cin_c, 2 * cout_c
    # Sub-pixel: window tap (dy,dx), output parity (ry,rx): k_idx = 2*(1-d) + r
    w2 = jnp.zeros((2, 2, C, 2, 2, Cout), jnp.float32)
    for dy in (0, 1):
        for ry in (0, 1):
            ky = 2 * (1 - dy) + ry
            for dx in (0, 1):
                for rx in (0, 1):
                    kx = 2 * (1 - dx) + rx
                    w2 = w2.at[dy, dx, :, ry, rx, :].set(wt_eff[:, :, ky, kx])
    return (w2.reshape(4 * C, 4 * Cout).astype(jnp.bfloat16),
            jnp.tile(b_eff, 4))


def make_params(seed=42):
    key = jax.random.PRNGKey(seed)
    keys = jax.random.split(key, 13)
    init = {                                # PhaseInitNetwork (used layers only)
        "enc1": _down_params(keys[0], 1, 8),
        "enc2": _down_params(keys[1], 8, 16),
        "enc3": _down_params(keys[2], 16, 32),
        "dec1": _up_params(keys[3], 16, 8),
        "final": _up_params(keys[4], 8, 1),
    }
    refine = {                              # PhaseRefinementNetwork
        "enc1": _down_params(keys[5], 1, 8),
        "enc2": _down_params(keys[6], 8, 16),
        "enc3": _down_params(keys[7], 16, 32),
        "enc4": _down_params(keys[8], 32, 64),
        "dec4": _up_params(keys[9], 64, 32),
        "dec3": _up_params(keys[10], 32, 16),
        "dec2": _up_params(keys[11], 16, 8),
        "final": _up_params(keys[12], 8, 1),
    }
    return {"init": init, "refine": refine}


# ------------------------------ networks --------------------------------------

def phase_init_forward(x_ri, params):
    """PhaseInitNetwork.  x_ri: (N, H, W, 2) = [real, imag] of the input field."""
    x1 = complex_down(x_ri, params["enc1"])          # (N, H/2, W/2, 16)
    x2 = complex_down(x1, params["enc2"])            # (N, H/4, W/4, 32)
    x3 = complex_down(x2, params["enc3"])            # (N, H/8, W/8, 64)
    del x3  # reference computes x6 = decoder2(x3) but never uses it (and its
            # channel counts mismatch); it does not affect the output.
    x7 = complex_up(x2, params["dec1"], "relu")      # (N, H/2, W/2, 16)
    x_out = complex_up(x7 + x1, params["final"], "elu")   # (N, H, W, 2)
    # Matches reference: torch.atan2(x_out.real, x_out.imag)
    phase = jnp.arctan2(x_out[..., 0], x_out[..., 1])
    re = x_ri[..., 0] * jnp.cos(phase)
    im = x_ri[..., 0] * jnp.sin(phase)
    return re, im


def phase_refine_forward(x_ri, params):
    """PhaseRefinementNetwork.  x_ri: (N, H, W, 2) -> refined phase (N, H, W)."""
    d1 = complex_down(x_ri, params["enc1"])
    d2 = complex_down(d1, params["enc2"])
    d3 = complex_down(d2, params["enc3"])
    d4 = complex_down(d3, params["enc4"])
    u4 = complex_up(d4, params["dec4"], "relu")
    # skip-adds feed directly into the next layer's input restructuring, so
    # XLA fuses add + pad + block-gather into one HBM pass (no standalone add).
    u3 = complex_up(u4 + d3, params["dec3"], "relu")
    u2 = complex_up(u3 + d2, params["dec2"], "relu")
    u1 = complex_up(u2 + d1, params["final"], "elu")
    # torch.squeeze drops the size-1 channel dim; atan2(real, imag) as in reference.
    # TODO(synk): atan2 epilogue kept in plain JAX (tiny elementwise; Mosaic
    # atan2 lowering is not guaranteed).
    return jnp.arctan2(u1[..., 0], u1[..., 1])


def _fftn_all(x, inverse=False):
    """torch.fft.fftn/ifftn over ALL dims.  XLA FFT is rank<=3, so compose over
    axis groups (size-1 axes are identities and are skipped — same result)."""
    fn = jnp.fft.ifftn if inverse else jnp.fft.fftn
    axes = [a for a in range(x.ndim) if x.shape[a] > 1]
    for i in range(0, len(axes), 3):
        x = fn(x, axes=tuple(axes[i:i + 3]))
    return x


def advanced_phase_estimation_forward(x_real, x_imag, H2, params):
    """AdvancedPhaseEstimationNet.forward(input_field, H2).
    x_real/x_imag: (N, 1, H, W) real/imag parts of the complex input field.
    H2: (N, 1, H, W) complex64 Fourier-domain modulation."""
    N, _, H, W = x_real.shape
    x_ri = jnp.concatenate([x_real, x_imag], axis=1)          # (N, 2, H, W)
    x_ri = jnp.transpose(x_ri, (0, 2, 3, 1)).astype(jnp.float32)  # (N, H, W, 2)

    # --- initializer ---
    re, im = phase_init_forward(x_ri, params["init"])         # (N, H, W) each
    init_complex = jax.lax.complex(re, im).reshape(N, 1, H, W)

    # --- Fourier-domain modulation ---
    # TODO(synk): FFT kept in plain JAX/XLA (no Pallas FFT primitive).
    freq = _fftn_all(init_complex)
    slm = _fftn_all(freq * H2, inverse=True)
    s_ri = jnp.stack([jnp.real(slm), jnp.imag(slm)], axis=-1)  # (N,1,H,W,2)
    s_ri = s_ri.reshape(N, H, W, 2).astype(jnp.float32)

    # --- refiner ---
    return phase_refine_forward(s_ri, params["refine"])       # (N, H, W)


# -------------------------------- main ----------------------------------------

if __name__ == "__main__":
    key = jax.random.PRNGKey(0)
    kr, ki, khr, khi = jax.random.split(key, 4)
    N, C, H, W = 2, 1, 16, 16
    x_real = jax.random.normal(kr, (N, C, H, W), jnp.float32)
    x_imag = jax.random.normal(ki, (N, C, H, W), jnp.float32)
    H2 = jax.lax.complex(jax.random.normal(khr, (N, C, H, W), jnp.float32),
                         jax.random.normal(khi, (N, C, H, W), jnp.float32))

    params = make_params(seed=42)
    fwd = jax.jit(advanced_phase_estimation_forward)
    out = jax.block_until_ready(fwd(x_real, x_imag, H2, params))

    assert out.shape == (N, H, W), out.shape
    assert bool(jnp.all(jnp.isfinite(out)))
    print("KERNEL_OK")
</pallas_src>

<mosaic_0001>
module attributes {stable_mosaic.version = 11 : i64} {
  func.func @_conv2x2_kernel(%arg0: i32, %arg1: i32, %arg2: memref<1x1x9x9x8xf32, #tpu.memory_space<vmem>>, %arg3: memref<32x16xbf16, #tpu.memory_space<vmem>>, %arg4: memref<1x16xf32, #tpu.memory_space<vmem>>, %arg5: memref<1x1x64x16xf32, #tpu.memory_space<vmem>>) attributes {dimension_semantics = [#tpu.dimension_semantics<parallel>, #tpu.dimension_semantics<parallel>], iteration_bounds = array<i64: 2, 1>, scalar_prefetch = 0 : i64, scratch_operands = 0 : i64, tpu.core_type = #tpu.core_type<tc>, window_params = [{transform_indices = @transform_0, window_bounds = array<i64: 1, 1, 9, 9, 8>}, {pipeline_mode = #tpu.pipeline_mode<synchronous>, transform_indices = @transform_1, window_bounds = array<i64: 32, 16>}, {pipeline_mode = #tpu.pipeline_mode<synchronous>, transform_indices = @transform_2, window_bounds = array<i64: 1, 16>}, {transform_indices = @transform_3, window_bounds = array<i64: 1, 1, 64, 16>}]} {
    %c0 = arith.constant 0 : index
    %c0_0 = arith.constant 0 : index
    %c0_1 = arith.constant 0 : index
    %c0_2 = arith.constant 0 : index
    %c0_3 = arith.constant 0 : index
    %0 = vector.load %arg2[%c0, %c0_0, %c0_1, %c0_2, %c0_3] : memref<1x1x9x9x8xf32, #tpu.memory_space<vmem>>, vector<1x1x9x9x8xf32>
    %1 = vector.shape_cast %0 : vector<1x1x9x9x8xf32> to vector<9x9x8xf32>
    %2 = vector.extract_strided_slice %1 {offsets = [0, 0, 0], sizes = [8, 8, 8], strides = [1, 1, 1]} : vector<9x9x8xf32> to vector<8x8x8xf32>
    %3 = vector.extract_strided_slice %1 {offsets = [0, 1, 0], sizes = [8, 8, 8], strides = [1, 1, 1]} : vector<9x9x8xf32> to vector<8x8x8xf32>
    %4 = vector.extract_strided_slice %1 {offsets = [1, 0, 0], sizes = [8, 8, 8], strides = [1, 1, 1]} : vector<9x9x8xf32> to vector<8x8x8xf32>
    %5 = vector.extract_strided_slice %1 {offsets = [1, 1, 0], sizes = [8, 8, 8], strides = [1, 1, 1]} : vector<9x9x8xf32> to vector<8x8x8xf32>
    %6 = tpu.concatenate %2, %3, %4, %5 in 2 : vector<8x8x8xf32>, vector<8x8x8xf32>, vector<8x8x8xf32>, vector<8x8x8xf32> -> vector<8x8x32xf32>
    %7 = vector.shape_cast %6 : vector<8x8x32xf32> to vector<64x32xf32>
    %8 = arith.truncf %7 : vector<64x32xf32> to vector<64x32xbf16>
    %c0_4 = arith.constant 0 : index
    %c0_5 = arith.constant 0 : index
    %9 = vector.load %arg3[%c0_4, %c0_5] : memref<32x16xbf16, #tpu.memory_space<vmem>>, vector<32x16xbf16>
    %cst = arith.constant dense<0.000000e+00> : vector<64x16xf32>
    %10 = tpu.matmul %8, %9, %cst {dimension_numbers = #tpu.dot_dimension_numbers<[1], [0], [0], [1], [0, 0, 1, 1], [], []>} : vector<64x32xbf16>, vector<32x16xbf16>, vector<64x16xf32> -> vector<64x16xf32>
    %c0_6 = arith.constant 0 : index
    %c0_7 = arith.constant 0 : index
    %11 = vector.load %arg4[%c0_6, %c0_7] : memref<1x16xf32, #tpu.memory_space<vmem>>, vector<1x16xf32>
    %12 = vector.broadcast %11 : vector<1x16xf32> to vector<64x16xf32>
    %13 = arith.addf %10, %12 : vector<64x16xf32>
    %cst_8 = arith.constant 0.000000e+00 : f32
    %14 = vector.broadcast %cst_8 : f32 to vector<64x16xf32>
    %15 = arith.maximumf %13, %14 : vector<64x16xf32>
    %c0_9 = arith.constant 0 : index
    %c0_10 = arith.constant 0 : index
    %c0_11 = arith.constant 0 : index
    %c0_12 = arith.constant 0 : index
    %16 = vector.load %arg5[%c0_9, %c0_10, %c0_11, %c0_12] : memref<1x1x64x16xf32, #tpu.memory_space<vmem>>, vector<1x1x64x16xf32>
    %17 = vector.shape_cast %16 : vector<1x1x64x16xf32> to vector<64x16xf32>
    %18 = vector.shape_cast %15 : vector<64x16xf32> to vector<1x1x64x16xf32>
    tpu.vector_store %arg5[%c0_9, %c0_10, %c0_11, %c0_12], %18 {strides = array<i32>} : memref<1x1x64x16xf32, #tpu.memory_space<vmem>>, vector<1x1x64x16xf32>,
    return
  }
  func.func @transform_0(%arg0: i32, %arg1: i32) -> (i32, i32, i32, i32, i32) {
    %c0_i32 = arith.constant 0 : i32
    %c0_i32_0 = arith.constant 0 : i32
    %c0_i32_1 = arith.constant 0 : i32
    %c0_i32_2 = arith.constant 0 : i32
    return %arg0, %arg1, %c0_i32, %c0_i32_0, %c0_i32_1 : i32, i32, i32, i32, i32
  }
  func.func @transform_1(%arg0: i32, %arg1: i32) -> (i32, i32) {
    %c0_i32 = arith.constant 0 : i32
    %c0_i32_0 = arith.constant 0 : i32
    %c0_i32_1 = arith.constant 0 : i32
    return %c0_i32, %c0_i32_0 : i32, i32
  }
  func.func @transform_2(%arg0: i32, %arg1: i32) -> (i32, i32) {
    %c0_i32 = arith.constant 0 : i32
    %c0_i32_0 = arith.constant 0 : i32
    %c0_i32_1 = arith.constant 0 : i32
    return %c0_i32, %c0_i32_0 : i32, i32
  }
  func.func @transform_3(%arg0: i32, %arg1: i32) -> (i32, i32, i32, i32) {
    %c0_i32 = arith.constant 0 : i32
    %c0_i32_0 = arith.constant 0 : i32
    %c0_i32_1 = arith.constant 0 : i32
    return %arg0, %arg1, %c0_i32, %c0_i32_0 : i32, i32, i32, i32
  }
}

module attributes {stable_mosaic.version = 11 : i64} {
  func.func @_conv2x2_kernel(%arg0: i32, %arg1: i32, %arg2: memref<1x1x5x5x64xf32, #tpu.memory_space<vmem>>, %arg3: memref<256x32xbf16, #tpu.memory_space<vmem>>, %arg4: memref<1x32xf32, #tpu.memory_space<vmem>>, %arg5: memref<1x1x16x32xf32, #tpu.memory_space<vmem>>) attributes {dimension_semantics = [#tpu.dimension_semantics<parallel>, #tpu.dimension_semantics<parallel>], iteration_bounds = array<i64: 2, 1>, scalar_prefetch = 0 : i64, scratch_operands = 0 : i64, tpu.core_type = #tpu.core_type<tc>, window_params = [{transform_indices = @transform_0, window_bounds = array<i64: 1, 1, 5, 5, 64>}, {pipeline_mode = #tpu.pipeline_mode<synchronous>, transform_indices = @transform_1, window_bounds = array<i64: 256, 32>}, {pipeline_mode = #tpu.pipeline_mode<synchronous>, transform_indices = @transform_2, window_bounds = array<i64: 1, 32>}, {transform_indices = @transform_3, window_bounds = array<i64: 1, 1, 16, 32>}]} {
    %c0 = arith.constant 0 : index
    %c0_0 = arith.constant 0 : index
    %c0_1 = arith.constant 0 : index
    %c0_2 = arith.constant 0 : index
    %c0_3 = arith.constant 0 : index
    %0 = vector.load %arg2[%c0, %c0_0, %c0_1, %c0_2, %c0_3] : memref<1x1x5x5x64xf32, #tpu.memory_space<vmem>>, vector<1x1x5x5x64xf32>
    %1 = vector.shape_cast %0 : vector<1x1x5x5x64xf32> to vector<5x5x64xf32>
    %2 = vector.extract_strided_slice %1 {offsets = [0, 0, 0], sizes = [4, 4, 64], strides = [1, 1, 1]} : vector<5x5x64xf32> to vector<4x4x64xf32>
    %3 = vector.extract_strided_slice %1 {offsets = [0, 1, 0], sizes = [4, 4, 64], strides = [1, 1, 1]} : vector<5x5x64xf32> to vector<4x4x64xf32>
    %4 = vector.extract_strided_slice %1 {offsets = [1, 0, 0], sizes = [4, 4, 64], strides = [1, 1, 1]} : vector<5x5x64xf32> to vector<4x4x64xf32>
    %5 = vector.extract_strided_slice %1 {offsets = [1, 1, 0], sizes = [4, 4, 64], strides = [1, 1, 1]} : vector<5x5x64xf32> to vector<4x4x64xf32>
    %6 = tpu.concatenate %2, %3, %4, %5 in 2 : vector<4x4x64xf32>, vector<4x4x64xf32>, vector<4x4x64xf32>, vector<4x4x64xf32> -> vector<4x4x256xf32>
    %7 = vector.shape_cast %6 : vector<4x4x256xf32> to vector<16x256xf32>
    %8 = arith.truncf %7 : vector<16x256xf32> to vector<16x256xbf16>
    %c0_4 = arith.constant 0 : index
    %c0_5 = arith.constant 0 : index
    %9 = vector.load %arg3[%c0_4, %c0_5] : memref<256x32xbf16, #tpu.memory_space<vmem>>, vector<256x32xbf16>
    %cst = arith.constant dense<0.000000e+00> : vector<16x32xf32>
    %10 = tpu.matmul %8, %9, %cst {dimension_numbers = #tpu.dot_dimension_numbers<[1], [0], [0], [1], [0, 0, 1, 1], [], []>} : vector<16x256xbf16>, vector<256x32xbf16>, vector<16x32xf32> -> vector<16x32xf32>
    %c0_6 = arith.constant 0 : index
    %c0_7 = arith.constant 0 : index
    %11 = vector.load %arg4[%c0_6, %c0_7] : memref<1x32xf32, #tpu.memory_space<vmem>>, vector<1x32xf32>
    %12 = vector.broadcast %11 : vector<1x32xf32> to vector<16x32xf32>
    %13 = arith.addf %10, %12 : vector<16x32xf32>
    %cst_8 = arith.constant 0.000000e+00 : f32
    %14 = vector.broadcast %cst_8 : f32 to vector<16x32xf32>
    %15 = arith.maximumf %13, %14 : vector<16x32xf32>
    %c0_9 = arith.constant 0 : index
    %c0_10 = arith.constant 0 : index
    %c0_11 = arith.constant 0 : index
    %c0_12 = arith.constant 0 : index
    %16 = vector.load %arg5[%c0_9, %c0_10, %c0_11, %c0_12] : memref<1x1x16x32xf32, #tpu.memory_space<vmem>>, vector<1x1x16x32xf32>
    %17 = vector.shape_cast %16 : vector<1x1x16x32xf32> to vector<16x32xf32>
    %18 = vector.shape_cast %15 : vector<16x32xf32> to vector<1x1x16x32xf32>
    tpu.vector_store %arg5[%c0_9, %c0_10, %c0_11, %c0_12], %18 {strides = array<i32>} : memref<1x1x16x32xf32, #tpu.memory_space<vmem>>, vector<1x1x16x32xf32>,
    return
  }
  func.func @transform_0(%arg0: i32, %arg1: i32) -> (i32, i32, i32, i32, i32) {
    %c0_i32 = arith.constant 0 : i32
    %c0_i32_0 = arith.constant 0 : i32
    %c0_i32_1 = arith.constant 0 : i32
    %c0_i32_2 = arith.constant 0 : i32
    return %arg0, %arg1, %c0_i32, %c0_i32_0, %c0_i32_1 : i32, i32, i32, i32, i32
  }
  func.func @transform_1(%arg0: i32, %arg1: i32) -> (i32, i32) {
    %c0_i32 = arith.constant 0 : i32
    %c0_i32_0 = arith.constant 0 : i32
    %c0_i32_1 = arith.constant 0 : i32
    return %c0_i32, %c0_i32_0 : i32, i32
  }
  func.func @transform_2(%arg0: i32, %arg1: i32) -> (i32, i32) {
    %c0_i32 = arith.constant 0 : i32
    %c0_i32_0 = arith.constant 0 : i32
    %c0_i32_1 = arith.constant 0 : i32
    return %c0_i32, %c0_i32_0 : i32, i32
  }
  func.func @transform_3(%arg0: i32, %arg1: i32) -> (i32, i32, i32, i32) {
    %c0_i32 = arith.constant 0 : i32
    %c0_i32_0 = arith.constant 0 : i32
    %c0_i32_1 = arith.constant 0 : i32
    return %arg0, %arg1, %c0_i32, %c0_i32_0 : i32, i32, i32, i32
  }
}

module attributes {stable_mosaic.version = 11 : i64} {
  func.func @_conv2x2_kernel(%arg0: i32, %arg1: i32, %arg2: memref<1x1x6x6x32xf32, #tpu.memory_space<vmem>>, %arg3: memref<128x64xbf16, #tpu.memory_space<vmem>>, %arg4: memref<1x64xf32, #tpu.memory_space<vmem>>, %arg5: memref<1x1x25x64xf32, #tpu.memory_space<vmem>>) attributes {dimension_semantics = [#tpu.dimension_semantics<parallel>, #tpu.dimension_semantics<parallel>], iteration_bounds = array<i64: 2, 1>, scalar_prefetch = 0 : i64, scratch_operands = 0 : i64, tpu.core_type = #tpu.core_type<tc>, window_params = [{transform_indices = @transform_0, window_bounds = array<i64: 1, 1, 6, 6, 32>}, {pipeline_mode = #tpu.pipeline_mode<synchronous>, transform_indices = @transform_1, window_bounds = array<i64: 128, 64>}, {pipeline_mode = #tpu.pipeline_mode<synchronous>, transform_indices = @transform_2, window_bounds = array<i64: 1, 64>}, {transform_indices = @transform_3, window_bounds = array<i64: 1, 1, 25, 64>}]} {
    %c0 = arith.constant 0 : index
    %c0_0 = arith.constant 0 : index
    %c0_1 = arith.constant 0 : index
    %c0_2 = arith.constant 0 : index
    %c0_3 = arith.constant 0 : index
    %0 = vector.load %arg2[%c0, %c0_0, %c0_1, %c0_2, %c0_3] : memref<1x1x6x6x32xf32, #tpu.memory_space<vmem>>, vector<1x1x6x6x32xf32>
    %1 = vector.shape_cast %0 : vector<1x1x6x6x32xf32> to vector<6x6x32xf32>
    %2 = vector.extract_strided_slice %1 {offsets = [0, 0, 0], sizes = [5, 5, 32], strides = [1, 1, 1]} : vector<6x6x32xf32> to vector<5x5x32xf32>
    %3 = vector.extract_strided_slice %1 {offsets = [0, 1, 0], sizes = [5, 5, 32], strides = [1, 1, 1]} : vector<6x6x32xf32> to vector<5x5x32xf32>
    %4 = vector.extract_strided_slice %1 {offsets = [1, 0, 0], sizes = [5, 5, 32], strides = [1, 1, 1]} : vector<6x6x32xf32> to vector<5x5x32xf32>
    %5 = vector.extract_strided_slice %1 {offsets = [1, 1, 0], sizes = [5, 5, 32], strides = [1, 1, 1]} : vector<6x6x32xf32> to vector<5x5x32xf32>
    %6 = tpu.concatenate %2, %3, %4, %5 in 2 : vector<5x5x32xf32>, vector<5x5x32xf32>, vector<5x5x32xf32>, vector<5x5x32xf32> -> vector<5x5x128xf32>
    %7 = vector.shape_cast %6 : vector<5x5x128xf32> to vector<25x128xf32>
    %8 = arith.truncf %7 : vector<25x128xf32> to vector<25x128xbf16>
    %c0_4 = arith.constant 0 : index
    %c0_5 = arith.constant 0 : index
    %9 = vector.load %arg3[%c0_4, %c0_5] : memref<128x64xbf16, #tpu.memory_space<vmem>>, vector<128x64xbf16>
    %cst = arith.constant dense<0.000000e+00> : vector<25x64xf32>
    %10 = tpu.matmul %8, %9, %cst {dimension_numbers = #tpu.dot_dimension_numbers<[1], [0], [0], [1], [0, 0, 1, 1], [], []>} : vector<25x128xbf16>, vector<128x64xbf16>, vector<25x64xf32> -> vector<25x64xf32>
    %c0_6 = arith.constant 0 : index
    %c0_7 = arith.constant 0 : index
    %11 = vector.load %arg4[%c0_6, %c0_7] : memref<1x64xf32, #tpu.memory_space<vmem>>, vector<1x64xf32>
    %12 = vector.broadcast %11 : vector<1x64xf32> to vector<25x64xf32>
    %13 = arith.addf %10, %12 : vector<25x64xf32>
    %cst_8 = arith.constant 0.000000e+00 : f32
    %14 = vector.broadcast %cst_8 : f32 to vector<25x64xf32>
    %15 = arith.maximumf %13, %14 : vector<25x64xf32>
    %c0_9 = arith.constant 0 : index
    %c0_10 = arith.constant 0 : index
    %c0_11 = arith.constant 0 : index
    %c0_12 = arith.constant 0 : index
    %16 = vector.load %arg5[%c0_9, %c0_10, %c0_11, %c0_12] : memref<1x1x25x64xf32, #tpu.memory_space<vmem>>, vector<1x1x25x64xf32>
    %17 = vector.shape_cast %16 : vector<1x1x25x64xf32> to vector<25x64xf32>
    %18 = vector.shape_cast %15 : vector<25x64xf32> to vector<1x1x25x64xf32>
    tpu.vector_store %arg5[%c0_9, %c0_10, %c0_11, %c0_12], %18 {strides = array<i32>} : memref<1x1x25x64xf32, #tpu.memory_space<vmem>>, vector<1x1x25x64xf32>,
    return
  }
  func.func @transform_0(%arg0: i32, %arg1: i32) -> (i32, i32, i32, i32, i32) {
    %c0_i32 = arith.constant 0 : i32
    %c0_i32_0 = arith.constant 0 : i32
    %c0_i32_1 = arith.constant 0 : i32
    %c0_i32_2 = arith.constant 0 : i32
    return %arg0, %arg1, %c0_i32, %c0_i32_0, %c0_i32_1 : i32, i32, i32, i32, i32
  }
  func.func @transform_1(%arg0: i32, %arg1: i32) -> (i32, i32) {
    %c0_i32 = arith.constant 0 : i32
    %c0_i32_0 = arith.constant 0 : i32
    %c0_i32_1 = arith.constant 0 : i32
    return %c0_i32, %c0_i32_0 : i32, i32
  }
  func.func @transform_2(%arg0: i32, %arg1: i32) -> (i32, i32) {
    %c0_i32 = arith.constant 0 : i32
    %c0_i32_0 = arith.constant 0 : i32
    %c0_i32_1 = arith.constant 0 : i32
    return %c0_i32, %c0_i32_0 : i32, i32
  }
  func.func @transform_3(%arg0: i32, %arg1: i32) -> (i32, i32, i32, i32) {
    %c0_i32 = arith.constant 0 : i32
    %c0_i32_0 = arith.constant 0 : i32
    %c0_i32_1 = arith.constant 0 : i32
    return %arg0, %arg1, %c0_i32, %c0_i32_0 : i32, i32, i32, i32
  }
}

module attributes {stable_mosaic.version = 11 : i64} {
  func.func @_conv2x2_kernel(%arg0: i32, %arg1: i32, %arg2: memref<1x1x10x10x16xf32, #tpu.memory_space<vmem>>, %arg3: memref<64x8xbf16, #tpu.memory_space<vmem>>, %arg4: memref<1x8xf32, #tpu.memory_space<vmem>>, %arg5: memref<1x1x81x8xf32, #tpu.memory_space<vmem>>) attributes {dimension_semantics = [#tpu.dimension_semantics<parallel>, #tpu.dimension_semantics<parallel>], iteration_bounds = array<i64: 2, 1>, scalar_prefetch = 0 : i64, scratch_operands = 0 : i64, tpu.core_type = #tpu.core_type<tc>, window_params = [{transform_indices = @transform_0, window_bounds = array<i64: 1, 1, 10, 10, 16>}, {pipeline_mode = #tpu.pipeline_mode<synchronous>, transform_indices = @transform_1, window_bounds = array<i64: 64, 8>}, {pipeline_mode = #tpu.pipeline_mode<synchronous>, transform_indices = @transform_2, window_bounds = array<i64: 1, 8>}, {transform_indices = @transform_3, window_bounds = array<i64: 1, 1, 81, 8>}]} {
    %c0 = arith.constant 0 : index
    %c0_0 = arith.constant 0 : index
    %c0_1 = arith.constant 0 : index
    %c0_2 = arith.constant 0 : index
    %c0_3 = arith.constant 0 : index
    %0 = vector.load %arg2[%c0, %c0_0, %c0_1, %c0_2, %c0_3] : memref<1x1x10x10x16xf32, #tpu.memory_space<vmem>>, vector<1x1x10x10x16xf32>
    %1 = vector.shape_cast %0 : vector<1x1x10x10x16xf32> to vector<10x10x16xf32>
    %2 = vector.extract_strided_slice %1 {offsets = [0, 0, 0], sizes = [9, 9, 16], strides = [1, 1, 1]} : vector<10x10x16xf32> to vector<9x9x16xf32>
    %3 = vector.extract_strided_slice %1 {offsets = [0, 1, 0], sizes = [9, 9, 16], strides = [1, 1, 1]} : vector<10x10x16xf32> to vector<9x9x16xf32>
    %4 = vector.extract_strided_slice %1 {offsets = [1, 0, 0], sizes = [9, 9, 16], strides = [1, 1, 1]} : vector<10x10x16xf32> to vector<9x9x16xf32>
    %5 = vector.extract_strided_slice %1 {offsets = [1, 1, 0], sizes = [9, 9, 16], strides = [1, 1, 1]} : vector<10x10x16xf32> to vector<9x9x16xf32>
    %6 = tpu.concatenate %2, %3, %4, %5 in 2 : vector<9x9x16xf32>, vector<9x9x16xf32>, vector<9x9x16xf32>, vector<9x9x16xf32> -> vector<9x9x64xf32>
    %7 = vector.shape_cast %6 : vector<9x9x64xf32> to vector<81x64xf32>
    %8 = arith.truncf %7 : vector<81x64xf32> to vector<81x64xbf16>
    %c0_4 = arith.constant 0 : index
    %c0_5 = arith.constant 0 : index
    %9 = vector.load %arg3[%c0_4, %c0_5] : memref<64x8xbf16, #tpu.memory_space<vmem>>, vector<64x8xbf16>
    %cst = arith.constant dense<0.000000e+00> : vector<81x8xf32>
    %10 = tpu.matmul %8, %9, %cst {dimension_numbers = #tpu.dot_dimension_numbers<[1], [0], [0], [1], [0, 0, 1, 1], [], []>} : vector<81x64xbf16>, vector<64x8xbf16>, vector<81x8xf32> -> vector<81x8xf32>
    %c0_6 = arith.constant 0 : index
    %c0_7 = arith.constant 0 : index
    %11 = vector.load %arg4[%c0_6, %c0_7] : memref<1x8xf32, #tpu.memory_space<vmem>>, vector<1x8xf32>
    %12 = vector.broadcast %11 : vector<1x8xf32> to vector<81x8xf32>
    %13 = arith.addf %10, %12 : vector<81x8xf32>
    %cst_8 = arith.constant 0.000000e+00 : f32
    %14 = vector.broadcast %cst_8 : f32 to vector<81x8xf32>
    %15 = arith.cmpf ogt, %13, %14 : vector<81x8xf32>
    %cst_9 = arith.constant 0.000000e+00 : f32
    %16 = vector.broadcast %cst_9 : f32 to vector<81x8xf32>
    %17 = arith.minimumf %13, %16 : vector<81x8xf32>
    %18 = math.exp %17 : vector<81x8xf32>
    %cst_10 = arith.constant 1.000000e+00 : f32
    %19 = vector.broadcast %cst_10 : f32 to vector<81x8xf32>
    %20 = arith.subf %18, %19 : vector<81x8xf32>
    %21 = arith.select %15, %13, %20 : vector<81x8xi1>, vector<81x8xf32>
    %c0_11 = arith.constant 0 : index
    %c0_12 = arith.constant 0 : index
    %c0_13 = arith.constant 0 : index
    %c0_14 = arith.constant 0 : index
    %22 = vector.load %arg5[%c0_11, %c0_12, %c0_13, %c0_14] : memref<1x1x81x8xf32, #tpu.memory_space<vmem>>, vector<1x1x81x8xf32>
    %23 = vector.shape_cast %22 : vector<1x1x81x8xf32> to vector<81x8xf32>
    %24 = vector.shape_cast %21 : vector<81x8xf32> to vector<1x1x81x8xf32>
    tpu.vector_store %arg5[%c0_11, %c0_12, %c0_13, %c0_14], %24 {strides = array<i32>} : memref<1x1x81x8xf32, #tpu.memory_space<vmem>>, vector<1x1x81x8xf32>,
    return
  }
  func.func @transform_0(%arg0: i32, %arg1: i32) -> (i32, i32, i32, i32, i32) {
    %c0_i32 = arith.constant 0 : i32
    %c0_i32_0 = arith.constant 0 : i32
    %c0_i32_1 = arith.constant 0 : i32
    %c0_i32_2 = arith.constant 0 : i32
    return %arg0, %arg1, %c0_i32, %c0_i32_0, %c0_i32_1 : i32, i32, i32, i32, i32
  }
  func.func @transform_1(%arg0: i32, %arg1: i32) -> (i32, i32) {
    %c0_i32 = arith.constant 0 : i32
    %c0_i32_0 = arith.constant 0 : i32
    %c0_i32_1 = arith.constant 0 : i32
    return %c0_i32, %c0_i32_0 : i32, i32
  }
  func.func @transform_2(%arg0: i32, %arg1: i32) -> (i32, i32) {
    %c0_i32 = arith.constant 0 : i32
    %c0_i32_0 = arith.constant 0 : i32
    %c0_i32_1 = arith.constant 0 : i32
    return %c0_i32, %c0_i32_0 : i32, i32
  }
  func.func @transform_3(%arg0: i32, %arg1: i32) -> (i32, i32, i32, i32) {
    %c0_i32 = arith.constant 0 : i32
    %c0_i32_0 = arith.constant 0 : i32
    %c0_i32_1 = arith.constant 0 : i32
    return %arg0, %arg1, %c0_i32, %c0_i32_0 : i32, i32, i32, i32
  }
}

module attributes {stable_mosaic.version = 11 : i64} {
  func.func @_conv2x2_kernel(%arg0: i32, %arg1: i32, %arg2: memref<1x1x3x3x128xf32, #tpu.memory_space<vmem>>, %arg3: memref<512x64xbf16, #tpu.memory_space<vmem>>, %arg4: memref<1x64xf32, #tpu.memory_space<vmem>>, %arg5: memref<1x1x4x64xf32, #tpu.memory_space<vmem>>) attributes {dimension_semantics = [#tpu.dimension_semantics<parallel>, #tpu.dimension_semantics<parallel>], iteration_bounds = array<i64: 2, 1>, scalar_prefetch = 0 : i64, scratch_operands = 0 : i64, tpu.core_type = #tpu.core_type<tc>, window_params = [{transform_indices = @transform_0, window_bounds = array<i64: 1, 1, 3, 3, 128>}, {pipeline_mode = #tpu.pipeline_mode<synchronous>, transform_indices = @transform_1, window_bounds = array<i64: 512, 64>}, {pipeline_mode = #tpu.pipeline_mode<synchronous>, transform_indices = @transform_2, window_bounds = array<i64: 1, 64>}, {transform_indices = @transform_3, window_bounds = array<i64: 1, 1, 4, 64>}]} {
    %c0 = arith.constant 0 : index
    %c0_0 = arith.constant 0 : index
    %c0_1 = arith.constant 0 : index
    %c0_2 = arith.constant 0 : index
    %c0_3 = arith.constant 0 : index
    %0 = vector.load %arg2[%c0, %c0_0, %c0_1, %c0_2, %c0_3] : memref<1x1x3x3x128xf32, #tpu.memory_space<vmem>>, vector<1x1x3x3x128xf32>
    %1 = vector.shape_cast %0 : vector<1x1x3x3x128xf32> to vector<3x3x128xf32>
    %2 = vector.extract_strided_slice %1 {offsets = [0, 0, 0], sizes = [2, 2, 128], strides = [1, 1, 1]} : vector<3x3x128xf32> to vector<2x2x128xf32>
    %3 = vector.extract_strided_slice %1 {offsets = [0, 1, 0], sizes = [2, 2, 128], strides = [1, 1, 1]} : vector<3x3x128xf32> to vector<2x2x128xf32>
    %4 = vector.extract_strided_slice %1 {offsets = [1, 0, 0], sizes = [2, 2, 128], strides = [1, 1, 1]} : vector<3x3x128xf32> to vector<2x2x128xf32>
    %5 = vector.extract_strided_slice %1 {offsets = [1, 1, 0], sizes = [2, 2, 128], strides = [1, 1, 1]} : vector<3x3x128xf32> to vector<2x2x128xf32>
    %6 = tpu.concatenate %2, %3, %4, %5 in 2 : vector<2x2x128xf32>, vector<2x2x128xf32>, vector<2x2x128xf32>, vector<2x2x128xf32> -> vector<2x2x512xf32>
    %7 = vector.shape_cast %6 : vector<2x2x512xf32> to vector<4x512xf32>
    %8 = arith.truncf %7 : vector<4x512xf32> to vector<4x512xbf16>
    %c0_4 = arith.constant 0 : index
    %c0_5 = arith.constant 0 : index
    %9 = vector.load %arg3[%c0_4, %c0_5] : memref<512x64xbf16, #tpu.memory_space<vmem>>, vector<512x64xbf16>
    %cst = arith.constant dense<0.000000e+00> : vector<4x64xf32>
    %10 = tpu.matmul %8, %9, %cst {dimension_numbers = #tpu.dot_dimension_numbers<[1], [0], [0], [1], [0, 0, 1, 1], [], []>} : vector<4x512xbf16>, vector<512x64xbf16>, vector<4x64xf32> -> vector<4x64xf32>
    %c0_6 = arith.constant 0 : index
    %c0_7 = arith.constant 0 : index
    %11 = vector.load %arg4[%c0_6, %c0_7] : memref<1x64xf32, #tpu.memory_space<vmem>>, vector<1x64xf32>
    %12 = vector.broadcast %11 : vector<1x64xf32> to vector<4x64xf32>
    %13 = arith.addf %10, %12 : vector<4x64xf32>
    %cst_8 = arith.constant 0.000000e+00 : f32
    %14 = vector.broadcast %cst_8 : f32 to vector<4x64xf32>
    %15 = arith.maximumf %13, %14 : vector<4x64xf32>
    %c0_9 = arith.constant 0 : index
    %c0_10 = arith.constant 0 : index
    %c0_11 = arith.constant 0 : index
    %c0_12 = arith.constant 0 : index
    %16 = vector.load %arg5[%c0_9, %c0_10, %c0_11, %c0_12] : memref<1x1x4x64xf32, #tpu.memory_space<vmem>>, vector<1x1x4x64xf32>
    %17 = vector.shape_cast %16 : vector<1x1x4x64xf32> to vector<4x64xf32>
    %18 = vector.shape_cast %15 : vector<4x64xf32> to vector<1x1x4x64xf32>
    tpu.vector_store %arg5[%c0_9, %c0_10, %c0_11, %c0_12], %18 {strides = array<i32>} : memref<1x1x4x64xf32, #tpu.memory_space<vmem>>, vector<1x1x4x64xf32>,
    return
  }
  func.func @transform_0(%arg0: i32, %arg1: i32) -> (i32, i32, i32, i32, i32) {
    %c0_i32 = arith.constant 0 : i32
    %c0_i32_0 = arith.constant 0 : i32
    %c0_i32_1 = arith.constant 0 : i32
    %c0_i32_2 = arith.constant 0 : i32
    return %arg0, %arg1, %c0_i32, %c0_i32_0, %c0_i32_1 : i32, i32, i32, i32, i32
  }
  func.func @transform_1(%arg0: i32, %arg1: i32) -> (i32, i32) {
    %c0_i32 = arith.constant 0 : i32
    %c0_i32_0 = arith.constant 0 : i32
    %c0_i32_1 = arith.constant 0 : i32
    return %c0_i32, %c0_i32_0 : i32, i32
  }
  func.func @transform_2(%arg0: i32, %arg1: i32) -> (i32, i32) {
    %c0_i32 = arith.constant 0 : i32
    %c0_i32_0 = arith.constant 0 : i32
    %c0_i32_1 = arith.constant 0 : i32
    return %c0_i32, %c0_i32_0 : i32, i32
  }
  func.func @transform_3(%arg0: i32, %arg1: i32) -> (i32, i32, i32, i32) {
    %c0_i32 = arith.constant 0 : i32
    %c0_i32_0 = arith.constant 0 : i32
    %c0_i32_1 = arith.constant 0 : i32
    return %arg0, %arg1, %c0_i32, %c0_i32_0 : i32, i32, i32, i32
  }
}

module attributes {stable_mosaic.version = 11 : i64} {
  func.func @_conv2x2_kernel(%arg0: i32, %arg1: i32, %arg2: memref<1x1x2x2x256xf32, #tpu.memory_space<vmem>>, %arg3: memref<1024x128xbf16, #tpu.memory_space<vmem>>, %arg4: memref<1x128xf32, #tpu.memory_space<vmem>>, %arg5: memref<1x1x1x128xf32, #tpu.memory_space<vmem>>) attributes {dimension_semantics = [#tpu.dimension_semantics<parallel>, #tpu.dimension_semantics<parallel>], iteration_bounds = array<i64: 2, 1>, scalar_prefetch = 0 : i64, scratch_operands = 0 : i64, tpu.core_type = #tpu.core_type<tc>, window_params = [{transform_indices = @transform_0, window_bounds = array<i64: 1, 1, 2, 2, 256>}, {pipeline_mode = #tpu.pipeline_mode<synchronous>, transform_indices = @transform_1, window_bounds = array<i64: 1024, 128>}, {pipeline_mode = #tpu.pipeline_mode<synchronous>, transform_indices = @transform_2, window_bounds = array<i64: 1, 128>}, {transform_indices = @transform_3, window_bounds = array<i64: 1, 1, 1, 128>}]} {
    %c0 = arith.constant 0 : index
    %c0_0 = arith.constant 0 : index
    %c0_1 = arith.constant 0 : index
    %c0_2 = arith.constant 0 : index
    %c0_3 = arith.constant 0 : index
    %0 = vector.load %arg2[%c0, %c0_0, %c0_1, %c0_2, %c0_3] : memref<1x1x2x2x256xf32, #tpu.memory_space<vmem>>, vector<1x1x2x2x256xf32>
    %1 = vector.shape_cast %0 : vector<1x1x2x2x256xf32> to vector<2x2x256xf32>
    %2 = vector.extract_strided_slice %1 {offsets = [0, 0, 0], sizes = [1, 1, 256], strides = [1, 1, 1]} : vector<2x2x256xf32> to vector<1x1x256xf32>
    %3 = vector.extract_strided_slice %1 {offsets = [0, 1, 0], sizes = [1, 1, 256], strides = [1, 1, 1]} : vector<2x2x256xf32> to vector<1x1x256xf32>
    %4 = vector.extract_strided_slice %1 {offsets = [1, 0, 0], sizes = [1, 1, 256], strides = [1, 1, 1]} : vector<2x2x256xf32> to vector<1x1x256xf32>
    %5 = vector.extract_strided_slice %1 {offsets = [1, 1, 0], sizes = [1, 1, 256], strides = [1, 1, 1]} : vector<2x2x256xf32> to vector<1x1x256xf32>
    %6 = tpu.concatenate %2, %3, %4, %5 in 2 : vector<1x1x256xf32>, vector<1x1x256xf32>, vector<1x1x256xf32>, vector<1x1x256xf32> -> vector<1x1x1024xf32>
    %7 = vector.shape_cast %6 : vector<1x1x1024xf32> to vector<1x1024xf32>
    %8 = arith.truncf %7 : vector<1x1024xf32> to vector<1x1024xbf16>
    %c0_4 = arith.constant 0 : index
    %c0_5 = arith.constant 0 : index
    %9 = vector.load %arg3[%c0_4, %c0_5] : memref<1024x128xbf16, #tpu.memory_space<vmem>>, vector<1024x128xbf16>
    %cst = arith.constant dense<0.000000e+00> : vector<1x128xf32>
    %10 = tpu.matmul %8, %9, %cst {dimension_numbers = #tpu.dot_dimension_numbers<[1], [0], [0], [1], [0, 0, 1, 1], [], []>} : vector<1x1024xbf16>, vector<1024x128xbf16>, vector<1x128xf32> -> vector<1x128xf32>
    %c0_6 = arith.constant 0 : index
    %c0_7 = arith.constant 0 : index
    %11 = vector.load %arg4[%c0_6, %c0_7] : memref<1x128xf32, #tpu.memory_space<vmem>>, vector<1x128xf32>
    %12 = arith.addf %10, %11 : vector<1x128xf32>
    %cst_8 = arith.constant 0.000000e+00 : f32
    %13 = vector.broadcast %cst_8 : f32 to vector<1x128xf32>
    %14 = arith.maximumf %12, %13 : vector<1x128xf32>
    %c0_9 = arith.constant 0 : index
    %c0_10 = arith.constant 0 : index
    %c0_11 = arith.constant 0 : index
    %c0_12 = arith.constant 0 : index
    %15 = vector.load %arg5[%c0_9, %c0_10, %c0_11, %c0_12] : memref<1x1x1x128xf32, #tpu.memory_space<vmem>>, vector<1x1x1x128xf32>
    %16 = vector.shape_cast %15 : vector<1x1x1x128xf32> to vector<1x128xf32>
    %17 = vector.shape_cast %14 : vector<1x128xf32> to vector<1x1x1x128xf32>
    tpu.vector_store %arg5[%c0_9, %c0_10, %c0_11, %c0_12], %17 {strides = array<i32>} : memref<1x1x1x128xf32, #tpu.memory_space<vmem>>, vector<1x1x1x128xf32>,
    return
  }
  func.func @transform_0(%arg0: i32, %arg1: i32) -> (i32, i32, i32, i32, i32) {
    %c0_i32 = arith.constant 0 : i32
    %c0_i32_0 = arith.constant 0 : i32
    %c0_i32_1 = arith.constant 0 : i32
    %c0_i32_2 = arith.constant 0 : i32
    return %arg0, %arg1, %c0_i32, %c0_i32_0, %c0_i32_1 : i32, i32, i32, i32, i32
  }
  func.func @transform_1(%arg0: i32, %arg1: i32) -> (i32, i32) {
    %c0_i32 = arith.constant 0 : i32
    %c0_i32_0 = arith.constant 0 : i32
    %c0_i32_1 = arith.constant 0 : i32
    return %c0_i32, %c0_i32_0 : i32, i32
  }
  func.func @transform_2(%arg0: i32, %arg1: i32) -> (i32, i32) {
    %c0_i32 = arith.constant 0 : i32
    %c0_i32_0 = arith.constant 0 : i32
    %c0_i32_1 = arith.constant 0 : i32
    return %c0_i32, %c0_i32_0 : i32, i32
  }
  func.func @transform_3(%arg0: i32, %arg1: i32) -> (i32, i32, i32, i32) {
    %c0_i32 = arith.constant 0 : i32
    %c0_i32_0 = arith.constant 0 : i32
    %c0_i32_1 = arith.constant 0 : i32
    return %arg0, %arg1, %c0_i32, %c0_i32_0 : i32, i32, i32, i32
  }
}

module attributes {stable_mosaic.version = 11 : i64} {
  func.func @_conv2x2_kernel(%arg0: i32, %arg1: i32, %arg2: memref<1x1x3x3x128xf32, #tpu.memory_space<vmem>>, %arg3: memref<512x256xbf16, #tpu.memory_space<vmem>>, %arg4: memref<1x256xf32, #tpu.memory_space<vmem>>, %arg5: memref<1x1x4x256xf32, #tpu.memory_space<vmem>>) attributes {dimension_semantics = [#tpu.dimension_semantics<parallel>, #tpu.dimension_semantics<parallel>], iteration_bounds = array<i64: 2, 1>, scalar_prefetch = 0 : i64, scratch_operands = 0 : i64, tpu.core_type = #tpu.core_type<tc>, window_params = [{transform_indices = @transform_0, window_bounds = array<i64: 1, 1, 3, 3, 128>}, {pipeline_mode = #tpu.pipeline_mode<synchronous>, transform_indices = @transform_1, window_bounds = array<i64: 512, 256>}, {pipeline_mode = #tpu.pipeline_mode<synchronous>, transform_indices = @transform_2, window_bounds = array<i64: 1, 256>}, {transform_indices = @transform_3, window_bounds = array<i64: 1, 1, 4, 256>}]} {
    %c0 = arith.constant 0 : index
    %c0_0 = arith.constant 0 : index
    %c0_1 = arith.constant 0 : index
    %c0_2 = arith.constant 0 : index
    %c0_3 = arith.constant 0 : index
    %0 = vector.load %arg2[%c0, %c0_0, %c0_1, %c0_2, %c0_3] : memref<1x1x3x3x128xf32, #tpu.memory_space<vmem>>, vector<1x1x3x3x128xf32>
    %1 = vector.shape_cast %0 : vector<1x1x3x3x128xf32> to vector<3x3x128xf32>
    %2 = vector.extract_strided_slice %1 {offsets = [0, 0, 0], sizes = [2, 2, 128], strides = [1, 1, 1]} : vector<3x3x128xf32> to vector<2x2x128xf32>
    %3 = vector.extract_strided_slice %1 {offsets = [0, 1, 0], sizes = [2, 2, 128], strides = [1, 1, 1]} : vector<3x3x128xf32> to vector<2x2x128xf32>
    %4 = vector.extract_strided_slice %1 {offsets = [1, 0, 0], sizes = [2, 2, 128], strides = [1, 1, 1]} : vector<3x3x128xf32> to vector<2x2x128xf32>
    %5 = vector.extract_strided_slice %1 {offsets = [1, 1, 0], sizes = [2, 2, 128], strides = [1, 1, 1]} : vector<3x3x128xf32> to vector<2x2x128xf32>
    %6 = tpu.concatenate %2, %3, %4, %5 in 2 : vector<2x2x128xf32>, vector<2x2x128xf32>, vector<2x2x128xf32>, vector<2x2x128xf32> -> vector<2x2x512xf32>
    %7 = vector.shape_cast %6 : vector<2x2x512xf32> to vector<4x512xf32>
    %8 = arith.truncf %7 : vector<4x512xf32> to vector<4x512xbf16>
    %c0_4 = arith.constant 0 : index
    %c0_5 = arith.constant 0 : index
    %9 = vector.load %arg3[%c0_4, %c0_5] : memref<512x256xbf16, #tpu.memory_space<vmem>>, vector<512x256xbf16>
    %cst = arith.constant dense<0.000000e+00> : vector<4x256xf32>
    %10 = tpu.matmul %8, %9, %cst {dimension_numbers = #tpu.dot_dimension_numbers<[1], [0], [0], [1], [0, 0, 1, 1], [], []>} : vector<4x512xbf16>, vector<512x256xbf16>, vector<4x256xf32> -> vector<4x256xf32>
    %c0_6 = arith.constant 0 : index
    %c0_7 = arith.constant 0 : index
    %11 = vector.load %arg4[%c0_6, %c0_7] : memref<1x256xf32, #tpu.memory_space<vmem>>, vector<1x256xf32>
    %12 = vector.broadcast %11 : vector<1x256xf32> to vector<4x256xf32>
    %13 = arith.addf %10, %12 : vector<4x256xf32>
    %cst_8 = arith.constant 0.000000e+00 : f32
    %14 = vector.broadcast %cst_8 : f32 to vector<4x256xf32>
    %15 = arith.maximumf %13, %14 : vector<4x256xf32>
    %c0_9 = arith.constant 0 : index
    %c0_10 = arith.constant 0 : index
    %c0_11 = arith.constant 0 : index
    %c0_12 = arith.constant 0 : index
    %16 = vector.load %arg5[%c0_9, %c0_10, %c0_11, %c0_12] : memref<1x1x4x256xf32, #tpu.memory_space<vmem>>, vector<1x1x4x256xf32>
    %17 = vector.shape_cast %16 : vector<1x1x4x256xf32> to vector<4x256xf32>
    %18 = vector.shape_cast %15 : vector<4x256xf32> to vector<1x1x4x256xf32>
    tpu.vector_store %arg5[%c0_9, %c0_10, %c0_11, %c0_12], %18 {strides = array<i32>} : memref<1x1x4x256xf32, #tpu.memory_space<vmem>>, vector<1x1x4x256xf32>,
    return
  }
  func.func @transform_0(%arg0: i32, %arg1: i32) -> (i32, i32, i32, i32, i32) {
    %c0_i32 = arith.constant 0 : i32
    %c0_i32_0 = arith.constant 0 : i32
    %c0_i32_1 = arith.constant 0 : i32
    %c0_i32_2 = arith.constant 0 : i32
    return %arg0, %arg1, %c0_i32, %c0_i32_0, %c0_i32_1 : i32, i32, i32, i32, i32
  }
  func.func @transform_1(%arg0: i32, %arg1: i32) -> (i32, i32) {
    %c0_i32 = arith.constant 0 : i32
    %c0_i32_0 = arith.constant 0 : i32
    %c0_i32_1 = arith.constant 0 : i32
    return %c0_i32, %c0_i32_0 : i32, i32
  }
  func.func @transform_2(%arg0: i32, %arg1: i32) -> (i32, i32) {
    %c0_i32 = arith.constant 0 : i32
    %c0_i32_0 = arith.constant 0 : i32
    %c0_i32_1 = arith.constant 0 : i32
    return %c0_i32, %c0_i32_0 : i32, i32
  }
  func.func @transform_3(%arg0: i32, %arg1: i32) -> (i32, i32, i32, i32) {
    %c0_i32 = arith.constant 0 : i32
    %c0_i32_0 = arith.constant 0 : i32
    %c0_i32_1 = arith.constant 0 : i32
    return %arg0, %arg1, %c0_i32, %c0_i32_0 : i32, i32, i32, i32
  }
}

module attributes {stable_mosaic.version = 11 : i64} {
  func.func @_conv2x2_kernel(%arg0: i32, %arg1: i32, %arg2: memref<1x1x4x4x64xf32, #tpu.memory_space<vmem>>, %arg3: memref<256x128xbf16, #tpu.memory_space<vmem>>, %arg4: memref<1x128xf32, #tpu.memory_space<vmem>>, %arg5: memref<1x1x9x128xf32, #tpu.memory_space<vmem>>) attributes {dimension_semantics = [#tpu.dimension_semantics<parallel>, #tpu.dimension_semantics<parallel>], iteration_bounds = array<i64: 2, 1>, scalar_prefetch = 0 : i64, scratch_operands = 0 : i64, tpu.core_type = #tpu.core_type<tc>, window_params = [{transform_indices = @transform_0, window_bounds = array<i64: 1, 1, 4, 4, 64>}, {pipeline_mode = #tpu.pipeline_mode<synchronous>, transform_indices = @transform_1, window_bounds = array<i64: 256, 128>}, {pipeline_mode = #tpu.pipeline_mode<synchronous>, transform_indices = @transform_2, window_bounds = array<i64: 1, 128>}, {transform_indices = @transform_3, window_bounds = array<i64: 1, 1, 9, 128>}]} {
    %c0 = arith.constant 0 : index
    %c0_0 = arith.constant 0 : index
    %c0_1 = arith.constant 0 : index
    %c0_2 = arith.constant 0 : index
    %c0_3 = arith.constant 0 : index
    %0 = vector.load %arg2[%c0, %c0_0, %c0_1, %c0_2, %c0_3] : memref<1x1x4x4x64xf32, #tpu.memory_space<vmem>>, vector<1x1x4x4x64xf32>
    %1 = vector.shape_cast %0 : vector<1x1x4x4x64xf32> to vector<4x4x64xf32>
    %2 = vector.extract_strided_slice %1 {offsets = [0, 0, 0], sizes = [3, 3, 64], strides = [1, 1, 1]} : vector<4x4x64xf32> to vector<3x3x64xf32>
    %3 = vector.extract_strided_slice %1 {offsets = [0, 1, 0], sizes = [3, 3, 64], strides = [1, 1, 1]} : vector<4x4x64xf32> to vector<3x3x64xf32>
    %4 = vector.extract_strided_slice %1 {offsets = [1, 0, 0], sizes = [3, 3, 64], strides = [1, 1, 1]} : vector<4x4x64xf32> to vector<3x3x64xf32>
    %5 = vector.extract_strided_slice %1 {offsets = [1, 1, 0], sizes = [3, 3, 64], strides = [1, 1, 1]} : vector<4x4x64xf32> to vector<3x3x64xf32>
    %6 = tpu.concatenate %2, %3, %4, %5 in 2 : vector<3x3x64xf32>, vector<3x3x64xf32>, vector<3x3x64xf32>, vector<3x3x64xf32> -> vector<3x3x256xf32>
    %7 = vector.shape_cast %6 : vector<3x3x256xf32> to vector<9x256xf32>
    %8 = arith.truncf %7 : vector<9x256xf32> to vector<9x256xbf16>
    %c0_4 = arith.constant 0 : index
    %c0_5 = arith.constant 0 : index
    %9 = vector.load %arg3[%c0_4, %c0_5] : memref<256x128xbf16, #tpu.memory_space<vmem>>, vector<256x128xbf16>
    %cst = arith.constant dense<0.000000e+00> : vector<9x128xf32>
    %10 = tpu.matmul %8, %9, %cst {dimension_numbers = #tpu.dot_dimension_numbers<[1], [0], [0], [1], [0, 0, 1, 1], [], []>} : vector<9x256xbf16>, vector<256x128xbf16>, vector<9x128xf32> -> vector<9x128xf32>
    %c0_6 = arith.constant 0 : index
    %c0_7 = arith.constant 0 : index
    %11 = vector.load %arg4[%c0_6, %c0_7] : memref<1x128xf32, #tpu.memory_space<vmem>>, vector<1x128xf32>
    %12 = vector.broadcast %11 : vector<1x128xf32> to vector<9x128xf32>
    %13 = arith.addf %10, %12 : vector<9x128xf32>
    %cst_8 = arith.constant 0.000000e+00 : f32
    %14 = vector.broadcast %cst_8 : f32 to vector<9x128xf32>
    %15 = arith.maximumf %13, %14 : vector<9x128xf32>
    %c0_9 = arith.constant 0 : index
    %c0_10 = arith.constant 0 : index
    %c0_11 = arith.constant 0 : index
    %c0_12 = arith.constant 0 : index
    %16 = vector.load %arg5[%c0_9, %c0_10, %c0_11, %c0_12] : memref<1x1x9x128xf32, #tpu.memory_space<vmem>>, vector<1x1x9x128xf32>
    %17 = vector.shape_cast %16 : vector<1x1x9x128xf32> to vector<9x128xf32>
    %18 = vector.shape_cast %15 : vector<9x128xf32> to vector<1x1x9x128xf32>
    tpu.vector_store %arg5[%c0_9, %c0_10, %c0_11, %c0_12], %18 {strides = array<i32>} : memref<1x1x9x128xf32, #tpu.memory_space<vmem>>, vector<1x1x9x128xf32>,
    return
  }
  func.func @transform_0(%arg0: i32, %arg1: i32) -> (i32, i32, i32, i32, i32) {
    %c0_i32 = arith.constant 0 : i32
    %c0_i32_0 = arith.constant 0 : i32
    %c0_i32_1 = arith.constant 0 : i32
    %c0_i32_2 = arith.constant 0 : i32
    return %arg0, %arg1, %c0_i32, %c0_i32_0, %c0_i32_1 : i32, i32, i32, i32, i32
  }
  func.func @transform_1(%arg0: i32, %arg1: i32) -> (i32, i32) {
    %c0_i32 = arith.constant 0 : i32
    %c0_i32_0 = arith.constant 0 : i32
    %c0_i32_1 = arith.constant 0 : i32
    return %c0_i32, %c0_i32_0 : i32, i32
  }
  func.func @transform_2(%arg0: i32, %arg1: i32) -> (i32, i32) {
    %c0_i32 = arith.constant 0 : i32
    %c0_i32_0 = arith.constant 0 : i32
    %c0_i32_1 = arith.constant 0 : i32
    return %c0_i32, %c0_i32_0 : i32, i32
  }
  func.func @transform_3(%arg0: i32, %arg1: i32) -> (i32, i32, i32, i32) {
    %c0_i32 = arith.constant 0 : i32
    %c0_i32_0 = arith.constant 0 : i32
    %c0_i32_1 = arith.constant 0 : i32
    return %arg0, %arg1, %c0_i32, %c0_i32_0 : i32, i32, i32, i32
  }
}

</mosaic_0001>

<llo_original>
// kernel: advanced_phase_estimation_forward.13
$region0: #{advanced_phase_estimation_forward.13}
  #allocation0 [shape = 'u32[]', space=smem, size = 0x4, offset = 0x4, fixed_abs, tag = 'smem constant byte address 0x4 - core index']
  #allocation1 [shape = 'u32[144,128]{1,0:T(1,128)}', space=vmem, size = 0x12000, scoped, tag = 'internal scratch']
  %s0 = inlined_call_operand.vmem [shape: f32[2,1,5,5,64], index: 0, kind: input, shape index: {}]
  %s1 = inlined_call_operand.vmem [shape: bf16[256,32], index: 1, kind: input, shape index: {}]
  %s2 = inlined_call_operand.vmem [shape: f32[1,32], index: 2, kind: input, shape index: {}]
  %s3 = inlined_call_operand.vmem [shape: f32[2,1,16,32], index: 3, kind: output, shape index: {}]
  %s4 = sld [smem:[#allocation0]]
  $region45: #{advanced_phase_estimation_forward.13} parent=0
    _
  %s6 = ssub.s32 1, %s4
  %s7 = scalar_select 0, %s6, %s4
  loop: start=0, step=1, limit=4
  $region2: #{advanced_phase_estimation_forward.13} parent=0 // loop_pre_header
    _
  $region3: #{advanced_phase_estimation_forward.13} parent=0 // loop_header
    %s9 = sphi 0, %s13
    %p10 = scmp.ge.s32.totalorder %s9, 4
    %s16 = sphi 0, %s28
    %s17 = sphi 0, %s24
    %s18 = sphi 0, %s16
    %s19 = sphi 0, %s17
    %s20 = sphi 0, %s18
    %s21 = sphi 0, %s19
    %s33 = sphi 0, %s35
    %s36 = sphi 0, %s33
    %s37 = sphi 0, %s36
    %s53 = sphi 0, %s37
    %s57 = sphi 0, %s57
    %s59 = sphi 0, %s57
    %s60 = sphi 0, %s59
    %s74 = sphi 0, %s60
    %s78 = sphi 0, %s78
    %s80 = sphi 0, %s78
    %s81 = sphi 0, %s80
    %s95 = sphi 0, %s81
    %s103 = sphi 0, %s105
    %s106 = sphi 0, %s103
    %s107 = sphi 0, %s106
    %s123 = sphi 0, %s107
  $region4: #{advanced_phase_estimation_forward.13} parent=0 // loop_header_branch
    %12 = sbr.rel (%p10) target = $region8
  $region5: #{advanced_phase_estimation_forward.13} parent=0 // loop_body
    %s14 = ssub.s32 %s9, 1
    %s15 = ssub.s32 %s9, 2
    %s22 = sadd.s32 1, %s17
    %p23 = scmp.ge.s32.totalorder %s22, 1
    %s24 = scalar_select %p23, 0, %s22
    %s25 = sadd.s32 1, %s16
    %s26 = scalar_select %p23, %s25, %s16
    %p27 = scmp.ge.s32.totalorder %s26, 2
    %s28 = scalar_select %p27, 0, %s26
    %s29 = ssub.s32 %s16, %s28
    %s30 = ssub.s32 %s17, %s24
    %s31 = sor.u32 %s29, %s30
    %p32 = scmp.eq.s32.totalorder %s31, 0
    %s34 = sadd.s32 %s33, 1
    %s35 = scalar_select %p32, %s33, %s34
    %p38 = pneg %p32
    %p39 = scmp.eq.s32.totalorder %s9, 1
    %p40 = por %p38, %p39
    %p41 = scmp.ne.s32.totalorder %s33, %s36
    %p42 = scmp.eq.s32.totalorder %s9, 0
    %p43 = por %p41, %p42
    %p44 = scmp.ne.s32.totalorder %s33, %s36
    %p45 = scmp.eq.s32.totalorder %s14, 1
    %p46 = por %p44, %p45
    %p47 = scmp.ne.s32.totalorder %s36, %s37
    %p48 = scmp.eq.s32.totalorder %s14, 0
    %p49 = por %p47, %p48
    %p50 = scmp.ne.s32.totalorder %s36, %s37
    %p51 = scmp.eq.s32.totalorder %s15, 1
    %p52 = por %p50, %p51
    %p54 = scmp.ne.s32.totalorder %s37, %s53
    %p55 = scmp.eq.s32.totalorder %s15, 0
    %p56 = por %p54, %p55
    %s58 = sadd.s32 %s57, 1
    %p61 = scmp.eq.s32.totalorder %s9, 1
    %p62 = scmp.ne.s32.totalorder %s57, %s59
    %p63 = scmp.eq.s32.totalorder %s9, 0
    %p64 = por %p62, %p63
    %p65 = scmp.ne.s32.totalorder %s57, %s59
    %p66 = scmp.eq.s32.totalorder %s14, 1
    %p67 = por %p65, %p66
    %p68 = scmp.ne.s32.totalorder %s59, %s60
    %p69 = scmp.eq.s32.totalorder %s14, 0
    %p70 = por %p68, %p69
    %p71 = scmp.ne.s32.totalorder %s59, %s60
    %p72 = scmp.eq.s32.totalorder %s15, 1
    %p73 = por %p71, %p72
    %p75 = scmp.ne.s32.totalorder %s60, %s74
    %p76 = scmp.eq.s32.totalorder %s15, 0
    %p77 = por %p75, %p76
    %s79 = sadd.s32 %s78, 1
    %p82 = scmp.eq.s32.totalorder %s9, 1
    %p83 = scmp.ne.s32.totalorder %s78, %s80
    %p84 = scmp.eq.s32.totalorder %s9, 0
    %p85 = por %p83, %p84
    %p86 = scmp.ne.s32.totalorder %s78, %s80
    %p87 = scmp.eq.s32.totalorder %s14, 1
    %p88 = por %p86, %p87
    %p89 = scmp.ne.s32.totalorder %s80, %s81
    %p90 = scmp.eq.s32.totalorder %s14, 0
    %p91 = por %p89, %p90
    %p92 = scmp.ne.s32.totalorder %s80, %s81
    %p93 = scmp.eq.s32.totalorder %s15, 1
    %p94 = por %p92, %p93
    %p96 = scmp.ne.s32.totalorder %s81, %s95
    %p97 = scmp.eq.s32.totalorder %s15, 0
    %p98 = por %p96, %p97
    %s99 = ssub.s32 %s16, %s28
    %s100 = ssub.s32 %s17, %s24
    %s101 = sor.u32 %s99, %s100
    %p102 = scmp.eq.s32.totalorder %s101, 0
    %s104 = sadd.s32 %s103, 1
    %s105 = scalar_select %p102, %s103, %s104
    %p108 = pneg %p102
    %p109 = scmp.eq.s32.totalorder %s9, 1
    %p110 = por %p108, %p109
    %p111 = scmp.ne.s32.totalorder %s103, %s106
    %p112 = scmp.eq.s32.totalorder %s9, 0
    %p113 = por %p111, %p112
    %p114 = scmp.ne.s32.totalorder %s103, %s106
    %p115 = scmp.eq.s32.totalorder %s14, 1
    %p116 = por %p114, %p115
    %p117 = scmp.ne.s32.totalorder %s106, %s107
    %p118 = scmp.eq.s32.totalorder %s14, 0
    %p119 = por %p117, %p118
    %p120 = scmp.ne.s32.totalorder %s106, %s107
    %p121 = scmp.eq.s32.totalorder %s15, 1
    %p122 = por %p120, %p121
    %p124 = scmp.ne.s32.totalorder %s107, %s123
    %p125 = scmp.eq.s32.totalorder %s15, 0
    %p126 = por %p124, %p125
    %p127 = scmp.le.s32.totalorder 1, %s9
    %p128 = scmp.lt.s32.totalorder %s9, 3
    %p129 = pnand %p127, %p128
    %p130 = pneg %p129
    // Predicated region
    $region9: #{advanced_phase_estimation_forward.13} parent=5 // pred_check
      _
    $region10: #{advanced_phase_estimation_forward.13} parent=5 // pred_check_branch
      %132 = sbr.rel (%p129) target = $region12
    $region11: #{advanced_phase_estimation_forward.13} parent=5 // pred_region
      %s133 = ssub.s32 %s9, 1
      // Predicated region
      $region13: #{advanced_phase_estimation_forward.13} parent=11 // pred_check
        %p134 = pneg %p70
      $region14: #{advanced_phase_estimation_forward.13} parent=11 // pred_check_branch
        %136 = sbr.rel (%p134) target = $region16
      $region15: #{advanced_phase_estimation_forward.13} parent=11 // pred_region
        _
      $region16: #{advanced_phase_estimation_forward.13} parent=11 // pred_fallthru
        _
      // Predicated region
      $region17: #{advanced_phase_estimation_forward.13} parent=11 // pred_check
        %p137 = pneg %p91
      $region18: #{advanced_phase_estimation_forward.13} parent=11 // pred_check_branch
        %139 = sbr.rel (%p137) target = $region20
      $region19: #{advanced_phase_estimation_forward.13} parent=11 // pred_region
        _
      $region20: #{advanced_phase_estimation_forward.13} parent=11 // pred_fallthru
        _
    $region12: #{advanced_phase_estimation_forward.13} parent=5 // pred_fallthru
      _
    %p140 = scmp.lt.s32.totalorder %s9, 2
    // Predicated region
    $region21: #{advanced_phase_estimation_forward.13} parent=5 // pred_check
      %p141 = pneg %p140
    $region22: #{advanced_phase_estimation_forward.13} parent=5 // pred_check_branch
      %143 = sbr.rel (%p141) target = $region24
    $region23: #{advanced_phase_estimation_forward.13} parent=5 // pred_region
      // Predicated region
      $region25: #{advanced_phase_estimation_forward.13} parent=23 // pred_check
        %p144 = pneg %p43
      $region26: #{advanced_phase_estimation_forward.13} parent=23 // pred_check_branch
        %146 = sbr.rel (%p144) target = $region28
      $region27: #{advanced_phase_estimation_forward.13} parent=23 // pred_region
        %p147 = scmp.lt.s32.totalorder %s16, 1
        %s148 = scalar_select %p147, %s16, 1
        %p149 = scmp.lt.s32.totalorder %s17, 0
        %s150 = scalar_select %p149, %s17, 0
        %s151 = smul.addr %s150, 5
        %s152 = smul.addr %s148, 5
        %s153 = sadd.s32 %s151, %s152
        %s154 = smul.addr %s153, 8
        %s155 = scalar_lea.vmem %s0, %s154
      $region28: #{advanced_phase_estimation_forward.13} parent=23 // pred_fallthru
        _
    $region24: #{advanced_phase_estimation_forward.13} parent=5 // pred_fallthru
      _
    %p156 = scmp.le.s32.totalorder 1, %s9
    %p157 = scmp.lt.s32.totalorder %s9, 3
    %p158 = pnand %p156, %p157
    %p159 = pneg %p158
    // Predicated region
    $region29: #{advanced_phase_estimation_forward.13} parent=5 // pred_check
      _
    $region30: #{advanced_phase_estimation_forward.13} parent=5 // pred_check_branch
      %161 = sbr.rel (%p158) target = $region32
    $region31: #{advanced_phase_estimation_forward.13} parent=5 // pred_region
      %s162 = ssub.s32 %s9, 1
      %p163 = scmp.lt.s32.totalorder %s18, 1
      %s164 = scalar_select %p163, %s18, 1
      %p165 = scmp.lt.s32.totalorder %s19, 0
      %s166 = scalar_select %p165, %s19, 0
      %s167 = smul.addr %s166, 5
      %s168 = smul.addr %s164, 5
      %s169 = sadd.s32 %s167, %s168
      %s170 = smul.addr %s169, 8
      %s171 = scalar_lea.vmem %s0, %s170
      %p172 = pneg %p49
      %p173 = pneg %p46
      %p174 = pneg %p70
      %p175 = pneg %p67
      %p176 = pneg %p91
      %p177 = pneg %p88
      %p178 = pneg %p119
      %p179 = pneg %p116
      %p180 = scmp.lt.s32.totalorder %s18, 1
      %s181 = scalar_select %p180, %s18, 1
      %p182 = scmp.lt.s32.totalorder %s19, 0
      %s183 = scalar_select %p182, %s19, 0
      %s184 = smul.addr %s183, 2
      %s185 = smul.addr %s181, 2
      %s186 = sadd.s32 %s184, %s185
      %s187 = smul.addr %s186, 8
      %s188 = scalar_lea.vmem %s3, %s187
      %p189 = scmp.lt.s32.totalorder %s18, 1
      %s190 = scalar_select %p189, %s18, 1
      %p191 = scmp.lt.s32.totalorder %s19, 0
      %s192 = scalar_select %p191, %s19, 0
      %s193 = smul.addr %s192, 5
      %s194 = smul.addr %s190, 5
      %s195 = sadd.s32 %s193, %s194
      %s196 = smul.addr %s195, 8
      %s197 = scalar_lea.vmem %s0, %s196
      %p198 = scmp.lt.s32.totalorder %s18, 1
      %s199 = scalar_select %p198, %s18, 1
      %p200 = scmp.lt.s32.totalorder %s19, 0
      %s201 = scalar_select %p200, %s19, 0
      %s202 = smul.addr %s201, 2
      %s203 = smul.addr %s199, 2
      %s204 = sadd.s32 %s202, %s203
      %s205 = smul.addr %s204, 8
      %s206 = scalar_lea.vmem %s3, %s205
      %v208 = vld [vmem:[%s197] sm:$0x1f]
      %v209 = vld [vmem:[%s197 + $0x8] sm:$0x1f]
      %v210 = vld [vmem:[%s197 + $0x10] sm:$0x1f]
      %v211 = vld [vmem:[%s197 + $0x18] sm:$0x1f]
      %v212 = vld [vmem:[%s197 + $0x20] sm:$0x1f]
      %v217 = vrot.slane %v208, 1
      %v218 = vrot.slane %v209, 1
      %v219 = vrot.slane %v210, 1
      %v220 = vrot.slane %v211, 1
      %221 = vrot.lane.b32.xlu0 %v217, 64
      %v222 = vpop.permute.xlu0 %221
      %223 = vrot.lane.b32.xlu0 %v218, 64
      %v224 = vpop.permute.xlu0 %223
      %225 = vrot.lane.b32.xlu0 %v219, 64
      %v226 = vpop.permute.xlu0 %225
      %227 = vrot.lane.b32.xlu0 %v220, 64
      %v228 = vpop.permute.xlu0 %227
      %v234 = vrot.slane %v212, 1
      %235 = vrot.lane.b32.xlu0 %v234, 64
      %v236 = vpop.permute.xlu0 %235
      %vm238 = vcmask 523264
      %v239 = vsel %vm238, %v208, %v222
      %v240 = vsel %vm238, %v209, %v224
      %v241 = vsel %vm238, %v210, %v226
      %v242 = vsel %vm238, %v211, %v228
      %v243 = vsel %vm238, %v212, %v236
      %v249 = vcombine.low %v239, %v240
      %v250 = vcombine.low %v240, %v241
      %v251 = vcombine.low %v241, %v242
      %v252 = vcombine.low %v242, %v243
      %v253 = vcombine.low %v249, %v250
      %v254 = vcombine.high %v249, %v250
      %v255 = vcombine.low %v251, %v252
      %v256 = vcombine.high %v251, %v252
      %v261 = vpack.c.bf16 %v255, %v253
      %v262 = vpack.c.bf16 %v256, %v254
      %v263 = vld [vmem:[%s1] sm:$0xf]
      %v264 = vld [vmem:[%s1 + $0x4] sm:$0xf]
      %v265 = vld [vmem:[%s1 + $0x8] sm:$0xf]
      %v266 = vld [vmem:[%s1 + $0xc] sm:$0xf]
      %v267 = vld [vmem:[%s1 + $0x10] sm:$0xf]
      %v268 = vld [vmem:[%s1 + $0x14] sm:$0xf]
      %v269 = vld [vmem:[%s1 + $0x18] sm:$0xf]
      %v270 = vld [vmem:[%s1 + $0x1c] sm:$0xf]
      %v271 = vld [vmem:[%s1 + $0x20] sm:$0xf]
      %v272 = vld [vmem:[%s1 + $0x24] sm:$0xf]
      %v273 = vld [vmem:[%s1 + $0x28] sm:$0xf]
      %v274 = vld [vmem:[%s1 + $0x2c] sm:$0xf]
      %v275 = vld [vmem:[%s1 + $0x30] sm:$0xf]
      %v276 = vld [vmem:[%s1 + $0x34] sm:$0xf]
      %v277 = vld [vmem:[%s1 + $0x38] sm:$0xf]
      %v278 = vld [vmem:[%s1 + $0x3c] sm:$0xf]
      %v279 = vld [vmem:[%s1 + $0x40] sm:$0xf]
      %v280 = vld [vmem:[%s1 + $0x44] sm:$0xf]
      %v281 = vld [vmem:[%s1 + $0x48] sm:$0xf]
      %v282 = vld [vmem:[%s1 + $0x4c] sm:$0xf]
      %v283 = vld [vmem:[%s1 + $0x50] sm:$0xf]
      %v284 = vld [vmem:[%s1 + $0x54] sm:$0xf]
      %v285 = vld [vmem:[%s1 + $0x58] sm:$0xf]
      %v286 = vld [vmem:[%s1 + $0x5c] sm:$0xf]
      %v287 = vld [vmem:[%s1 + $0x60] sm:$0xf]
      %v288 = vld [vmem:[%s1 + $0x64] sm:$0xf]
      %v289 = vld [vmem:[%s1 + $0x68] sm:$0xf]
      %v290 = vld [vmem:[%s1 + $0x6c] sm:$0xf]
      %v291 = vld [vmem:[%s1 + $0x70] sm:$0xf]
      %v292 = vld [vmem:[%s1 + $0x74] sm:$0xf]
      %v293 = vld [vmem:[%s1 + $0x78] sm:$0xf]
      %v294 = vld [vmem:[%s1 + $0x7c] sm:$0xf]
      %v295 = vld [vmem:[%s2] sm:$0x1]
      %v297 = vlaneseq
      %v298 = vshrl.u32 %v297, 7
      %v299 = vsub.s32 0, %v298
      %v300 = vrot.slane %v295, %v299
      %v334 = vunpack.c.l.b16 %v263
      %v335 = vunpack.c.l.b16 %v264
      %v336 = vunpack.c.l.b16 %v265
      %v337 = vunpack.c.l.b16 %v266
      %v338 = vunpack.c.l.b16 %v267
      %v339 = vunpack.c.l.b16 %v268
      %v340 = vunpack.c.l.b16 %v269
      %v341 = vunpack.c.l.b16 %v270
      %v342 = vunpack.c.l.b16 %v271
      %v343 = vunpack.c.l.b16 %v272
      %v344 = vunpack.c.l.b16 %v273
      %v345 = vunpack.c.l.b16 %v274
      %v346 = vunpack.c.l.b16 %v275
      %v347 = vunpack.c.l.b16 %v276
      %v348 = vunpack.c.l.b16 %v277
      %v349 = vunpack.c.l.b16 %v278
      %v350 = vunpack.c.l.b16 %v279
      %v351 = vunpack.c.l.b16 %v280
      %v352 = vunpack.c.l.b16 %v281
      %v353 = vunpack.c.l.b16 %v282
      %v354 = vunpack.c.l.b16 %v283
      %v355 = vunpack.c.l.b16 %v284
      %v356 = vunpack.c.l.b16 %v285
      %v357 = vunpack.c.l.b16 %v286
      %v358 = vunpack.c.l.b16 %v287
      %v359 = vunpack.c.l.b16 %v288
      %v360 = vunpack.c.l.b16 %v289
      %v361 = vunpack.c.l.b16 %v290
      %v362 = vunpack.c.l.b16 %v291
      %v363 = vunpack.c.l.b16 %v292
      %v364 = vunpack.c.l.b16 %v293
      %v365 = vunpack.c.l.b16 %v294
      %v366 = vpack.c.b16 %v335, %v334
      %v367 = vpack.c.b16 %v337, %v336
      %v368 = vpack.c.b16 %v339, %v338
      %v369 = vpack.c.b16 %v341, %v340
      %v370 = vpack.c.b16 %v343, %v342
      %v371 = vpack.c.b16 %v345, %v344
      %v372 = vpack.c.b16 %v347, %v346
      %v373 = vpack.c.b16 %v349, %v348
      %v374 = vpack.c.b16 %v351, %v350
      %v375 = vpack.c.b16 %v353, %v352
      %v376 = vpack.c.b16 %v355, %v354
      %v377 = vpack.c.b16 %v357, %v356
      %v378 = vpack.c.b16 %v359, %v358
      %v379 = vpack.c.b16 %v361, %v360
      %v380 = vpack.c.b16 %v363, %v362
      %v381 = vpack.c.b16 %v365, %v364
      %398 = vmatprep.subr.bf16.mxu0 0
      %399 = vmatpush1.bf16.msra.mxu0 %v373
      %400 = vmatprep.subr.bf16.mxu0 0
      %401 = vmatpush1.bf16.msra.mxu0 %v372
      %402 = vmatprep.subr.bf16.mxu0 0
      %403 = vmatpush1.bf16.msra.mxu0 %v371
      %404 = vmatprep.subr.bf16.mxu0 0
      %405 = vmatpush1.bf16.msra.mxu0 %v370
      %406 = vmatprep.subr.bf16.mxu0 0
      %407 = vmatpush1.bf16.msra.mxu0 %v369
      %408 = vmatprep.subr.bf16.mxu0 0
      %409 = vmatpush1.bf16.msra.mxu0 %v368
      %410 = vmatprep.subr.bf16.mxu0 0
      %411 = vmatpush1.bf16.msra.mxu0 %v367
      %412 = vmatprep.subr.bf16.mxu0 0
      %413 = vmatpush1.bf16.msra.mxu0 %v366
      %414 = vmatprep.subr.bf16.mxu0 0
      %415 = vmatpush2.bf16.msra.mxu0 %v381
      %416 = vmatprep.subr.bf16.mxu0 0
      %417 = vmatpush2.bf16.msra.mxu0 %v380
      %418 = vmatprep.subr.bf16.mxu0 0
      %419 = vmatpush2.bf16.msra.mxu0 %v379
      %420 = vmatprep.subr.bf16.mxu0 0
      %421 = vmatpush2.bf16.msra.mxu0 %v378
      %422 = vmatprep.subr.bf16.mxu0 0
      %423 = vmatpush2.bf16.msra.mxu0 %v377
      %424 = vmatprep.subr.bf16.mxu0 0
      %425 = vmatpush2.bf16.msra.mxu0 %v376
      %426 = vmatprep.subr.bf16.mxu0 0
      %427 = vmatpush2.bf16.msra.mxu0 %v375
      %428 = vmatprep.subr.bf16.mxu0 0
      %429 = vmatpush2.bf16.msra.mxu0 %v374
      %430 = vmatprep.mubr.bf16.mxu0 %v262
      %431 = vmatmul.mubr.bf16.gmra.mxu0 %v261
      %v432 = vpop.f32.mrf.mxu0
      %v433 = vadd.f32 %v300, %v432
      %v434 = vpop.f32.mrf.mxu0
      %v435 = vpop.f32.mrf.mxu0
      %v436 = vadd.f32 %v300, %v435
      %v437 = vpop.f32.mrf.mxu0
      %438 = vdwg.mxu0
      %v439 = vmax.f32 %v433, 0.0
      %v440 = vmax.f32 %v436, 0.0
      %vm441 = vcmask 261120
      %442 = vst.msk [vmem:[%s206] sm:$0xff] %vm441, %v439
      %443 = vst.msk [vmem:[%s206 + $0x8] sm:$0xff] %vm441, %v440
      %p444 = scmp.lt.s32.totalorder %s18, 1
      %s445 = scalar_select %p444, %s18, 1
      %p446 = scmp.lt.s32.totalorder %s19, 0
      %s447 = scalar_select %p446, %s19, 0
      %s448 = smul.addr %s447, 2
      %s449 = smul.addr %s445, 2
      %s450 = sadd.s32 %s448, %s449
      %s451 = smul.addr %s450, 8
      %s452 = scalar_lea.vmem %s3, %s451
      // Predicated region
      $region33: #{advanced_phase_estimation_forward.13} parent=31 // pred_check
        %p453 = pneg %p116
      $region34: #{advanced_phase_estimation_forward.13} parent=31 // pred_check_branch
        %455 = sbr.rel (%p453) target = $region36
      $region35: #{advanced_phase_estimation_forward.13} parent=31 // pred_region
        _
      $region36: #{advanced_phase_estimation_forward.13} parent=31 // pred_fallthru
        _
    $region32: #{advanced_phase_estimation_forward.13} parent=5 // pred_fallthru
      _
    %p456 = scmp.le.s32.totalorder 2, %s9
    // Predicated region
    $region37: #{advanced_phase_estimation_forward.13} parent=5 // pred_check
      %p457 = pneg %p456
    $region38: #{advanced_phase_estimation_forward.13} parent=5 // pred_check_branch
      %459 = sbr.rel (%p457) target = $region40
    $region39: #{advanced_phase_estimation_forward.13} parent=5 // pred_region
      %s460 = ssub.s32 %s9, 2
      // Predicated region
      $region41: #{advanced_phase_estimation_forward.13} parent=39 // pred_check
        %p461 = pneg %p122
      $region42: #{advanced_phase_estimation_forward.13} parent=39 // pred_check_branch
        %463 = sbr.rel (%p461) target = $region44
      $region43: #{advanced_phase_estimation_forward.13} parent=39 // pred_region
        %p464 = scmp.lt.s32.totalorder %s20, 1
        %s465 = scalar_select %p464, %s20, 1
        %p466 = scmp.lt.s32.totalorder %s21, 0
        %s467 = scalar_select %p466, %s21, 0
        %s468 = smul.addr %s467, 2
        %s469 = smul.addr %s465, 2
        %s470 = sadd.s32 %s468, %s469
        %s471 = smul.addr %s470, 8
        %s472 = scalar_lea.vmem %s3, %s471
      $region44: #{advanced_phase_estimation_forward.13} parent=39 // pred_fallthru
        _
    $region40: #{advanced_phase_estimation_forward.13} parent=5 // pred_fallthru
      _
  $region6: #{advanced_phase_estimation_forward.13} parent=0 // loop_footer
    %s13 = sadd.s32 1, %s9
  $region7: #{advanced_phase_estimation_forward.13} parent=0 // loop_footer_branch
    %8 = sbr.rel target = $region3
  $region8: #{advanced_phase_estimation_forward.13} parent=0 // loop_exit
    _

// kernel: advanced_phase_estimation_forward.12
$region0: #{advanced_phase_estimation_forward.12}
  #allocation0 [shape = 'u32[]', space=smem, size = 0x4, offset = 0x4, fixed_abs, tag = 'smem constant byte address 0x4 - core index']
  #allocation1 [shape = 'u32[144,128]{1,0:T(1,128)}', space=vmem, size = 0x12000, scoped, tag = 'internal scratch']
  %s0 = inlined_call_operand.vmem [shape: f32[2,1,9,9,8], index: 0, kind: input, shape index: {}]
  %s1 = inlined_call_operand.vmem [shape: bf16[32,16], index: 1, kind: input, shape index: {}]
  %s2 = inlined_call_operand.vmem [shape: f32[1,16], index: 2, kind: input, shape index: {}]
  %s3 = inlined_call_operand.vmem [shape: f32[2,1,64,16], index: 3, kind: output, shape index: {}]
  %s4 = sld [smem:[#allocation0]]
  $region45: #{advanced_phase_estimation_forward.12} parent=0
    _
  %s6 = ssub.s32 1, %s4
  %s7 = scalar_select 0, %s6, %s4
  loop: start=0, step=1, limit=4
  $region2: #{advanced_phase_estimation_forward.12} parent=0 // loop_pre_header
    _
  $region3: #{advanced_phase_estimation_forward.12} parent=0 // loop_header
    %s9 = sphi 0, %s13
    %p10 = scmp.ge.s32.totalorder %s9, 4
    %s16 = sphi 0, %s28
    %s17 = sphi 0, %s24
    %s18 = sphi 0, %s16
    %s19 = sphi 0, %s17
    %s20 = sphi 0, %s18
    %s21 = sphi 0, %s19
    %s33 = sphi 0, %s35
    %s36 = sphi 0, %s33
    %s37 = sphi 0, %s36
    %s53 = sphi 0, %s37
    %s57 = sphi 0, %s57
    %s59 = sphi 0, %s57
    %s60 = sphi 0, %s59
    %s74 = sphi 0, %s60
    %s78 = sphi 0, %s78
    %s80 = sphi 0, %s78
    %s81 = sphi 0, %s80
    %s95 = sphi 0, %s81
    %s103 = sphi 0, %s105
    %s106 = sphi 0, %s103
    %s107 = sphi 0, %s106
    %s123 = sphi 0, %s107
  $region4: #{advanced_phase_estimation_forward.12} parent=0 // loop_header_branch
    %12 = sbr.rel (%p10) target = $region8
  $region5: #{advanced_phase_estimation_forward.12} parent=0 // loop_body
    %s14 = ssub.s32 %s9, 1
    %s15 = ssub.s32 %s9, 2
    %s22 = sadd.s32 1, %s17
    %p23 = scmp.ge.s32.totalorder %s22, 1
    %s24 = scalar_select %p23, 0, %s22
    %s25 = sadd.s32 1, %s16
    %s26 = scalar_select %p23, %s25, %s16
    %p27 = scmp.ge.s32.totalorder %s26, 2
    %s28 = scalar_select %p27, 0, %s26
    %s29 = ssub.s32 %s16, %s28
    %s30 = ssub.s32 %s17, %s24
    %s31 = sor.u32 %s29, %s30
    %p32 = scmp.eq.s32.totalorder %s31, 0
    %s34 = sadd.s32 %s33, 1
    %s35 = scalar_select %p32, %s33, %s34
    %p38 = pneg %p32
    %p39 = scmp.eq.s32.totalorder %s9, 1
    %p40 = por %p38, %p39
    %p41 = scmp.ne.s32.totalorder %s33, %s36
    %p42 = scmp.eq.s32.totalorder %s9, 0
    %p43 = por %p41, %p42
    %p44 = scmp.ne.s32.totalorder %s33, %s36
    %p45 = scmp.eq.s32.totalorder %s14, 1
    %p46 = por %p44, %p45
    %p47 = scmp.ne.s32.totalorder %s36, %s37
    %p48 = scmp.eq.s32.totalorder %s14, 0
    %p49 = por %p47, %p48
    %p50 = scmp.ne.s32.totalorder %s36, %s37
    %p51 = scmp.eq.s32.totalorder %s15, 1
    %p52 = por %p50, %p51
    %p54 = scmp.ne.s32.totalorder %s37, %s53
    %p55 = scmp.eq.s32.totalorder %s15, 0
    %p56 = por %p54, %p55
    %s58 = sadd.s32 %s57, 1
    %p61 = scmp.eq.s32.totalorder %s9, 1
    %p62 = scmp.ne.s32.totalorder %s57, %s59
    %p63 = scmp.eq.s32.totalorder %s9, 0
    %p64 = por %p62, %p63
    %p65 = scmp.ne.s32.totalorder %s57, %s59
    %p66 = scmp.eq.s32.totalorder %s14, 1
    %p67 = por %p65, %p66
    %p68 = scmp.ne.s32.totalorder %s59, %s60
    %p69 = scmp.eq.s32.totalorder %s14, 0
    %p70 = por %p68, %p69
    %p71 = scmp.ne.s32.totalorder %s59, %s60
    %p72 = scmp.eq.s32.totalorder %s15, 1
    %p73 = por %p71, %p72
    %p75 = scmp.ne.s32.totalorder %s60, %s74
    %p76 = scmp.eq.s32.totalorder %s15, 0
    %p77 = por %p75, %p76
    %s79 = sadd.s32 %s78, 1
    %p82 = scmp.eq.s32.totalorder %s9, 1
    %p83 = scmp.ne.s32.totalorder %s78, %s80
    %p84 = scmp.eq.s32.totalorder %s9, 0
    %p85 = por %p83, %p84
    %p86 = scmp.ne.s32.totalorder %s78, %s80
    %p87 = scmp.eq.s32.totalorder %s14, 1
    %p88 = por %p86, %p87
    %p89 = scmp.ne.s32.totalorder %s80, %s81
    %p90 = scmp.eq.s32.totalorder %s14, 0
    %p91 = por %p89, %p90
    %p92 = scmp.ne.s32.totalorder %s80, %s81
    %p93 = scmp.eq.s32.totalorder %s15, 1
    %p94 = por %p92, %p93
    %p96 = scmp.ne.s32.totalorder %s81, %s95
    %p97 = scmp.eq.s32.totalorder %s15, 0
    %p98 = por %p96, %p97
    %s99 = ssub.s32 %s16, %s28
    %s100 = ssub.s32 %s17, %s24
    %s101 = sor.u32 %s99, %s100
    %p102 = scmp.eq.s32.totalorder %s101, 0
    %s104 = sadd.s32 %s103, 1
    %s105 = scalar_select %p102, %s103, %s104
    %p108 = pneg %p102
    %p109 = scmp.eq.s32.totalorder %s9, 1
    %p110 = por %p108, %p109
    %p111 = scmp.ne.s32.totalorder %s103, %s106
    %p112 = scmp.eq.s32.totalorder %s9, 0
    %p113 = por %p111, %p112
    %p114 = scmp.ne.s32.totalorder %s103, %s106
    %p115 = scmp.eq.s32.totalorder %s14, 1
    %p116 = por %p114, %p115
    %p117 = scmp.ne.s32.totalorder %s106, %s107
    %p118 = scmp.eq.s32.totalorder %s14, 0
    %p119 = por %p117, %p118
    %p120 = scmp.ne.s32.totalorder %s106, %s107
    %p121 = scmp.eq.s32.totalorder %s15, 1
    %p122 = por %p120, %p121
    %p124 = scmp.ne.s32.totalorder %s107, %s123
    %p125 = scmp.eq.s32.totalorder %s15, 0
    %p126 = por %p124, %p125
    %p127 = scmp.le.s32.totalorder 1, %s9
    %p128 = scmp.lt.s32.totalorder %s9, 3
    %p129 = pnand %p127, %p128
    %p130 = pneg %p129
    // Predicated region
    $region9: #{advanced_phase_estimation_forward.12} parent=5 // pred_check
      _
    $region10: #{advanced_phase_estimation_forward.12} parent=5 // pred_check_branch
      %132 = sbr.rel (%p129) target = $region12
    $region11: #{advanced_phase_estimation_forward.12} parent=5 // pred_region
      %s133 = ssub.s32 %s9, 1
      // Predicated region
      $region13: #{advanced_phase_estimation_forward.12} parent=11 // pred_check
        %p134 = pneg %p70
      $region14: #{advanced_phase_estimation_forward.12} parent=11 // pred_check_branch
        %136 = sbr.rel (%p134) target = $region16
      $region15: #{advanced_phase_estimation_forward.12} parent=11 // pred_region
        _
      $region16: #{advanced_phase_estimation_forward.12} parent=11 // pred_fallthru
        _
      // Predicated region
      $region17: #{advanced_phase_estimation_forward.12} parent=11 // pred_check
        %p137 = pneg %p91
      $region18: #{advanced_phase_estimation_forward.12} parent=11 // pred_check_branch
        %139 = sbr.rel (%p137) target = $region20
      $region19: #{advanced_phase_estimation_forward.12} parent=11 // pred_region
        _
      $region20: #{advanced_phase_estimation_forward.12} parent=11 // pred_fallthru
        _
    $region12: #{advanced_phase_estimation_forward.12} parent=5 // pred_fallthru
      _
    %p140 = scmp.lt.s32.totalorder %s9, 2
    // Predicated region
    $region21: #{advanced_phase_estimation_forward.12} parent=5 // pred_check
      %p141 = pneg %p140
    $region22: #{advanced_phase_estimation_forward.12} parent=5 // pred_check_branch
      %143 = sbr.rel (%p141) target = $region24
    $region23: #{advanced_phase_estimation_forward.12} parent=5 // pred_region
      // Predicated region
      $region25: #{advanced_phase_estimation_forward.12} parent=23 // pred_check
        %p144 = pneg %p43
      $region26: #{advanced_phase_estimation_forward.12} parent=23 // pred_check_branch
        %146 = sbr.rel (%p144) target = $region28
      $region27: #{advanced_phase_estimation_forward.12} parent=23 // pred_region
        %p147 = scmp.lt.s32.totalorder %s16, 1
        %s148 = scalar_select %p147, %s16, 1
        %p149 = scmp.lt.s32.totalorder %s17, 0
        %s150 = scalar_select %p149, %s17, 0
        %s151 = smul.addr %s150, 18
        %s152 = smul.addr %s148, 18
        %s153 = sadd.s32 %s151, %s152
        %s154 = smul.addr %s153, 8
        %s155 = scalar_lea.vmem %s0, %s154
      $region28: #{advanced_phase_estimation_forward.12} parent=23 // pred_fallthru
        _
    $region24: #{advanced_phase_estimation_forward.12} parent=5 // pred_fallthru
      _
    %p156 = scmp.le.s32.totalorder 1, %s9
    %p157 = scmp.lt.s32.totalorder %s9, 3
    %p158 = pnand %p156, %p157
    %p159 = pneg %p158
    // Predicated region
    $region29: #{advanced_phase_estimation_forward.12} parent=5 // pred_check
      _
    $region30: #{advanced_phase_estimation_forward.12} parent=5 // pred_check_branch
      %161 = sbr.rel (%p158) target = $region32
    $region31: #{advanced_phase_estimation_forward.12} parent=5 // pred_region
      %s162 = ssub.s32 %s9, 1
      %p163 = scmp.lt.s32.totalorder %s18, 1
      %s164 = scalar_select %p163, %s18, 1
      %p165 = scmp.lt.s32.totalorder %s19, 0
      %s166 = scalar_select %p165, %s19, 0
      %s167 = smul.addr %s166, 18
      %s168 = smul.addr %s164, 18
      %s169 = sadd.s32 %s167, %s168
      %s170 = smul.addr %s169, 8
      %s171 = scalar_lea.vmem %s0, %s170
      %p172 = pneg %p49
      %p173 = pneg %p46
      %p174 = pneg %p70
      %p175 = pneg %p67
      %p176 = pneg %p91
      %p177 = pneg %p88
      %p178 = pneg %p119
      %p179 = pneg %p116
      %p180 = scmp.lt.s32.totalorder %s18, 1
      %s181 = scalar_select %p180, %s18, 1
      %p182 = scmp.lt.s32.totalorder %s19, 0
      %s183 = scalar_select %p182, %s19, 0
      %s184 = smul.addr %s183, 8
      %s185 = smul.addr %s181, 8
      %s186 = sadd.s32 %s184, %s185
      %s187 = smul.addr %s186, 8
      %s188 = scalar_lea.vmem %s3, %s187
      %p189 = scmp.lt.s32.totalorder %s18, 1
      %s190 = scalar_select %p189, %s18, 1
      %p191 = scmp.lt.s32.totalorder %s19, 0
      %s192 = scalar_select %p191, %s19, 0
      %s193 = smul.addr %s192, 18
      %s194 = smul.addr %s190, 18
      %s195 = sadd.s32 %s193, %s194
      %s196 = smul.addr %s195, 8
      %s197 = scalar_lea.vmem %s0, %s196
      %p198 = scmp.lt.s32.totalorder %s18, 1
      %s199 = scalar_select %p198, %s18, 1
      %p200 = scmp.lt.s32.totalorder %s19, 0
      %s201 = scalar_select %p200, %s19, 0
      %s202 = smul.addr %s201, 8
      %s203 = smul.addr %s199, 8
      %s204 = sadd.s32 %s202, %s203
      %s205 = smul.addr %s204, 8
      %s206 = scalar_lea.vmem %s3, %s205
      %v208 = vld [vmem:[%s197] sm:$0xff]
      %v209 = vld [vmem:[%s197 + $0x8] sm:$0x1]
      %v210 = vld [vmem:[%s197 + $0x10] sm:$0xff]
      %v211 = vld [vmem:[%s197 + $0x18] sm:$0x1]
      %v212 = vld [vmem:[%s197 + $0x20] sm:$0xff]
      %v213 = vld [vmem:[%s197 + $0x28] sm:$0x1]
      %v214 = vld [vmem:[%s197 + $0x30] sm:$0xff]
      %v215 = vld [vmem:[%s197 + $0x38] sm:$0x1]
      %v216 = vld [vmem:[%s197 + $0x40] sm:$0xff]
      %v217 = vld [vmem:[%s197 + $0x48] sm:$0x1]
      %v218 = vld [vmem:[%s197 + $0x50] sm:$0xff]
      %v219 = vld [vmem:[%s197 + $0x58] sm:$0x1]
      %v220 = vld [vmem:[%s197 + $0x60] sm:$0xff]
      %v221 = vld [vmem:[%s197 + $0x68] sm:$0x1]
      %v222 = vld [vmem:[%s197 + $0x70] sm:$0xff]
      %v223 = vld [vmem:[%s197 + $0x78] sm:$0x1]
      %v224 = vld [vmem:[%s197 + $0x80] sm:$0xff]
      %v225 = vld [vmem:[%s197 + $0x88] sm:$0x1]
      %vm242 = vcmask 1046528
      %v243 = vrot.slane %v208, 1
      %v244 = vrot.slane %v209, 1
      %v245 = vsel %vm242, %v243, %v244
      %v246 = vrot.slane %v210, 1
      %v247 = vrot.slane %v211, 1
      %v248 = vsel %vm242, %v246, %v247
      %v249 = vrot.slane %v212, 1
      %v250 = vrot.slane %v213, 1
      %v251 = vsel %vm242, %v249, %v250
      %v252 = vrot.slane %v214, 1
      %v253 = vrot.slane %v215, 1
      %v254 = vsel %vm242, %v252, %v253
      %v255 = vrot.slane %v216, 1
      %v256 = vrot.slane %v217, 1
      %v257 = vsel %vm242, %v255, %v256
      %v258 = vrot.slane %v218, 1
      %v259 = vrot.slane %v219, 1
      %v260 = vsel %vm242, %v258, %v259
      %v261 = vrot.slane %v220, 1
      %v262 = vrot.slane %v221, 1
      %v263 = vsel %vm242, %v261, %v262
      %v264 = vrot.slane %v222, 1
      %v265 = vrot.slane %v223, 1
      %v266 = vsel %vm242, %v264, %v265
      %267 = vrot.lane.b32.xlu0 %v245, 8
      %v268 = vpop.permute.xlu0 %267
      %269 = vrot.lane.b32.xlu0 %v248, 8
      %v270 = vpop.permute.xlu0 %269
      %271 = vrot.lane.b32.xlu0 %v251, 8
      %v272 = vpop.permute.xlu0 %271
      %273 = vrot.lane.b32.xlu0 %v254, 8
      %v274 = vpop.permute.xlu0 %273
      %275 = vrot.lane.b32.xlu0 %v257, 8
      %v276 = vpop.permute.xlu0 %275
      %277 = vrot.lane.b32.xlu0 %v260, 8
      %v278 = vpop.permute.xlu0 %277
      %279 = vrot.lane.b32.xlu0 %v263, 8
      %v280 = vpop.permute.xlu0 %279
      %281 = vrot.lane.b32.xlu0 %v266, 8
      %v282 = vpop.permute.xlu0 %281
      %292 = vrot.lane.b32.xlu0 %v210, 16
      %v293 = vpop.permute.xlu0 %292
      %294 = vrot.lane.b32.xlu0 %v212, 16
      %v295 = vpop.permute.xlu0 %294
      %296 = vrot.lane.b32.xlu0 %v214, 16
      %v297 = vpop.permute.xlu0 %296
      %298 = vrot.lane.b32.xlu0 %v216, 16
      %v299 = vpop.permute.xlu0 %298
      %300 = vrot.lane.b32.xlu0 %v218, 16
      %v301 = vpop.permute.xlu0 %300
      %302 = vrot.lane.b32.xlu0 %v220, 16
      %v303 = vpop.permute.xlu0 %302
      %304 = vrot.lane.b32.xlu0 %v222, 16
      %v305 = vpop.permute.xlu0 %304
      %306 = vrot.lane.b32.xlu0 %v224, 16
      %v307 = vpop.permute.xlu0 %306
      %v317 = vrot.slane %v224, 1
      %v318 = vrot.slane %v225, 1
      %v319 = vsel %vm242, %v317, %v318
      %320 = vrot.lane.b32.xlu0 %v248, 24
      %v321 = vpop.permute.xlu0 %320
      %322 = vrot.lane.b32.xlu0 %v251, 24
      %v323 = vpop.permute.xlu0 %322
      %324 = vrot.lane.b32.xlu0 %v254, 24
      %v325 = vpop.permute.xlu0 %324
      %326 = vrot.lane.b32.xlu0 %v257, 24
      %v327 = vpop.permute.xlu0 %326
      %328 = vrot.lane.b32.xlu0 %v260, 24
      %v329 = vpop.permute.xlu0 %328
      %330 = vrot.lane.b32.xlu0 %v263, 24
      %v331 = vpop.permute.xlu0 %330
      %332 = vrot.lane.b32.xlu0 %v266, 24
      %v333 = vpop.permute.xlu0 %332
      %334 = vrot.lane.b32.xlu0 %v319, 24
      %v335 = vpop.permute.xlu0 %334
      %vm344 = vcmask 64512
      %v345 = vsel %vm344, %v208, %v268
      %v346 = vsel %vm344, %v210, %v270
      %v347 = vsel %vm344, %v212, %v272
      %v348 = vsel %vm344, %v214, %v274
      %v349 = vsel %vm344, %v216, %v276
      %v350 = vsel %vm344, %v218, %v278
      %v351 = vsel %vm344, %v220, %v280
      %v352 = vsel %vm344, %v222, %v282
      %vm353 = vcmask 130048
      %v354 = vsel %vm353, %v345, %v293
      %v355 = vsel %vm353, %v346, %v295
      %v356 = vsel %vm353, %v347, %v297
      %v357 = vsel %vm353, %v348, %v299
      %v358 = vsel %vm353, %v349, %v301
      %v359 = vsel %vm353, %v350, %v303
      %v360 = vsel %vm353, %v351, %v305
      %v361 = vsel %vm353, %v352, %v307
      %vm362 = vcmask 195584
      %v363 = vsel %vm362, %v354, %v321
      %v364 = vsel %vm362, %v355, %v323
      %v365 = vsel %vm362, %v356, %v325
      %v366 = vsel %vm362, %v357, %v327
      %v367 = vsel %vm362, %v358, %v329
      %v368 = vsel %vm362, %v359, %v331
      %v369 = vsel %vm362, %v360, %v333
      %v370 = vsel %vm362, %v361, %v335
      %v371 = vpack.c.bf16 %v364, %v363
      %v372 = vpack.c.bf16 %v366, %v365
      %v373 = vpack.c.bf16 %v368, %v367
      %v374 = vpack.c.bf16 %v370, %v369
      %v375 = vld [vmem:[%s1] sm:$0xf]
      %v376 = vld [vmem:[%s1 + $0x4] sm:$0xf]
      %v377 = vld [vmem:[%s1 + $0x8] sm:$0xf]
      %v378 = vld [vmem:[%s1 + $0xc] sm:$0xf]
      %v379 = vld [vmem:[%s2] sm:$0x1]
      %v381 = vlaneseq
      %v382 = vshrl.u32 %v381, 7
      %v383 = vsub.s32 0, %v382
      %v384 = vrot.slane %v379, %v383
      %v390 = vunpack.c.l.b16 %v375
      %v391 = vunpack.c.l.b16 %v376
      %v392 = vunpack.c.l.b16 %v377
      %v393 = vunpack.c.l.b16 %v378
      %v394 = vpack.c.b16 %v391, %v390
      %v395 = vpack.c.b16 %v393, %v392
      %vm398 = vcmask 261120
      %v400 = vsel %vm398, %v371, 0
      %v403 = vsel %vm398, %v372, 0
      %v406 = vsel %vm398, %v373, 0
      %v409 = vsel %vm398, %v374, 0
      %411 = vmatprep.subr.bf16.mxu0 0
      %412 = vmatpush1.bf16.msra.mxu0 0
      %413 = vmatprep.subr.bf16.mxu0 0
      %414 = vmatpush1.bf16.msra.mxu0 0
      %415 = vmatprep.subr.bf16.mxu0 0
      %416 = vmatpush1.bf16.msra.mxu0 0
      %417 = vmatprep.subr.bf16.mxu0 0
      %418 = vmatpush1.bf16.msra.mxu0 0
      %419 = vmatprep.subr.bf16.mxu0 0
      %420 = vmatpush1.bf16.msra.mxu0 0
      %421 = vmatprep.subr.bf16.mxu0 0
      %422 = vmatpush1.bf16.msra.mxu0 0
      %423 = vmatprep.subr.bf16.mxu0 0
      %424 = vmatpush1.bf16.msra.mxu0 %v395
      %425 = vmatprep.subr.bf16.mxu0 0
      %426 = vmatpush1.bf16.msra.mxu0 %v394
      %427 = vmatprep.subr.bf16.mxu0 0
      %428 = vmatpush2.bf16.msra.mxu0 0
      %429 = vmatprep.subr.bf16.mxu0 0
      %430 = vmatpush2.bf16.msra.mxu0 0
      %431 = vmatprep.subr.bf16.mxu0 0
      %432 = vmatpush2.bf16.msra.mxu0 0
      %433 = vmatprep.subr.bf16.mxu0 0
      %434 = vmatpush2.bf16.msra.mxu0 0
      %435 = vmatprep.subr.bf16.mxu0 0
      %436 = vmatpush2.bf16.msra.mxu0 0
      %437 = vmatprep.subr.bf16.mxu0 0
      %438 = vmatpush2.bf16.msra.mxu0 0
      %439 = vmatprep.subr.bf16.mxu0 0
      %440 = vmatpush2.bf16.msra.mxu0 0
      %441 = vmatprep.subr.bf16.mxu0 0
      %442 = vmatpush2.bf16.msra.mxu0 0
      %443 = vmatprep.mubr.bf16.mxu0 0
      %444 = vmatmul.mubr.bf16.gmra.mxu0 %v400
      %v445 = vpop.f32.mrf.mxu0
      %v446 = vadd.f32 %v384, %v445
      %v447 = vpop.f32.mrf.mxu0
      %v448 = vpop.f32.mrf.mxu0
      %v449 = vadd.f32 %v384, %v448
      %v450 = vpop.f32.mrf.mxu0
      %451 = vmatprep.mubr.bf16.mxu0 0
      %452 = vmatmul.mubr.bf16.gmra.mxu0 %v403
      %v453 = vpop.f32.mrf.mxu0
      %v454 = vadd.f32 %v384, %v453
      %v455 = vpop.f32.mrf.mxu0
      %v456 = vpop.f32.mrf.mxu0
      %v457 = vadd.f32 %v384, %v456
      %v458 = vpop.f32.mrf.mxu0
      %459 = vmatprep.mubr.bf16.mxu0 0
      %460 = vmatmul.mubr.bf16.gmra.mxu0 %v406
      %v461 = vpop.f32.mrf.mxu0
      %v462 = vadd.f32 %v384, %v461
      %v463 = vpop.f32.mrf.mxu0
      %v464 = vpop.f32.mrf.mxu0
      %v465 = vadd.f32 %v384, %v464
      %v466 = vpop.f32.mrf.mxu0
      %467 = vmatprep.mubr.bf16.mxu0 0
      %468 = vmatmul.mubr.bf16.gmra.mxu0 %v409
      %v469 = vpop.f32.mrf.mxu0
      %v470 = vadd.f32 %v384, %v469
      %v471 = vpop.f32.mrf.mxu0
      %v472 = vpop.f32.mrf.mxu0
      %v473 = vadd.f32 %v384, %v472
      %v474 = vpop.f32.mrf.mxu0
      %475 = vdwg.mxu0
      %v476 = vmax.f32 %v446, 0.0
      %v477 = vmax.f32 %v449, 0.0
      %v478 = vmax.f32 %v454, 0.0
      %v479 = vmax.f32 %v457, 0.0
      %v480 = vmax.f32 %v462, 0.0
      %v481 = vmax.f32 %v465, 0.0
      %v482 = vmax.f32 %v470, 0.0
      %v483 = vmax.f32 %v473, 0.0
      %484 = vst.msk [vmem:[%s206] sm:$0xff] %vm353, %v476
      %485 = vst.msk [vmem:[%s206 + $0x8] sm:$0xff] %vm353, %v477
      %486 = vst.msk [vmem:[%s206 + $0x10] sm:$0xff] %vm353, %v478
      %487 = vst.msk [vmem:[%s206 + $0x18] sm:$0xff] %vm353, %v479
      %488 = vst.msk [vmem:[%s206 + $0x20] sm:$0xff] %vm353, %v480
      %489 = vst.msk [vmem:[%s206 + $0x28] sm:$0xff] %vm353, %v481
      %490 = vst.msk [vmem:[%s206 + $0x30] sm:$0xff] %vm353, %v482
      %491 = vst.msk [vmem:[%s206 + $0x38] sm:$0xff] %vm353, %v483
      %p492 = scmp.lt.s32.totalorder %s18, 1
      %s493 = scalar_select %p492, %s18, 1
      %p494 = scmp.lt.s32.totalorder %s19, 0
      %s495 = scalar_select %p494, %s19, 0
      %s496 = smul.addr %s495, 8
      %s497 = smul.addr %s493, 8
      %s498 = sadd.s32 %s496, %s497
      %s499 = smul.addr %s498, 8
      %s500 = scalar_lea.vmem %s3, %s499
      // Predicated region
      $region33: #{advanced_phase_estimation_forward.12} parent=31 // pred_check
        %p501 = pneg %p116
      $region34: #{advanced_phase_estimation_forward.12} parent=31 // pred_check_branch
        %503 = sbr.rel (%p501) target = $region36
      $region35: #{advanced_phase_estimation_forward.12} parent=31 // pred_region
        _
      $region36: #{advanced_phase_estimation_forward.12} parent=31 // pred_fallthru
        _
    $region32: #{advanced_phase_estimation_forward.12} parent=5 // pred_fallthru
      _
    %p504 = scmp.le.s32.totalorder 2, %s9
    // Predicated region
    $region37: #{advanced_phase_estimation_forward.12} parent=5 // pred_check
      %p505 = pneg %p504
    $region38: #{advanced_phase_estimation_forward.12} parent=5 // pred_check_branch
      %507 = sbr.rel (%p505) target = $region40
    $region39: #{advanced_phase_estimation_forward.12} parent=5 // pred_region
      %s508 = ssub.s32 %s9, 2
      // Predicated region
      $region41: #{advanced_phase_estimation_forward.12} parent=39 // pred_check
        %p509 = pneg %p122
      $region42: #{advanced_phase_estimation_forward.12} parent=39 // pred_check_branch
        %511 = sbr.rel (%p509) target = $region44
      $region43: #{advanced_phase_estimation_forward.12} parent=39 // pred_region
        %p512 = scmp.lt.s32.totalorder %s20, 1
        %s513 = scalar_select %p512, %s20, 1
        %p514 = scmp.lt.s32.totalorder %s21, 0
        %s515 = scalar_select %p514, %s21, 0
        %s516 = smul.addr %s515, 8
        %s517 = smul.addr %s513, 8
        %s518 = sadd.s32 %s516, %s517
        %s519 = smul.addr %s518, 8
        %s520 = scalar_lea.vmem %s3, %s519
      $region44: #{advanced_phase_estimation_forward.12} parent=39 // pred_fallthru
        _
    $region40: #{advanced_phase_estimation_forward.12} parent=5 // pred_fallthru
      _
  $region6: #{advanced_phase_estimation_forward.12} parent=0 // loop_footer
    %s13 = sadd.s32 1, %s9
  $region7: #{advanced_phase_estimation_forward.12} parent=0 // loop_footer_branch
    %8 = sbr.rel target = $region3
  $region8: #{advanced_phase_estimation_forward.12} parent=0 // loop_exit
    _

// kernel: advanced_phase_estimation_forward.14
$region0: #{advanced_phase_estimation_forward.14}
  #allocation0 [shape = 'u32[]', space=smem, size = 0x4, offset = 0x4, fixed_abs, tag = 'smem constant byte address 0x4 - core index']
  #allocation1 [shape = 'u32[144,128]{1,0:T(1,128)}', space=vmem, size = 0x12000, scoped, tag = 'internal scratch']
  %s0 = inlined_call_operand.vmem [shape: f32[2,1,6,6,32], index: 0, kind: input, shape index: {}]
  %s1 = inlined_call_operand.vmem [shape: bf16[128,64], index: 1, kind: input, shape index: {}]
  %s2 = inlined_call_operand.vmem [shape: f32[1,64], index: 2, kind: input, shape index: {}]
  %s3 = inlined_call_operand.vmem [shape: f32[2,1,25,64], index: 3, kind: output, shape index: {}]
  %s4 = sld [smem:[#allocation0]]
  $region45: #{advanced_phase_estimation_forward.14} parent=0
    _
  %s6 = ssub.s32 1, %s4
  %s7 = scalar_select 0, %s6, %s4
  loop: start=0, step=1, limit=4
  $region2: #{advanced_phase_estimation_forward.14} parent=0 // loop_pre_header
    _
  $region3: #{advanced_phase_estimation_forward.14} parent=0 // loop_header
    %s9 = sphi 0, %s13
    %p10 = scmp.ge.s32.totalorder %s9, 4
    %s16 = sphi 0, %s28
    %s17 = sphi 0, %s24
    %s18 = sphi 0, %s16
    %s19 = sphi 0, %s17
    %s20 = sphi 0, %s18
    %s21 = sphi 0, %s19
    %s33 = sphi 0, %s35
    %s36 = sphi 0, %s33
    %s37 = sphi 0, %s36
    %s53 = sphi 0, %s37
    %s57 = sphi 0, %s57
    %s59 = sphi 0, %s57
    %s60 = sphi 0, %s59
    %s74 = sphi 0, %s60
    %s78 = sphi 0, %s78
    %s80 = sphi 0, %s78
    %s81 = sphi 0, %s80
    %s95 = sphi 0, %s81
    %s103 = sphi 0, %s105
    %s106 = sphi 0, %s103
    %s107 = sphi 0, %s106
    %s123 = sphi 0, %s107
  $region4: #{advanced_phase_estimation_forward.14} parent=0 // loop_header_branch
    %12 = sbr.rel (%p10) target = $region8
  $region5: #{advanced_phase_estimation_forward.14} parent=0 // loop_body
    %s14 = ssub.s32 %s9, 1
    %s15 = ssub.s32 %s9, 2
    %s22 = sadd.s32 1, %s17
    %p23 = scmp.ge.s32.totalorder %s22, 1
    %s24 = scalar_select %p23, 0, %s22
    %s25 = sadd.s32 1, %s16
    %s26 = scalar_select %p23, %s25, %s16
    %p27 = scmp.ge.s32.totalorder %s26, 2
    %s28 = scalar_select %p27, 0, %s26
    %s29 = ssub.s32 %s16, %s28
    %s30 = ssub.s32 %s17, %s24
    %s31 = sor.u32 %s29, %s30
    %p32 = scmp.eq.s32.totalorder %s31, 0
    %s34 = sadd.s32 %s33, 1
    %s35 = scalar_select %p32, %s33, %s34
    %p38 = pneg %p32
    %p39 = scmp.eq.s32.totalorder %s9, 1
    %p40 = por %p38, %p39
    %p41 = scmp.ne.s32.totalorder %s33, %s36
    %p42 = scmp.eq.s32.totalorder %s9, 0
    %p43 = por %p41, %p42
    %p44 = scmp.ne.s32.totalorder %s33, %s36
    %p45 = scmp.eq.s32.totalorder %s14, 1
    %p46 = por %p44, %p45
    %p47 = scmp.ne.s32.totalorder %s36, %s37
    %p48 = scmp.eq.s32.totalorder %s14, 0
    %p49 = por %p47, %p48
    %p50 = scmp.ne.s32.totalorder %s36, %s37
    %p51 = scmp.eq.s32.totalorder %s15, 1
    %p52 = por %p50, %p51
    %p54 = scmp.ne.s32.totalorder %s37, %s53
    %p55 = scmp.eq.s32.totalorder %s15, 0
    %p56 = por %p54, %p55
    %s58 = sadd.s32 %s57, 1
    %p61 = scmp.eq.s32.totalorder %s9, 1
    %p62 = scmp.ne.s32.totalorder %s57, %s59
    %p63 = scmp.eq.s32.totalorder %s9, 0
    %p64 = por %p62, %p63
    %p65 = scmp.ne.s32.totalorder %s57, %s59
    %p66 = scmp.eq.s32.totalorder %s14, 1
    %p67 = por %p65, %p66
    %p68 = scmp.ne.s32.totalorder %s59, %s60
    %p69 = scmp.eq.s32.totalorder %s14, 0
    %p70 = por %p68, %p69
    %p71 = scmp.ne.s32.totalorder %s59, %s60
    %p72 = scmp.eq.s32.totalorder %s15, 1
    %p73 = por %p71, %p72
    %p75 = scmp.ne.s32.totalorder %s60, %s74
    %p76 = scmp.eq.s32.totalorder %s15, 0
    %p77 = por %p75, %p76
    %s79 = sadd.s32 %s78, 1
    %p82 = scmp.eq.s32.totalorder %s9, 1
    %p83 = scmp.ne.s32.totalorder %s78, %s80
    %p84 = scmp.eq.s32.totalorder %s9, 0
    %p85 = por %p83, %p84
    %p86 = scmp.ne.s32.totalorder %s78, %s80
    %p87 = scmp.eq.s32.totalorder %s14, 1
    %p88 = por %p86, %p87
    %p89 = scmp.ne.s32.totalorder %s80, %s81
    %p90 = scmp.eq.s32.totalorder %s14, 0
    %p91 = por %p89, %p90
    %p92 = scmp.ne.s32.totalorder %s80, %s81
    %p93 = scmp.eq.s32.totalorder %s15, 1
    %p94 = por %p92, %p93
    %p96 = scmp.ne.s32.totalorder %s81, %s95
    %p97 = scmp.eq.s32.totalorder %s15, 0
    %p98 = por %p96, %p97
    %s99 = ssub.s32 %s16, %s28
    %s100 = ssub.s32 %s17, %s24
    %s101 = sor.u32 %s99, %s100
    %p102 = scmp.eq.s32.totalorder %s101, 0
    %s104 = sadd.s32 %s103, 1
    %s105 = scalar_select %p102, %s103, %s104
    %p108 = pneg %p102
    %p109 = scmp.eq.s32.totalorder %s9, 1
    %p110 = por %p108, %p109
    %p111 = scmp.ne.s32.totalorder %s103, %s106
    %p112 = scmp.eq.s32.totalorder %s9, 0
    %p113 = por %p111, %p112
    %p114 = scmp.ne.s32.totalorder %s103, %s106
    %p115 = scmp.eq.s32.totalorder %s14, 1
    %p116 = por %p114, %p115
    %p117 = scmp.ne.s32.totalorder %s106, %s107
    %p118 = scmp.eq.s32.totalorder %s14, 0
    %p119 = por %p117, %p118
    %p120 = scmp.ne.s32.totalorder %s106, %s107
    %p121 = scmp.eq.s32.totalorder %s15, 1
    %p122 = por %p120, %p121
    %p124 = scmp.ne.s32.totalorder %s107, %s123
    %p125 = scmp.eq.s32.totalorder %s15, 0
    %p126 = por %p124, %p125
    %p127 = scmp.le.s32.totalorder 1, %s9
    %p128 = scmp.lt.s32.totalorder %s9, 3
    %p129 = pnand %p127, %p128
    %p130 = pneg %p129
    // Predicated region
    $region9: #{advanced_phase_estimation_forward.14} parent=5 // pred_check
      _
    $region10: #{advanced_phase_estimation_forward.14} parent=5 // pred_check_branch
      %132 = sbr.rel (%p129) target = $region12
    $region11: #{advanced_phase_estimation_forward.14} parent=5 // pred_region
      %s133 = ssub.s32 %s9, 1
      // Predicated region
      $region13: #{advanced_phase_estimation_forward.14} parent=11 // pred_check
        %p134 = pneg %p70
      $region14: #{advanced_phase_estimation_forward.14} parent=11 // pred_check_branch
        %136 = sbr.rel (%p134) target = $region16
      $region15: #{advanced_phase_estimation_forward.14} parent=11 // pred_region
        _
      $region16: #{advanced_phase_estimation_forward.14} parent=11 // pred_fallthru
        _
      // Predicated region
      $region17: #{advanced_phase_estimation_forward.14} parent=11 // pred_check
        %p137 = pneg %p91
      $region18: #{advanced_phase_estimation_forward.14} parent=11 // pred_check_branch
        %139 = sbr.rel (%p137) target = $region20
      $region19: #{advanced_phase_estimation_forward.14} parent=11 // pred_region
        _
      $region20: #{advanced_phase_estimation_forward.14} parent=11 // pred_fallthru
        _
    $region12: #{advanced_phase_estimation_forward.14} parent=5 // pred_fallthru
      _
    %p140 = scmp.lt.s32.totalorder %s9, 2
    // Predicated region
    $region21: #{advanced_phase_estimation_forward.14} parent=5 // pred_check
      %p141 = pneg %p140
    $region22: #{advanced_phase_estimation_forward.14} parent=5 // pred_check_branch
      %143 = sbr.rel (%p141) target = $region24
    $region23: #{advanced_phase_estimation_forward.14} parent=5 // pred_region
      // Predicated region
      $region25: #{advanced_phase_estimation_forward.14} parent=23 // pred_check
        %p144 = pneg %p43
      $region26: #{advanced_phase_estimation_forward.14} parent=23 // pred_check_branch
        %146 = sbr.rel (%p144) target = $region28
      $region27: #{advanced_phase_estimation_forward.14} parent=23 // pred_region
        %p147 = scmp.lt.s32.totalorder %s16, 1
        %s148 = scalar_select %p147, %s16, 1
        %p149 = scmp.lt.s32.totalorder %s17, 0
        %s150 = scalar_select %p149, %s17, 0
        %s151 = smul.addr %s150, 6
        %s152 = smul.addr %s148, 6
        %s153 = sadd.s32 %s151, %s152
        %s154 = smul.addr %s153, 8
        %s155 = scalar_lea.vmem %s0, %s154
      $region28: #{advanced_phase_estimation_forward.14} parent=23 // pred_fallthru
        _
    $region24: #{advanced_phase_estimation_forward.14} parent=5 // pred_fallthru
      _
    %p156 = scmp.le.s32.totalorder 1, %s9
    %p157 = scmp.lt.s32.totalorder %s9, 3
    %p158 = pnand %p156, %p157
    %p159 = pneg %p158
    // Predicated region
    $region29: #{advanced_phase_estimation_forward.14} parent=5 // pred_check
      _
    $region30: #{advanced_phase_estimation_forward.14} parent=5 // pred_check_branch
      %161 = sbr.rel (%p158) target = $region32
    $region31: #{advanced_phase_estimation_forward.14} parent=5 // pred_region
      %s162 = ssub.s32 %s9, 1
      %p163 = scmp.lt.s32.totalorder %s18, 1
      %s164 = scalar_select %p163, %s18, 1
      %p165 = scmp.lt.s32.totalorder %s19, 0
      %s166 = scalar_select %p165, %s19, 0
      %s167 = smul.addr %s166, 6
      %s168 = smul.addr %s164, 6
      %s169 = sadd.s32 %s167, %s168
      %s170 = smul.addr %s169, 8
      %s171 = scalar_lea.vmem %s0, %s170
      %p172 = pneg %p49
      %p173 = pneg %p46
      %p174 = pneg %p70
      %p175 = pneg %p67
      %p176 = pneg %p91
      %p177 = pneg %p88
      %p178 = pneg %p119
      %p179 = pneg %p116
      %p180 = scmp.lt.s32.totalorder %s18, 1
      %s181 = scalar_select %p180, %s18, 1
      %p182 = scmp.lt.s32.totalorder %s19, 0
      %s183 = scalar_select %p182, %s19, 0
      %s184 = smul.addr %s183, 4
      %s185 = smul.addr %s181, 4
      %s186 = sadd.s32 %s184, %s185
      %s187 = smul.addr %s186, 8
      %s188 = scalar_lea.vmem %s3, %s187
      %p189 = scmp.lt.s32.totalorder %s18, 1
      %s190 = scalar_select %p189, %s18, 1
      %p191 = scmp.lt.s32.totalorder %s19, 0
      %s192 = scalar_select %p191, %s19, 0
      %s193 = smul.addr %s192, 6
      %s194 = smul.addr %s190, 6
      %s195 = sadd.s32 %s193, %s194
      %s196 = smul.addr %s195, 8
      %s197 = scalar_lea.vmem %s0, %s196
      %p198 = scmp.lt.s32.totalorder %s18, 1
      %s199 = scalar_select %p198, %s18, 1
      %p200 = scmp.lt.s32.totalorder %s19, 0
      %s201 = scalar_select %p200, %s19, 0
      %s202 = smul.addr %s201, 4
      %s203 = smul.addr %s199, 4
      %s204 = sadd.s32 %s202, %s203
      %s205 = smul.addr %s204, 8
      %s206 = scalar_lea.vmem %s3, %s205
      %v208 = vld [vmem:[%s197] sm:$0x3f]
      %v209 = vld [vmem:[%s197 + $0x8] sm:$0x3f]
      %v210 = vld [vmem:[%s197 + $0x10] sm:$0x3f]
      %v211 = vld [vmem:[%s197 + $0x18] sm:$0x3f]
      %v212 = vld [vmem:[%s197 + $0x20] sm:$0x3f]
      %v213 = vld [vmem:[%s197 + $0x28] sm:$0x3f]
      %v219 = vrot.slane %v208, 1
      %v220 = vrot.slane %v209, 1
      %v221 = vrot.slane %v210, 1
      %v222 = vrot.slane %v211, 1
      %v223 = vrot.slane %v212, 1
      %224 = vrot.lane.b32.xlu0 %v219, 32
      %v225 = vpop.permute.xlu0 %224
      %226 = vrot.lane.b32.xlu0 %v220, 32
      %v227 = vpop.permute.xlu0 %226
      %228 = vrot.lane.b32.xlu0 %v221, 32
      %v229 = vpop.permute.xlu0 %228
      %230 = vrot.lane.b32.xlu0 %v222, 32
      %v231 = vpop.permute.xlu0 %230
      %232 = vrot.lane.b32.xlu0 %v223, 32
      %v233 = vpop.permute.xlu0 %232
      %240 = vrot.lane.b32.xlu0 %v209, 64
      %v241 = vpop.permute.xlu0 %240
      %242 = vrot.lane.b32.xlu0 %v210, 64
      %v243 = vpop.permute.xlu0 %242
      %244 = vrot.lane.b32.xlu0 %v211, 64
      %v245 = vpop.permute.xlu0 %244
      %246 = vrot.lane.b32.xlu0 %v212, 64
      %v247 = vpop.permute.xlu0 %246
      %248 = vrot.lane.b32.xlu0 %v213, 64
      %v249 = vpop.permute.xlu0 %248
      %v255 = vrot.slane %v213, 1
      %256 = vrot.lane.b32.xlu0 %v220, 96
      %v257 = vpop.permute.xlu0 %256
      %258 = vrot.lane.b32.xlu0 %v221, 96
      %v259 = vpop.permute.xlu0 %258
      %260 = vrot.lane.b32.xlu0 %v222, 96
      %v261 = vpop.permute.xlu0 %260
      %262 = vrot.lane.b32.xlu0 %v223, 96
      %v263 = vpop.permute.xlu0 %262
      %264 = vrot.lane.b32.xlu0 %v255, 96
      %v265 = vpop.permute.xlu0 %264
      %vm271 = vcmask 261120
      %v272 = vsel %vm271, %v208, %v225
      %v273 = vsel %vm271, %v209, %v227
      %v274 = vsel %vm271, %v210, %v229
      %v275 = vsel %vm271, %v211, %v231
      %v276 = vsel %vm271, %v212, %v233
      %vm277 = vcmask 523264
      %v278 = vsel %vm277, %v272, %v241
      %v279 = vsel %vm277, %v273, %v243
      %v280 = vsel %vm277, %v274, %v245
      %v281 = vsel %vm277, %v275, %v247
      %v282 = vsel %vm277, %v276, %v249
      %vm283 = vcmask 785408
      %v284 = vsel %vm283, %v278, %v257
      %v285 = vsel %vm283, %v279, %v259
      %v286 = vsel %vm283, %v280, %v261
      %v287 = vsel %vm283, %v281, %v263
      %v288 = vsel %vm283, %v282, %v265
      %v294 = vcombine.high %v284, %v284
      %v296 = vunpack.c.l.s4 1966171168
      %v297 = vunpack.c.0.s8 %v296
      %v298 = vlaneseq
      %v299 = vshrl.u32 %v298, 7
      %v300 = vsub.s32 %v297, %v299
      %v301 = vrot.slane %v284, %v300
      %v303 = vunpack.c.l.s4 1966171168
      %v304 = vunpack.c.0.s8 %v303
      %v305 = vlaneseq
      %v306 = vshrl.u32 %v305, 7
      %v307 = vsub.s32 %v304, %v306
      %v308 = vrot.slane %v294, %v307
      %v309 = vcombine.high %v301, %v301
      %v311 = vunpack.c.l.s4 1966171168
      %v312 = vunpack.c.0.s8 %v311
      %v313 = vlaneseq
      %v314 = vshrl.u32 %v313, 7
      %v315 = vsub.s32 %v312, %v314
      %v316 = vrot.slane %v301, %v315
      %v318 = vunpack.c.l.s4 1966171168
      %v319 = vunpack.c.0.s8 %v318
      %v320 = vlaneseq
      %v321 = vshrl.u32 %v320, 7
      %v322 = vsub.s32 %v319, %v321
      %v323 = vrot.slane %v308, %v322
      %v325 = vunpack.c.l.s4 1966171168
      %v326 = vunpack.c.0.s8 %v325
      %v327 = vlaneseq
      %v328 = vshrl.u32 %v327, 7
      %v329 = vsub.s32 %v326, %v328
      %v330 = vrot.slane %v309, %v329
      %v331 = vcombine.high %v316, %v316
      %v332 = vcombine.high %v330, %v330
      %v333 = vcombine.high %v285, %v285
      %v335 = vunpack.c.l.s4 1966171168
      %v336 = vunpack.c.0.s8 %v335
      %v337 = vlaneseq
      %v338 = vshrl.u32 %v337, 7
      %v339 = vsub.s32 %v336, %v338
      %v340 = vrot.slane %v285, %v339
      %v342 = vunpack.c.l.s4 1966171168
      %v343 = vunpack.c.0.s8 %v342
      %v344 = vlaneseq
      %v345 = vshrl.u32 %v344, 7
      %v346 = vsub.s32 %v343, %v345
      %v347 = vrot.slane %v333, %v346
      %v348 = vcombine.high %v340, %v340
      %v350 = vunpack.c.l.s4 1966171168
      %v351 = vunpack.c.0.s8 %v350
      %v352 = vlaneseq
      %v353 = vshrl.u32 %v352, 7
      %v354 = vsub.s32 %v351, %v353
      %v355 = vrot.slane %v340, %v354
      %v357 = vunpack.c.l.s4 1966171168
      %v358 = vunpack.c.0.s8 %v357
      %v359 = vlaneseq
      %v360 = vshrl.u32 %v359, 7
      %v361 = vsub.s32 %v358, %v360
      %v362 = vrot.slane %v347, %v361
      %v364 = vunpack.c.l.s4 1966171168
      %v365 = vunpack.c.0.s8 %v364
      %v366 = vlaneseq
      %v367 = vshrl.u32 %v366, 7
      %v368 = vsub.s32 %v365, %v367
      %v369 = vrot.slane %v348, %v368
      %v370 = vcombine.high %v355, %v355
      %v371 = vcombine.high %v369, %v369
      %v372 = vcombine.high %v286, %v286
      %v374 = vunpack.c.l.s4 1966171168
      %v375 = vunpack.c.0.s8 %v374
      %v376 = vlaneseq
      %v377 = vshrl.u32 %v376, 7
      %v378 = vsub.s32 %v375, %v377
      %v379 = vrot.slane %v286, %v378
      %v381 = vunpack.c.l.s4 1966171168
      %v382 = vunpack.c.0.s8 %v381
      %v383 = vlaneseq
      %v384 = vshrl.u32 %v383, 7
      %v385 = vsub.s32 %v382, %v384
      %v386 = vrot.slane %v372, %v385
      %v387 = vcombine.high %v379, %v379
      %v389 = vunpack.c.l.s4 1966171168
      %v390 = vunpack.c.0.s8 %v389
      %v391 = vlaneseq
      %v392 = vshrl.u32 %v391, 7
      %v393 = vsub.s32 %v390, %v392
      %v394 = vrot.slane %v379, %v393
      %v396 = vunpack.c.l.s4 1966171168
      %v397 = vunpack.c.0.s8 %v396
      %v398 = vlaneseq
      %v399 = vshrl.u32 %v398, 7
      %v400 = vsub.s32 %v397, %v399
      %v401 = vrot.slane %v386, %v400
      %v403 = vunpack.c.l.s4 1966171168
      %v404 = vunpack.c.0.s8 %v403
      %v405 = vlaneseq
      %v406 = vshrl.u32 %v405, 7
      %v407 = vsub.s32 %v404, %v406
      %v408 = vrot.slane %v387, %v407
      %v409 = vcombine.high %v394, %v394
      %v410 = vcombine.high %v408, %v408
      %v411 = vcombine.high %v287, %v287
      %v413 = vunpack.c.l.s4 1966171168
      %v414 = vunpack.c.0.s8 %v413
      %v415 = vlaneseq
      %v416 = vshrl.u32 %v415, 7
      %v417 = vsub.s32 %v414, %v416
      %v418 = vrot.slane %v287, %v417
      %v420 = vunpack.c.l.s4 1966171168
      %v421 = vunpack.c.0.s8 %v420
      %v422 = vlaneseq
      %v423 = vshrl.u32 %v422, 7
      %v424 = vsub.s32 %v421, %v423
      %v425 = vrot.slane %v411, %v424
      %v426 = vcombine.high %v418, %v418
      %v428 = vunpack.c.l.s4 1966171168
      %v429 = vunpack.c.0.s8 %v428
      %v430 = vlaneseq
      %v431 = vshrl.u32 %v430, 7
      %v432 = vsub.s32 %v429, %v431
      %v433 = vrot.slane %v418, %v432
      %v435 = vunpack.c.l.s4 1966171168
      %v436 = vunpack.c.0.s8 %v435
      %v437 = vlaneseq
      %v438 = vshrl.u32 %v437, 7
      %v439 = vsub.s32 %v436, %v438
      %v440 = vrot.slane %v425, %v439
      %v442 = vunpack.c.l.s4 1966171168
      %v443 = vunpack.c.0.s8 %v442
      %v444 = vlaneseq
      %v445 = vshrl.u32 %v444, 7
      %v446 = vsub.s32 %v443, %v445
      %v447 = vrot.slane %v426, %v446
      %v448 = vcombine.high %v433, %v433
      %v449 = vcombine.high %v447, %v447
      %v450 = vcombine.high %v288, %v288
      %v452 = vunpack.c.l.s4 1966171168
      %v453 = vunpack.c.0.s8 %v452
      %v454 = vlaneseq
      %v455 = vshrl.u32 %v454, 7
      %v456 = vsub.s32 %v453, %v455
      %v457 = vrot.slane %v288, %v456
      %v459 = vunpack.c.l.s4 1966171168
      %v460 = vunpack.c.0.s8 %v459
      %v461 = vlaneseq
      %v462 = vshrl.u32 %v461, 7
      %v463 = vsub.s32 %v460, %v462
      %v464 = vrot.slane %v450, %v463
      %v465 = vcombine.high %v457, %v457
      %v467 = vunpack.c.l.s4 1966171168
      %v468 = vunpack.c.0.s8 %v467
      %v469 = vlaneseq
      %v470 = vshrl.u32 %v469, 7
      %v471 = vsub.s32 %v468, %v470
      %v472 = vrot.slane %v457, %v471
      %v474 = vunpack.c.l.s4 1966171168
      %v475 = vunpack.c.0.s8 %v474
      %v476 = vlaneseq
      %v477 = vshrl.u32 %v476, 7
      %v478 = vsub.s32 %v475, %v477
      %v479 = vrot.slane %v464, %v478
      %v481 = vunpack.c.l.s4 1966171168
      %v482 = vunpack.c.0.s8 %v481
      %v483 = vlaneseq
      %v484 = vshrl.u32 %v483, 7
      %v485 = vsub.s32 %v482, %v484
      %v486 = vrot.slane %v465, %v485
      %v487 = vcombine.high %v472, %v472
      %v488 = vcombine.high %v486, %v486
      %v489 = vcombine.low %v316, %v330
      %v490 = vcombine.low %v331, %v332
      %v491 = vcombine.low %v323, %v355
      %v492 = vcombine.low %v369, %v370
      %v494 = vunpack.c.l.s4 1966171168
      %v495 = vunpack.c.0.s8 %v494
      %v496 = vlaneseq
      %v497 = vshrl.u32 %v496, 7
      %v498 = vsub.s32 %v495, %v497
      %v499 = vrot.slane %v489, %v498
      %v501 = vunpack.c.l.s4 1966171168
      %v502 = vunpack.c.0.s8 %v501
      %v503 = vlaneseq
      %v504 = vshrl.u32 %v503, 7
      %v505 = vsub.s32 %v502, %v504
      %v506 = vrot.slane %v490, %v505
      %v508 = vunpack.c.l.s4 1966171168
      %v509 = vunpack.c.0.s8 %v508
      %v510 = vlaneseq
      %v511 = vshrl.u32 %v510, 7
      %v512 = vsub.s32 %v509, %v511
      %v513 = vrot.slane %v491, %v512
      %v515 = vunpack.c.l.s4 1966171168
      %v516 = vunpack.c.0.s8 %v515
      %v517 = vlaneseq
      %v518 = vshrl.u32 %v517, 7
      %v519 = vsub.s32 %v516, %v518
      %v520 = vrot.slane %v492, %v519
      %v521 = vcombine.low %v499, %v506
      %v522 = vcombine.low %v513, %v520
      %v524 = vunpack.c.l.s4 1966171168
      %v525 = vunpack.c.0.s8 %v524
      %v526 = vlaneseq
      %v527 = vshrl.u32 %v526, 7
      %v528 = vsub.s32 %v525, %v527
      %v529 = vrot.slane %v521, %v528
      %v531 = vunpack.c.l.s4 1966171168
      %v532 = vunpack.c.0.s8 %v531
      %v533 = vlaneseq
      %v534 = vshrl.u32 %v533, 7
      %v535 = vsub.s32 %v532, %v534
      %v536 = vrot.slane %v522, %v535
      %v537 = vcombine.low %v529, %v536
      %v538 = vcombine.low %v371, %v362
      %v539 = vcombine.low %v394, %v408
      %v540 = vcombine.low %v409, %v410
      %v541 = vcombine.low %v401, %v433
      %v543 = vunpack.c.l.s4 1966171168
      %v544 = vunpack.c.0.s8 %v543
      %v545 = vlaneseq
      %v546 = vshrl.u32 %v545, 7
      %v547 = vsub.s32 %v544, %v546
      %v548 = vrot.slane %v538, %v547
      %v550 = vunpack.c.l.s4 1966171168
      %v551 = vunpack.c.0.s8 %v550
      %v552 = vlaneseq
      %v553 = vshrl.u32 %v552, 7
      %v554 = vsub.s32 %v551, %v553
      %v555 = vrot.slane %v539, %v554
      %v557 = vunpack.c.l.s4 1966171168
      %v558 = vunpack.c.0.s8 %v557
      %v559 = vlaneseq
      %v560 = vshrl.u32 %v559, 7
      %v561 = vsub.s32 %v558, %v560
      %v562 = vrot.slane %v540, %v561
      %v564 = vunpack.c.l.s4 1966171168
      %v565 = vunpack.c.0.s8 %v564
      %v566 = vlaneseq
      %v567 = vshrl.u32 %v566, 7
      %v568 = vsub.s32 %v565, %v567
      %v569 = vrot.slane %v541, %v568
      %v570 = vcombine.low %v548, %v555
      %v571 = vcombine.low %v562, %v569
      %v573 = vunpack.c.l.s4 1966171168
      %v574 = vunpack.c.0.s8 %v573
      %v575 = vlaneseq
      %v576 = vshrl.u32 %v575, 7
      %v577 = vsub.s32 %v574, %v576
      %v578 = vrot.slane %v570, %v577
      %v580 = vunpack.c.l.s4 1966171168
      %v581 = vunpack.c.0.s8 %v580
      %v582 = vlaneseq
      %v583 = vshrl.u32 %v582, 7
      %v584 = vsub.s32 %v581, %v583
      %v585 = vrot.slane %v571, %v584
      %v586 = vcombine.low %v578, %v585
      %v587 = vcombine.low %v447, %v448
      %v588 = vcombine.low %v449, %v440
      %v589 = vcombine.low %v472, %v486
      %v590 = vcombine.low %v487, %v488
      %v592 = vunpack.c.l.s4 1966171168
      %v593 = vunpack.c.0.s8 %v592
      %v594 = vlaneseq
      %v595 = vshrl.u32 %v594, 7
      %v596 = vsub.s32 %v593, %v595
      %v597 = vrot.slane %v587, %v596
      %v599 = vunpack.c.l.s4 1966171168
      %v600 = vunpack.c.0.s8 %v599
      %v601 = vlaneseq
      %v602 = vshrl.u32 %v601, 7
      %v603 = vsub.s32 %v600, %v602
      %v604 = vrot.slane %v588, %v603
      %v606 = vunpack.c.l.s4 1966171168
      %v607 = vunpack.c.0.s8 %v606
      %v608 = vlaneseq
      %v609 = vshrl.u32 %v608, 7
      %v610 = vsub.s32 %v607, %v609
      %v611 = vrot.slane %v589, %v610
      %v613 = vunpack.c.l.s4 1966171168
      %v614 = vunpack.c.0.s8 %v613
      %v615 = vlaneseq
      %v616 = vshrl.u32 %v615, 7
      %v617 = vsub.s32 %v614, %v616
      %v618 = vrot.slane %v590, %v617
      %v619 = vcombine.low %v597, %v604
      %v620 = vcombine.low %v611, %v618
      %v622 = vunpack.c.l.s4 1966171168
      %v623 = vunpack.c.0.s8 %v622
      %v624 = vlaneseq
      %v625 = vshrl.u32 %v624, 7
      %v626 = vsub.s32 %v623, %v625
      %v627 = vrot.slane %v619, %v626
      %v629 = vunpack.c.l.s4 1966171168
      %v630 = vunpack.c.0.s8 %v629
      %v631 = vlaneseq
      %v632 = vshrl.u32 %v631, 7
      %v633 = vsub.s32 %v630, %v632
      %v634 = vrot.slane %v620, %v633
      %v635 = vcombine.low %v627, %v634
      %v637 = vunpack.c.l.s4 1966171168
      %v638 = vunpack.c.0.s8 %v637
      %v639 = vlaneseq
      %v640 = vshrl.u32 %v639, 7
      %v641 = vsub.s32 %v638, %v640
      %v642 = vrot.slane %v479, %v641
      %v644 = vunpack.c.l.s4 1966171168
      %v645 = vunpack.c.0.s8 %v644
      %v646 = vlaneseq
      %v647 = vshrl.u32 %v646, 7
      %v648 = vsub.s32 %v645, %v647
      %v649 = vrot.slane %v642, %v648
      %v654 = vpack.c.bf16 %v586, %v537
      %v655 = vpack.c.bf16 %v649, %v635
      %v656 = vld [vmem:[%s1] sm:$0xf]
      %v657 = vld [vmem:[%s1 + $0x4] sm:$0xf]
      %v658 = vld [vmem:[%s1 + $0x8] sm:$0xf]
      %v659 = vld [vmem:[%s1 + $0xc] sm:$0xf]
      %v660 = vld [vmem:[%s1 + $0x10] sm:$0xf]
      %v661 = vld [vmem:[%s1 + $0x14] sm:$0xf]
      %v662 = vld [vmem:[%s1 + $0x18] sm:$0xf]
      %v663 = vld [vmem:[%s1 + $0x1c] sm:$0xf]
      %v664 = vld [vmem:[%s1 + $0x20] sm:$0xf]
      %v665 = vld [vmem:[%s1 + $0x24] sm:$0xf]
      %v666 = vld [vmem:[%s1 + $0x28] sm:$0xf]
      %v667 = vld [vmem:[%s1 + $0x2c] sm:$0xf]
      %v668 = vld [vmem:[%s1 + $0x30] sm:$0xf]
      %v669 = vld [vmem:[%s1 + $0x34] sm:$0xf]
      %v670 = vld [vmem:[%s1 + $0x38] sm:$0xf]
      %v671 = vld [vmem:[%s1 + $0x3c] sm:$0xf]
      %v672 = vld [vmem:[%s2] sm:$0x1]
      %v674 = vlaneseq
      %v675 = vshrl.u32 %v674, 7
      %v676 = vsub.s32 0, %v675
      %v677 = vrot.slane %v672, %v676
      %v695 = vunpack.c.l.b16 %v656
      %v696 = vunpack.c.l.b16 %v657
      %v697 = vunpack.c.l.b16 %v658
      %v698 = vunpack.c.l.b16 %v659
      %v699 = vunpack.c.l.b16 %v660
      %v700 = vunpack.c.l.b16 %v661
      %v701 = vunpack.c.l.b16 %v662
      %v702 = vunpack.c.l.b16 %v663
      %v703 = vunpack.c.l.b16 %v664
      %v704 = vunpack.c.l.b16 %v665
      %v705 = vunpack.c.l.b16 %v666
      %v706 = vunpack.c.l.b16 %v667
      %v707 = vunpack.c.l.b16 %v668
      %v708 = vunpack.c.l.b16 %v669
      %v709 = vunpack.c.l.b16 %v670
      %v710 = vunpack.c.l.b16 %v671
      %v711 = vpack.c.b16 %v696, %v695
      %v712 = vpack.c.b16 %v698, %v697
      %v713 = vpack.c.b16 %v700, %v699
      %v714 = vpack.c.b16 %v702, %v701
      %v715 = vpack.c.b16 %v704, %v703
      %v716 = vpack.c.b16 %v706, %v705
      %v717 = vpack.c.b16 %v708, %v707
      %v718 = vpack.c.b16 %v710, %v709
      %727 = vmatprep.subr.bf16.mxu0 0
      %728 = vmatpush1.bf16.msra.mxu0 %v718
      %729 = vmatprep.subr.bf16.mxu0 0
      %730 = vmatpush1.bf16.msra.mxu0 %v717
      %731 = vmatprep.subr.bf16.mxu0 0
      %732 = vmatpush1.bf16.msra.mxu0 %v716
      %733 = vmatprep.subr.bf16.mxu0 0
      %734 = vmatpush1.bf16.msra.mxu0 %v715
      %735 = vmatprep.subr.bf16.mxu0 0
      %736 = vmatpush1.bf16.msra.mxu0 %v714
      %737 = vmatprep.subr.bf16.mxu0 0
      %738 = vmatpush1.bf16.msra.mxu0 %v713
      %739 = vmatprep.subr.bf16.mxu0 0
      %740 = vmatpush1.bf16.msra.mxu0 %v712
      %741 = vmatprep.subr.bf16.mxu0 0
      %742 = vmatpush1.bf16.msra.mxu0 %v711
      %743 = vmatprep.subr.bf16.mxu0 0
      %744 = vmatpush2.bf16.msra.mxu0 0
      %745 = vmatprep.subr.bf16.mxu0 0
      %746 = vmatpush2.bf16.msra.mxu0 0
      %747 = vmatprep.subr.bf16.mxu0 0
      %748 = vmatpush2.bf16.msra.mxu0 0
      %749 = vmatprep.subr.bf16.mxu0 0
      %750 = vmatpush2.bf16.msra.mxu0 0
      %751 = vmatprep.subr.bf16.mxu0 0
      %752 = vmatpush2.bf16.msra.mxu0 0
      %753 = vmatprep.subr.bf16.mxu0 0
      %754 = vmatpush2.bf16.msra.mxu0 0
      %755 = vmatprep.subr.bf16.mxu0 0
      %756 = vmatpush2.bf16.msra.mxu0 0
      %757 = vmatprep.subr.bf16.mxu0 0
      %758 = vmatpush2.bf16.msra.mxu0 0
      %759 = vmatprep.mubr.bf16.mxu0 0
      %760 = vmatmul.mubr.bf16.gmra.mxu0 %v654
      %v761 = vpop.f32.mrf.mxu0
      %v762 = vadd.f32 %v677, %v761
      %v763 = vpop.f32.mrf.mxu0
      %v764 = vpop.f32.mrf.mxu0
      %v765 = vadd.f32 %v677, %v764
      %v766 = vpop.f32.mrf.mxu0
      %767 = vmatprep.mubr.bf16.mxu0 0
      %768 = vmatmul.mubr.bf16.gmra.mxu0 %v655
      %v769 = vpop.f32.mrf.mxu0
      %v770 = vadd.f32 %v677, %v769
      %v771 = vpop.f32.mrf.mxu0
      %v772 = vpop.f32.mrf.mxu0
      %v773 = vadd.f32 %v677, %v772
      %v774 = vpop.f32.mrf.mxu0
      %775 = vdwg.mxu0
      %v776 = vmax.f32 %v762, 0.0
      %v777 = vmax.f32 %v765, 0.0
      %v778 = vmax.f32 %v770, 0.0
      %v779 = vmax.f32 %v773, 0.0
      %780 = vst.msk [vmem:[%s206] sm:$0xff] %vm277, %v776
      %781 = vst.msk [vmem:[%s206 + $0x8] sm:$0xff] %vm277, %v777
      %782 = vst.msk [vmem:[%s206 + $0x10] sm:$0xff] %vm277, %v778
      %vm783 = vcmask 516096
      %784 = vst.msk [vmem:[%s206 + $0x18] sm:$0x1] %vm783, %v779
      %p785 = scmp.lt.s32.totalorder %s18, 1
      %s786 = scalar_select %p785, %s18, 1
      %p787 = scmp.lt.s32.totalorder %s19, 0
      %s788 = scalar_select %p787, %s19, 0
      %s789 = smul.addr %s788, 4
      %s790 = smul.addr %s786, 4
      %s791 = sadd.s32 %s789, %s790
      %s792 = smul.addr %s791, 8
      %s793 = scalar_lea.vmem %s3, %s792
      // Predicated region
      $region33: #{advanced_phase_estimation_forward.14} parent=31 // pred_check
        %p794 = pneg %p116
      $region34: #{advanced_phase_estimation_forward.14} parent=31 // pred_check_branch
        %796 = sbr.rel (%p794) target = $region36
      $region35: #{advanced_phase_estimation_forward.14} parent=31 // pred_region
        _
      $region36: #{advanced_phase_estimation_forward.14} parent=31 // pred_fallthru
        _
    $region32: #{advanced_phase_estimation_forward.14} parent=5 // pred_fallthru
      _
    %p797 = scmp.le.s32.totalorder 2, %s9
    // Predicated region
    $region37: #{advanced_phase_estimation_forward.14} parent=5 // pred_check
      %p798 = pneg %p797
    $region38: #{advanced_phase_estimation_forward.14} parent=5 // pred_check_branch
      %800 = sbr.rel (%p798) target = $region40
    $region39: #{advanced_phase_estimation_forward.14} parent=5 // pred_region
      %s801 = ssub.s32 %s9, 2
      // Predicated region
      $region41: #{advanced_phase_estimation_forward.14} parent=39 // pred_check
        %p802 = pneg %p122
      $region42: #{advanced_phase_estimation_forward.14} parent=39 // pred_check_branch
        %804 = sbr.rel (%p802) target = $region44
      $region43: #{advanced_phase_estimation_forward.14} parent=39 // pred_region
        %p805 = scmp.lt.s32.totalorder %s20, 1
        %s806 = scalar_select %p805, %s20, 1
        %p807 = scmp.lt.s32.totalorder %s21, 0
        %s808 = scalar_select %p807, %s21, 0
        %s809 = smul.addr %s808, 4
        %s810 = smul.addr %s806, 4
        %s811 = sadd.s32 %s809, %s810
        %s812 = smul.addr %s811, 8
        %s813 = scalar_lea.vmem %s3, %s812
      $region44: #{advanced_phase_estimation_forward.14} parent=39 // pred_fallthru
        _
    $region40: #{advanced_phase_estimation_forward.14} parent=5 // pred_fallthru
      _
  $region6: #{advanced_phase_estimation_forward.14} parent=0 // loop_footer
    %s13 = sadd.s32 1, %s9
  $region7: #{advanced_phase_estimation_forward.14} parent=0 // loop_footer_branch
    %8 = sbr.rel target = $region3
  $region8: #{advanced_phase_estimation_forward.14} parent=0 // loop_exit
    _

// kernel: advanced_phase_estimation_forward.15
$region0: #{advanced_phase_estimation_forward.15}
  #allocation0 [shape = 'u32[]', space=smem, size = 0x4, offset = 0x4, fixed_abs, tag = 'smem constant byte address 0x4 - core index']
  #allocation1 [shape = 'u32[144,128]{1,0:T(1,128)}', space=vmem, size = 0x12000, scoped, tag = 'internal scratch']
  %s0 = inlined_call_operand.vmem [shape: f32[2,1,10,10,16], index: 0, kind: input, shape index: {}]
  %s1 = inlined_call_operand.vmem [shape: bf16[64,8], index: 1, kind: input, shape index: {}]
  %s2 = inlined_call_operand.vmem [shape: f32[1,8], index: 2, kind: input, shape index: {}]
  %s3 = inlined_call_operand.vmem [shape: f32[2,1,81,8], index: 3, kind: output, shape index: {}]
  %s4 = sld [smem:[#allocation0]]
  $region45: #{advanced_phase_estimation_forward.15} parent=0
    _
  %s6 = ssub.s32 1, %s4
  %s7 = scalar_select 0, %s6, %s4
  loop: start=0, step=1, limit=4
  $region2: #{advanced_phase_estimation_forward.15} parent=0 // loop_pre_header
    _
  $region3: #{advanced_phase_estimation_forward.15} parent=0 // loop_header
    %s9 = sphi 0, %s13
    %p10 = scmp.ge.s32.totalorder %s9, 4
    %s16 = sphi 0, %s28
    %s17 = sphi 0, %s24
    %s18 = sphi 0, %s16
    %s19 = sphi 0, %s17
    %s20 = sphi 0, %s18
    %s21 = sphi 0, %s19
    %s33 = sphi 0, %s35
    %s36 = sphi 0, %s33
    %s37 = sphi 0, %s36
    %s53 = sphi 0, %s37
    %s57 = sphi 0, %s57
    %s59 = sphi 0, %s57
    %s60 = sphi 0, %s59
    %s74 = sphi 0, %s60
    %s78 = sphi 0, %s78
    %s80 = sphi 0, %s78
    %s81 = sphi 0, %s80
    %s95 = sphi 0, %s81
    %s103 = sphi 0, %s105
    %s106 = sphi 0, %s103
    %s107 = sphi 0, %s106
    %s123 = sphi 0, %s107
  $region4: #{advanced_phase_estimation_forward.15} parent=0 // loop_header_branch
    %12 = sbr.rel (%p10) target = $region8
  $region5: #{advanced_phase_estimation_forward.15} parent=0 // loop_body
    %s14 = ssub.s32 %s9, 1
    %s15 = ssub.s32 %s9, 2
    %s22 = sadd.s32 1, %s17
    %p23 = scmp.ge.s32.totalorder %s22, 1
    %s24 = scalar_select %p23, 0, %s22
    %s25 = sadd.s32 1, %s16
    %s26 = scalar_select %p23, %s25, %s16
    %p27 = scmp.ge.s32.totalorder %s26, 2
    %s28 = scalar_select %p27, 0, %s26
    %s29 = ssub.s32 %s16, %s28
    %s30 = ssub.s32 %s17, %s24
    %s31 = sor.u32 %s29, %s30
    %p32 = scmp.eq.s32.totalorder %s31, 0
    %s34 = sadd.s32 %s33, 1
    %s35 = scalar_select %p32, %s33, %s34
    %p38 = pneg %p32
    %p39 = scmp.eq.s32.totalorder %s9, 1
    %p40 = por %p38, %p39
    %p41 = scmp.ne.s32.totalorder %s33, %s36
    %p42 = scmp.eq.s32.totalorder %s9, 0
    %p43 = por %p41, %p42
    %p44 = scmp.ne.s32.totalorder %s33, %s36
    %p45 = scmp.eq.s32.totalorder %s14, 1
    %p46 = por %p44, %p45
    %p47 = scmp.ne.s32.totalorder %s36, %s37
    %p48 = scmp.eq.s32.totalorder %s14, 0
    %p49 = por %p47, %p48
    %p50 = scmp.ne.s32.totalorder %s36, %s37
    %p51 = scmp.eq.s32.totalorder %s15, 1
    %p52 = por %p50, %p51
    %p54 = scmp.ne.s32.totalorder %s37, %s53
    %p55 = scmp.eq.s32.totalorder %s15, 0
    %p56 = por %p54, %p55
    %s58 = sadd.s32 %s57, 1
    %p61 = scmp.eq.s32.totalorder %s9, 1
    %p62 = scmp.ne.s32.totalorder %s57, %s59
    %p63 = scmp.eq.s32.totalorder %s9, 0
    %p64 = por %p62, %p63
    %p65 = scmp.ne.s32.totalorder %s57, %s59
    %p66 = scmp.eq.s32.totalorder %s14, 1
    %p67 = por %p65, %p66
    %p68 = scmp.ne.s32.totalorder %s59, %s60
    %p69 = scmp.eq.s32.totalorder %s14, 0
    %p70 = por %p68, %p69
    %p71 = scmp.ne.s32.totalorder %s59, %s60
    %p72 = scmp.eq.s32.totalorder %s15, 1
    %p73 = por %p71, %p72
    %p75 = scmp.ne.s32.totalorder %s60, %s74
    %p76 = scmp.eq.s32.totalorder %s15, 0
    %p77 = por %p75, %p76
    %s79 = sadd.s32 %s78, 1
    %p82 = scmp.eq.s32.totalorder %s9, 1
    %p83 = scmp.ne.s32.totalorder %s78, %s80
    %p84 = scmp.eq.s32.totalorder %s9, 0
    %p85 = por %p83, %p84
    %p86 = scmp.ne.s32.totalorder %s78, %s80
    %p87 = scmp.eq.s32.totalorder %s14, 1
    %p88 = por %p86, %p87
    %p89 = scmp.ne.s32.totalorder %s80, %s81
    %p90 = scmp.eq.s32.totalorder %s14, 0
    %p91 = por %p89, %p90
    %p92 = scmp.ne.s32.totalorder %s80, %s81
    %p93 = scmp.eq.s32.totalorder %s15, 1
    %p94 = por %p92, %p93
    %p96 = scmp.ne.s32.totalorder %s81, %s95
    %p97 = scmp.eq.s32.totalorder %s15, 0
    %p98 = por %p96, %p97
    %s99 = ssub.s32 %s16, %s28
    %s100 = ssub.s32 %s17, %s24
    %s101 = sor.u32 %s99, %s100
    %p102 = scmp.eq.s32.totalorder %s101, 0
    %s104 = sadd.s32 %s103, 1
    %s105 = scalar_select %p102, %s103, %s104
    %p108 = pneg %p102
    %p109 = scmp.eq.s32.totalorder %s9, 1
    %p110 = por %p108, %p109
    %p111 = scmp.ne.s32.totalorder %s103, %s106
    %p112 = scmp.eq.s32.totalorder %s9, 0
    %p113 = por %p111, %p112
    %p114 = scmp.ne.s32.totalorder %s103, %s106
    %p115 = scmp.eq.s32.totalorder %s14, 1
    %p116 = por %p114, %p115
    %p117 = scmp.ne.s32.totalorder %s106, %s107
    %p118 = scmp.eq.s32.totalorder %s14, 0
    %p119 = por %p117, %p118
    %p120 = scmp.ne.s32.totalorder %s106, %s107
    %p121 = scmp.eq.s32.totalorder %s15, 1
    %p122 = por %p120, %p121
    %p124 = scmp.ne.s32.totalorder %s107, %s123
    %p125 = scmp.eq.s32.totalorder %s15, 0
    %p126 = por %p124, %p125
    %p127 = scmp.le.s32.totalorder 1, %s9
    %p128 = scmp.lt.s32.totalorder %s9, 3
    %p129 = pnand %p127, %p128
    %p130 = pneg %p129
    // Predicated region
    $region9: #{advanced_phase_estimation_forward.15} parent=5 // pred_check
      _
    $region10: #{advanced_phase_estimation_forward.15} parent=5 // pred_check_branch
      %132 = sbr.rel (%p129) target = $region12
    $region11: #{advanced_phase_estimation_forward.15} parent=5 // pred_region
      %s133 = ssub.s32 %s9, 1
      // Predicated region
      $region13: #{advanced_phase_estimation_forward.15} parent=11 // pred_check
        %p134 = pneg %p70
      $region14: #{advanced_phase_estimation_forward.15} parent=11 // pred_check_branch
        %136 = sbr.rel (%p134) target = $region16
      $region15: #{advanced_phase_estimation_forward.15} parent=11 // pred_region
        _
      $region16: #{advanced_phase_estimation_forward.15} parent=11 // pred_fallthru
        _
      // Predicated region
      $region17: #{advanced_phase_estimation_forward.15} parent=11 // pred_check
        %p137 = pneg %p91
      $region18: #{advanced_phase_estimation_forward.15} parent=11 // pred_check_branch
        %139 = sbr.rel (%p137) target = $region20
      $region19: #{advanced_phase_estimation_forward.15} parent=11 // pred_region
        _
      $region20: #{advanced_phase_estimation_forward.15} parent=11 // pred_fallthru
        _
    $region12: #{advanced_phase_estimation_forward.15} parent=5 // pred_fallthru
      _
    %p140 = scmp.lt.s32.totalorder %s9, 2
    // Predicated region
    $region21: #{advanced_phase_estimation_forward.15} parent=5 // pred_check
      %p141 = pneg %p140
    $region22: #{advanced_phase_estimation_forward.15} parent=5 // pred_check_branch
      %143 = sbr.rel (%p141) target = $region24
    $region23: #{advanced_phase_estimation_forward.15} parent=5 // pred_region
      // Predicated region
      $region25: #{advanced_phase_estimation_forward.15} parent=23 // pred_check
        %p144 = pneg %p43
      $region26: #{advanced_phase_estimation_forward.15} parent=23 // pred_check_branch
        %146 = sbr.rel (%p144) target = $region28
      $region27: #{advanced_phase_estimation_forward.15} parent=23 // pred_region
        %p147 = scmp.lt.s32.totalorder %s16, 1
        %s148 = scalar_select %p147, %s16, 1
        %p149 = scmp.lt.s32.totalorder %s17, 0
        %s150 = scalar_select %p149, %s17, 0
        %s151 = smul.addr %s150, 20
        %s152 = smul.addr %s148, 20
        %s153 = sadd.s32 %s151, %s152
        %s154 = smul.addr %s153, 8
        %s155 = scalar_lea.vmem %s0, %s154
      $region28: #{advanced_phase_estimation_forward.15} parent=23 // pred_fallthru
        _
    $region24: #{advanced_phase_estimation_forward.15} parent=5 // pred_fallthru
      _
    %p156 = scmp.le.s32.totalorder 1, %s9
    %p157 = scmp.lt.s32.totalorder %s9, 3
    %p158 = pnand %p156, %p157
    %p159 = pneg %p158
    // Predicated region
    $region29: #{advanced_phase_estimation_forward.15} parent=5 // pred_check
      _
    $region30: #{advanced_phase_estimation_forward.15} parent=5 // pred_check_branch
      %161 = sbr.rel (%p158) target = $region32
    $region31: #{advanced_phase_estimation_forward.15} parent=5 // pred_region
      %s162 = ssub.s32 %s9, 1
      %p163 = scmp.lt.s32.totalorder %s18, 1
      %s164 = scalar_select %p163, %s18, 1
      %p165 = scmp.lt.s32.totalorder %s19, 0
      %s166 = scalar_select %p165, %s19, 0
      %s167 = smul.addr %s166, 20
      %s168 = smul.addr %s164, 20
      %s169 = sadd.s32 %s167, %s168
      %s170 = smul.addr %s169, 8
      %s171 = scalar_lea.vmem %s0, %s170
      %p172 = pneg %p49
      %p173 = pneg %p46
      %p174 = pneg %p70
      %p175 = pneg %p67
      %p176 = pneg %p91
      %p177 = pneg %p88
      %p178 = pneg %p119
      %p179 = pneg %p116
      %p180 = scmp.lt.s32.totalorder %s18, 1
      %s181 = scalar_select %p180, %s18, 1
      %p182 = scmp.lt.s32.totalorder %s19, 0
      %s183 = scalar_select %p182, %s19, 0
      %s184 = smul.addr %s183, 11
      %s185 = smul.addr %s181, 11
      %s186 = sadd.s32 %s184, %s185
      %s187 = smul.addr %s186, 8
      %s188 = scalar_lea.vmem %s3, %s187
      %p189 = scmp.lt.s32.totalorder %s18, 1
      %s190 = scalar_select %p189, %s18, 1
      %p191 = scmp.lt.s32.totalorder %s19, 0
      %s192 = scalar_select %p191, %s19, 0
      %s193 = smul.addr %s192, 20
      %s194 = smul.addr %s190, 20
      %s195 = sadd.s32 %s193, %s194
      %s196 = smul.addr %s195, 8
      %s197 = scalar_lea.vmem %s0, %s196
      %p198 = scmp.lt.s32.totalorder %s18, 1
      %s199 = scalar_select %p198, %s18, 1
      %p200 = scmp.lt.s32.totalorder %s19, 0
      %s201 = scalar_select %p200, %s19, 0
      %s202 = smul.addr %s201, 11
      %s203 = smul.addr %s199, 11
      %s204 = sadd.s32 %s202, %s203
      %s205 = smul.addr %s204, 8
      %s206 = scalar_lea.vmem %s3, %s205
      %v208 = vld [vmem:[%s197] sm:$0xff]
      %v209 = vld [vmem:[%s197 + $0x8] sm:$0x3]
      %v210 = vld [vmem:[%s197 + $0x10] sm:$0xff]
      %v211 = vld [vmem:[%s197 + $0x18] sm:$0x3]
      %v212 = vld [vmem:[%s197 + $0x20] sm:$0xff]
      %v213 = vld [vmem:[%s197 + $0x28] sm:$0x3]
      %v214 = vld [vmem:[%s197 + $0x30] sm:$0xff]
      %v215 = vld [vmem:[%s197 + $0x38] sm:$0x3]
      %v216 = vld [vmem:[%s197 + $0x40] sm:$0xff]
      %v217 = vld [vmem:[%s197 + $0x48] sm:$0x3]
      %v218 = vld [vmem:[%s197 + $0x50] sm:$0xff]
      %v219 = vld [vmem:[%s197 + $0x58] sm:$0x3]
      %v220 = vld [vmem:[%s197 + $0x60] sm:$0xff]
      %v221 = vld [vmem:[%s197 + $0x68] sm:$0x3]
      %v222 = vld [vmem:[%s197 + $0x70] sm:$0xff]
      %v223 = vld [vmem:[%s197 + $0x78] sm:$0x3]
      %v224 = vld [vmem:[%s197 + $0x80] sm:$0xff]
      %v225 = vld [vmem:[%s197 + $0x88] sm:$0x3]
      %v226 = vld [vmem:[%s197 + $0x90] sm:$0xff]
      %v227 = vld [vmem:[%s197 + $0x98] sm:$0x3]
      %vm246 = vcmask 1046528
      %v247 = vrot.slane %v208, 1
      %v248 = vrot.slane %v209, 1
      %v249 = vsel %vm246, %v247, %v248
      %v250 = vrot.slane %v210, 1
      %v251 = vrot.slane %v211, 1
      %v252 = vsel %vm246, %v250, %v251
      %v253 = vrot.slane %v212, 1
      %v254 = vrot.slane %v213, 1
      %v255 = vsel %vm246, %v253, %v254
      %v256 = vrot.slane %v214, 1
      %v257 = vrot.slane %v215, 1
      %v258 = vsel %vm246, %v256, %v257
      %v259 = vrot.slane %v216, 1
      %v260 = vrot.slane %v217, 1
      %v261 = vsel %vm246, %v259, %v260
      %v262 = vrot.slane %v218, 1
      %v263 = vrot.slane %v219, 1
      %v264 = vsel %vm246, %v262, %v263
      %v265 = vrot.slane %v220, 1
      %v266 = vrot.slane %v221, 1
      %v267 = vsel %vm246, %v265, %v266
      %v268 = vrot.slane %v222, 1
      %v269 = vrot.slane %v223, 1
      %v270 = vsel %vm246, %v268, %v269
      %v271 = vrot.slane %v224, 1
      %v272 = vrot.slane %v225, 1
      %v273 = vsel %vm246, %v271, %v272
      %274 = vrot.lane.b32.xlu0 %v249, 16
      %v275 = vpop.permute.xlu0 %274
      %276 = vrot.lane.b32.xlu0 %v248, 16
      %v277 = vpop.permute.xlu0 %276
      %278 = vrot.lane.b32.xlu0 %v252, 16
      %v279 = vpop.permute.xlu0 %278
      %280 = vrot.lane.b32.xlu0 %v251, 16
      %v281 = vpop.permute.xlu0 %280
      %282 = vrot.lane.b32.xlu0 %v255, 16
      %v283 = vpop.permute.xlu0 %282
      %284 = vrot.lane.b32.xlu0 %v254, 16
      %v285 = vpop.permute.xlu0 %284
      %286 = vrot.lane.b32.xlu0 %v258, 16
      %v287 = vpop.permute.xlu0 %286
      %288 = vrot.lane.b32.xlu0 %v257, 16
      %v289 = vpop.permute.xlu0 %288
      %290 = vrot.lane.b32.xlu0 %v261, 16
      %v291 = vpop.permute.xlu0 %290
      %292 = vrot.lane.b32.xlu0 %v260, 16
      %v293 = vpop.permute.xlu0 %292
      %294 = vrot.lane.b32.xlu0 %v264, 16
      %v295 = vpop.permute.xlu0 %294
      %296 = vrot.lane.b32.xlu0 %v263, 16
      %v297 = vpop.permute.xlu0 %296
      %298 = vrot.lane.b32.xlu0 %v267, 16
      %v299 = vpop.permute.xlu0 %298
      %300 = vrot.lane.b32.xlu0 %v266, 16
      %v301 = vpop.permute.xlu0 %300
      %302 = vrot.lane.b32.xlu0 %v270, 16
      %v303 = vpop.permute.xlu0 %302
      %304 = vrot.lane.b32.xlu0 %v269, 16
      %v305 = vpop.permute.xlu0 %304
      %306 = vrot.lane.b32.xlu0 %v273, 16
      %v307 = vpop.permute.xlu0 %306
      %308 = vrot.lane.b32.xlu0 %v272, 16
      %v309 = vpop.permute.xlu0 %308
      %330 = vrot.lane.b32.xlu0 %v210, 32
      %v331 = vpop.permute.xlu0 %330
      %332 = vrot.lane.b32.xlu0 %v211, 32
      %v333 = vpop.permute.xlu0 %332
      %334 = vrot.lane.b32.xlu0 %v212, 32
      %v335 = vpop.permute.xlu0 %334
      %336 = vrot.lane.b32.xlu0 %v213, 32
      %v337 = vpop.permute.xlu0 %336
      %338 = vrot.lane.b32.xlu0 %v214, 32
      %v339 = vpop.permute.xlu0 %338
      %340 = vrot.lane.b32.xlu0 %v215, 32
      %v341 = vpop.permute.xlu0 %340
      %342 = vrot.lane.b32.xlu0 %v216, 32
      %v343 = vpop.permute.xlu0 %342
      %344 = vrot.lane.b32.xlu0 %v217, 32
      %v345 = vpop.permute.xlu0 %344
      %346 = vrot.lane.b32.xlu0 %v218, 32
      %v347 = vpop.permute.xlu0 %346
      %348 = vrot.lane.b32.xlu0 %v219, 32
      %v349 = vpop.permute.xlu0 %348
      %350 = vrot.lane.b32.xlu0 %v220, 32
      %v351 = vpop.permute.xlu0 %350
      %352 = vrot.lane.b32.xlu0 %v221, 32
      %v353 = vpop.permute.xlu0 %352
      %354 = vrot.lane.b32.xlu0 %v222, 32
      %v355 = vpop.permute.xlu0 %354
      %356 = vrot.lane.b32.xlu0 %v223, 32
      %v357 = vpop.permute.xlu0 %356
      %358 = vrot.lane.b32.xlu0 %v224, 32
      %v359 = vpop.permute.xlu0 %358
      %360 = vrot.lane.b32.xlu0 %v225, 32
      %v361 = vpop.permute.xlu0 %360
      %362 = vrot.lane.b32.xlu0 %v226, 32
      %v363 = vpop.permute.xlu0 %362
      %364 = vrot.lane.b32.xlu0 %v227, 32
      %v365 = vpop.permute.xlu0 %364
      %v384 = vrot.slane %v226, 1
      %v385 = vrot.slane %v227, 1
      %v386 = vsel %vm246, %v384, %v385
      %387 = vrot.lane.b32.xlu0 %v252, 48
      %v388 = vpop.permute.xlu0 %387
      %389 = vrot.lane.b32.xlu0 %v251, 48
      %v390 = vpop.permute.xlu0 %389
      %391 = vrot.lane.b32.xlu0 %v255, 48
      %v392 = vpop.permute.xlu0 %391
      %393 = vrot.lane.b32.xlu0 %v254, 48
      %v394 = vpop.permute.xlu0 %393
      %395 = vrot.lane.b32.xlu0 %v258, 48
      %v396 = vpop.permute.xlu0 %395
      %397 = vrot.lane.b32.xlu0 %v257, 48
      %v398 = vpop.permute.xlu0 %397
      %399 = vrot.lane.b32.xlu0 %v261, 48
      %v400 = vpop.permute.xlu0 %399
      %401 = vrot.lane.b32.xlu0 %v260, 48
      %v402 = vpop.permute.xlu0 %401
      %403 = vrot.lane.b32.xlu0 %v264, 48
      %v404 = vpop.permute.xlu0 %403
      %405 = vrot.lane.b32.xlu0 %v263, 48
      %v406 = vpop.permute.xlu0 %405
      %407 = vrot.lane.b32.xlu0 %v267, 48
      %v408 = vpop.permute.xlu0 %407
      %409 = vrot.lane.b32.xlu0 %v266, 48
      %v410 = vpop.permute.xlu0 %409
      %411 = vrot.lane.b32.xlu0 %v270, 48
      %v412 = vpop.permute.xlu0 %411
      %413 = vrot.lane.b32.xlu0 %v269, 48
      %v414 = vpop.permute.xlu0 %413
      %415 = vrot.lane.b32.xlu0 %v273, 48
      %v416 = vpop.permute.xlu0 %415
      %417 = vrot.lane.b32.xlu0 %v272, 48
      %v418 = vpop.permute.xlu0 %417
      %419 = vrot.lane.b32.xlu0 %v386, 48
      %v420 = vpop.permute.xlu0 %419
      %421 = vrot.lane.b32.xlu0 %v385, 48
      %v422 = vpop.permute.xlu0 %421
      %vm441 = vcmask 130048
      %v442 = vsel %vm441, %v208, %v275
      %v443 = vsel %vm441, %v209, %v277
      %v444 = vsel %vm441, %v210, %v279
      %v445 = vsel %vm441, %v211, %v281
      %v446 = vsel %vm441, %v212, %v283
      %v447 = vsel %vm441, %v213, %v285
      %v448 = vsel %vm441, %v214, %v287
      %v449 = vsel %vm441, %v215, %v289
      %v450 = vsel %vm441, %v216, %v291
      %v451 = vsel %vm441, %v217, %v293
      %v452 = vsel %vm441, %v218, %v295
      %v453 = vsel %vm441, %v219, %v297
      %v454 = vsel %vm441, %v220, %v299
      %v455 = vsel %vm441, %v221, %v301
      %v456 = vsel %vm441, %v222, %v303
      %v457 = vsel %vm441, %v223, %v305
      %v458 = vsel %vm441, %v224, %v307
      %v459 = vsel %vm441, %v225, %v309
      %vm460 = vcmask 261120
      %v461 = vsel %vm460, %v442, %v331
      %v462 = vsel %vm460, %v443, %v333
      %v463 = vsel %vm460, %v444, %v335
      %v464 = vsel %vm460, %v445, %v337
      %v465 = vsel %vm460, %v446, %v339
      %v466 = vsel %vm460, %v447, %v341
      %v467 = vsel %vm460, %v448, %v343
      %v468 = vsel %vm460, %v449, %v345
      %v469 = vsel %vm460, %v450, %v347
      %v470 = vsel %vm460, %v451, %v349
      %v471 = vsel %vm460, %v452, %v351
      %v472 = vsel %vm460, %v453, %v353
      %v473 = vsel %vm460, %v454, %v355
      %v474 = vsel %vm460, %v455, %v357
      %v475 = vsel %vm460, %v456, %v359
      %v476 = vsel %vm460, %v457, %v361
      %v477 = vsel %vm460, %v458, %v363
      %v478 = vsel %vm460, %v459, %v365
      %vm479 = vcmask 392192
      %v480 = vsel %vm479, %v461, %v388
      %v481 = vsel %vm479, %v462, %v390
      %v482 = vsel %vm479, %v463, %v392
      %v483 = vsel %vm479, %v464, %v394
      %v484 = vsel %vm479, %v465, %v396
      %v485 = vsel %vm479, %v466, %v398
      %v486 = vsel %vm479, %v467, %v400
      %v487 = vsel %vm479, %v468, %v402
      %v488 = vsel %vm479, %v469, %v404
      %v489 = vsel %vm479, %v470, %v406
      %v490 = vsel %vm479, %v471, %v408
      %v491 = vsel %vm479, %v472, %v410
      %v492 = vsel %vm479, %v473, %v412
      %v493 = vsel %vm479, %v474, %v414
      %v494 = vsel %vm479, %v475, %v416
      %v495 = vsel %vm479, %v476, %v418
      %v496 = vsel %vm479, %v477, %v420
      %v497 = vsel %vm479, %v478, %v422
      %v516 = vcombine.high %v480, %v480
      %v518 = vunpack.c.l.s4 1966171168
      %v519 = vunpack.c.0.s8 %v518
      %v520 = vlaneseq
      %v521 = vshrl.u32 %v520, 7
      %v522 = vsub.s32 %v519, %v521
      %v523 = vrot.slane %v480, %v522
      %v525 = vunpack.c.l.s4 1966171168
      %v526 = vunpack.c.0.s8 %v525
      %v527 = vlaneseq
      %v528 = vshrl.u32 %v527, 7
      %v529 = vsub.s32 %v526, %v528
      %v530 = vrot.slane %v516, %v529
      %v531 = vcombine.high %v523, %v523
      %v532 = vcombine.high %v530, %v530
      %v534 = vunpack.c.l.s4 1966171168
      %v535 = vunpack.c.0.s8 %v534
      %v536 = vlaneseq
      %v537 = vshrl.u32 %v536, 7
      %v538 = vsub.s32 %v535, %v537
      %v539 = vrot.slane %v523, %v538
      %v541 = vunpack.c.l.s4 1966171168
      %v542 = vunpack.c.0.s8 %v541
      %v543 = vlaneseq
      %v544 = vshrl.u32 %v543, 7
      %v545 = vsub.s32 %v542, %v544
      %v546 = vrot.slane %v530, %v545
      %v548 = vunpack.c.l.s4 1966171168
      %v549 = vunpack.c.0.s8 %v548
      %v550 = vlaneseq
      %v551 = vshrl.u32 %v550, 7
      %v552 = vsub.s32 %v549, %v551
      %v553 = vrot.slane %v531, %v552
      %v555 = vunpack.c.l.s4 1966171168
      %v556 = vunpack.c.0.s8 %v555
      %v557 = vlaneseq
      %v558 = vshrl.u32 %v557, 7
      %v559 = vsub.s32 %v556, %v558
      %v560 = vrot.slane %v532, %v559
      %v561 = vcombine.high %v539, %v539
      %v562 = vcombine.high %v546, %v546
      %v563 = vcombine.high %v553, %v553
      %v564 = vcombine.high %v560, %v560
      %v566 = vunpack.c.l.s4 1966171168
      %v567 = vunpack.c.0.s8 %v566
      %v568 = vlaneseq
      %v569 = vshrl.u32 %v568, 7
      %v570 = vsub.s32 %v567, %v569
      %v571 = vrot.slane %v481, %v570
      %v573 = vunpack.c.l.s4 1966171168
      %v574 = vunpack.c.0.s8 %v573
      %v575 = vlaneseq
      %v576 = vshrl.u32 %v575, 7
      %v577 = vsub.s32 %v574, %v576
      %v578 = vrot.slane %v571, %v577
      %v579 = vcombine.high %v482, %v482
      %v581 = vunpack.c.l.s4 1966171168
      %v582 = vunpack.c.0.s8 %v581
      %v583 = vlaneseq
      %v584 = vshrl.u32 %v583, 7
      %v585 = vsub.s32 %v582, %v584
      %v586 = vrot.slane %v482, %v585
      %v588 = vunpack.c.l.s4 1966171168
      %v589 = vunpack.c.0.s8 %v588
      %v590 = vlaneseq
      %v591 = vshrl.u32 %v590, 7
      %v592 = vsub.s32 %v589, %v591
      %v593 = vrot.slane %v579, %v592
      %v594 = vcombine.high %v586, %v586
      %v595 = vcombine.high %v593, %v593
      %v597 = vunpack.c.l.s4 1966171168
      %v598 = vunpack.c.0.s8 %v597
      %v599 = vlaneseq
      %v600 = vshrl.u32 %v599, 7
      %v601 = vsub.s32 %v598, %v600
      %v602 = vrot.slane %v586, %v601
      %v604 = vunpack.c.l.s4 1966171168
      %v605 = vunpack.c.0.s8 %v604
      %v606 = vlaneseq
      %v607 = vshrl.u32 %v606, 7
      %v608 = vsub.s32 %v605, %v607
      %v609 = vrot.slane %v593, %v608
      %v611 = vunpack.c.l.s4 1966171168
      %v612 = vunpack.c.0.s8 %v611
      %v613 = vlaneseq
      %v614 = vshrl.u32 %v613, 7
      %v615 = vsub.s32 %v612, %v614
      %v616 = vrot.slane %v594, %v615
      %v618 = vunpack.c.l.s4 1966171168
      %v619 = vunpack.c.0.s8 %v618
      %v620 = vlaneseq
      %v621 = vshrl.u32 %v620, 7
      %v622 = vsub.s32 %v619, %v621
      %v623 = vrot.slane %v595, %v622
      %v624 = vcombine.high %v602, %v602
      %v625 = vcombine.high %v609, %v609
      %v626 = vcombine.high %v616, %v616
      %v627 = vcombine.high %v623, %v623
      %v629 = vunpack.c.l.s4 1966171168
      %v630 = vunpack.c.0.s8 %v629
      %v631 = vlaneseq
      %v632 = vshrl.u32 %v631, 7
      %v633 = vsub.s32 %v630, %v632
      %v634 = vrot.slane %v483, %v633
      %v636 = vunpack.c.l.s4 1966171168
      %v637 = vunpack.c.0.s8 %v636
      %v638 = vlaneseq
      %v639 = vshrl.u32 %v638, 7
      %v640 = vsub.s32 %v637, %v639
      %v641 = vrot.slane %v634, %v640
      %v642 = vcombine.high %v484, %v484
      %v644 = vunpack.c.l.s4 1966171168
      %v645 = vunpack.c.0.s8 %v644
      %v646 = vlaneseq
      %v647 = vshrl.u32 %v646, 7
      %v648 = vsub.s32 %v645, %v647
      %v649 = vrot.slane %v484, %v648
      %v651 = vunpack.c.l.s4 1966171168
      %v652 = vunpack.c.0.s8 %v651
      %v653 = vlaneseq
      %v654 = vshrl.u32 %v653, 7
      %v655 = vsub.s32 %v652, %v654
      %v656 = vrot.slane %v642, %v655
      %v657 = vcombine.high %v649, %v649
      %v658 = vcombine.high %v656, %v656
      %v660 = vunpack.c.l.s4 1966171168
      %v661 = vunpack.c.0.s8 %v660
      %v662 = vlaneseq
      %v663 = vshrl.u32 %v662, 7
      %v664 = vsub.s32 %v661, %v663
      %v665 = vrot.slane %v649, %v664
      %v667 = vunpack.c.l.s4 1966171168
      %v668 = vunpack.c.0.s8 %v667
      %v669 = vlaneseq
      %v670 = vshrl.u32 %v669, 7
      %v671 = vsub.s32 %v668, %v670
      %v672 = vrot.slane %v656, %v671
      %v674 = vunpack.c.l.s4 1966171168
      %v675 = vunpack.c.0.s8 %v674
      %v676 = vlaneseq
      %v677 = vshrl.u32 %v676, 7
      %v678 = vsub.s32 %v675, %v677
      %v679 = vrot.slane %v657, %v678
      %v681 = vunpack.c.l.s4 1966171168
      %v682 = vunpack.c.0.s8 %v681
      %v683 = vlaneseq
      %v684 = vshrl.u32 %v683, 7
      %v685 = vsub.s32 %v682, %v684
      %v686 = vrot.slane %v658, %v685
      %v687 = vcombine.high %v665, %v665
      %v688 = vcombine.high %v672, %v672
      %v689 = vcombine.high %v679, %v679
      %v690 = vcombine.high %v686, %v686
      %v692 = vunpack.c.l.s4 1966171168
      %v693 = vunpack.c.0.s8 %v692
      %v694 = vlaneseq
      %v695 = vshrl.u32 %v694, 7
      %v696 = vsub.s32 %v693, %v695
      %v697 = vrot.slane %v485, %v696
      %v699 = vunpack.c.l.s4 1966171168
      %v700 = vunpack.c.0.s8 %v699
      %v701 = vlaneseq
      %v702 = vshrl.u32 %v701, 7
      %v703 = vsub.s32 %v700, %v702
      %v704 = vrot.slane %v697, %v703
      %v705 = vcombine.high %v486, %v486
      %v707 = vunpack.c.l.s4 1966171168
      %v708 = vunpack.c.0.s8 %v707
      %v709 = vlaneseq
      %v710 = vshrl.u32 %v709, 7
      %v711 = vsub.s32 %v708, %v710
      %v712 = vrot.slane %v486, %v711
      %v714 = vunpack.c.l.s4 1966171168
      %v715 = vunpack.c.0.s8 %v714
      %v716 = vlaneseq
      %v717 = vshrl.u32 %v716, 7
      %v718 = vsub.s32 %v715, %v717
      %v719 = vrot.slane %v705, %v718
      %v720 = vcombine.high %v712, %v712
      %v721 = vcombine.high %v719, %v719
      %v723 = vunpack.c.l.s4 1966171168
      %v724 = vunpack.c.0.s8 %v723
      %v725 = vlaneseq
      %v726 = vshrl.u32 %v725, 7
      %v727 = vsub.s32 %v724, %v726
      %v728 = vrot.slane %v712, %v727
      %v730 = vunpack.c.l.s4 1966171168
      %v731 = vunpack.c.0.s8 %v730
      %v732 = vlaneseq
      %v733 = vshrl.u32 %v732, 7
      %v734 = vsub.s32 %v731, %v733
      %v735 = vrot.slane %v719, %v734
      %v737 = vunpack.c.l.s4 1966171168
      %v738 = vunpack.c.0.s8 %v737
      %v739 = vlaneseq
      %v740 = vshrl.u32 %v739, 7
      %v741 = vsub.s32 %v738, %v740
      %v742 = vrot.slane %v720, %v741
      %v744 = vunpack.c.l.s4 1966171168
      %v745 = vunpack.c.0.s8 %v744
      %v746 = vlaneseq
      %v747 = vshrl.u32 %v746, 7
      %v748 = vsub.s32 %v745, %v747
      %v749 = vrot.slane %v721, %v748
      %v750 = vcombine.high %v728, %v728
      %v751 = vcombine.high %v735, %v735
      %v752 = vcombine.high %v742, %v742
      %v753 = vcombine.high %v749, %v749
      %v755 = vunpack.c.l.s4 1966171168
      %v756 = vunpack.c.0.s8 %v755
      %v757 = vlaneseq
      %v758 = vshrl.u32 %v757, 7
      %v759 = vsub.s32 %v756, %v758
      %v760 = vrot.slane %v487, %v759
      %v762 = vunpack.c.l.s4 1966171168
      %v763 = vunpack.c.0.s8 %v762
      %v764 = vlaneseq
      %v765 = vshrl.u32 %v764, 7
      %v766 = vsub.s32 %v763, %v765
      %v767 = vrot.slane %v760, %v766
      %v768 = vcombine.high %v488, %v488
      %v770 = vunpack.c.l.s4 1966171168
      %v771 = vunpack.c.0.s8 %v770
      %v772 = vlaneseq
      %v773 = vshrl.u32 %v772, 7
      %v774 = vsub.s32 %v771, %v773
      %v775 = vrot.slane %v488, %v774
      %v777 = vunpack.c.l.s4 1966171168
      %v778 = vunpack.c.0.s8 %v777
      %v779 = vlaneseq
      %v780 = vshrl.u32 %v779, 7
      %v781 = vsub.s32 %v778, %v780
      %v782 = vrot.slane %v768, %v781
      %v783 = vcombine.high %v775, %v775
      %v784 = vcombine.high %v782, %v782
      %v786 = vunpack.c.l.s4 1966171168
      %v787 = vunpack.c.0.s8 %v786
      %v788 = vlaneseq
      %v789 = vshrl.u32 %v788, 7
      %v790 = vsub.s32 %v787, %v789
      %v791 = vrot.slane %v775, %v790
      %v793 = vunpack.c.l.s4 1966171168
      %v794 = vunpack.c.0.s8 %v793
      %v795 = vlaneseq
      %v796 = vshrl.u32 %v795, 7
      %v797 = vsub.s32 %v794, %v796
      %v798 = vrot.slane %v782, %v797
      %v800 = vunpack.c.l.s4 1966171168
      %v801 = vunpack.c.0.s8 %v800
      %v802 = vlaneseq
      %v803 = vshrl.u32 %v802, 7
      %v804 = vsub.s32 %v801, %v803
      %v805 = vrot.slane %v783, %v804
      %v807 = vunpack.c.l.s4 1966171168
      %v808 = vunpack.c.0.s8 %v807
      %v809 = vlaneseq
      %v810 = vshrl.u32 %v809, 7
      %v811 = vsub.s32 %v808, %v810
      %v812 = vrot.slane %v784, %v811
      %v813 = vcombine.high %v791, %v791
      %v814 = vcombine.high %v798, %v798
      %v815 = vcombine.high %v805, %v805
      %v816 = vcombine.high %v812, %v812
      %v818 = vunpack.c.l.s4 1966171168
      %v819 = vunpack.c.0.s8 %v818
      %v820 = vlaneseq
      %v821 = vshrl.u32 %v820, 7
      %v822 = vsub.s32 %v819, %v821
      %v823 = vrot.slane %v489, %v822
      %v825 = vunpack.c.l.s4 1966171168
      %v826 = vunpack.c.0.s8 %v825
      %v827 = vlaneseq
      %v828 = vshrl.u32 %v827, 7
      %v829 = vsub.s32 %v826, %v828
      %v830 = vrot.slane %v823, %v829
      %v831 = vcombine.high %v490, %v490
      %v833 = vunpack.c.l.s4 1966171168
      %v834 = vunpack.c.0.s8 %v833
      %v835 = vlaneseq
      %v836 = vshrl.u32 %v835, 7
      %v837 = vsub.s32 %v834, %v836
      %v838 = vrot.slane %v490, %v837
      %v840 = vunpack.c.l.s4 1966171168
      %v841 = vunpack.c.0.s8 %v840
      %v842 = vlaneseq
      %v843 = vshrl.u32 %v842, 7
      %v844 = vsub.s32 %v841, %v843
      %v845 = vrot.slane %v831, %v844
      %v846 = vcombine.high %v838, %v838
      %v847 = vcombine.high %v845, %v845
      %v849 = vunpack.c.l.s4 1966171168
      %v850 = vunpack.c.0.s8 %v849
      %v851 = vlaneseq
      %v852 = vshrl.u32 %v851, 7
      %v853 = vsub.s32 %v850, %v852
      %v854 = vrot.slane %v838, %v853
      %v856 = vunpack.c.l.s4 1966171168
      %v857 = vunpack.c.0.s8 %v856
      %v858 = vlaneseq
      %v859 = vshrl.u32 %v858, 7
      %v860 = vsub.s32 %v857, %v859
      %v861 = vrot.slane %v845, %v860
      %v863 = vunpack.c.l.s4 1966171168
      %v864 = vunpack.c.0.s8 %v863
      %v865 = vlaneseq
      %v866 = vshrl.u32 %v865, 7
      %v867 = vsub.s32 %v864, %v866
      %v868 = vrot.slane %v846, %v867
      %v870 = vunpack.c.l.s4 1966171168
      %v871 = vunpack.c.0.s8 %v870
      %v872 = vlaneseq
      %v873 = vshrl.u32 %v872, 7
      %v874 = vsub.s32 %v871, %v873
      %v875 = vrot.slane %v847, %v874
      %v876 = vcombine.high %v854, %v854
      %v877 = vcombine.high %v861, %v861
      %v878 = vcombine.high %v868, %v868
      %v879 = vcombine.high %v875, %v875
      %v881 = vunpack.c.l.s4 1966171168
      %v882 = vunpack.c.0.s8 %v881
      %v883 = vlaneseq
      %v884 = vshrl.u32 %v883, 7
      %v885 = vsub.s32 %v882, %v884
      %v886 = vrot.slane %v491, %v885
      %v888 = vunpack.c.l.s4 1966171168
      %v889 = vunpack.c.0.s8 %v888
      %v890 = vlaneseq
      %v891 = vshrl.u32 %v890, 7
      %v892 = vsub.s32 %v889, %v891
      %v893 = vrot.slane %v886, %v892
      %v894 = vcombine.high %v492, %v492
      %v896 = vunpack.c.l.s4 1966171168
      %v897 = vunpack.c.0.s8 %v896
      %v898 = vlaneseq
      %v899 = vshrl.u32 %v898, 7
      %v900 = vsub.s32 %v897, %v899
      %v901 = vrot.slane %v492, %v900
      %v903 = vunpack.c.l.s4 1966171168
      %v904 = vunpack.c.0.s8 %v903
      %v905 = vlaneseq
      %v906 = vshrl.u32 %v905, 7
      %v907 = vsub.s32 %v904, %v906
      %v908 = vrot.slane %v894, %v907
      %v909 = vcombine.high %v901, %v901
      %v910 = vcombine.high %v908, %v908
      %v912 = vunpack.c.l.s4 1966171168
      %v913 = vunpack.c.0.s8 %v912
      %v914 = vlaneseq
      %v915 = vshrl.u32 %v914, 7
      %v916 = vsub.s32 %v913, %v915
      %v917 = vrot.slane %v901, %v916
      %v919 = vunpack.c.l.s4 1966171168
      %v920 = vunpack.c.0.s8 %v919
      %v921 = vlaneseq
      %v922 = vshrl.u32 %v921, 7
      %v923 = vsub.s32 %v920, %v922
      %v924 = vrot.slane %v908, %v923
      %v926 = vunpack.c.l.s4 1966171168
      %v927 = vunpack.c.0.s8 %v926
      %v928 = vlaneseq
      %v929 = vshrl.u32 %v928, 7
      %v930 = vsub.s32 %v927, %v929
      %v931 = vrot.slane %v909, %v930
      %v933 = vunpack.c.l.s4 1966171168
      %v934 = vunpack.c.0.s8 %v933
      %v935 = vlaneseq
      %v936 = vshrl.u32 %v935, 7
      %v937 = vsub.s32 %v934, %v936
      %v938 = vrot.slane %v910, %v937
      %v939 = vcombine.high %v917, %v917
      %v940 = vcombine.high %v924, %v924
      %v941 = vcombine.high %v931, %v931
      %v942 = vcombine.high %v938, %v938
      %v944 = vunpack.c.l.s4 1966171168
      %v945 = vunpack.c.0.s8 %v944
      %v946 = vlaneseq
      %v947 = vshrl.u32 %v946, 7
      %v948 = vsub.s32 %v945, %v947
      %v949 = vrot.slane %v493, %v948
      %v951 = vunpack.c.l.s4 1966171168
      %v952 = vunpack.c.0.s8 %v951
      %v953 = vlaneseq
      %v954 = vshrl.u32 %v953, 7
      %v955 = vsub.s32 %v952, %v954
      %v956 = vrot.slane %v949, %v955
      %v957 = vcombine.high %v494, %v494
      %v959 = vunpack.c.l.s4 1966171168
      %v960 = vunpack.c.0.s8 %v959
      %v961 = vlaneseq
      %v962 = vshrl.u32 %v961, 7
      %v963 = vsub.s32 %v960, %v962
      %v964 = vrot.slane %v494, %v963
      %v966 = vunpack.c.l.s4 1966171168
      %v967 = vunpack.c.0.s8 %v966
      %v968 = vlaneseq
      %v969 = vshrl.u32 %v968, 7
      %v970 = vsub.s32 %v967, %v969
      %v971 = vrot.slane %v957, %v970
      %v972 = vcombine.high %v964, %v964
      %v973 = vcombine.high %v971, %v971
      %v975 = vunpack.c.l.s4 1966171168
      %v976 = vunpack.c.0.s8 %v975
      %v977 = vlaneseq
      %v978 = vshrl.u32 %v977, 7
      %v979 = vsub.s32 %v976, %v978
      %v980 = vrot.slane %v964, %v979
      %v982 = vunpack.c.l.s4 1966171168
      %v983 = vunpack.c.0.s8 %v982
      %v984 = vlaneseq
      %v985 = vshrl.u32 %v984, 7
      %v986 = vsub.s32 %v983, %v985
      %v987 = vrot.slane %v971, %v986
      %v989 = vunpack.c.l.s4 1966171168
      %v990 = vunpack.c.0.s8 %v989
      %v991 = vlaneseq
      %v992 = vshrl.u32 %v991, 7
      %v993 = vsub.s32 %v990, %v992
      %v994 = vrot.slane %v972, %v993
      %v996 = vunpack.c.l.s4 1966171168
      %v997 = vunpack.c.0.s8 %v996
      %v998 = vlaneseq
      %v999 = vshrl.u32 %v998, 7
      %v1000 = vsub.s32 %v997, %v999
      %v1001 = vrot.slane %v973, %v1000
      %v1002 = vcombine.high %v980, %v980
      %v1003 = vcombine.high %v987, %v987
      %v1004 = vcombine.high %v994, %v994
      %v1005 = vcombine.high %v1001, %v1001
      %v1007 = vunpack.c.l.s4 1966171168
      %v1008 = vunpack.c.0.s8 %v1007
      %v1009 = vlaneseq
      %v1010 = vshrl.u32 %v1009, 7
      %v1011 = vsub.s32 %v1008, %v1010
      %v1012 = vrot.slane %v495, %v1011
      %v1014 = vunpack.c.l.s4 1966171168
      %v1015 = vunpack.c.0.s8 %v1014
      %v1016 = vlaneseq
      %v1017 = vshrl.u32 %v1016, 7
      %v1018 = vsub.s32 %v1015, %v1017
      %v1019 = vrot.slane %v1012, %v1018
      %v1020 = vcombine.high %v496, %v496
      %v1022 = vunpack.c.l.s4 1966171168
      %v1023 = vunpack.c.0.s8 %v1022
      %v1024 = vlaneseq
      %v1025 = vshrl.u32 %v1024, 7
      %v1026 = vsub.s32 %v1023, %v1025
      %v1027 = vrot.slane %v496, %v1026
      %v1029 = vunpack.c.l.s4 1966171168
      %v1030 = vunpack.c.0.s8 %v1029
      %v1031 = vlaneseq
      %v1032 = vshrl.u32 %v1031, 7
      %v1033 = vsub.s32 %v1030, %v1032
      %v1034 = vrot.slane %v1020, %v1033
      %v1035 = vcombine.high %v1027, %v1027
      %v1036 = vcombine.high %v1034, %v1034
      %v1038 = vunpack.c.l.s4 1966171168
      %v1039 = vunpack.c.0.s8 %v1038
      %v1040 = vlaneseq
      %v1041 = vshrl.u32 %v1040, 7
      %v1042 = vsub.s32 %v1039, %v1041
      %v1043 = vrot.slane %v1027, %v1042
      %v1045 = vunpack.c.l.s4 1966171168
      %v1046 = vunpack.c.0.s8 %v1045
      %v1047 = vlaneseq
      %v1048 = vshrl.u32 %v1047, 7
      %v1049 = vsub.s32 %v1046, %v1048
      %v1050 = vrot.slane %v1034, %v1049
      %v1052 = vunpack.c.l.s4 1966171168
      %v1053 = vunpack.c.0.s8 %v1052
      %v1054 = vlaneseq
      %v1055 = vshrl.u32 %v1054, 7
      %v1056 = vsub.s32 %v1053, %v1055
      %v1057 = vrot.slane %v1035, %v1056
      %v1059 = vunpack.c.l.s4 1966171168
      %v1060 = vunpack.c.0.s8 %v1059
      %v1061 = vlaneseq
      %v1062 = vshrl.u32 %v1061, 7
      %v1063 = vsub.s32 %v1060, %v1062
      %v1064 = vrot.slane %v1036, %v1063
      %v1065 = vcombine.high %v1043, %v1043
      %v1066 = vcombine.high %v1050, %v1050
      %v1067 = vcombine.high %v1057, %v1057
      %v1068 = vcombine.high %v1064, %v1064
      %v1070 = vunpack.c.l.s4 1966171168
      %v1071 = vunpack.c.0.s8 %v1070
      %v1072 = vlaneseq
      %v1073 = vshrl.u32 %v1072, 7
      %v1074 = vsub.s32 %v1071, %v1073
      %v1075 = vrot.slane %v497, %v1074
      %v1077 = vunpack.c.l.s4 1966171168
      %v1078 = vunpack.c.0.s8 %v1077
      %v1079 = vlaneseq
      %v1080 = vshrl.u32 %v1079, 7
      %v1081 = vsub.s32 %v1078, %v1080
      %v1082 = vrot.slane %v1075, %v1081
      %v1083 = vcombine.low %v539, %v553
      %v1084 = vcombine.low %v561, %v563
      %v1085 = vcombine.low %v546, %v560
      %v1086 = vcombine.low %v562, %v564
      %v1088 = vunpack.c.l.s4 1966171168
      %v1089 = vunpack.c.0.s8 %v1088
      %v1090 = vlaneseq
      %v1091 = vshrl.u32 %v1090, 7
      %v1092 = vsub.s32 %v1089, %v1091
      %v1093 = vrot.slane %v1083, %v1092
      %v1095 = vunpack.c.l.s4 1966171168
      %v1096 = vunpack.c.0.s8 %v1095
      %v1097 = vlaneseq
      %v1098 = vshrl.u32 %v1097, 7
      %v1099 = vsub.s32 %v1096, %v1098
      %v1100 = vrot.slane %v1084, %v1099
      %v1102 = vunpack.c.l.s4 1966171168
      %v1103 = vunpack.c.0.s8 %v1102
      %v1104 = vlaneseq
      %v1105 = vshrl.u32 %v1104, 7
      %v1106 = vsub.s32 %v1103, %v1105
      %v1107 = vrot.slane %v1085, %v1106
      %v1109 = vunpack.c.l.s4 1966171168
      %v1110 = vunpack.c.0.s8 %v1109
      %v1111 = vlaneseq
      %v1112 = vshrl.u32 %v1111, 7
      %v1113 = vsub.s32 %v1110, %v1112
      %v1114 = vrot.slane %v1086, %v1113
      %v1115 = vcombine.low %v1093, %v1100
      %v1116 = vcombine.low %v1107, %v1114
      %v1118 = vunpack.c.l.s4 1966171168
      %v1119 = vunpack.c.0.s8 %v1118
      %v1120 = vlaneseq
      %v1121 = vshrl.u32 %v1120, 7
      %v1122 = vsub.s32 %v1119, %v1121
      %v1123 = vrot.slane %v1115, %v1122
      %v1125 = vunpack.c.l.s4 1966171168
      %v1126 = vunpack.c.0.s8 %v1125
      %v1127 = vlaneseq
      %v1128 = vshrl.u32 %v1127, 7
      %v1129 = vsub.s32 %v1126, %v1128
      %v1130 = vrot.slane %v1116, %v1129
      %v1131 = vcombine.low %v1123, %v1130
      %v1132 = vcombine.low %v578, %v602
      %v1133 = vcombine.low %v616, %v624
      %v1134 = vcombine.low %v626, %v609
      %v1135 = vcombine.low %v623, %v625
      %v1137 = vunpack.c.l.s4 1966171168
      %v1138 = vunpack.c.0.s8 %v1137
      %v1139 = vlaneseq
      %v1140 = vshrl.u32 %v1139, 7
      %v1141 = vsub.s32 %v1138, %v1140
      %v1142 = vrot.slane %v1132, %v1141
      %v1144 = vunpack.c.l.s4 1966171168
      %v1145 = vunpack.c.0.s8 %v1144
      %v1146 = vlaneseq
      %v1147 = vshrl.u32 %v1146, 7
      %v1148 = vsub.s32 %v1145, %v1147
      %v1149 = vrot.slane %v1133, %v1148
      %v1151 = vunpack.c.l.s4 1966171168
      %v1152 = vunpack.c.0.s8 %v1151
      %v1153 = vlaneseq
      %v1154 = vshrl.u32 %v1153, 7
      %v1155 = vsub.s32 %v1152, %v1154
      %v1156 = vrot.slane %v1134, %v1155
      %v1158 = vunpack.c.l.s4 1966171168
      %v1159 = vunpack.c.0.s8 %v1158
      %v1160 = vlaneseq
      %v1161 = vshrl.u32 %v1160, 7
      %v1162 = vsub.s32 %v1159, %v1161
      %v1163 = vrot.slane %v1135, %v1162
      %v1164 = vcombine.low %v1142, %v1149
      %v1165 = vcombine.low %v1156, %v1163
      %v1167 = vunpack.c.l.s4 1966171168
      %v1168 = vunpack.c.0.s8 %v1167
      %v1169 = vlaneseq
      %v1170 = vshrl.u32 %v1169, 7
      %v1171 = vsub.s32 %v1168, %v1170
      %v1172 = vrot.slane %v1164, %v1171
      %v1174 = vunpack.c.l.s4 1966171168
      %v1175 = vunpack.c.0.s8 %v1174
      %v1176 = vlaneseq
      %v1177 = vshrl.u32 %v1176, 7
      %v1178 = vsub.s32 %v1175, %v1177
      %v1179 = vrot.slane %v1165, %v1178
      %v1180 = vcombine.low %v1172, %v1179
      %v1181 = vcombine.low %v627, %v641
      %v1182 = vcombine.low %v665, %v679
      %v1183 = vcombine.low %v687, %v689
      %v1184 = vcombine.low %v672, %v686
      %v1186 = vunpack.c.l.s4 1966171168
      %v1187 = vunpack.c.0.s8 %v1186
      %v1188 = vlaneseq
      %v1189 = vshrl.u32 %v1188, 7
      %v1190 = vsub.s32 %v1187, %v1189
      %v1191 = vrot.slane %v1181, %v1190
      %v1193 = vunpack.c.l.s4 1966171168
      %v1194 = vunpack.c.0.s8 %v1193
      %v1195 = vlaneseq
      %v1196 = vshrl.u32 %v1195, 7
      %v1197 = vsub.s32 %v1194, %v1196
      %v1198 = vrot.slane %v1182, %v1197
      %v1200 = vunpack.c.l.s4 1966171168
      %v1201 = vunpack.c.0.s8 %v1200
      %v1202 = vlaneseq
      %v1203 = vshrl.u32 %v1202, 7
      %v1204 = vsub.s32 %v1201, %v1203
      %v1205 = vrot.slane %v1183, %v1204
      %v1207 = vunpack.c.l.s4 1966171168
      %v1208 = vunpack.c.0.s8 %v1207
      %v1209 = vlaneseq
      %v1210 = vshrl.u32 %v1209, 7
      %v1211 = vsub.s32 %v1208, %v1210
      %v1212 = vrot.slane %v1184, %v1211
      %v1213 = vcombine.low %v1191, %v1198
      %v1214 = vcombine.low %v1205, %v1212
      %v1216 = vunpack.c.l.s4 1966171168
      %v1217 = vunpack.c.0.s8 %v1216
      %v1218 = vlaneseq
      %v1219 = vshrl.u32 %v1218, 7
      %v1220 = vsub.s32 %v1217, %v1219
      %v1221 = vrot.slane %v1213, %v1220
      %v1223 = vunpack.c.l.s4 1966171168
      %v1224 = vunpack.c.0.s8 %v1223
      %v1225 = vlaneseq
      %v1226 = vshrl.u32 %v1225, 7
      %v1227 = vsub.s32 %v1224, %v1226
      %v1228 = vrot.slane %v1214, %v1227
      %v1229 = vcombine.low %v1221, %v1228
      %v1230 = vcombine.low %v688, %v690
      %v1231 = vcombine.low %v704, %v728
      %v1232 = vcombine.low %v742, %v750
      %v1233 = vcombine.low %v752, %v735
      %v1235 = vunpack.c.l.s4 1966171168
      %v1236 = vunpack.c.0.s8 %v1235
      %v1237 = vlaneseq
      %v1238 = vshrl.u32 %v1237, 7
      %v1239 = vsub.s32 %v1236, %v1238
      %v1240 = vrot.slane %v1230, %v1239
      %v1242 = vunpack.c.l.s4 1966171168
      %v1243 = vunpack.c.0.s8 %v1242
      %v1244 = vlaneseq
      %v1245 = vshrl.u32 %v1244, 7
      %v1246 = vsub.s32 %v1243, %v1245
      %v1247 = vrot.slane %v1231, %v1246
      %v1249 = vunpack.c.l.s4 1966171168
      %v1250 = vunpack.c.0.s8 %v1249
      %v1251 = vlaneseq
      %v1252 = vshrl.u32 %v1251, 7
      %v1253 = vsub.s32 %v1250, %v1252
      %v1254 = vrot.slane %v1232, %v1253
      %v1256 = vunpack.c.l.s4 1966171168
      %v1257 = vunpack.c.0.s8 %v1256
      %v1258 = vlaneseq
      %v1259 = vshrl.u32 %v1258, 7
      %v1260 = vsub.s32 %v1257, %v1259
      %v1261 = vrot.slane %v1233, %v1260
      %v1262 = vcombine.low %v1240, %v1247
      %v1263 = vcombine.low %v1254, %v1261
      %v1265 = vunpack.c.l.s4 1966171168
      %v1266 = vunpack.c.0.s8 %v1265
      %v1267 = vlaneseq
      %v1268 = vshrl.u32 %v1267, 7
      %v1269 = vsub.s32 %v1266, %v1268
      %v1270 = vrot.slane %v1262, %v1269
      %v1272 = vunpack.c.l.s4 1966171168
      %v1273 = vunpack.c.0.s8 %v1272
      %v1274 = vlaneseq
      %v1275 = vshrl.u32 %v1274, 7
      %v1276 = vsub.s32 %v1273, %v1275
      %v1277 = vrot.slane %v1263, %v1276
      %v1278 = vcombine.low %v1270, %v1277
      %v1279 = vcombine.low %v749, %v751
      %v1280 = vcombine.low %v753, %v767
      %v1281 = vcombine.low %v791, %v805
      %v1282 = vcombine.low %v813, %v815
      %v1284 = vunpack.c.l.s4 1966171168
      %v1285 = vunpack.c.0.s8 %v1284
      %v1286 = vlaneseq
      %v1287 = vshrl.u32 %v1286, 7
      %v1288 = vsub.s32 %v1285, %v1287
      %v1289 = vrot.slane %v1279, %v1288
      %v1291 = vunpack.c.l.s4 1966171168
      %v1292 = vunpack.c.0.s8 %v1291
      %v1293 = vlaneseq
      %v1294 = vshrl.u32 %v1293, 7
      %v1295 = vsub.s32 %v1292, %v1294
      %v1296 = vrot.slane %v1280, %v1295
      %v1298 = vunpack.c.l.s4 1966171168
      %v1299 = vunpack.c.0.s8 %v1298
      %v1300 = vlaneseq
      %v1301 = vshrl.u32 %v1300, 7
      %v1302 = vsub.s32 %v1299, %v1301
      %v1303 = vrot.slane %v1281, %v1302
      %v1305 = vunpack.c.l.s4 1966171168
      %v1306 = vunpack.c.0.s8 %v1305
      %v1307 = vlaneseq
      %v1308 = vshrl.u32 %v1307, 7
      %v1309 = vsub.s32 %v1306, %v1308
      %v1310 = vrot.slane %v1282, %v1309
      %v1311 = vcombine.low %v1289, %v1296
      %v1312 = vcombine.low %v1303, %v1310
      %v1314 = vunpack.c.l.s4 1966171168
      %v1315 = vunpack.c.0.s8 %v1314
      %v1316 = vlaneseq
      %v1317 = vshrl.u32 %v1316, 7
      %v1318 = vsub.s32 %v1315, %v1317
      %v1319 = vrot.slane %v1311, %v1318
      %v1321 = vunpack.c.l.s4 1966171168
      %v1322 = vunpack.c.0.s8 %v1321
      %v1323 = vlaneseq
      %v1324 = vshrl.u32 %v1323, 7
      %v1325 = vsub.s32 %v1322, %v1324
      %v1326 = vrot.slane %v1312, %v1325
      %v1327 = vcombine.low %v1319, %v1326
      %v1328 = vcombine.low %v798, %v812
      %v1329 = vcombine.low %v814, %v816
      %v1330 = vcombine.low %v830, %v854
      %v1331 = vcombine.low %v868, %v876
      %v1333 = vunpack.c.l.s4 1966171168
      %v1334 = vunpack.c.0.s8 %v1333
      %v1335 = vlaneseq
      %v1336 = vshrl.u32 %v1335, 7
      %v1337 = vsub.s32 %v1334, %v1336
      %v1338 = vrot.slane %v1328, %v1337
      %v1340 = vunpack.c.l.s4 1966171168
      %v1341 = vunpack.c.0.s8 %v1340
      %v1342 = vlaneseq
      %v1343 = vshrl.u32 %v1342, 7
      %v1344 = vsub.s32 %v1341, %v1343
      %v1345 = vrot.slane %v1329, %v1344
      %v1347 = vunpack.c.l.s4 1966171168
      %v1348 = vunpack.c.0.s8 %v1347
      %v1349 = vlaneseq
      %v1350 = vshrl.u32 %v1349, 7
      %v1351 = vsub.s32 %v1348, %v1350
      %v1352 = vrot.slane %v1330, %v1351
      %v1354 = vunpack.c.l.s4 1966171168
      %v1355 = vunpack.c.0.s8 %v1354
      %v1356 = vlaneseq
      %v1357 = vshrl.u32 %v1356, 7
      %v1358 = vsub.s32 %v1355, %v1357
      %v1359 = vrot.slane %v1331, %v1358
      %v1360 = vcombine.low %v1338, %v1345
      %v1361 = vcombine.low %v1352, %v1359
      %v1363 = vunpack.c.l.s4 1966171168
      %v1364 = vunpack.c.0.s8 %v1363
      %v1365 = vlaneseq
      %v1366 = vshrl.u32 %v1365, 7
      %v1367 = vsub.s32 %v1364, %v1366
      %v1368 = vrot.slane %v1360, %v1367
      %v1370 = vunpack.c.l.s4 1966171168
      %v1371 = vunpack.c.0.s8 %v1370
      %v1372 = vlaneseq
      %v1373 = vshrl.u32 %v1372, 7
      %v1374 = vsub.s32 %v1371, %v1373
      %v1375 = vrot.slane %v1361, %v1374
      %v1376 = vcombine.low %v1368, %v1375
      %v1377 = vcombine.low %v878, %v861
      %v1378 = vcombine.low %v875, %v877
      %v1379 = vcombine.low %v879, %v893
      %v1380 = vcombine.low %v917, %v931
      %v1382 = vunpack.c.l.s4 1966171168
      %v1383 = vunpack.c.0.s8 %v1382
      %v1384 = vlaneseq
      %v1385 = vshrl.u32 %v1384, 7
      %v1386 = vsub.s32 %v1383, %v1385
      %v1387 = vrot.slane %v1377, %v1386
      %v1389 = vunpack.c.l.s4 1966171168
      %v1390 = vunpack.c.0.s8 %v1389
      %v1391 = vlaneseq
      %v1392 = vshrl.u32 %v1391, 7
      %v1393 = vsub.s32 %v1390, %v1392
      %v1394 = vrot.slane %v1378, %v1393
      %v1396 = vunpack.c.l.s4 1966171168
      %v1397 = vunpack.c.0.s8 %v1396
      %v1398 = vlaneseq
      %v1399 = vshrl.u32 %v1398, 7
      %v1400 = vsub.s32 %v1397, %v1399
      %v1401 = vrot.slane %v1379, %v1400
      %v1403 = vunpack.c.l.s4 1966171168
      %v1404 = vunpack.c.0.s8 %v1403
      %v1405 = vlaneseq
      %v1406 = vshrl.u32 %v1405, 7
      %v1407 = vsub.s32 %v1404, %v1406
      %v1408 = vrot.slane %v1380, %v1407
      %v1409 = vcombine.low %v1387, %v1394
      %v1410 = vcombine.low %v1401, %v1408
      %v1412 = vunpack.c.l.s4 1966171168
      %v1413 = vunpack.c.0.s8 %v1412
      %v1414 = vlaneseq
      %v1415 = vshrl.u32 %v1414, 7
      %v1416 = vsub.s32 %v1413, %v1415
      %v1417 = vrot.slane %v1409, %v1416
      %v1419 = vunpack.c.l.s4 1966171168
      %v1420 = vunpack.c.0.s8 %v1419
      %v1421 = vlaneseq
      %v1422 = vshrl.u32 %v1421, 7
      %v1423 = vsub.s32 %v1420, %v1422
      %v1424 = vrot.slane %v1410, %v1423
      %v1425 = vcombine.low %v1417, %v1424
      %v1426 = vcombine.low %v939, %v941
      %v1427 = vcombine.low %v924, %v938
      %v1428 = vcombine.low %v940, %v942
      %v1429 = vcombine.low %v956, %v980
      %v1431 = vunpack.c.l.s4 1966171168
      %v1432 = vunpack.c.0.s8 %v1431
      %v1433 = vlaneseq
      %v1434 = vshrl.u32 %v1433, 7
      %v1435 = vsub.s32 %v1432, %v1434
      %v1436 = vrot.slane %v1426, %v1435
      %v1438 = vunpack.c.l.s4 1966171168
      %v1439 = vunpack.c.0.s8 %v1438
      %v1440 = vlaneseq
      %v1441 = vshrl.u32 %v1440, 7
      %v1442 = vsub.s32 %v1439, %v1441
      %v1443 = vrot.slane %v1427, %v1442
      %v1445 = vunpack.c.l.s4 1966171168
      %v1446 = vunpack.c.0.s8 %v1445
      %v1447 = vlaneseq
      %v1448 = vshrl.u32 %v1447, 7
      %v1449 = vsub.s32 %v1446, %v1448
      %v1450 = vrot.slane %v1428, %v1449
      %v1452 = vunpack.c.l.s4 1966171168
      %v1453 = vunpack.c.0.s8 %v1452
      %v1454 = vlaneseq
      %v1455 = vshrl.u32 %v1454, 7
      %v1456 = vsub.s32 %v1453, %v1455
      %v1457 = vrot.slane %v1429, %v1456
      %v1458 = vcombine.low %v1436, %v1443
      %v1459 = vcombine.low %v1450, %v1457
      %v1461 = vunpack.c.l.s4 1966171168
      %v1462 = vunpack.c.0.s8 %v1461
      %v1463 = vlaneseq
      %v1464 = vshrl.u32 %v1463, 7
      %v1465 = vsub.s32 %v1462, %v1464
      %v1466 = vrot.slane %v1458, %v1465
      %v1468 = vunpack.c.l.s4 1966171168
      %v1469 = vunpack.c.0.s8 %v1468
      %v1470 = vlaneseq
      %v1471 = vshrl.u32 %v1470, 7
      %v1472 = vsub.s32 %v1469, %v1471
      %v1473 = vrot.slane %v1459, %v1472
      %v1474 = vcombine.low %v1466, %v1473
      %v1475 = vcombine.low %v994, %v1002
      %v1476 = vcombine.low %v1004, %v987
      %v1477 = vcombine.low %v1001, %v1003
      %v1478 = vcombine.low %v1005, %v1019
      %v1480 = vunpack.c.l.s4 1966171168
      %v1481 = vunpack.c.0.s8 %v1480
      %v1482 = vlaneseq
      %v1483 = vshrl.u32 %v1482, 7
      %v1484 = vsub.s32 %v1481, %v1483
      %v1485 = vrot.slane %v1475, %v1484
      %v1487 = vunpack.c.l.s4 1966171168
      %v1488 = vunpack.c.0.s8 %v1487
      %v1489 = vlaneseq
      %v1490 = vshrl.u32 %v1489, 7
      %v1491 = vsub.s32 %v1488, %v1490
      %v1492 = vrot.slane %v1476, %v1491
      %v1494 = vunpack.c.l.s4 1966171168
      %v1495 = vunpack.c.0.s8 %v1494
      %v1496 = vlaneseq
      %v1497 = vshrl.u32 %v1496, 7
      %v1498 = vsub.s32 %v1495, %v1497
      %v1499 = vrot.slane %v1477, %v1498
      %v1501 = vunpack.c.l.s4 1966171168
      %v1502 = vunpack.c.0.s8 %v1501
      %v1503 = vlaneseq
      %v1504 = vshrl.u32 %v1503, 7
      %v1505 = vsub.s32 %v1502, %v1504
      %v1506 = vrot.slane %v1478, %v1505
      %v1507 = vcombine.low %v1485, %v1492
      %v1508 = vcombine.low %v1499, %v1506
      %v1510 = vunpack.c.l.s4 1966171168
      %v1511 = vunpack.c.0.s8 %v1510
      %v1512 = vlaneseq
      %v1513 = vshrl.u32 %v1512, 7
      %v1514 = vsub.s32 %v1511, %v1513
      %v1515 = vrot.slane %v1507, %v1514
      %v1517 = vunpack.c.l.s4 1966171168
      %v1518 = vunpack.c.0.s8 %v1517
      %v1519 = vlaneseq
      %v1520 = vshrl.u32 %v1519, 7
      %v1521 = vsub.s32 %v1518, %v1520
      %v1522 = vrot.slane %v1508, %v1521
      %v1523 = vcombine.low %v1515, %v1522
      %v1524 = vcombine.low %v1043, %v1057
      %v1525 = vcombine.low %v1065, %v1067
      %v1526 = vcombine.low %v1050, %v1064
      %v1527 = vcombine.low %v1066, %v1068
      %v1529 = vunpack.c.l.s4 1966171168
      %v1530 = vunpack.c.0.s8 %v1529
      %v1531 = vlaneseq
      %v1532 = vshrl.u32 %v1531, 7
      %v1533 = vsub.s32 %v1530, %v1532
      %v1534 = vrot.slane %v1524, %v1533
      %v1536 = vunpack.c.l.s4 1966171168
      %v1537 = vunpack.c.0.s8 %v1536
      %v1538 = vlaneseq
      %v1539 = vshrl.u32 %v1538, 7
      %v1540 = vsub.s32 %v1537, %v1539
      %v1541 = vrot.slane %v1525, %v1540
      %v1543 = vunpack.c.l.s4 1966171168
      %v1544 = vunpack.c.0.s8 %v1543
      %v1545 = vlaneseq
      %v1546 = vshrl.u32 %v1545, 7
      %v1547 = vsub.s32 %v1544, %v1546
      %v1548 = vrot.slane %v1526, %v1547
      %v1550 = vunpack.c.l.s4 1966171168
      %v1551 = vunpack.c.0.s8 %v1550
      %v1552 = vlaneseq
      %v1553 = vshrl.u32 %v1552, 7
      %v1554 = vsub.s32 %v1551, %v1553
      %v1555 = vrot.slane %v1527, %v1554
      %v1556 = vcombine.low %v1534, %v1541
      %v1557 = vcombine.low %v1548, %v1555
      %v1559 = vunpack.c.l.s4 1966171168
      %v1560 = vunpack.c.0.s8 %v1559
      %v1561 = vlaneseq
      %v1562 = vshrl.u32 %v1561, 7
      %v1563 = vsub.s32 %v1560, %v1562
      %v1564 = vrot.slane %v1556, %v1563
      %v1566 = vunpack.c.l.s4 1966171168
      %v1567 = vunpack.c.0.s8 %v1566
      %v1568 = vlaneseq
      %v1569 = vshrl.u32 %v1568, 7
      %v1570 = vsub.s32 %v1567, %v1569
      %v1571 = vrot.slane %v1557, %v1570
      %v1572 = vcombine.low %v1564, %v1571
      %v1574 = vunpack.c.l.s4 1966171168
      %v1575 = vunpack.c.0.s8 %v1574
      %v1576 = vlaneseq
      %v1577 = vshrl.u32 %v1576, 7
      %v1578 = vsub.s32 %v1575, %v1577
      %v1579 = vrot.slane %v1082, %v1578
      %v1581 = vunpack.c.l.s4 1966171168
      %v1582 = vunpack.c.0.s8 %v1581
      %v1583 = vlaneseq
      %v1584 = vshrl.u32 %v1583, 7
      %v1585 = vsub.s32 %v1582, %v1584
      %v1586 = vrot.slane %v1579, %v1585
      %v1598 = vpack.c.bf16 %v1180, %v1131
      %v1599 = vpack.c.bf16 %v1278, %v1229
      %v1600 = vpack.c.bf16 %v1376, %v1327
      %v1601 = vpack.c.bf16 %v1474, %v1425
      %v1602 = vpack.c.bf16 %v1572, %v1523
      %v1603 = vpack.c.bf16 %v1586, %v1586
      %v1604 = vld [vmem:[%s1] sm:$0xf]
      %v1605 = vld [vmem:[%s1 + $0x4] sm:$0xf]
      %v1606 = vld [vmem:[%s1 + $0x8] sm:$0xf]
      %v1607 = vld [vmem:[%s1 + $0xc] sm:$0xf]
      %v1608 = vld [vmem:[%s1 + $0x10] sm:$0xf]
      %v1609 = vld [vmem:[%s1 + $0x14] sm:$0xf]
      %v1610 = vld [vmem:[%s1 + $0x18] sm:$0xf]
      %v1611 = vld [vmem:[%s1 + $0x1c] sm:$0xf]
      %v1612 = vld [vmem:[%s2] sm:$0x1]
      %v1614 = vlaneseq
      %v1615 = vshrl.u32 %v1614, 7
      %v1616 = vsub.s32 0, %v1615
      %v1617 = vrot.slane %v1612, %v1616
      %v1627 = vunpack.c.l.b16 %v1604
      %v1628 = vunpack.c.l.b16 %v1605
      %v1629 = vunpack.c.l.b16 %v1606
      %v1630 = vunpack.c.l.b16 %v1607
      %v1631 = vunpack.c.l.b16 %v1608
      %v1632 = vunpack.c.l.b16 %v1609
      %v1633 = vunpack.c.l.b16 %v1610
      %v1634 = vunpack.c.l.b16 %v1611
      %v1635 = vpack.c.b16 %v1628, %v1627
      %v1636 = vpack.c.b16 %v1630, %v1629
      %v1637 = vpack.c.b16 %v1632, %v1631
      %v1638 = vpack.c.b16 %v1634, %v1633
      %vm1643 = vcmask 523264
      %v1645 = vsel %vm1643, %v1598, 0
      %v1648 = vsel %vm1643, %v1599, 0
      %v1651 = vsel %vm1643, %v1600, 0
      %v1654 = vsel %vm1643, %v1601, 0
      %v1657 = vsel %vm1643, %v1602, 0
      %v1660 = vsel %vm1643, %v1603, 0
      %1662 = vmatprep.subr.bf16.mxu0 0
      %1663 = vmatpush1.bf16.msra.mxu0 0
      %1664 = vmatprep.subr.bf16.mxu0 0
      %1665 = vmatpush1.bf16.msra.mxu0 0
      %1666 = vmatprep.subr.bf16.mxu0 0
      %1667 = vmatpush1.bf16.msra.mxu0 0
      %1668 = vmatprep.subr.bf16.mxu0 0
      %1669 = vmatpush1.bf16.msra.mxu0 0
      %1670 = vmatprep.subr.bf16.mxu0 0
      %1671 = vmatpush1.bf16.msra.mxu0 %v1638
      %1672 = vmatprep.subr.bf16.mxu0 0
      %1673 = vmatpush1.bf16.msra.mxu0 %v1637
      %1674 = vmatprep.subr.bf16.mxu0 0
      %1675 = vmatpush1.bf16.msra.mxu0 %v1636
      %1676 = vmatprep.subr.bf16.mxu0 0
      %1677 = vmatpush1.bf16.msra.mxu0 %v1635
      %1678 = vmatprep.subr.bf16.mxu0 0
      %1679 = vmatpush2.bf16.msra.mxu0 0
      %1680 = vmatprep.subr.bf16.mxu0 0
      %1681 = vmatpush2.bf16.msra.mxu0 0
      %1682 = vmatprep.subr.bf16.mxu0 0
      %1683 = vmatpush2.bf16.msra.mxu0 0
      %1684 = vmatprep.subr.bf16.mxu0 0
      %1685 = vmatpush2.bf16.msra.mxu0 0
      %1686 = vmatprep.subr.bf16.mxu0 0
      %1687 = vmatpush2.bf16.msra.mxu0 0
      %1688 = vmatprep.subr.bf16.mxu0 0
      %1689 = vmatpush2.bf16.msra.mxu0 0
      %1690 = vmatprep.subr.bf16.mxu0 0
      %1691 = vmatpush2.bf16.msra.mxu0 0
      %1692 = vmatprep.subr.bf16.mxu0 0
      %1693 = vmatpush2.bf16.msra.mxu0 0
      %1694 = vmatprep.mubr.bf16.mxu0 0
      %1695 = vmatmul.mubr.bf16.gmra.mxu0 %v1645
      %v1696 = vpop.f32.mrf.mxu0
      %v1697 = vadd.f32 %v1617, %v1696
      %v1698 = vpop.f32.mrf.mxu0
      %v1699 = vpop.f32.mrf.mxu0
      %v1700 = vadd.f32 %v1617, %v1699
      %v1701 = vpop.f32.mrf.mxu0
      %1702 = vmatprep.mubr.bf16.mxu0 0
      %1703 = vmatmul.mubr.bf16.gmra.mxu0 %v1648
      %v1704 = vpop.f32.mrf.mxu0
      %v1705 = vadd.f32 %v1617, %v1704
      %v1706 = vpop.f32.mrf.mxu0
      %v1707 = vpop.f32.mrf.mxu0
      %v1708 = vadd.f32 %v1617, %v1707
      %v1709 = vpop.f32.mrf.mxu0
      %1710 = vmatprep.mubr.bf16.mxu0 0
      %1711 = vmatmul.mubr.bf16.gmra.mxu0 %v1651
      %v1712 = vpop.f32.mrf.mxu0
      %v1713 = vadd.f32 %v1617, %v1712
      %v1714 = vpop.f32.mrf.mxu0
      %v1715 = vpop.f32.mrf.mxu0
      %v1716 = vadd.f32 %v1617, %v1715
      %v1717 = vpop.f32.mrf.mxu0
      %1718 = vmatprep.mubr.bf16.mxu0 0
      %1719 = vmatmul.mubr.bf16.gmra.mxu0 %v1654
      %v1720 = vpop.f32.mrf.mxu0
      %v1721 = vadd.f32 %v1617, %v1720
      %v1722 = vpop.f32.mrf.mxu0
      %v1723 = vpop.f32.mrf.mxu0
      %v1724 = vadd.f32 %v1617, %v1723
      %v1725 = vpop.f32.mrf.mxu0
      %1726 = vmatprep.mubr.bf16.mxu0 0
      %1727 = vmatmul.mubr.bf16.gmra.mxu0 %v1657
      %v1728 = vpop.f32.mrf.mxu0
      %v1729 = vadd.f32 %v1617, %v1728
      %v1730 = vpop.f32.mrf.mxu0
      %v1731 = vpop.f32.mrf.mxu0
      %v1732 = vadd.f32 %v1617, %v1731
      %v1733 = vpop.f32.mrf.mxu0
      %1734 = vmatprep.mubr.bf16.mxu0 0
      %1735 = vmatmul.mubr.bf16.gmra.mxu0 %v1660
      %v1736 = vpop.f32.mrf.mxu0
      %v1737 = vadd.f32 %v1617, %v1736
      %v1738 = vpop.f32.mrf.mxu0
      %v1739 = vpop.f32.mrf.mxu0
      %v1740 = vpop.f32.mrf.mxu0
      %1741 = vdwg.mxu0
      %vm1742 = vcmp.gt.f32.partialorder %v1697, 0.0
      %vm1743 = vcmp.gt.f32.partialorder %v1700, 0.0
      %vm1744 = vcmp.gt.f32.partialorder %v1705, 0.0
      %vm1745 = vcmp.gt.f32.partialorder %v1708, 0.0
      %vm1746 = vcmp.gt.f32.partialorder %v1713, 0.0
      %vm1747 = vcmp.gt.f32.partialorder %v1716, 0.0
      %vm1748 = vcmp.gt.f32.partialorder %v1721, 0.0
      %vm1749 = vcmp.gt.f32.partialorder %v1724, 0.0
      %vm1750 = vcmp.gt.f32.partialorder %v1729, 0.0
      %vm1751 = vcmp.gt.f32.partialorder %v1732, 0.0
      %vm1752 = vcmp.gt.f32.partialorder %v1737, 0.0
      %v1753 = vmin.f32 %v1697, 0.0
      %v1754 = vmin.f32 %v1700, 0.0
      %v1755 = vmin.f32 %v1705, 0.0
      %v1756 = vmin.f32 %v1708, 0.0
      %v1757 = vmin.f32 %v1713, 0.0
      %v1758 = vmin.f32 %v1716, 0.0
      %v1759 = vmin.f32 %v1721, 0.0
      %v1760 = vmin.f32 %v1724, 0.0
      %v1761 = vmin.f32 %v1729, 0.0
      %v1762 = vmin.f32 %v1732, 0.0
      %v1763 = vmin.f32 %v1737, 0.0
      %v1764 = vmul.f32 %v1753, 1.442695
      %v1765 = vpow.pop %v1764
      %v1766 = vmul.f32 %v1754, 1.442695
      %v1767 = vpow.pop %v1766
      %v1768 = vmul.f32 %v1755, 1.442695
      %v1769 = vpow.pop %v1768
      %v1770 = vmul.f32 %v1756, 1.442695
      %v1771 = vpow.pop %v1770
      %v1772 = vmul.f32 %v1757, 1.442695
      %v1773 = vpow.pop %v1772
      %v1774 = vmul.f32 %v1758, 1.442695
      %v1775 = vpow.pop %v1774
      %v1776 = vmul.f32 %v1759, 1.442695
      %v1777 = vpow.pop %v1776
      %v1778 = vmul.f32 %v1760, 1.442695
      %v1779 = vpow.pop %v1778
      %v1780 = vmul.f32 %v1761, 1.442695
      %v1781 = vpow.pop %v1780
      %v1782 = vmul.f32 %v1762, 1.442695
      %v1783 = vpow.pop %v1782
      %v1784 = vmul.f32 %v1763, 1.442695
      %v1785 = vpow.pop %v1784
      %v1786 = vsub.f32 %v1765, 1.0
      %v1787 = vsub.f32 %v1767, 1.0
      %v1788 = vsub.f32 %v1769, 1.0
      %v1789 = vsub.f32 %v1771, 1.0
      %v1790 = vsub.f32 %v1773, 1.0
      %v1791 = vsub.f32 %v1775, 1.0
      %v1792 = vsub.f32 %v1777, 1.0
      %v1793 = vsub.f32 %v1779, 1.0
      %v1794 = vsub.f32 %v1781, 1.0
      %v1795 = vsub.f32 %v1783, 1.0
      %v1796 = vsub.f32 %v1785, 1.0
      %v1797 = vsel %vm1742, %v1697, %v1786
      %v1798 = vsel %vm1743, %v1700, %v1787
      %v1799 = vsel %vm1744, %v1705, %v1788
      %v1800 = vsel %vm1745, %v1708, %v1789
      %v1801 = vsel %vm1746, %v1713, %v1790
      %v1802 = vsel %vm1747, %v1716, %v1791
      %v1803 = vsel %vm1748, %v1721, %v1792
      %v1804 = vsel %vm1749, %v1724, %v1793
      %v1805 = vsel %vm1750, %v1729, %v1794
      %v1806 = vsel %vm1751, %v1732, %v1795
      %v1807 = vsel %vm1752, %v1737, %v1796
      %vm1808 = vcmask 64512
      %1809 = vst.msk [vmem:[%s206] sm:$0xff] %vm1808, %v1797
      %1810 = vst.msk [vmem:[%s206 + $0x8] sm:$0xff] %vm1808, %v1798
      %1811 = vst.msk [vmem:[%s206 + $0x10] sm:$0xff] %vm1808, %v1799
      %1812 = vst.msk [vmem:[%s206 + $0x18] sm:$0xff] %vm1808, %v1800
      %1813 = vst.msk [vmem:[%s206 + $0x20] sm:$0xff] %vm1808, %v1801
      %1814 = vst.msk [vmem:[%s206 + $0x28] sm:$0xff] %vm1808, %v1802
      %1815 = vst.msk [vmem:[%s206 + $0x30] sm:$0xff] %vm1808, %v1803
      %1816 = vst.msk [vmem:[%s206 + $0x38] sm:$0xff] %vm1808, %v1804
      %1817 = vst.msk [vmem:[%s206 + $0x40] sm:$0xff] %vm1808, %v1805
      %1818 = vst.msk [vmem:[%s206 + $0x48] sm:$0xff] %vm1808, %v1806
      %vm1819 = vcmask 57344
      %1820 = vst.msk [vmem:[%s206 + $0x50] sm:$0x1] %vm1819, %v1807
      %p1821 = scmp.lt.s32.totalorder %s18, 1
      %s1822 = scalar_select %p1821, %s18, 1
      %p1823 = scmp.lt.s32.totalorder %s19, 0
      %s1824 = scalar_select %p1823, %s19, 0
      %s1825 = smul.addr %s1824, 11
      %s1826 = smul.addr %s1822, 11
      %s1827 = sadd.s32 %s1825, %s1826
      %s1828 = smul.addr %s1827, 8
      %s1829 = scalar_lea.vmem %s3, %s1828
      // Predicated region
      $region33: #{advanced_phase_estimation_forward.15} parent=31 // pred_check
        %p1830 = pneg %p116
      $region34: #{advanced_phase_estimation_forward.15} parent=31 // pred_check_branch
        %1832 = sbr.rel (%p1830) target = $region36
      $region35: #{advanced_phase_estimation_forward.15} parent=31 // pred_region
        _
      $region36: #{advanced_phase_estimation_forward.15} parent=31 // pred_fallthru
        _
    $region32: #{advanced_phase_estimation_forward.15} parent=5 // pred_fallthru
      _
    %p1833 = scmp.le.s32.totalorder 2, %s9
    // Predicated region
    $region37: #{advanced_phase_estimation_forward.15} parent=5 // pred_check
      %p1834 = pneg %p1833
    $region38: #{advanced_phase_estimation_forward.15} parent=5 // pred_check_branch
      %1836 = sbr.rel (%p1834) target = $region40
    $region39: #{advanced_phase_estimation_forward.15} parent=5 // pred_region
      %s1837 = ssub.s32 %s9, 2
      // Predicated region
      $region41: #{advanced_phase_estimation_forward.15} parent=39 // pred_check
        %p1838 = pneg %p122
      $region42: #{advanced_phase_estimation_forward.15} parent=39 // pred_check_branch
        %1840 = sbr.rel (%p1838) target = $region44
      $region43: #{advanced_phase_estimation_forward.15} parent=39 // pred_region
        %p1841 = scmp.lt.s32.totalorder %s20, 1
        %s1842 = scalar_select %p1841, %s20, 1
        %p1843 = scmp.lt.s32.totalorder %s21, 0
        %s1844 = scalar_select %p1843, %s21, 0
        %s1845 = smul.addr %s1844, 11
        %s1846 = smul.addr %s1842, 11
        %s1847 = sadd.s32 %s1845, %s1846
        %s1848 = smul.addr %s1847, 8
        %s1849 = scalar_lea.vmem %s3, %s1848
      $region44: #{advanced_phase_estimation_forward.15} parent=39 // pred_fallthru
        _
    $region40: #{advanced_phase_estimation_forward.15} parent=5 // pred_fallthru
      _
  $region6: #{advanced_phase_estimation_forward.15} parent=0 // loop_footer
    %s13 = sadd.s32 1, %s9
  $region7: #{advanced_phase_estimation_forward.15} parent=0 // loop_footer_branch
    %8 = sbr.rel target = $region3
  $region8: #{advanced_phase_estimation_forward.15} parent=0 // loop_exit
    _

// kernel: custom-call
$region0: #{custom-call}
  %s0 = inlined_call_operand.hbm [shape: c64[2,1,16,16], index: 0, kind: input, shape index: {}]
  %s1 = inlined_call_operand.vmem [shape: f32[2,1,16,16], index: 1, kind: output, shape index: {}]
  $region1: #{custom-call} parent=0
    #allocation0 [shape = 's32[1]{0}', space=sflag, size = 0x4, scoped, tag = 'scoped memory for custom-call']
    %2 = vsyncpa [#allocation0], 0
    %s3 = sshll.u32 %s1, 4
    %s4 = int_to_ptr.vmem [resolvable:$true] %s3
    %6 = dma.hbm_to_vmem [thread:$0]  %s0, 512, %s4, [#allocation0]
    %7 = dma.done [#allocation0], 512
    %8 = vsyncpa [#allocation0], 1

// kernel: custom-call.1
$region0: #{custom-call.1}
  %s0 = inlined_call_operand.hbm [shape: c64[2,1,16,16], index: 0, kind: input, shape index: {}]
  %s1 = inlined_call_operand.vmem [shape: f32[2,1,16,16], index: 1, kind: output, shape index: {}]
  %s2 = scalar_lea.hbm %s0, 512
  $region1: #{custom-call.1} parent=0
    #allocation0 [shape = 's32[1]{0}', space=sflag, size = 0x4, scoped, tag = 'scoped memory for custom-call.1']
    %3 = vsyncpa [#allocation0], 0
    %s4 = sshll.u32 %s1, 4
    %s5 = int_to_ptr.vmem [resolvable:$true] %s4
    %7 = dma.hbm_to_vmem [thread:$0]  %s2, 512, %s5, [#allocation0]
    %8 = dma.done [#allocation0], 512
    %9 = vsyncpa [#allocation0], 1

// kernel: advanced_phase_estimation_forward.18
$region0: #{advanced_phase_estimation_forward.18}
  #allocation0 [shape = 'u32[]', space=smem, size = 0x4, offset = 0x4, fixed_abs, tag = 'smem constant byte address 0x4 - core index']
  #allocation1 [shape = 'u32[144,128]{1,0:T(1,128)}', space=vmem, size = 0x12000, scoped, tag = 'internal scratch']
  %s0 = inlined_call_operand.vmem [shape: f32[2,1,3,3,128], index: 0, kind: input, shape index: {}]
  %s1 = inlined_call_operand.vmem [shape: bf16[512,64], index: 1, kind: input, shape index: {}]
  %s2 = inlined_call_operand.vmem [shape: f32[1,64], index: 2, kind: input, shape index: {}]
  %s3 = inlined_call_operand.vmem [shape: f32[2,1,4,64], index: 3, kind: output, shape index: {}]
  %s4 = sld [smem:[#allocation0]]
  $region45: #{advanced_phase_estimation_forward.18} parent=0
    _
  %s6 = ssub.s32 1, %s4
  %s7 = scalar_select 0, %s6, %s4
  loop: start=0, step=1, limit=4
  $region2: #{advanced_phase_estimation_forward.18} parent=0 // loop_pre_header
    _
  $region3: #{advanced_phase_estimation_forward.18} parent=0 // loop_header
    %s9 = sphi 0, %s13
    %p10 = scmp.ge.s32.totalorder %s9, 4
    %s16 = sphi 0, %s28
    %s17 = sphi 0, %s24
    %s18 = sphi 0, %s16
    %s19 = sphi 0, %s17
    %s20 = sphi 0, %s18
    %s21 = sphi 0, %s19
    %s33 = sphi 0, %s35
    %s36 = sphi 0, %s33
    %s37 = sphi 0, %s36
    %s53 = sphi 0, %s37
    %s57 = sphi 0, %s57
    %s59 = sphi 0, %s57
    %s60 = sphi 0, %s59
    %s74 = sphi 0, %s60
    %s78 = sphi 0, %s78
    %s80 = sphi 0, %s78
    %s81 = sphi 0, %s80
    %s95 = sphi 0, %s81
    %s103 = sphi 0, %s105
    %s106 = sphi 0, %s103
    %s107 = sphi 0, %s106
    %s123 = sphi 0, %s107
  $region4: #{advanced_phase_estimation_forward.18} parent=0 // loop_header_branch
    %12 = sbr.rel (%p10) target = $region8
  $region5: #{advanced_phase_estimation_forward.18} parent=0 // loop_body
    %s14 = ssub.s32 %s9, 1
    %s15 = ssub.s32 %s9, 2
    %s22 = sadd.s32 1, %s17
    %p23 = scmp.ge.s32.totalorder %s22, 1
    %s24 = scalar_select %p23, 0, %s22
    %s25 = sadd.s32 1, %s16
    %s26 = scalar_select %p23, %s25, %s16
    %p27 = scmp.ge.s32.totalorder %s26, 2
    %s28 = scalar_select %p27, 0, %s26
    %s29 = ssub.s32 %s16, %s28
    %s30 = ssub.s32 %s17, %s24
    %s31 = sor.u32 %s29, %s30
    %p32 = scmp.eq.s32.totalorder %s31, 0
    %s34 = sadd.s32 %s33, 1
    %s35 = scalar_select %p32, %s33, %s34
    %p38 = pneg %p32
    %p39 = scmp.eq.s32.totalorder %s9, 1
    %p40 = por %p38, %p39
    %p41 = scmp.ne.s32.totalorder %s33, %s36
    %p42 = scmp.eq.s32.totalorder %s9, 0
    %p43 = por %p41, %p42
    %p44 = scmp.ne.s32.totalorder %s33, %s36
    %p45 = scmp.eq.s32.totalorder %s14, 1
    %p46 = por %p44, %p45
    %p47 = scmp.ne.s32.totalorder %s36, %s37
    %p48 = scmp.eq.s32.totalorder %s14, 0
    %p49 = por %p47, %p48
    %p50 = scmp.ne.s32.totalorder %s36, %s37
    %p51 = scmp.eq.s32.totalorder %s15, 1
    %p52 = por %p50, %p51
    %p54 = scmp.ne.s32.totalorder %s37, %s53
    %p55 = scmp.eq.s32.totalorder %s15, 0
    %p56 = por %p54, %p55
    %s58 = sadd.s32 %s57, 1
    %p61 = scmp.eq.s32.totalorder %s9, 1
    %p62 = scmp.ne.s32.totalorder %s57, %s59
    %p63 = scmp.eq.s32.totalorder %s9, 0
    %p64 = por %p62, %p63
    %p65 = scmp.ne.s32.totalorder %s57, %s59
    %p66 = scmp.eq.s32.totalorder %s14, 1
    %p67 = por %p65, %p66
    %p68 = scmp.ne.s32.totalorder %s59, %s60
    %p69 = scmp.eq.s32.totalorder %s14, 0
    %p70 = por %p68, %p69
    %p71 = scmp.ne.s32.totalorder %s59, %s60
    %p72 = scmp.eq.s32.totalorder %s15, 1
    %p73 = por %p71, %p72
    %p75 = scmp.ne.s32.totalorder %s60, %s74
    %p76 = scmp.eq.s32.totalorder %s15, 0
    %p77 = por %p75, %p76
    %s79 = sadd.s32 %s78, 1
    %p82 = scmp.eq.s32.totalorder %s9, 1
    %p83 = scmp.ne.s32.totalorder %s78, %s80
    %p84 = scmp.eq.s32.totalorder %s9, 0
    %p85 = por %p83, %p84
    %p86 = scmp.ne.s32.totalorder %s78, %s80
    %p87 = scmp.eq.s32.totalorder %s14, 1
    %p88 = por %p86, %p87
    %p89 = scmp.ne.s32.totalorder %s80, %s81
    %p90 = scmp.eq.s32.totalorder %s14, 0
    %p91 = por %p89, %p90
    %p92 = scmp.ne.s32.totalorder %s80, %s81
    %p93 = scmp.eq.s32.totalorder %s15, 1
    %p94 = por %p92, %p93
    %p96 = scmp.ne.s32.totalorder %s81, %s95
    %p97 = scmp.eq.s32.totalorder %s15, 0
    %p98 = por %p96, %p97
    %s99 = ssub.s32 %s16, %s28
    %s100 = ssub.s32 %s17, %s24
    %s101 = sor.u32 %s99, %s100
    %p102 = scmp.eq.s32.totalorder %s101, 0
    %s104 = sadd.s32 %s103, 1
    %s105 = scalar_select %p102, %s103, %s104
    %p108 = pneg %p102
    %p109 = scmp.eq.s32.totalorder %s9, 1
    %p110 = por %p108, %p109
    %p111 = scmp.ne.s32.totalorder %s103, %s106
    %p112 = scmp.eq.s32.totalorder %s9, 0
    %p113 = por %p111, %p112
    %p114 = scmp.ne.s32.totalorder %s103, %s106
    %p115 = scmp.eq.s32.totalorder %s14, 1
    %p116 = por %p114, %p115
    %p117 = scmp.ne.s32.totalorder %s106, %s107
    %p118 = scmp.eq.s32.totalorder %s14, 0
    %p119 = por %p117, %p118
    %p120 = scmp.ne.s32.totalorder %s106, %s107
    %p121 = scmp.eq.s32.totalorder %s15, 1
    %p122 = por %p120, %p121
    %p124 = scmp.ne.s32.totalorder %s107, %s123
    %p125 = scmp.eq.s32.totalorder %s15, 0
    %p126 = por %p124, %p125
    %p127 = scmp.le.s32.totalorder 1, %s9
    %p128 = scmp.lt.s32.totalorder %s9, 3
    %p129 = pnand %p127, %p128
    %p130 = pneg %p129
    // Predicated region
    $region9: #{advanced_phase_estimation_forward.18} parent=5 // pred_check
      _
    $region10: #{advanced_phase_estimation_forward.18} parent=5 // pred_check_branch
      %132 = sbr.rel (%p129) target = $region12
    $region11: #{advanced_phase_estimation_forward.18} parent=5 // pred_region
      %s133 = ssub.s32 %s9, 1
      // Predicated region
      $region13: #{advanced_phase_estimation_forward.18} parent=11 // pred_check
        %p134 = pneg %p70
      $region14: #{advanced_phase_estimation_forward.18} parent=11 // pred_check_branch
        %136 = sbr.rel (%p134) target = $region16
      $region15: #{advanced_phase_estimation_forward.18} parent=11 // pred_region
        _
      $region16: #{advanced_phase_estimation_forward.18} parent=11 // pred_fallthru
        _
      // Predicated region
      $region17: #{advanced_phase_estimation_forward.18} parent=11 // pred_check
        %p137 = pneg %p91
      $region18: #{advanced_phase_estimation_forward.18} parent=11 // pred_check_branch
        %139 = sbr.rel (%p137) target = $region20
      $region19: #{advanced_phase_estimation_forward.18} parent=11 // pred_region
        _
      $region20: #{advanced_phase_estimation_forward.18} parent=11 // pred_fallthru
        _
    $region12: #{advanced_phase_estimation_forward.18} parent=5 // pred_fallthru
      _
    %p140 = scmp.lt.s32.totalorder %s9, 2
    // Predicated region
    $region21: #{advanced_phase_estimation_forward.18} parent=5 // pred_check
      %p141 = pneg %p140
    $region22: #{advanced_phase_estimation_forward.18} parent=5 // pred_check_branch
      %143 = sbr.rel (%p141) target = $region24
    $region23: #{advanced_phase_estimation_forward.18} parent=5 // pred_region
      // Predicated region
      $region25: #{advanced_phase_estimation_forward.18} parent=23 // pred_check
        %p144 = pneg %p43
      $region26: #{advanced_phase_estimation_forward.18} parent=23 // pred_check_branch
        %146 = sbr.rel (%p144) target = $region28
      $region27: #{advanced_phase_estimation_forward.18} parent=23 // pred_region
        %p147 = scmp.lt.s32.totalorder %s16, 1
        %s148 = scalar_select %p147, %s16, 1
        %p149 = scmp.lt.s32.totalorder %s17, 0
        %s150 = scalar_select %p149, %s17, 0
        %s151 = smul.addr %s150, 3
        %s152 = smul.addr %s148, 3
        %s153 = sadd.s32 %s151, %s152
        %s154 = smul.addr %s153, 4
        %s155 = scalar_lea.vmem %s0, %s154
      $region28: #{advanced_phase_estimation_forward.18} parent=23 // pred_fallthru
        _
    $region24: #{advanced_phase_estimation_forward.18} parent=5 // pred_fallthru
      _
    %p156 = scmp.le.s32.totalorder 1, %s9
    %p157 = scmp.lt.s32.totalorder %s9, 3
    %p158 = pnand %p156, %p157
    %p159 = pneg %p158
    // Predicated region
    $region29: #{advanced_phase_estimation_forward.18} parent=5 // pred_check
      _
    $region30: #{advanced_phase_estimation_forward.18} parent=5 // pred_check_branch
      %161 = sbr.rel (%p158) target = $region32
    $region31: #{advanced_phase_estimation_forward.18} parent=5 // pred_region
      %s162 = ssub.s32 %s9, 1
      %p163 = scmp.lt.s32.totalorder %s18, 1
      %s164 = scalar_select %p163, %s18, 1
      %p165 = scmp.lt.s32.totalorder %s19, 0
      %s166 = scalar_select %p165, %s19, 0
      %s167 = smul.addr %s166, 3
      %s168 = smul.addr %s164, 3
      %s169 = sadd.s32 %s167, %s168
      %s170 = smul.addr %s169, 4
      %s171 = scalar_lea.vmem %s0, %s170
      %p172 = pneg %p49
      %p173 = pneg %p46
      %p174 = pneg %p70
      %p175 = pneg %p67
      %p176 = pneg %p91
      %p177 = pneg %p88
      %p178 = pneg %p119
      %p179 = pneg %p116
      %p180 = scmp.lt.s32.totalorder %s18, 1
      %s181 = scalar_select %p180, %s18, 1
      %p182 = scmp.lt.s32.totalorder %s19, 0
      %s183 = scalar_select %p182, %s19, 0
      %s184 = sadd.s32 %s183, %s181
      %s185 = smul.addr %s184, 4
      %s186 = scalar_lea.vmem %s3, %s185
      %p187 = scmp.lt.s32.totalorder %s18, 1
      %s188 = scalar_select %p187, %s18, 1
      %p189 = scmp.lt.s32.totalorder %s19, 0
      %s190 = scalar_select %p189, %s19, 0
      %s191 = smul.addr %s190, 3
      %s192 = smul.addr %s188, 3
      %s193 = sadd.s32 %s191, %s192
      %s194 = smul.addr %s193, 4
      %s195 = scalar_lea.vmem %s0, %s194
      %p196 = scmp.lt.s32.totalorder %s18, 1
      %s197 = scalar_select %p196, %s18, 1
      %p198 = scmp.lt.s32.totalorder %s19, 0
      %s199 = scalar_select %p198, %s19, 0
      %s200 = sadd.s32 %s199, %s197
      %s201 = smul.addr %s200, 4
      %s202 = scalar_lea.vmem %s3, %s201
      %v204 = vld [vmem:[%s195] sm:$0x7]
      %v205 = vld [vmem:[%s195 + $0x4] sm:$0x7]
      %v206 = vld [vmem:[%s195 + $0x8] sm:$0x7]
      %v209 = vrot.slane %v204, 1
      %v210 = vrot.slane %v205, 1
      %v212 = vrot.slane %v206, 1
      %v213 = vcombine.low %v204, %v209
      %v214 = vcombine.low %v205, %v210
      %v216 = vunpack.c.l.s4 1983009808
      %v217 = vunpack.c.0.s8 %v216
      %v218 = vlaneseq
      %v219 = vshrl.u32 %v218, 7
      %v220 = vsub.s32 %v217, %v219
      %v221 = vrot.slane %v213, %v220
      %v223 = vunpack.c.l.s4 1983009808
      %v224 = vunpack.c.0.s8 %v223
      %v225 = vlaneseq
      %v226 = vshrl.u32 %v225, 7
      %v227 = vsub.s32 %v224, %v226
      %v228 = vrot.slane %v214, %v227
      %v229 = vcombine.low %v221, %v228
      %v230 = vcombine.low %v206, %v212
      %v232 = vunpack.c.l.s4 1983009808
      %v233 = vunpack.c.0.s8 %v232
      %v234 = vlaneseq
      %v235 = vshrl.u32 %v234, 7
      %v236 = vsub.s32 %v233, %v235
      %v237 = vrot.slane %v230, %v236
      %v238 = vcombine.low %v228, %v237
      %v239 = vcombine.low %v229, %v238
      %v240 = vcombine.high %v229, %v238
      %v242 = vunpack.c.l.s4 1983009808
      %v243 = vunpack.c.0.s8 %v242
      %v244 = vlaneseq
      %v245 = vshrl.u32 %v244, 7
      %v246 = vsub.s32 %v243, %v245
      %v247 = vrot.slane %v239, %v246
      %v249 = vunpack.c.l.s4 1983009808
      %v250 = vunpack.c.0.s8 %v249
      %v251 = vlaneseq
      %v252 = vshrl.u32 %v251, 7
      %v253 = vsub.s32 %v250, %v252
      %v254 = vrot.slane %v240, %v253
      %v255 = vcombine.high %v247, %v247
      %v256 = vcombine.high %v254, %v254
      %v261 = vpack.c.bf16 %v247, %v247
      %v262 = vpack.c.bf16 %v255, %v255
      %v263 = vpack.c.bf16 %v254, %v254
      %v264 = vpack.c.bf16 %v256, %v256
      %v265 = vld [vmem:[%s1] sm:$0xf]
      %v266 = vld [vmem:[%s1 + $0x4] sm:$0xf]
      %v267 = vld [vmem:[%s1 + $0x8] sm:$0xf]
      %v268 = vld [vmem:[%s1 + $0xc] sm:$0xf]
      %v269 = vld [vmem:[%s1 + $0x10] sm:$0xf]
      %v270 = vld [vmem:[%s1 + $0x14] sm:$0xf]
      %v271 = vld [vmem:[%s1 + $0x18] sm:$0xf]
      %v272 = vld [vmem:[%s1 + $0x1c] sm:$0xf]
      %v273 = vld [vmem:[%s1 + $0x20] sm:$0xf]
      %v274 = vld [vmem:[%s1 + $0x24] sm:$0xf]
      %v275 = vld [vmem:[%s1 + $0x28] sm:$0xf]
      %v276 = vld [vmem:[%s1 + $0x2c] sm:$0xf]
      %v277 = vld [vmem:[%s1 + $0x30] sm:$0xf]
      %v278 = vld [vmem:[%s1 + $0x34] sm:$0xf]
      %v279 = vld [vmem:[%s1 + $0x38] sm:$0xf]
      %v280 = vld [vmem:[%s1 + $0x3c] sm:$0xf]
      %v281 = vld [vmem:[%s1 + $0x40] sm:$0xf]
      %v282 = vld [vmem:[%s1 + $0x44] sm:$0xf]
      %v283 = vld [vmem:[%s1 + $0x48] sm:$0xf]
      %v284 = vld [vmem:[%s1 + $0x4c] sm:$0xf]
      %v285 = vld [vmem:[%s1 + $0x50] sm:$0xf]
      %v286 = vld [vmem:[%s1 + $0x54] sm:$0xf]
      %v287 = vld [vmem:[%s1 + $0x58] sm:$0xf]
      %v288 = vld [vmem:[%s1 + $0x5c] sm:$0xf]
      %v289 = vld [vmem:[%s1 + $0x60] sm:$0xf]
      %v290 = vld [vmem:[%s1 + $0x64] sm:$0xf]
      %v291 = vld [vmem:[%s1 + $0x68] sm:$0xf]
      %v292 = vld [vmem:[%s1 + $0x6c] sm:$0xf]
      %v293 = vld [vmem:[%s1 + $0x70] sm:$0xf]
      %v294 = vld [vmem:[%s1 + $0x74] sm:$0xf]
      %v295 = vld [vmem:[%s1 + $0x78] sm:$0xf]
      %v296 = vld [vmem:[%s1 + $0x7c] sm:$0xf]
      %v297 = vld [vmem:[%s1 + $0x80] sm:$0xf]
      %v298 = vld [vmem:[%s1 + $0x84] sm:$0xf]
      %v299 = vld [vmem:[%s1 + $0x88] sm:$0xf]
      %v300 = vld [vmem:[%s1 + $0x8c] sm:$0xf]
      %v301 = vld [vmem:[%s1 + $0x90] sm:$0xf]
      %v302 = vld [vmem:[%s1 + $0x94] sm:$0xf]
      %v303 = vld [vmem:[%s1 + $0x98] sm:$0xf]
      %v304 = vld [vmem:[%s1 + $0x9c] sm:$0xf]
      %v305 = vld [vmem:[%s1 + $0xa0] sm:$0xf]
      %v306 = vld [vmem:[%s1 + $0xa4] sm:$0xf]
      %v307 = vld [vmem:[%s1 + $0xa8] sm:$0xf]
      %v308 = vld [vmem:[%s1 + $0xac] sm:$0xf]
      %v309 = vld [vmem:[%s1 + $0xb0] sm:$0xf]
      %v310 = vld [vmem:[%s1 + $0xb4] sm:$0xf]
      %v311 = vld [vmem:[%s1 + $0xb8] sm:$0xf]
      %v312 = vld [vmem:[%s1 + $0xbc] sm:$0xf]
      %v313 = vld [vmem:[%s1 + $0xc0] sm:$0xf]
      %v314 = vld [vmem:[%s1 + $0xc4] sm:$0xf]
      %v315 = vld [vmem:[%s1 + $0xc8] sm:$0xf]
      %v316 = vld [vmem:[%s1 + $0xcc] sm:$0xf]
      %v317 = vld [vmem:[%s1 + $0xd0] sm:$0xf]
      %v318 = vld [vmem:[%s1 + $0xd4] sm:$0xf]
      %v319 = vld [vmem:[%s1 + $0xd8] sm:$0xf]
      %v320 = vld [vmem:[%s1 + $0xdc] sm:$0xf]
      %v321 = vld [vmem:[%s1 + $0xe0] sm:$0xf]
      %v322 = vld [vmem:[%s1 + $0xe4] sm:$0xf]
      %v323 = vld [vmem:[%s1 + $0xe8] sm:$0xf]
      %v324 = vld [vmem:[%s1 + $0xec] sm:$0xf]
      %v325 = vld [vmem:[%s1 + $0xf0] sm:$0xf]
      %v326 = vld [vmem:[%s1 + $0xf4] sm:$0xf]
      %v327 = vld [vmem:[%s1 + $0xf8] sm:$0xf]
      %v328 = vld [vmem:[%s1 + $0xfc] sm:$0xf]
      %v329 = vld [vmem:[%s2] sm:$0x1]
      %v331 = vlaneseq
      %v332 = vshrl.u32 %v331, 7
      %v333 = vsub.s32 0, %v332
      %v334 = vrot.slane %v329, %v333
      %v400 = vunpack.c.l.b16 %v265
      %v401 = vunpack.c.l.b16 %v266
      %v402 = vunpack.c.l.b16 %v267
      %v403 = vunpack.c.l.b16 %v268
      %v404 = vunpack.c.l.b16 %v269
      %v405 = vunpack.c.l.b16 %v270
      %v406 = vunpack.c.l.b16 %v271
      %v407 = vunpack.c.l.b16 %v272
      %v408 = vunpack.c.l.b16 %v273
      %v409 = vunpack.c.l.b16 %v274
      %v410 = vunpack.c.l.b16 %v275
      %v411 = vunpack.c.l.b16 %v276
      %v412 = vunpack.c.l.b16 %v277
      %v413 = vunpack.c.l.b16 %v278
      %v414 = vunpack.c.l.b16 %v279
      %v415 = vunpack.c.l.b16 %v280
      %v416 = vunpack.c.l.b16 %v281
      %v417 = vunpack.c.l.b16 %v282
      %v418 = vunpack.c.l.b16 %v283
      %v419 = vunpack.c.l.b16 %v284
      %v420 = vunpack.c.l.b16 %v285
      %v421 = vunpack.c.l.b16 %v286
      %v422 = vunpack.c.l.b16 %v287
      %v423 = vunpack.c.l.b16 %v288
      %v424 = vunpack.c.l.b16 %v289
      %v425 = vunpack.c.l.b16 %v290
      %v426 = vunpack.c.l.b16 %v291
      %v427 = vunpack.c.l.b16 %v292
      %v428 = vunpack.c.l.b16 %v293
      %v429 = vunpack.c.l.b16 %v294
      %v430 = vunpack.c.l.b16 %v295
      %v431 = vunpack.c.l.b16 %v296
      %v432 = vunpack.c.l.b16 %v297
      %v433 = vunpack.c.l.b16 %v298
      %v434 = vunpack.c.l.b16 %v299
      %v435 = vunpack.c.l.b16 %v300
      %v436 = vunpack.c.l.b16 %v301
      %v437 = vunpack.c.l.b16 %v302
      %v438 = vunpack.c.l.b16 %v303
      %v439 = vunpack.c.l.b16 %v304
      %v440 = vunpack.c.l.b16 %v305
      %v441 = vunpack.c.l.b16 %v306
      %v442 = vunpack.c.l.b16 %v307
      %v443 = vunpack.c.l.b16 %v308
      %v444 = vunpack.c.l.b16 %v309
      %v445 = vunpack.c.l.b16 %v310
      %v446 = vunpack.c.l.b16 %v311
      %v447 = vunpack.c.l.b16 %v312
      %v448 = vunpack.c.l.b16 %v313
      %v449 = vunpack.c.l.b16 %v314
      %v450 = vunpack.c.l.b16 %v315
      %v451 = vunpack.c.l.b16 %v316
      %v452 = vunpack.c.l.b16 %v317
      %v453 = vunpack.c.l.b16 %v318
      %v454 = vunpack.c.l.b16 %v319
      %v455 = vunpack.c.l.b16 %v320
      %v456 = vunpack.c.l.b16 %v321
      %v457 = vunpack.c.l.b16 %v322
      %v458 = vunpack.c.l.b16 %v323
      %v459 = vunpack.c.l.b16 %v324
      %v460 = vunpack.c.l.b16 %v325
      %v461 = vunpack.c.l.b16 %v326
      %v462 = vunpack.c.l.b16 %v327
      %v463 = vunpack.c.l.b16 %v328
      %v464 = vpack.c.b16 %v401, %v400
      %v465 = vpack.c.b16 %v403, %v402
      %v466 = vpack.c.b16 %v405, %v404
      %v467 = vpack.c.b16 %v407, %v406
      %v468 = vpack.c.b16 %v409, %v408
      %v469 = vpack.c.b16 %v411, %v410
      %v470 = vpack.c.b16 %v413, %v412
      %v471 = vpack.c.b16 %v415, %v414
      %v472 = vpack.c.b16 %v417, %v416
      %v473 = vpack.c.b16 %v419, %v418
      %v474 = vpack.c.b16 %v421, %v420
      %v475 = vpack.c.b16 %v423, %v422
      %v476 = vpack.c.b16 %v425, %v424
      %v477 = vpack.c.b16 %v427, %v426
      %v478 = vpack.c.b16 %v429, %v428
      %v479 = vpack.c.b16 %v431, %v430
      %v480 = vpack.c.b16 %v433, %v432
      %v481 = vpack.c.b16 %v435, %v434
      %v482 = vpack.c.b16 %v437, %v436
      %v483 = vpack.c.b16 %v439, %v438
      %v484 = vpack.c.b16 %v441, %v440
      %v485 = vpack.c.b16 %v443, %v442
      %v486 = vpack.c.b16 %v445, %v444
      %v487 = vpack.c.b16 %v447, %v446
      %v488 = vpack.c.b16 %v449, %v448
      %v489 = vpack.c.b16 %v451, %v450
      %v490 = vpack.c.b16 %v453, %v452
      %v491 = vpack.c.b16 %v455, %v454
      %v492 = vpack.c.b16 %v457, %v456
      %v493 = vpack.c.b16 %v459, %v458
      %v494 = vpack.c.b16 %v461, %v460
      %v495 = vpack.c.b16 %v463, %v462
      %528 = vmatprep.subr.bf16.mxu0 0
      %529 = vmatpush1.bf16.msra.mxu0 %v471
      %530 = vmatprep.subr.bf16.mxu0 0
      %531 = vmatpush1.bf16.msra.mxu0 %v470
      %532 = vmatprep.subr.bf16.mxu0 0
      %533 = vmatpush1.bf16.msra.mxu0 %v469
      %534 = vmatprep.subr.bf16.mxu0 0
      %535 = vmatpush1.bf16.msra.mxu0 %v468
      %536 = vmatprep.subr.bf16.mxu0 0
      %537 = vmatpush1.bf16.msra.mxu0 %v467
      %538 = vmatprep.subr.bf16.mxu0 0
      %539 = vmatpush1.bf16.msra.mxu0 %v466
      %540 = vmatprep.subr.bf16.mxu0 0
      %541 = vmatpush1.bf16.msra.mxu0 %v465
      %542 = vmatprep.subr.bf16.mxu0 0
      %543 = vmatpush1.bf16.msra.mxu0 %v464
      %544 = vmatprep.subr.bf16.mxu0 0
      %545 = vmatpush2.bf16.msra.mxu0 %v479
      %546 = vmatprep.subr.bf16.mxu0 0
      %547 = vmatpush2.bf16.msra.mxu0 %v478
      %548 = vmatprep.subr.bf16.mxu0 0
      %549 = vmatpush2.bf16.msra.mxu0 %v477
      %550 = vmatprep.subr.bf16.mxu0 0
      %551 = vmatpush2.bf16.msra.mxu0 %v476
      %552 = vmatprep.subr.bf16.mxu0 0
      %553 = vmatpush2.bf16.msra.mxu0 %v475
      %554 = vmatprep.subr.bf16.mxu0 0
      %555 = vmatpush2.bf16.msra.mxu0 %v474
      %556 = vmatprep.subr.bf16.mxu0 0
      %557 = vmatpush2.bf16.msra.mxu0 %v473
      %558 = vmatprep.subr.bf16.mxu0 0
      %559 = vmatpush2.bf16.msra.mxu0 %v472
      %560 = vmatprep.mubr.bf16.mxu0 %v262
      %561 = vmatmul.mubr.bf16.gmra.mxu0 %v261
      %v562 = vpop.f32.mrf.mxu0
      %v563 = vadd.f32 %v334, %v562
      %v564 = vpop.f32.mrf.mxu0
      %v565 = vpop.f32.mrf.mxu0
      %v566 = vpop.f32.mrf.mxu0
      %567 = vdwg.mxu0
      %568 = vmatprep.subr.bf16.mxu0 0
      %569 = vmatpush1.bf16.msra.mxu0 %v487
      %570 = vmatprep.subr.bf16.mxu0 0
      %571 = vmatpush1.bf16.msra.mxu0 %v486
      %572 = vmatprep.subr.bf16.mxu0 0
      %573 = vmatpush1.bf16.msra.mxu0 %v485
      %574 = vmatprep.subr.bf16.mxu0 0
      %575 = vmatpush1.bf16.msra.mxu0 %v484
      %576 = vmatprep.subr.bf16.mxu0 0
      %577 = vmatpush1.bf16.msra.mxu0 %v483
      %578 = vmatprep.subr.bf16.mxu0 0
      %579 = vmatpush1.bf16.msra.mxu0 %v482
      %580 = vmatprep.subr.bf16.mxu0 0
      %581 = vmatpush1.bf16.msra.mxu0 %v481
      %582 = vmatprep.subr.bf16.mxu0 0
      %583 = vmatpush1.bf16.msra.mxu0 %v480
      %584 = vmatprep.subr.bf16.mxu0 0
      %585 = vmatpush2.bf16.msra.mxu0 %v495
      %586 = vmatprep.subr.bf16.mxu0 0
      %587 = vmatpush2.bf16.msra.mxu0 %v494
      %588 = vmatprep.subr.bf16.mxu0 0
      %589 = vmatpush2.bf16.msra.mxu0 %v493
      %590 = vmatprep.subr.bf16.mxu0 0
      %591 = vmatpush2.bf16.msra.mxu0 %v492
      %592 = vmatprep.subr.bf16.mxu0 0
      %593 = vmatpush2.bf16.msra.mxu0 %v491
      %594 = vmatprep.subr.bf16.mxu0 0
      %595 = vmatpush2.bf16.msra.mxu0 %v490
      %596 = vmatprep.subr.bf16.mxu0 0
      %597 = vmatpush2.bf16.msra.mxu0 %v489
      %598 = vmatprep.subr.bf16.mxu0 0
      %599 = vmatpush2.bf16.msra.mxu0 %v488
      %600 = vmatprep.mubr.bf16.mxu0 %v264
      %601 = vmatmul.mubr.bf16.gmra.mxu0 %v263
      %v602 = vpop.f32.mrf.mxu0
      %v603 = vadd.f32 %v563, %v602
      %v604 = vpop.f32.mrf.mxu0
      %v605 = vpop.f32.mrf.mxu0
      %v606 = vpop.f32.mrf.mxu0
      %607 = vdwg.mxu0
      %v608 = vmax.f32 %v603, 0.0
      %vm609 = vcmask 519168
      %610 = vst.msk [vmem:[%s202] sm:$0xf] %vm609, %v608
      %p611 = scmp.lt.s32.totalorder %s18, 1
      %s612 = scalar_select %p611, %s18, 1
      %p613 = scmp.lt.s32.totalorder %s19, 0
      %s614 = scalar_select %p613, %s19, 0
      %s615 = sadd.s32 %s614, %s612
      %s616 = smul.addr %s615, 4
      %s617 = scalar_lea.vmem %s3, %s616
      // Predicated region
      $region33: #{advanced_phase_estimation_forward.18} parent=31 // pred_check
        %p618 = pneg %p116
      $region34: #{advanced_phase_estimation_forward.18} parent=31 // pred_check_branch
        %620 = sbr.rel (%p618) target = $region36
      $region35: #{advanced_phase_estimation_forward.18} parent=31 // pred_region
        _
      $region36: #{advanced_phase_estimation_forward.18} parent=31 // pred_fallthru
        _
    $region32: #{advanced_phase_estimation_forward.18} parent=5 // pred_fallthru
      _
    %p621 = scmp.le.s32.totalorder 2, %s9
    // Predicated region
    $region37: #{advanced_phase_estimation_forward.18} parent=5 // pred_check
      %p622 = pneg %p621
    $region38: #{advanced_phase_estimation_forward.18} parent=5 // pred_check_branch
      %624 = sbr.rel (%p622) target = $region40
    $region39: #{advanced_phase_estimation_forward.18} parent=5 // pred_region
      %s625 = ssub.s32 %s9, 2
      // Predicated region
      $region41: #{advanced_phase_estimation_forward.18} parent=39 // pred_check
        %p626 = pneg %p122
      $region42: #{advanced_phase_estimation_forward.18} parent=39 // pred_check_branch
        %628 = sbr.rel (%p626) target = $region44
      $region43: #{advanced_phase_estimation_forward.18} parent=39 // pred_region
        %p629 = scmp.lt.s32.totalorder %s20, 1
        %s630 = scalar_select %p629, %s20, 1
        %p631 = scmp.lt.s32.totalorder %s21, 0
        %s632 = scalar_select %p631, %s21, 0
        %s633 = sadd.s32 %s632, %s630
        %s634 = smul.addr %s633, 4
        %s635 = scalar_lea.vmem %s3, %s634
      $region44: #{advanced_phase_estimation_forward.18} parent=39 // pred_fallthru
        _
    $region40: #{advanced_phase_estimation_forward.18} parent=5 // pred_fallthru
      _
  $region6: #{advanced_phase_estimation_forward.18} parent=0 // loop_footer
    %s13 = sadd.s32 1, %s9
  $region7: #{advanced_phase_estimation_forward.18} parent=0 // loop_footer_branch
    %8 = sbr.rel target = $region3
  $region8: #{advanced_phase_estimation_forward.18} parent=0 // loop_exit
    _

// kernel: advanced_phase_estimation_forward.20
$region0: #{advanced_phase_estimation_forward.20}
  #allocation0 [shape = 'u32[]', space=smem, size = 0x4, offset = 0x4, fixed_abs, tag = 'smem constant byte address 0x4 - core index']
  #allocation1 [shape = 'u32[144,128]{1,0:T(1,128)}', space=vmem, size = 0x12000, scoped, tag = 'internal scratch']
  %s0 = inlined_call_operand.vmem [shape: f32[2,1,3,3,128], index: 0, kind: input, shape index: {}]
  %s1 = inlined_call_operand.vmem [shape: bf16[512,256], index: 1, kind: input, shape index: {}]
  %s2 = inlined_call_operand.vmem [shape: f32[1,256], index: 2, kind: input, shape index: {}]
  %s3 = inlined_call_operand.vmem [shape: f32[2,1,4,256], index: 3, kind: output, shape index: {}]
  %s4 = sld [smem:[#allocation0]]
  $region45: #{advanced_phase_estimation_forward.20} parent=0
    _
  %s6 = ssub.s32 1, %s4
  %s7 = scalar_select 0, %s6, %s4
  loop: start=0, step=1, limit=4
  $region2: #{advanced_phase_estimation_forward.20} parent=0 // loop_pre_header
    _
  $region3: #{advanced_phase_estimation_forward.20} parent=0 // loop_header
    %s9 = sphi 0, %s13
    %p10 = scmp.ge.s32.totalorder %s9, 4
    %s16 = sphi 0, %s28
    %s17 = sphi 0, %s24
    %s18 = sphi 0, %s16
    %s19 = sphi 0, %s17
    %s20 = sphi 0, %s18
    %s21 = sphi 0, %s19
    %s33 = sphi 0, %s35
    %s36 = sphi 0, %s33
    %s37 = sphi 0, %s36
    %s53 = sphi 0, %s37
    %s57 = sphi 0, %s57
    %s59 = sphi 0, %s57
    %s60 = sphi 0, %s59
    %s74 = sphi 0, %s60
    %s78 = sphi 0, %s78
    %s80 = sphi 0, %s78
    %s81 = sphi 0, %s80
    %s95 = sphi 0, %s81
    %s103 = sphi 0, %s105
    %s106 = sphi 0, %s103
    %s107 = sphi 0, %s106
    %s123 = sphi 0, %s107
  $region4: #{advanced_phase_estimation_forward.20} parent=0 // loop_header_branch
    %12 = sbr.rel (%p10) target = $region8
  $region5: #{advanced_phase_estimation_forward.20} parent=0 // loop_body
    %s14 = ssub.s32 %s9, 1
    %s15 = ssub.s32 %s9, 2
    %s22 = sadd.s32 1, %s17
    %p23 = scmp.ge.s32.totalorder %s22, 1
    %s24 = scalar_select %p23, 0, %s22
    %s25 = sadd.s32 1, %s16
    %s26 = scalar_select %p23, %s25, %s16
    %p27 = scmp.ge.s32.totalorder %s26, 2
    %s28 = scalar_select %p27, 0, %s26
    %s29 = ssub.s32 %s16, %s28
    %s30 = ssub.s32 %s17, %s24
    %s31 = sor.u32 %s29, %s30
    %p32 = scmp.eq.s32.totalorder %s31, 0
    %s34 = sadd.s32 %s33, 1
    %s35 = scalar_select %p32, %s33, %s34
    %p38 = pneg %p32
    %p39 = scmp.eq.s32.totalorder %s9, 1
    %p40 = por %p38, %p39
    %p41 = scmp.ne.s32.totalorder %s33, %s36
    %p42 = scmp.eq.s32.totalorder %s9, 0
    %p43 = por %p41, %p42
    %p44 = scmp.ne.s32.totalorder %s33, %s36
    %p45 = scmp.eq.s32.totalorder %s14, 1
    %p46 = por %p44, %p45
    %p47 = scmp.ne.s32.totalorder %s36, %s37
    %p48 = scmp.eq.s32.totalorder %s14, 0
    %p49 = por %p47, %p48
    %p50 = scmp.ne.s32.totalorder %s36, %s37
    %p51 = scmp.eq.s32.totalorder %s15, 1
    %p52 = por %p50, %p51
    %p54 = scmp.ne.s32.totalorder %s37, %s53
    %p55 = scmp.eq.s32.totalorder %s15, 0
    %p56 = por %p54, %p55
    %s58 = sadd.s32 %s57, 1
    %p61 = scmp.eq.s32.totalorder %s9, 1
    %p62 = scmp.ne.s32.totalorder %s57, %s59
    %p63 = scmp.eq.s32.totalorder %s9, 0
    %p64 = por %p62, %p63
    %p65 = scmp.ne.s32.totalorder %s57, %s59
    %p66 = scmp.eq.s32.totalorder %s14, 1
    %p67 = por %p65, %p66
    %p68 = scmp.ne.s32.totalorder %s59, %s60
    %p69 = scmp.eq.s32.totalorder %s14, 0
    %p70 = por %p68, %p69
    %p71 = scmp.ne.s32.totalorder %s59, %s60
    %p72 = scmp.eq.s32.totalorder %s15, 1
    %p73 = por %p71, %p72
    %p75 = scmp.ne.s32.totalorder %s60, %s74
    %p76 = scmp.eq.s32.totalorder %s15, 0
    %p77 = por %p75, %p76
    %s79 = sadd.s32 %s78, 1
    %p82 = scmp.eq.s32.totalorder %s9, 1
    %p83 = scmp.ne.s32.totalorder %s78, %s80
    %p84 = scmp.eq.s32.totalorder %s9, 0
    %p85 = por %p83, %p84
    %p86 = scmp.ne.s32.totalorder %s78, %s80
    %p87 = scmp.eq.s32.totalorder %s14, 1
    %p88 = por %p86, %p87
    %p89 = scmp.ne.s32.totalorder %s80, %s81
    %p90 = scmp.eq.s32.totalorder %s14, 0
    %p91 = por %p89, %p90
    %p92 = scmp.ne.s32.totalorder %s80, %s81
    %p93 = scmp.eq.s32.totalorder %s15, 1
    %p94 = por %p92, %p93
    %p96 = scmp.ne.s32.totalorder %s81, %s95
    %p97 = scmp.eq.s32.totalorder %s15, 0
    %p98 = por %p96, %p97
    %s99 = ssub.s32 %s16, %s28
    %s100 = ssub.s32 %s17, %s24
    %s101 = sor.u32 %s99, %s100
    %p102 = scmp.eq.s32.totalorder %s101, 0
    %s104 = sadd.s32 %s103, 1
    %s105 = scalar_select %p102, %s103, %s104
    %p108 = pneg %p102
    %p109 = scmp.eq.s32.totalorder %s9, 1
    %p110 = por %p108, %p109
    %p111 = scmp.ne.s32.totalorder %s103, %s106
    %p112 = scmp.eq.s32.totalorder %s9, 0
    %p113 = por %p111, %p112
    %p114 = scmp.ne.s32.totalorder %s103, %s106
    %p115 = scmp.eq.s32.totalorder %s14, 1
    %p116 = por %p114, %p115
    %p117 = scmp.ne.s32.totalorder %s106, %s107
    %p118 = scmp.eq.s32.totalorder %s14, 0
    %p119 = por %p117, %p118
    %p120 = scmp.ne.s32.totalorder %s106, %s107
    %p121 = scmp.eq.s32.totalorder %s15, 1
    %p122 = por %p120, %p121
    %p124 = scmp.ne.s32.totalorder %s107, %s123
    %p125 = scmp.eq.s32.totalorder %s15, 0
    %p126 = por %p124, %p125
    %p127 = scmp.le.s32.totalorder 1, %s9
    %p128 = scmp.lt.s32.totalorder %s9, 3
    %p129 = pnand %p127, %p128
    %p130 = pneg %p129
    // Predicated region
    $region9: #{advanced_phase_estimation_forward.20} parent=5 // pred_check
      _
    $region10: #{advanced_phase_estimation_forward.20} parent=5 // pred_check_branch
      %132 = sbr.rel (%p129) target = $region12
    $region11: #{advanced_phase_estimation_forward.20} parent=5 // pred_region
      %s133 = ssub.s32 %s9, 1
      // Predicated region
      $region13: #{advanced_phase_estimation_forward.20} parent=11 // pred_check
        %p134 = pneg %p70
      $region14: #{advanced_phase_estimation_forward.20} parent=11 // pred_check_branch
        %136 = sbr.rel (%p134) target = $region16
      $region15: #{advanced_phase_estimation_forward.20} parent=11 // pred_region
        _
      $region16: #{advanced_phase_estimation_forward.20} parent=11 // pred_fallthru
        _
      // Predicated region
      $region17: #{advanced_phase_estimation_forward.20} parent=11 // pred_check
        %p137 = pneg %p91
      $region18: #{advanced_phase_estimation_forward.20} parent=11 // pred_check_branch
        %139 = sbr.rel (%p137) target = $region20
      $region19: #{advanced_phase_estimation_forward.20} parent=11 // pred_region
        _
      $region20: #{advanced_phase_estimation_forward.20} parent=11 // pred_fallthru
        _
    $region12: #{advanced_phase_estimation_forward.20} parent=5 // pred_fallthru
      _
    %p140 = scmp.lt.s32.totalorder %s9, 2
    // Predicated region
    $region21: #{advanced_phase_estimation_forward.20} parent=5 // pred_check
      %p141 = pneg %p140
    $region22: #{advanced_phase_estimation_forward.20} parent=5 // pred_check_branch
      %143 = sbr.rel (%p141) target = $region24
    $region23: #{advanced_phase_estimation_forward.20} parent=5 // pred_region
      // Predicated region
      $region25: #{advanced_phase_estimation_forward.20} parent=23 // pred_check
        %p144 = pneg %p43
      $region26: #{advanced_phase_estimation_forward.20} parent=23 // pred_check_branch
        %146 = sbr.rel (%p144) target = $region28
      $region27: #{advanced_phase_estimation_forward.20} parent=23 // pred_region
        %p147 = scmp.lt.s32.totalorder %s16, 1
        %s148 = scalar_select %p147, %s16, 1
        %p149 = scmp.lt.s32.totalorder %s17, 0
        %s150 = scalar_select %p149, %s17, 0
        %s151 = smul.addr %s150, 3
        %s152 = smul.addr %s148, 3
        %s153 = sadd.s32 %s151, %s152
        %s154 = smul.addr %s153, 4
        %s155 = scalar_lea.vmem %s0, %s154
      $region28: #{advanced_phase_estimation_forward.20} parent=23 // pred_fallthru
        _
    $region24: #{advanced_phase_estimation_forward.20} parent=5 // pred_fallthru
      _
    %p156 = scmp.le.s32.totalorder 1, %s9
    %p157 = scmp.lt.s32.totalorder %s9, 3
    %p158 = pnand %p156, %p157
    %p159 = pneg %p158
    // Predicated region
    $region29: #{advanced_phase_estimation_forward.20} parent=5 // pred_check
      _
    $region30: #{advanced_phase_estimation_forward.20} parent=5 // pred_check_branch
      %161 = sbr.rel (%p158) target = $region32
    $region31: #{advanced_phase_estimation_forward.20} parent=5 // pred_region
      %s162 = ssub.s32 %s9, 1
      %p163 = scmp.lt.s32.totalorder %s18, 1
      %s164 = scalar_select %p163, %s18, 1
      %p165 = scmp.lt.s32.totalorder %s19, 0
      %s166 = scalar_select %p165, %s19, 0
      %s167 = smul.addr %s166, 3
      %s168 = smul.addr %s164, 3
      %s169 = sadd.s32 %s167, %s168
      %s170 = smul.addr %s169, 4
      %s171 = scalar_lea.vmem %s0, %s170
      %p172 = pneg %p49
      %p173 = pneg %p46
      %p174 = pneg %p70
      %p175 = pneg %p67
      %p176 = pneg %p91
      %p177 = pneg %p88
      %p178 = pneg %p119
      %p179 = pneg %p116
      %p180 = scmp.lt.s32.totalorder %s18, 1
      %s181 = scalar_select %p180, %s18, 1
      %p182 = scmp.lt.s32.totalorder %s19, 0
      %s183 = scalar_select %p182, %s19, 0
      %s184 = smul.addr %s183, 2
      %s185 = smul.addr %s181, 2
      %s186 = sadd.s32 %s184, %s185
      %s187 = smul.addr %s186, 4
      %s188 = scalar_lea.vmem %s3, %s187
      %p189 = scmp.lt.s32.totalorder %s18, 1
      %s190 = scalar_select %p189, %s18, 1
      %p191 = scmp.lt.s32.totalorder %s19, 0
      %s192 = scalar_select %p191, %s19, 0
      %s193 = smul.addr %s192, 3
      %s194 = smul.addr %s190, 3
      %s195 = sadd.s32 %s193, %s194
      %s196 = smul.addr %s195, 4
      %s197 = scalar_lea.vmem %s0, %s196
      %p198 = scmp.lt.s32.totalorder %s18, 1
      %s199 = scalar_select %p198, %s18, 1
      %p200 = scmp.lt.s32.totalorder %s19, 0
      %s201 = scalar_select %p200, %s19, 0
      %s202 = smul.addr %s201, 2
      %s203 = smul.addr %s199, 2
      %s204 = sadd.s32 %s202, %s203
      %s205 = smul.addr %s204, 4
      %s206 = scalar_lea.vmem %s3, %s205
      %v207 = vld [vmem:[%s197] sm:$0x7]
      %v208 = vld [vmem:[%s197 + $0x4] sm:$0x7]
      %v209 = vld [vmem:[%s197 + $0x8] sm:$0x7]
      %v212 = vrot.slane %v207, 1
      %v213 = vrot.slane %v208, 1
      %v215 = vrot.slane %v209, 1
      %v216 = vcombine.low %v207, %v212
      %v217 = vcombine.low %v208, %v213
      %v219 = vunpack.c.l.s4 1983009808
      %v220 = vunpack.c.0.s8 %v219
      %v221 = vlaneseq
      %v222 = vshrl.u32 %v221, 7
      %v223 = vsub.s32 %v220, %v222
      %v224 = vrot.slane %v216, %v223
      %v226 = vunpack.c.l.s4 1983009808
      %v227 = vunpack.c.0.s8 %v226
      %v228 = vlaneseq
      %v229 = vshrl.u32 %v228, 7
      %v230 = vsub.s32 %v227, %v229
      %v231 = vrot.slane %v217, %v230
      %v232 = vcombine.low %v224, %v231
      %v233 = vcombine.low %v209, %v215
      %v235 = vunpack.c.l.s4 1983009808
      %v236 = vunpack.c.0.s8 %v235
      %v237 = vlaneseq
      %v238 = vshrl.u32 %v237, 7
      %v239 = vsub.s32 %v236, %v238
      %v240 = vrot.slane %v233, %v239
      %v241 = vcombine.low %v231, %v240
      %v242 = vcombine.low %v232, %v241
      %v243 = vcombine.high %v232, %v241
      %v245 = vunpack.c.l.s4 1983009808
      %v246 = vunpack.c.0.s8 %v245
      %v247 = vlaneseq
      %v248 = vshrl.u32 %v247, 7
      %v249 = vsub.s32 %v246, %v248
      %v250 = vrot.slane %v242, %v249
      %v252 = vunpack.c.l.s4 1983009808
      %v253 = vunpack.c.0.s8 %v252
      %v254 = vlaneseq
      %v255 = vshrl.u32 %v254, 7
      %v256 = vsub.s32 %v253, %v255
      %v257 = vrot.slane %v243, %v256
      %v258 = vcombine.high %v250, %v250
      %v259 = vcombine.high %v257, %v257
      %v264 = vpack.c.bf16 %v250, %v250
      %v265 = vpack.c.bf16 %v258, %v258
      %v266 = vpack.c.bf16 %v257, %v257
      %v267 = vpack.c.bf16 %v259, %v259
      %v268 = vld [vmem:[%s1] sm:$0xff]
      %v269 = vld [vmem:[%s1 + $0x8] sm:$0xff]
      %v270 = vld [vmem:[%s1 + $0x10] sm:$0xff]
      %v271 = vld [vmem:[%s1 + $0x18] sm:$0xff]
      %v272 = vld [vmem:[%s1 + $0x20] sm:$0xff]
      %v273 = vld [vmem:[%s1 + $0x28] sm:$0xff]
      %v274 = vld [vmem:[%s1 + $0x30] sm:$0xff]
      %v275 = vld [vmem:[%s1 + $0x38] sm:$0xff]
      %v276 = vld [vmem:[%s1 + $0x40] sm:$0xff]
      %v277 = vld [vmem:[%s1 + $0x48] sm:$0xff]
      %v278 = vld [vmem:[%s1 + $0x50] sm:$0xff]
      %v279 = vld [vmem:[%s1 + $0x58] sm:$0xff]
      %v280 = vld [vmem:[%s1 + $0x60] sm:$0xff]
      %v281 = vld [vmem:[%s1 + $0x68] sm:$0xff]
      %v282 = vld [vmem:[%s1 + $0x70] sm:$0xff]
      %v283 = vld [vmem:[%s1 + $0x78] sm:$0xff]
      %v284 = vld [vmem:[%s1 + $0x80] sm:$0xff]
      %v285 = vld [vmem:[%s1 + $0x88] sm:$0xff]
      %v286 = vld [vmem:[%s1 + $0x90] sm:$0xff]
      %v287 = vld [vmem:[%s1 + $0x98] sm:$0xff]
      %v288 = vld [vmem:[%s1 + $0xa0] sm:$0xff]
      %v289 = vld [vmem:[%s1 + $0xa8] sm:$0xff]
      %v290 = vld [vmem:[%s1 + $0xb0] sm:$0xff]
      %v291 = vld [vmem:[%s1 + $0xb8] sm:$0xff]
      %v292 = vld [vmem:[%s1 + $0xc0] sm:$0xff]
      %v293 = vld [vmem:[%s1 + $0xc8] sm:$0xff]
      %v294 = vld [vmem:[%s1 + $0xd0] sm:$0xff]
      %v295 = vld [vmem:[%s1 + $0xd8] sm:$0xff]
      %v296 = vld [vmem:[%s1 + $0xe0] sm:$0xff]
      %v297 = vld [vmem:[%s1 + $0xe8] sm:$0xff]
      %v298 = vld [vmem:[%s1 + $0xf0] sm:$0xff]
      %v299 = vld [vmem:[%s1 + $0xf8] sm:$0xff]
      %v300 = vld [vmem:[%s1 + $0x100] sm:$0xff]
      %v301 = vld [vmem:[%s1 + $0x108] sm:$0xff]
      %v302 = vld [vmem:[%s1 + $0x110] sm:$0xff]
      %v303 = vld [vmem:[%s1 + $0x118] sm:$0xff]
      %v304 = vld [vmem:[%s1 + $0x120] sm:$0xff]
      %v305 = vld [vmem:[%s1 + $0x128] sm:$0xff]
      %v306 = vld [vmem:[%s1 + $0x130] sm:$0xff]
      %v307 = vld [vmem:[%s1 + $0x138] sm:$0xff]
      %v308 = vld [vmem:[%s1 + $0x140] sm:$0xff]
      %v309 = vld [vmem:[%s1 + $0x148] sm:$0xff]
      %v310 = vld [vmem:[%s1 + $0x150] sm:$0xff]
      %v311 = vld [vmem:[%s1 + $0x158] sm:$0xff]
      %v312 = vld [vmem:[%s1 + $0x160] sm:$0xff]
      %v313 = vld [vmem:[%s1 + $0x168] sm:$0xff]
      %v314 = vld [vmem:[%s1 + $0x170] sm:$0xff]
      %v315 = vld [vmem:[%s1 + $0x178] sm:$0xff]
      %v316 = vld [vmem:[%s1 + $0x180] sm:$0xff]
      %v317 = vld [vmem:[%s1 + $0x188] sm:$0xff]
      %v318 = vld [vmem:[%s1 + $0x190] sm:$0xff]
      %v319 = vld [vmem:[%s1 + $0x198] sm:$0xff]
      %v320 = vld [vmem:[%s1 + $0x1a0] sm:$0xff]
      %v321 = vld [vmem:[%s1 + $0x1a8] sm:$0xff]
      %v322 = vld [vmem:[%s1 + $0x1b0] sm:$0xff]
      %v323 = vld [vmem:[%s1 + $0x1b8] sm:$0xff]
      %v324 = vld [vmem:[%s1 + $0x1c0] sm:$0xff]
      %v325 = vld [vmem:[%s1 + $0x1c8] sm:$0xff]
      %v326 = vld [vmem:[%s1 + $0x1d0] sm:$0xff]
      %v327 = vld [vmem:[%s1 + $0x1d8] sm:$0xff]
      %v328 = vld [vmem:[%s1 + $0x1e0] sm:$0xff]
      %v329 = vld [vmem:[%s1 + $0x1e8] sm:$0xff]
      %v330 = vld [vmem:[%s1 + $0x1f0] sm:$0xff]
      %v331 = vld [vmem:[%s1 + $0x1f8] sm:$0xff]
      %v332 = vld [vmem:[%s2] sm:$0x3]
      %v334 = vlaneseq
      %v335 = vshrl.u32 %v334, 7
      %v336 = vsub.s32 0, %v335
      %v337 = vrot.slane %v332, %v336
      %v338 = vlaneseq
      %v339 = vshrl.u32 %v338, 7
      %v340 = vsub.s32 1, %v339
      %v341 = vrot.slane %v332, %v340
      %v408 = vunpack.c.l.b16 %v268
      %v409 = vunpack.c.h.b16 %v268
      %v410 = vunpack.c.l.b16 %v269
      %v411 = vunpack.c.h.b16 %v269
      %v412 = vunpack.c.l.b16 %v270
      %v413 = vunpack.c.h.b16 %v270
      %v414 = vunpack.c.l.b16 %v271
      %v415 = vunpack.c.h.b16 %v271
      %v416 = vunpack.c.l.b16 %v272
      %v417 = vunpack.c.h.b16 %v272
      %v418 = vunpack.c.l.b16 %v273
      %v419 = vunpack.c.h.b16 %v273
      %v420 = vunpack.c.l.b16 %v274
      %v421 = vunpack.c.h.b16 %v274
      %v422 = vunpack.c.l.b16 %v275
      %v423 = vunpack.c.h.b16 %v275
      %v424 = vunpack.c.l.b16 %v276
      %v425 = vunpack.c.h.b16 %v276
      %v426 = vunpack.c.l.b16 %v277
      %v427 = vunpack.c.h.b16 %v277
      %v428 = vunpack.c.l.b16 %v278
      %v429 = vunpack.c.h.b16 %v278
      %v430 = vunpack.c.l.b16 %v279
      %v431 = vunpack.c.h.b16 %v279
      %v432 = vunpack.c.l.b16 %v280
      %v433 = vunpack.c.h.b16 %v280
      %v434 = vunpack.c.l.b16 %v281
      %v435 = vunpack.c.h.b16 %v281
      %v436 = vunpack.c.l.b16 %v282
      %v437 = vunpack.c.h.b16 %v282
      %v438 = vunpack.c.l.b16 %v283
      %v439 = vunpack.c.h.b16 %v283
      %v440 = vunpack.c.l.b16 %v284
      %v441 = vunpack.c.h.b16 %v284
      %v442 = vunpack.c.l.b16 %v285
      %v443 = vunpack.c.h.b16 %v285
      %v444 = vunpack.c.l.b16 %v286
      %v445 = vunpack.c.h.b16 %v286
      %v446 = vunpack.c.l.b16 %v287
      %v447 = vunpack.c.h.b16 %v287
      %v448 = vunpack.c.l.b16 %v288
      %v449 = vunpack.c.h.b16 %v288
      %v450 = vunpack.c.l.b16 %v289
      %v451 = vunpack.c.h.b16 %v289
      %v452 = vunpack.c.l.b16 %v290
      %v453 = vunpack.c.h.b16 %v290
      %v454 = vunpack.c.l.b16 %v291
      %v455 = vunpack.c.h.b16 %v291
      %v456 = vunpack.c.l.b16 %v292
      %v457 = vunpack.c.h.b16 %v292
      %v458 = vunpack.c.l.b16 %v293
      %v459 = vunpack.c.h.b16 %v293
      %v460 = vunpack.c.l.b16 %v294
      %v461 = vunpack.c.h.b16 %v294
      %v462 = vunpack.c.l.b16 %v295
      %v463 = vunpack.c.h.b16 %v295
      %v464 = vunpack.c.l.b16 %v296
      %v465 = vunpack.c.h.b16 %v296
      %v466 = vunpack.c.l.b16 %v297
      %v467 = vunpack.c.h.b16 %v297
      %v468 = vunpack.c.l.b16 %v298
      %v469 = vunpack.c.h.b16 %v298
      %v470 = vunpack.c.l.b16 %v299
      %v471 = vunpack.c.h.b16 %v299
      %v472 = vunpack.c.l.b16 %v300
      %v473 = vunpack.c.h.b16 %v300
      %v474 = vunpack.c.l.b16 %v301
      %v475 = vunpack.c.h.b16 %v301
      %v476 = vunpack.c.l.b16 %v302
      %v477 = vunpack.c.h.b16 %v302
      %v478 = vunpack.c.l.b16 %v303
      %v479 = vunpack.c.h.b16 %v303
      %v480 = vunpack.c.l.b16 %v304
      %v481 = vunpack.c.h.b16 %v304
      %v482 = vunpack.c.l.b16 %v305
      %v483 = vunpack.c.h.b16 %v305
      %v484 = vunpack.c.l.b16 %v306
      %v485 = vunpack.c.h.b16 %v306
      %v486 = vunpack.c.l.b16 %v307
      %v487 = vunpack.c.h.b16 %v307
      %v488 = vunpack.c.l.b16 %v308
      %v489 = vunpack.c.h.b16 %v308
      %v490 = vunpack.c.l.b16 %v309
      %v491 = vunpack.c.h.b16 %v309
      %v492 = vunpack.c.l.b16 %v310
      %v493 = vunpack.c.h.b16 %v310
      %v494 = vunpack.c.l.b16 %v311
      %v495 = vunpack.c.h.b16 %v311
      %v496 = vunpack.c.l.b16 %v312
      %v497 = vunpack.c.h.b16 %v312
      %v498 = vunpack.c.l.b16 %v313
      %v499 = vunpack.c.h.b16 %v313
      %v500 = vunpack.c.l.b16 %v314
      %v501 = vunpack.c.h.b16 %v314
      %v502 = vunpack.c.l.b16 %v315
      %v503 = vunpack.c.h.b16 %v315
      %v504 = vunpack.c.l.b16 %v316
      %v505 = vunpack.c.h.b16 %v316
      %v506 = vunpack.c.l.b16 %v317
      %v507 = vunpack.c.h.b16 %v317
      %v508 = vunpack.c.l.b16 %v318
      %v509 = vunpack.c.h.b16 %v318
      %v510 = vunpack.c.l.b16 %v319
      %v511 = vunpack.c.h.b16 %v319
      %v512 = vunpack.c.l.b16 %v320
      %v513 = vunpack.c.h.b16 %v320
      %v514 = vunpack.c.l.b16 %v321
      %v515 = vunpack.c.h.b16 %v321
      %v516 = vunpack.c.l.b16 %v322
      %v517 = vunpack.c.h.b16 %v322
      %v518 = vunpack.c.l.b16 %v323
      %v519 = vunpack.c.h.b16 %v323
      %v520 = vunpack.c.l.b16 %v324
      %v521 = vunpack.c.h.b16 %v324
      %v522 = vunpack.c.l.b16 %v325
      %v523 = vunpack.c.h.b16 %v325
      %v524 = vunpack.c.l.b16 %v326
      %v525 = vunpack.c.h.b16 %v326
      %v526 = vunpack.c.l.b16 %v327
      %v527 = vunpack.c.h.b16 %v327
      %v528 = vunpack.c.l.b16 %v328
      %v529 = vunpack.c.h.b16 %v328
      %v530 = vunpack.c.l.b16 %v329
      %v531 = vunpack.c.h.b16 %v329
      %v532 = vunpack.c.l.b16 %v330
      %v533 = vunpack.c.h.b16 %v330
      %v534 = vunpack.c.l.b16 %v331
      %v535 = vunpack.c.h.b16 %v331
      %v536 = vpack.c.b16 %v410, %v408
      %v537 = vpack.c.b16 %v411, %v409
      %v538 = vpack.c.b16 %v414, %v412
      %v539 = vpack.c.b16 %v415, %v413
      %v540 = vpack.c.b16 %v418, %v416
      %v541 = vpack.c.b16 %v419, %v417
      %v542 = vpack.c.b16 %v422, %v420
      %v543 = vpack.c.b16 %v423, %v421
      %v544 = vpack.c.b16 %v426, %v424
      %v545 = vpack.c.b16 %v427, %v425
      %v546 = vpack.c.b16 %v430, %v428
      %v547 = vpack.c.b16 %v431, %v429
      %v548 = vpack.c.b16 %v434, %v432
      %v549 = vpack.c.b16 %v435, %v433
      %v550 = vpack.c.b16 %v438, %v436
      %v551 = vpack.c.b16 %v439, %v437
      %v552 = vpack.c.b16 %v442, %v440
      %v553 = vpack.c.b16 %v443, %v441
      %v554 = vpack.c.b16 %v446, %v444
      %v555 = vpack.c.b16 %v447, %v445
      %v556 = vpack.c.b16 %v450, %v448
      %v557 = vpack.c.b16 %v451, %v449
      %v558 = vpack.c.b16 %v454, %v452
      %v559 = vpack.c.b16 %v455, %v453
      %v560 = vpack.c.b16 %v458, %v456
      %v561 = vpack.c.b16 %v459, %v457
      %v562 = vpack.c.b16 %v462, %v460
      %v563 = vpack.c.b16 %v463, %v461
      %v564 = vpack.c.b16 %v466, %v464
      %v565 = vpack.c.b16 %v467, %v465
      %v566 = vpack.c.b16 %v470, %v468
      %v567 = vpack.c.b16 %v471, %v469
      %v568 = vpack.c.b16 %v474, %v472
      %v569 = vpack.c.b16 %v475, %v473
      %v570 = vpack.c.b16 %v478, %v476
      %v571 = vpack.c.b16 %v479, %v477
      %v572 = vpack.c.b16 %v482, %v480
      %v573 = vpack.c.b16 %v483, %v481
      %v574 = vpack.c.b16 %v486, %v484
      %v575 = vpack.c.b16 %v487, %v485
      %v576 = vpack.c.b16 %v490, %v488
      %v577 = vpack.c.b16 %v491, %v489
      %v578 = vpack.c.b16 %v494, %v492
      %v579 = vpack.c.b16 %v495, %v493
      %v580 = vpack.c.b16 %v498, %v496
      %v581 = vpack.c.b16 %v499, %v497
      %v582 = vpack.c.b16 %v502, %v500
      %v583 = vpack.c.b16 %v503, %v501
      %v584 = vpack.c.b16 %v506, %v504
      %v585 = vpack.c.b16 %v507, %v505
      %v586 = vpack.c.b16 %v510, %v508
      %v587 = vpack.c.b16 %v511, %v509
      %v588 = vpack.c.b16 %v514, %v512
      %v589 = vpack.c.b16 %v515, %v513
      %v590 = vpack.c.b16 %v518, %v516
      %v591 = vpack.c.b16 %v519, %v517
      %v592 = vpack.c.b16 %v522, %v520
      %v593 = vpack.c.b16 %v523, %v521
      %v594 = vpack.c.b16 %v526, %v524
      %v595 = vpack.c.b16 %v527, %v525
      %v596 = vpack.c.b16 %v530, %v528
      %v597 = vpack.c.b16 %v531, %v529
      %v598 = vpack.c.b16 %v534, %v532
      %v599 = vpack.c.b16 %v535, %v533
      %664 = vmatprep.subr.bf16.mxu0 %v551
      %665 = vmatpush1.bf16.msra.mxu0 %v550
      %666 = vmatprep.subr.bf16.mxu0 %v549
      %667 = vmatpush1.bf16.msra.mxu0 %v548
      %668 = vmatprep.subr.bf16.mxu0 %v547
      %669 = vmatpush1.bf16.msra.mxu0 %v546
      %670 = vmatprep.subr.bf16.mxu0 %v545
      %671 = vmatpush1.bf16.msra.mxu0 %v544
      %672 = vmatprep.subr.bf16.mxu0 %v543
      %673 = vmatpush1.bf16.msra.mxu0 %v542
      %674 = vmatprep.subr.bf16.mxu0 %v541
      %675 = vmatpush1.bf16.msra.mxu0 %v540
      %676 = vmatprep.subr.bf16.mxu0 %v539
      %677 = vmatpush1.bf16.msra.mxu0 %v538
      %678 = vmatprep.subr.bf16.mxu0 %v537
      %679 = vmatpush1.bf16.msra.mxu0 %v536
      %680 = vmatprep.subr.bf16.mxu0 %v567
      %681 = vmatpush2.bf16.msra.mxu0 %v566
      %682 = vmatprep.subr.bf16.mxu0 %v565
      %683 = vmatpush2.bf16.msra.mxu0 %v564
      %684 = vmatprep.subr.bf16.mxu0 %v563
      %685 = vmatpush2.bf16.msra.mxu0 %v562
      %686 = vmatprep.subr.bf16.mxu0 %v561
      %687 = vmatpush2.bf16.msra.mxu0 %v560
      %688 = vmatprep.subr.bf16.mxu0 %v559
      %689 = vmatpush2.bf16.msra.mxu0 %v558
      %690 = vmatprep.subr.bf16.mxu0 %v557
      %691 = vmatpush2.bf16.msra.mxu0 %v556
      %692 = vmatprep.subr.bf16.mxu0 %v555
      %693 = vmatpush2.bf16.msra.mxu0 %v554
      %694 = vmatprep.subr.bf16.mxu0 %v553
      %695 = vmatpush2.bf16.msra.mxu0 %v552
      %696 = vmatprep.mubr.bf16.mxu0 %v265
      %697 = vmatmul.mubr.bf16.gmra.mxu0 %v264
      %v698 = vpop.f32.mrf.mxu0
      %v699 = vadd.f32 %v337, %v698
      %v700 = vpop.f32.mrf.mxu0
      %v701 = vadd.f32 %v341, %v700
      %v702 = vpop.f32.mrf.mxu0
      %v703 = vpop.f32.mrf.mxu0
      %704 = vdwg.mxu0
      %705 = vmatprep.subr.bf16.mxu0 %v583
      %706 = vmatpush1.bf16.msra.mxu0 %v582
      %707 = vmatprep.subr.bf16.mxu0 %v581
      %708 = vmatpush1.bf16.msra.mxu0 %v580
      %709 = vmatprep.subr.bf16.mxu0 %v579
      %710 = vmatpush1.bf16.msra.mxu0 %v578
      %711 = vmatprep.subr.bf16.mxu0 %v577
      %712 = vmatpush1.bf16.msra.mxu0 %v576
      %713 = vmatprep.subr.bf16.mxu0 %v575
      %714 = vmatpush1.bf16.msra.mxu0 %v574
      %715 = vmatprep.subr.bf16.mxu0 %v573
      %716 = vmatpush1.bf16.msra.mxu0 %v572
      %717 = vmatprep.subr.bf16.mxu0 %v571
      %718 = vmatpush1.bf16.msra.mxu0 %v570
      %719 = vmatprep.subr.bf16.mxu0 %v569
      %720 = vmatpush1.bf16.msra.mxu0 %v568
      %721 = vmatprep.subr.bf16.mxu0 %v599
      %722 = vmatpush2.bf16.msra.mxu0 %v598
      %723 = vmatprep.subr.bf16.mxu0 %v597
      %724 = vmatpush2.bf16.msra.mxu0 %v596
      %725 = vmatprep.subr.bf16.mxu0 %v595
      %726 = vmatpush2.bf16.msra.mxu0 %v594
      %727 = vmatprep.subr.bf16.mxu0 %v593
      %728 = vmatpush2.bf16.msra.mxu0 %v592
      %729 = vmatprep.subr.bf16.mxu0 %v591
      %730 = vmatpush2.bf16.msra.mxu0 %v590
      %731 = vmatprep.subr.bf16.mxu0 %v589
      %732 = vmatpush2.bf16.msra.mxu0 %v588
      %733 = vmatprep.subr.bf16.mxu0 %v587
      %734 = vmatpush2.bf16.msra.mxu0 %v586
      %735 = vmatprep.subr.bf16.mxu0 %v585
      %736 = vmatpush2.bf16.msra.mxu0 %v584
      %737 = vmatprep.mubr.bf16.mxu0 %v267
      %738 = vmatmul.mubr.bf16.gmra.mxu0 %v266
      %v739 = vpop.f32.mrf.mxu0
      %v740 = vadd.f32 %v699, %v739
      %v741 = vpop.f32.mrf.mxu0
      %v742 = vadd.f32 %v701, %v741
      %v743 = vpop.f32.mrf.mxu0
      %v744 = vpop.f32.mrf.mxu0
      %745 = vdwg.mxu0
      %v746 = vmax.f32 %v740, 0.0
      %v747 = vmax.f32 %v742, 0.0
      %v750 = vcombine.low %v746, %v747
      %752 = vst [vmem:[%s206] sm:$0xff] %v750
      %p753 = scmp.lt.s32.totalorder %s18, 1
      %s754 = scalar_select %p753, %s18, 1
      %p755 = scmp.lt.s32.totalorder %s19, 0
      %s756 = scalar_select %p755, %s19, 0
      %s757 = smul.addr %s756, 2
      %s758 = smul.addr %s754, 2
      %s759 = sadd.s32 %s757, %s758
      %s760 = smul.addr %s759, 4
      %s761 = scalar_lea.vmem %s3, %s760
      // Predicated region
      $region33: #{advanced_phase_estimation_forward.20} parent=31 // pred_check
        %p762 = pneg %p116
      $region34: #{advanced_phase_estimation_forward.20} parent=31 // pred_check_branch
        %764 = sbr.rel (%p762) target = $region36
      $region35: #{advanced_phase_estimation_forward.20} parent=31 // pred_region
        _
      $region36: #{advanced_phase_estimation_forward.20} parent=31 // pred_fallthru
        _
    $region32: #{advanced_phase_estimation_forward.20} parent=5 // pred_fallthru
      _
    %p765 = scmp.le.s32.totalorder 2, %s9
    // Predicated region
    $region37: #{advanced_phase_estimation_forward.20} parent=5 // pred_check
      %p766 = pneg %p765
    $region38: #{advanced_phase_estimation_forward.20} parent=5 // pred_check_branch
      %768 = sbr.rel (%p766) target = $region40
    $region39: #{advanced_phase_estimation_forward.20} parent=5 // pred_region
      %s769 = ssub.s32 %s9, 2
      // Predicated region
      $region41: #{advanced_phase_estimation_forward.20} parent=39 // pred_check
        %p770 = pneg %p122
      $region42: #{advanced_phase_estimation_forward.20} parent=39 // pred_check_branch
        %772 = sbr.rel (%p770) target = $region44
      $region43: #{advanced_phase_estimation_forward.20} parent=39 // pred_region
        %p773 = scmp.lt.s32.totalorder %s20, 1
        %s774 = scalar_select %p773, %s20, 1
        %p775 = scmp.lt.s32.totalorder %s21, 0
        %s776 = scalar_select %p775, %s21, 0
        %s777 = smul.addr %s776, 2
        %s778 = smul.addr %s774, 2
        %s779 = sadd.s32 %s777, %s778
        %s780 = smul.addr %s779, 4
        %s781 = scalar_lea.vmem %s3, %s780
      $region44: #{advanced_phase_estimation_forward.20} parent=39 // pred_fallthru
        _
    $region40: #{advanced_phase_estimation_forward.20} parent=5 // pred_fallthru
      _
  $region6: #{advanced_phase_estimation_forward.20} parent=0 // loop_footer
    %s13 = sadd.s32 1, %s9
  $region7: #{advanced_phase_estimation_forward.20} parent=0 // loop_footer_branch
    %8 = sbr.rel target = $region3
  $region8: #{advanced_phase_estimation_forward.20} parent=0 // loop_exit
    _

// kernel: advanced_phase_estimation_forward.21
$region0: #{advanced_phase_estimation_forward.21}
  #allocation0 [shape = 'u32[]', space=smem, size = 0x4, offset = 0x4, fixed_abs, tag = 'smem constant byte address 0x4 - core index']
  #allocation1 [shape = 'u32[144,128]{1,0:T(1,128)}', space=vmem, size = 0x12000, scoped, tag = 'internal scratch']
  %s0 = inlined_call_operand.vmem [shape: f32[2,1,4,4,64], index: 0, kind: input, shape index: {}]
  %s1 = inlined_call_operand.vmem [shape: bf16[256,128], index: 1, kind: input, shape index: {}]
  %s2 = inlined_call_operand.vmem [shape: f32[1,128], index: 2, kind: input, shape index: {}]
  %s3 = inlined_call_operand.vmem [shape: f32[2,1,9,128], index: 3, kind: output, shape index: {}]
  %s4 = sld [smem:[#allocation0]]
  $region45: #{advanced_phase_estimation_forward.21} parent=0
    _
  %s6 = ssub.s32 1, %s4
  %s7 = scalar_select 0, %s6, %s4
  loop: start=0, step=1, limit=4
  $region2: #{advanced_phase_estimation_forward.21} parent=0 // loop_pre_header
    _
  $region3: #{advanced_phase_estimation_forward.21} parent=0 // loop_header
    %s9 = sphi 0, %s13
    %p10 = scmp.ge.s32.totalorder %s9, 4
    %s16 = sphi 0, %s28
    %s17 = sphi 0, %s24
    %s18 = sphi 0, %s16
    %s19 = sphi 0, %s17
    %s20 = sphi 0, %s18
    %s21 = sphi 0, %s19
    %s33 = sphi 0, %s35
    %s36 = sphi 0, %s33
    %s37 = sphi 0, %s36
    %s53 = sphi 0, %s37
    %s57 = sphi 0, %s57
    %s59 = sphi 0, %s57
    %s60 = sphi 0, %s59
    %s74 = sphi 0, %s60
    %s78 = sphi 0, %s78
    %s80 = sphi 0, %s78
    %s81 = sphi 0, %s80
    %s95 = sphi 0, %s81
    %s103 = sphi 0, %s105
    %s106 = sphi 0, %s103
    %s107 = sphi 0, %s106
    %s123 = sphi 0, %s107
  $region4: #{advanced_phase_estimation_forward.21} parent=0 // loop_header_branch
    %12 = sbr.rel (%p10) target = $region8
  $region5: #{advanced_phase_estimation_forward.21} parent=0 // loop_body
    %s14 = ssub.s32 %s9, 1
    %s15 = ssub.s32 %s9, 2
    %s22 = sadd.s32 1, %s17
    %p23 = scmp.ge.s32.totalorder %s22, 1
    %s24 = scalar_select %p23, 0, %s22
    %s25 = sadd.s32 1, %s16
    %s26 = scalar_select %p23, %s25, %s16
    %p27 = scmp.ge.s32.totalorder %s26, 2
    %s28 = scalar_select %p27, 0, %s26
    %s29 = ssub.s32 %s16, %s28
    %s30 = ssub.s32 %s17, %s24
    %s31 = sor.u32 %s29, %s30
    %p32 = scmp.eq.s32.totalorder %s31, 0
    %s34 = sadd.s32 %s33, 1
    %s35 = scalar_select %p32, %s33, %s34
    %p38 = pneg %p32
    %p39 = scmp.eq.s32.totalorder %s9, 1
    %p40 = por %p38, %p39
    %p41 = scmp.ne.s32.totalorder %s33, %s36
    %p42 = scmp.eq.s32.totalorder %s9, 0
    %p43 = por %p41, %p42
    %p44 = scmp.ne.s32.totalorder %s33, %s36
    %p45 = scmp.eq.s32.totalorder %s14, 1
    %p46 = por %p44, %p45
    %p47 = scmp.ne.s32.totalorder %s36, %s37
    %p48 = scmp.eq.s32.totalorder %s14, 0
    %p49 = por %p47, %p48
    %p50 = scmp.ne.s32.totalorder %s36, %s37
    %p51 = scmp.eq.s32.totalorder %s15, 1
    %p52 = por %p50, %p51
    %p54 = scmp.ne.s32.totalorder %s37, %s53
    %p55 = scmp.eq.s32.totalorder %s15, 0
    %p56 = por %p54, %p55
    %s58 = sadd.s32 %s57, 1
    %p61 = scmp.eq.s32.totalorder %s9, 1
    %p62 = scmp.ne.s32.totalorder %s57, %s59
    %p63 = scmp.eq.s32.totalorder %s9, 0
    %p64 = por %p62, %p63
    %p65 = scmp.ne.s32.totalorder %s57, %s59
    %p66 = scmp.eq.s32.totalorder %s14, 1
    %p67 = por %p65, %p66
    %p68 = scmp.ne.s32.totalorder %s59, %s60
    %p69 = scmp.eq.s32.totalorder %s14, 0
    %p70 = por %p68, %p69
    %p71 = scmp.ne.s32.totalorder %s59, %s60
    %p72 = scmp.eq.s32.totalorder %s15, 1
    %p73 = por %p71, %p72
    %p75 = scmp.ne.s32.totalorder %s60, %s74
    %p76 = scmp.eq.s32.totalorder %s15, 0
    %p77 = por %p75, %p76
    %s79 = sadd.s32 %s78, 1
    %p82 = scmp.eq.s32.totalorder %s9, 1
    %p83 = scmp.ne.s32.totalorder %s78, %s80
    %p84 = scmp.eq.s32.totalorder %s9, 0
    %p85 = por %p83, %p84
    %p86 = scmp.ne.s32.totalorder %s78, %s80
    %p87 = scmp.eq.s32.totalorder %s14, 1
    %p88 = por %p86, %p87
    %p89 = scmp.ne.s32.totalorder %s80, %s81
    %p90 = scmp.eq.s32.totalorder %s14, 0
    %p91 = por %p89, %p90
    %p92 = scmp.ne.s32.totalorder %s80, %s81
    %p93 = scmp.eq.s32.totalorder %s15, 1
    %p94 = por %p92, %p93
    %p96 = scmp.ne.s32.totalorder %s81, %s95
    %p97 = scmp.eq.s32.totalorder %s15, 0
    %p98 = por %p96, %p97
    %s99 = ssub.s32 %s16, %s28
    %s100 = ssub.s32 %s17, %s24
    %s101 = sor.u32 %s99, %s100
    %p102 = scmp.eq.s32.totalorder %s101, 0
    %s104 = sadd.s32 %s103, 1
    %s105 = scalar_select %p102, %s103, %s104
    %p108 = pneg %p102
    %p109 = scmp.eq.s32.totalorder %s9, 1
    %p110 = por %p108, %p109
    %p111 = scmp.ne.s32.totalorder %s103, %s106
    %p112 = scmp.eq.s32.totalorder %s9, 0
    %p113 = por %p111, %p112
    %p114 = scmp.ne.s32.totalorder %s103, %s106
    %p115 = scmp.eq.s32.totalorder %s14, 1
    %p116 = por %p114, %p115
    %p117 = scmp.ne.s32.totalorder %s106, %s107
    %p118 = scmp.eq.s32.totalorder %s14, 0
    %p119 = por %p117, %p118
    %p120 = scmp.ne.s32.totalorder %s106, %s107
    %p121 = scmp.eq.s32.totalorder %s15, 1
    %p122 = por %p120, %p121
    %p124 = scmp.ne.s32.totalorder %s107, %s123
    %p125 = scmp.eq.s32.totalorder %s15, 0
    %p126 = por %p124, %p125
    %p127 = scmp.le.s32.totalorder 1, %s9
    %p128 = scmp.lt.s32.totalorder %s9, 3
    %p129 = pnand %p127, %p128
    %p130 = pneg %p129
    // Predicated region
    $region9: #{advanced_phase_estimation_forward.21} parent=5 // pred_check
      _
    $region10: #{advanced_phase_estimation_forward.21} parent=5 // pred_check_branch
      %132 = sbr.rel (%p129) target = $region12
    $region11: #{advanced_phase_estimation_forward.21} parent=5 // pred_region
      %s133 = ssub.s32 %s9, 1
      // Predicated region
      $region13: #{advanced_phase_estimation_forward.21} parent=11 // pred_check
        %p134 = pneg %p70
      $region14: #{advanced_phase_estimation_forward.21} parent=11 // pred_check_branch
        %136 = sbr.rel (%p134) target = $region16
      $region15: #{advanced_phase_estimation_forward.21} parent=11 // pred_region
        _
      $region16: #{advanced_phase_estimation_forward.21} parent=11 // pred_fallthru
        _
      // Predicated region
      $region17: #{advanced_phase_estimation_forward.21} parent=11 // pred_check
        %p137 = pneg %p91
      $region18: #{advanced_phase_estimation_forward.21} parent=11 // pred_check_branch
        %139 = sbr.rel (%p137) target = $region20
      $region19: #{advanced_phase_estimation_forward.21} parent=11 // pred_region
        _
      $region20: #{advanced_phase_estimation_forward.21} parent=11 // pred_fallthru
        _
    $region12: #{advanced_phase_estimation_forward.21} parent=5 // pred_fallthru
      _
    %p140 = scmp.lt.s32.totalorder %s9, 2
    // Predicated region
    $region21: #{advanced_phase_estimation_forward.21} parent=5 // pred_check
      %p141 = pneg %p140
    $region22: #{advanced_phase_estimation_forward.21} parent=5 // pred_check_branch
      %143 = sbr.rel (%p141) target = $region24
    $region23: #{advanced_phase_estimation_forward.21} parent=5 // pred_region
      // Predicated region
      $region25: #{advanced_phase_estimation_forward.21} parent=23 // pred_check
        %p144 = pneg %p43
      $region26: #{advanced_phase_estimation_forward.21} parent=23 // pred_check_branch
        %146 = sbr.rel (%p144) target = $region28
      $region27: #{advanced_phase_estimation_forward.21} parent=23 // pred_region
        %p147 = scmp.lt.s32.totalorder %s16, 1
        %s148 = scalar_select %p147, %s16, 1
        %p149 = scmp.lt.s32.totalorder %s17, 0
        %s150 = scalar_select %p149, %s17, 0
        %s151 = smul.addr %s150, 4
        %s152 = smul.addr %s148, 4
        %s153 = sadd.s32 %s151, %s152
        %s154 = smul.addr %s153, 4
        %s155 = scalar_lea.vmem %s0, %s154
      $region28: #{advanced_phase_estimation_forward.21} parent=23 // pred_fallthru
        _
    $region24: #{advanced_phase_estimation_forward.21} parent=5 // pred_fallthru
      _
    %p156 = scmp.le.s32.totalorder 1, %s9
    %p157 = scmp.lt.s32.totalorder %s9, 3
    %p158 = pnand %p156, %p157
    %p159 = pneg %p158
    // Predicated region
    $region29: #{advanced_phase_estimation_forward.21} parent=5 // pred_check
      _
    $region30: #{advanced_phase_estimation_forward.21} parent=5 // pred_check_branch
      %161 = sbr.rel (%p158) target = $region32
    $region31: #{advanced_phase_estimation_forward.21} parent=5 // pred_region
      %s162 = ssub.s32 %s9, 1
      %p163 = scmp.lt.s32.totalorder %s18, 1
      %s164 = scalar_select %p163, %s18, 1
      %p165 = scmp.lt.s32.totalorder %s19, 0
      %s166 = scalar_select %p165, %s19, 0
      %s167 = smul.addr %s166, 4
      %s168 = smul.addr %s164, 4
      %s169 = sadd.s32 %s167, %s168
      %s170 = smul.addr %s169, 4
      %s171 = scalar_lea.vmem %s0, %s170
      %p172 = pneg %p49
      %p173 = pneg %p46
      %p174 = pneg %p70
      %p175 = pneg %p67
      %p176 = pneg %p91
      %p177 = pneg %p88
      %p178 = pneg %p119
      %p179 = pneg %p116
      %p180 = scmp.lt.s32.totalorder %s18, 1
      %s181 = scalar_select %p180, %s18, 1
      %p182 = scmp.lt.s32.totalorder %s19, 0
      %s183 = scalar_select %p182, %s19, 0
      %s184 = smul.addr %s183, 2
      %s185 = smul.addr %s181, 2
      %s186 = sadd.s32 %s184, %s185
      %s187 = smul.addr %s186, 8
      %s188 = scalar_lea.vmem %s3, %s187
      %p189 = scmp.lt.s32.totalorder %s18, 1
      %s190 = scalar_select %p189, %s18, 1
      %p191 = scmp.lt.s32.totalorder %s19, 0
      %s192 = scalar_select %p191, %s19, 0
      %s193 = smul.addr %s192, 4
      %s194 = smul.addr %s190, 4
      %s195 = sadd.s32 %s193, %s194
      %s196 = smul.addr %s195, 4
      %s197 = scalar_lea.vmem %s0, %s196
      %p198 = scmp.lt.s32.totalorder %s18, 1
      %s199 = scalar_select %p198, %s18, 1
      %p200 = scmp.lt.s32.totalorder %s19, 0
      %s201 = scalar_select %p200, %s19, 0
      %s202 = smul.addr %s201, 2
      %s203 = smul.addr %s199, 2
      %s204 = sadd.s32 %s202, %s203
      %s205 = smul.addr %s204, 8
      %s206 = scalar_lea.vmem %s3, %s205
      %v208 = vld [vmem:[%s197] sm:$0xf]
      %v209 = vld [vmem:[%s197 + $0x4] sm:$0xf]
      %v210 = vld [vmem:[%s197 + $0x8] sm:$0xf]
      %v211 = vld [vmem:[%s197 + $0xc] sm:$0xf]
      %v215 = vrot.slane %v208, 1
      %v216 = vrot.slane %v209, 1
      %v217 = vrot.slane %v210, 1
      %218 = vrot.lane.b32.xlu0 %v215, 64
      %v219 = vpop.permute.xlu0 %218
      %220 = vrot.lane.b32.xlu0 %v216, 64
      %v221 = vpop.permute.xlu0 %220
      %222 = vrot.lane.b32.xlu0 %v217, 64
      %v223 = vpop.permute.xlu0 %222
      %v228 = vrot.slane %v211, 1
      %229 = vrot.lane.b32.xlu0 %v228, 64
      %v230 = vpop.permute.xlu0 %229
      %vm232 = vcmask 523264
      %v233 = vsel %vm232, %v208, %v219
      %v234 = vsel %vm232, %v209, %v221
      %v235 = vsel %vm232, %v210, %v223
      %v236 = vsel %vm232, %v211, %v230
      %v241 = vcombine.low %v233, %v234
      %v243 = vunpack.c.l.s4 1966171168
      %v244 = vunpack.c.0.s8 %v243
      %v245 = vlaneseq
      %v246 = vshrl.u32 %v245, 7
      %v247 = vsub.s32 %v244, %v246
      %v248 = vrot.slane %v241, %v247
      %v249 = vcombine.high %v248, %v248
      %v251 = vunpack.c.l.s4 1966171168
      %v252 = vunpack.c.0.s8 %v251
      %v253 = vlaneseq
      %v254 = vshrl.u32 %v253, 7
      %v255 = vsub.s32 %v252, %v254
      %v256 = vrot.slane %v248, %v255
      %v258 = vunpack.c.l.s4 1966171168
      %v259 = vunpack.c.0.s8 %v258
      %v260 = vlaneseq
      %v261 = vshrl.u32 %v260, 7
      %v262 = vsub.s32 %v259, %v261
      %v263 = vrot.slane %v249, %v262
      %v264 = vcombine.high %v256, %v256
      %v265 = vcombine.low %v234, %v235
      %v267 = vunpack.c.l.s4 1966171168
      %v268 = vunpack.c.0.s8 %v267
      %v269 = vlaneseq
      %v270 = vshrl.u32 %v269, 7
      %v271 = vsub.s32 %v268, %v270
      %v272 = vrot.slane %v265, %v271
      %v273 = vcombine.high %v272, %v272
      %v275 = vunpack.c.l.s4 1966171168
      %v276 = vunpack.c.0.s8 %v275
      %v277 = vlaneseq
      %v278 = vshrl.u32 %v277, 7
      %v279 = vsub.s32 %v276, %v278
      %v280 = vrot.slane %v272, %v279
      %v282 = vunpack.c.l.s4 1966171168
      %v283 = vunpack.c.0.s8 %v282
      %v284 = vlaneseq
      %v285 = vshrl.u32 %v284, 7
      %v286 = vsub.s32 %v283, %v285
      %v287 = vrot.slane %v273, %v286
      %v288 = vcombine.high %v280, %v280
      %v289 = vcombine.low %v235, %v236
      %v291 = vunpack.c.l.s4 1966171168
      %v292 = vunpack.c.0.s8 %v291
      %v293 = vlaneseq
      %v294 = vshrl.u32 %v293, 7
      %v295 = vsub.s32 %v292, %v294
      %v296 = vrot.slane %v289, %v295
      %v297 = vcombine.high %v296, %v296
      %v299 = vunpack.c.l.s4 1966171168
      %v300 = vunpack.c.0.s8 %v299
      %v301 = vlaneseq
      %v302 = vshrl.u32 %v301, 7
      %v303 = vsub.s32 %v300, %v302
      %v304 = vrot.slane %v296, %v303
      %v306 = vunpack.c.l.s4 1966171168
      %v307 = vunpack.c.0.s8 %v306
      %v308 = vlaneseq
      %v309 = vshrl.u32 %v308, 7
      %v310 = vsub.s32 %v307, %v309
      %v311 = vrot.slane %v297, %v310
      %v312 = vcombine.high %v304, %v304
      %v313 = vcombine.low %v256, %v263
      %v314 = vcombine.low %v264, %v280
      %v315 = vcombine.low %v287, %v288
      %v316 = vcombine.low %v304, %v311
      %v318 = vunpack.c.l.s4 1966171168
      %v319 = vunpack.c.0.s8 %v318
      %v320 = vlaneseq
      %v321 = vshrl.u32 %v320, 7
      %v322 = vsub.s32 %v319, %v321
      %v323 = vrot.slane %v313, %v322
      %v325 = vunpack.c.l.s4 1966171168
      %v326 = vunpack.c.0.s8 %v325
      %v327 = vlaneseq
      %v328 = vshrl.u32 %v327, 7
      %v329 = vsub.s32 %v326, %v328
      %v330 = vrot.slane %v314, %v329
      %v332 = vunpack.c.l.s4 1966171168
      %v333 = vunpack.c.0.s8 %v332
      %v334 = vlaneseq
      %v335 = vshrl.u32 %v334, 7
      %v336 = vsub.s32 %v333, %v335
      %v337 = vrot.slane %v315, %v336
      %v339 = vunpack.c.l.s4 1966171168
      %v340 = vunpack.c.0.s8 %v339
      %v341 = vlaneseq
      %v342 = vshrl.u32 %v341, 7
      %v343 = vsub.s32 %v340, %v342
      %v344 = vrot.slane %v316, %v343
      %v345 = vcombine.low %v323, %v330
      %v346 = vcombine.high %v323, %v330
      %v347 = vcombine.low %v337, %v344
      %v348 = vcombine.high %v337, %v344
      %v350 = vunpack.c.l.s4 1966171168
      %v351 = vunpack.c.0.s8 %v350
      %v352 = vlaneseq
      %v353 = vshrl.u32 %v352, 7
      %v354 = vsub.s32 %v351, %v353
      %v355 = vrot.slane %v345, %v354
      %v357 = vunpack.c.l.s4 1966171168
      %v358 = vunpack.c.0.s8 %v357
      %v359 = vlaneseq
      %v360 = vshrl.u32 %v359, 7
      %v361 = vsub.s32 %v358, %v360
      %v362 = vrot.slane %v346, %v361
      %v364 = vunpack.c.l.s4 1966171168
      %v365 = vunpack.c.0.s8 %v364
      %v366 = vlaneseq
      %v367 = vshrl.u32 %v366, 7
      %v368 = vsub.s32 %v365, %v367
      %v369 = vrot.slane %v347, %v368
      %v371 = vunpack.c.l.s4 1966171168
      %v372 = vunpack.c.0.s8 %v371
      %v373 = vlaneseq
      %v374 = vshrl.u32 %v373, 7
      %v375 = vsub.s32 %v372, %v374
      %v376 = vrot.slane %v348, %v375
      %v377 = vcombine.low %v355, %v369
      %v378 = vcombine.low %v362, %v376
      %v380 = vunpack.c.l.s4 1966171168
      %v381 = vunpack.c.0.s8 %v380
      %v382 = vlaneseq
      %v383 = vshrl.u32 %v382, 7
      %v384 = vsub.s32 %v381, %v383
      %v385 = vrot.slane %v312, %v384
      %v386 = vcombine.high %v385, %v385
      %v388 = vunpack.c.l.s4 1966171168
      %v389 = vunpack.c.0.s8 %v388
      %v390 = vlaneseq
      %v391 = vshrl.u32 %v390, 7
      %v392 = vsub.s32 %v389, %v391
      %v393 = vrot.slane %v385, %v392
      %v395 = vunpack.c.l.s4 1966171168
      %v396 = vunpack.c.0.s8 %v395
      %v397 = vlaneseq
      %v398 = vshrl.u32 %v397, 7
      %v399 = vsub.s32 %v396, %v398
      %v400 = vrot.slane %v386, %v399
      %v405 = vpack.c.bf16 %v393, %v377
      %v406 = vpack.c.bf16 %v400, %v378
      %v407 = vld [vmem:[%s1] sm:$0xf]
      %v408 = vld [vmem:[%s1 + $0x4] sm:$0xf]
      %v409 = vld [vmem:[%s1 + $0x8] sm:$0xf]
      %v410 = vld [vmem:[%s1 + $0xc] sm:$0xf]
      %v411 = vld [vmem:[%s1 + $0x10] sm:$0xf]
      %v412 = vld [vmem:[%s1 + $0x14] sm:$0xf]
      %v413 = vld [vmem:[%s1 + $0x18] sm:$0xf]
      %v414 = vld [vmem:[%s1 + $0x1c] sm:$0xf]
      %v415 = vld [vmem:[%s1 + $0x20] sm:$0xf]
      %v416 = vld [vmem:[%s1 + $0x24] sm:$0xf]
      %v417 = vld [vmem:[%s1 + $0x28] sm:$0xf]
      %v418 = vld [vmem:[%s1 + $0x2c] sm:$0xf]
      %v419 = vld [vmem:[%s1 + $0x30] sm:$0xf]
      %v420 = vld [vmem:[%s1 + $0x34] sm:$0xf]
      %v421 = vld [vmem:[%s1 + $0x38] sm:$0xf]
      %v422 = vld [vmem:[%s1 + $0x3c] sm:$0xf]
      %v423 = vld [vmem:[%s1 + $0x40] sm:$0xf]
      %v424 = vld [vmem:[%s1 + $0x44] sm:$0xf]
      %v425 = vld [vmem:[%s1 + $0x48] sm:$0xf]
      %v426 = vld [vmem:[%s1 + $0x4c] sm:$0xf]
      %v427 = vld [vmem:[%s1 + $0x50] sm:$0xf]
      %v428 = vld [vmem:[%s1 + $0x54] sm:$0xf]
      %v429 = vld [vmem:[%s1 + $0x58] sm:$0xf]
      %v430 = vld [vmem:[%s1 + $0x5c] sm:$0xf]
      %v431 = vld [vmem:[%s1 + $0x60] sm:$0xf]
      %v432 = vld [vmem:[%s1 + $0x64] sm:$0xf]
      %v433 = vld [vmem:[%s1 + $0x68] sm:$0xf]
      %v434 = vld [vmem:[%s1 + $0x6c] sm:$0xf]
      %v435 = vld [vmem:[%s1 + $0x70] sm:$0xf]
      %v436 = vld [vmem:[%s1 + $0x74] sm:$0xf]
      %v437 = vld [vmem:[%s1 + $0x78] sm:$0xf]
      %v438 = vld [vmem:[%s1 + $0x7c] sm:$0xf]
      %v439 = vld [vmem:[%s2] sm:$0x1]
      %v441 = vlaneseq
      %v442 = vshrl.u32 %v441, 7
      %v443 = vsub.s32 0, %v442
      %v444 = vrot.slane %v439, %v443
      %v478 = vunpack.c.l.b16 %v407
      %v479 = vunpack.c.l.b16 %v408
      %v480 = vunpack.c.l.b16 %v409
      %v481 = vunpack.c.l.b16 %v410
      %v482 = vunpack.c.l.b16 %v411
      %v483 = vunpack.c.l.b16 %v412
      %v484 = vunpack.c.l.b16 %v413
      %v485 = vunpack.c.l.b16 %v414
      %v486 = vunpack.c.l.b16 %v415
      %v487 = vunpack.c.l.b16 %v416
      %v488 = vunpack.c.l.b16 %v417
      %v489 = vunpack.c.l.b16 %v418
      %v490 = vunpack.c.l.b16 %v419
      %v491 = vunpack.c.l.b16 %v420
      %v492 = vunpack.c.l.b16 %v421
      %v493 = vunpack.c.l.b16 %v422
      %v494 = vunpack.c.l.b16 %v423
      %v495 = vunpack.c.l.b16 %v424
      %v496 = vunpack.c.l.b16 %v425
      %v497 = vunpack.c.l.b16 %v426
      %v498 = vunpack.c.l.b16 %v427
      %v499 = vunpack.c.l.b16 %v428
      %v500 = vunpack.c.l.b16 %v429
      %v501 = vunpack.c.l.b16 %v430
      %v502 = vunpack.c.l.b16 %v431
      %v503 = vunpack.c.l.b16 %v432
      %v504 = vunpack.c.l.b16 %v433
      %v505 = vunpack.c.l.b16 %v434
      %v506 = vunpack.c.l.b16 %v435
      %v507 = vunpack.c.l.b16 %v436
      %v508 = vunpack.c.l.b16 %v437
      %v509 = vunpack.c.l.b16 %v438
      %v510 = vpack.c.b16 %v479, %v478
      %v511 = vpack.c.b16 %v481, %v480
      %v512 = vpack.c.b16 %v483, %v482
      %v513 = vpack.c.b16 %v485, %v484
      %v514 = vpack.c.b16 %v487, %v486
      %v515 = vpack.c.b16 %v489, %v488
      %v516 = vpack.c.b16 %v491, %v490
      %v517 = vpack.c.b16 %v493, %v492
      %v518 = vpack.c.b16 %v495, %v494
      %v519 = vpack.c.b16 %v497, %v496
      %v520 = vpack.c.b16 %v499, %v498
      %v521 = vpack.c.b16 %v501, %v500
      %v522 = vpack.c.b16 %v503, %v502
      %v523 = vpack.c.b16 %v505, %v504
      %v524 = vpack.c.b16 %v507, %v506
      %v525 = vpack.c.b16 %v509, %v508
      %542 = vmatprep.subr.bf16.mxu0 0
      %543 = vmatpush1.bf16.msra.mxu0 %v517
      %544 = vmatprep.subr.bf16.mxu0 0
      %545 = vmatpush1.bf16.msra.mxu0 %v516
      %546 = vmatprep.subr.bf16.mxu0 0
      %547 = vmatpush1.bf16.msra.mxu0 %v515
      %548 = vmatprep.subr.bf16.mxu0 0
      %549 = vmatpush1.bf16.msra.mxu0 %v514
      %550 = vmatprep.subr.bf16.mxu0 0
      %551 = vmatpush1.bf16.msra.mxu0 %v513
      %552 = vmatprep.subr.bf16.mxu0 0
      %553 = vmatpush1.bf16.msra.mxu0 %v512
      %554 = vmatprep.subr.bf16.mxu0 0
      %555 = vmatpush1.bf16.msra.mxu0 %v511
      %556 = vmatprep.subr.bf16.mxu0 0
      %557 = vmatpush1.bf16.msra.mxu0 %v510
      %558 = vmatprep.subr.bf16.mxu0 0
      %559 = vmatpush2.bf16.msra.mxu0 %v525
      %560 = vmatprep.subr.bf16.mxu0 0
      %561 = vmatpush2.bf16.msra.mxu0 %v524
      %562 = vmatprep.subr.bf16.mxu0 0
      %563 = vmatpush2.bf16.msra.mxu0 %v523
      %564 = vmatprep.subr.bf16.mxu0 0
      %565 = vmatpush2.bf16.msra.mxu0 %v522
      %566 = vmatprep.subr.bf16.mxu0 0
      %567 = vmatpush2.bf16.msra.mxu0 %v521
      %568 = vmatprep.subr.bf16.mxu0 0
      %569 = vmatpush2.bf16.msra.mxu0 %v520
      %570 = vmatprep.subr.bf16.mxu0 0
      %571 = vmatpush2.bf16.msra.mxu0 %v519
      %572 = vmatprep.subr.bf16.mxu0 0
      %573 = vmatpush2.bf16.msra.mxu0 %v518
      %574 = vmatprep.mubr.bf16.mxu0 %v406
      %575 = vmatmul.mubr.bf16.gmra.mxu0 %v405
      %v576 = vpop.f32.mrf.mxu0
      %v577 = vadd.f32 %v444, %v576
      %v578 = vpop.f32.mrf.mxu0
      %v579 = vpop.f32.mrf.mxu0
      %v580 = vadd.f32 %v444, %v579
      %v581 = vpop.f32.mrf.mxu0
      %582 = vdwg.mxu0
      %v583 = vmax.f32 %v577, 0.0
      %v584 = vmax.f32 %v580, 0.0
      %585 = vst [vmem:[%s206] sm:$0xff] %v583
      %586 = vst [vmem:[%s206 + $0x8] sm:$0x1] %v584
      %p587 = scmp.lt.s32.totalorder %s18, 1
      %s588 = scalar_select %p587, %s18, 1
      %p589 = scmp.lt.s32.totalorder %s19, 0
      %s590 = scalar_select %p589, %s19, 0
      %s591 = smul.addr %s590, 2
      %s592 = smul.addr %s588, 2
      %s593 = sadd.s32 %s591, %s592
      %s594 = smul.addr %s593, 8
      %s595 = scalar_lea.vmem %s3, %s594
      // Predicated region
      $region33: #{advanced_phase_estimation_forward.21} parent=31 // pred_check
        %p596 = pneg %p116
      $region34: #{advanced_phase_estimation_forward.21} parent=31 // pred_check_branch
        %598 = sbr.rel (%p596) target = $region36
      $region35: #{advanced_phase_estimation_forward.21} parent=31 // pred_region
        _
      $region36: #{advanced_phase_estimation_forward.21} parent=31 // pred_fallthru
        _
    $region32: #{advanced_phase_estimation_forward.21} parent=5 // pred_fallthru
      _
    %p599 = scmp.le.s32.totalorder 2, %s9
    // Predicated region
    $region37: #{advanced_phase_estimation_forward.21} parent=5 // pred_check
      %p600 = pneg %p599
    $region38: #{advanced_phase_estimation_forward.21} parent=5 // pred_check_branch
      %602 = sbr.rel (%p600) target = $region40
    $region39: #{advanced_phase_estimation_forward.21} parent=5 // pred_region
      %s603 = ssub.s32 %s9, 2
      // Predicated region
      $region41: #{advanced_phase_estimation_forward.21} parent=39 // pred_check
        %p604 = pneg %p122
      $region42: #{advanced_phase_estimation_forward.21} parent=39 // pred_check_branch
        %606 = sbr.rel (%p604) target = $region44
      $region43: #{advanced_phase_estimation_forward.21} parent=39 // pred_region
        %p607 = scmp.lt.s32.totalorder %s20, 1
        %s608 = scalar_select %p607, %s20, 1
        %p609 = scmp.lt.s32.totalorder %s21, 0
        %s610 = scalar_select %p609, %s21, 0
        %s611 = smul.addr %s610, 2
        %s612 = smul.addr %s608, 2
        %s613 = sadd.s32 %s611, %s612
        %s614 = smul.addr %s613, 8
        %s615 = scalar_lea.vmem %s3, %s614
      $region44: #{advanced_phase_estimation_forward.21} parent=39 // pred_fallthru
        _
    $region40: #{advanced_phase_estimation_forward.21} parent=5 // pred_fallthru
      _
  $region6: #{advanced_phase_estimation_forward.21} parent=0 // loop_footer
    %s13 = sadd.s32 1, %s9
  $region7: #{advanced_phase_estimation_forward.21} parent=0 // loop_footer_branch
    %8 = sbr.rel target = $region3
  $region8: #{advanced_phase_estimation_forward.21} parent=0 // loop_exit
    _

// kernel: advanced_phase_estimation_forward.19
$region0: #{advanced_phase_estimation_forward.19}
  #allocation0 [shape = 'u32[]', space=smem, size = 0x4, offset = 0x4, fixed_abs, tag = 'smem constant byte address 0x4 - core index']
  #allocation1 [shape = 'u32[144,128]{1,0:T(1,128)}', space=vmem, size = 0x12000, scoped, tag = 'internal scratch']
  %s0 = inlined_call_operand.vmem [shape: f32[2,1,2,2,256], index: 0, kind: input, shape index: {}]
  %s1 = inlined_call_operand.vmem [shape: bf16[1024,128], index: 1, kind: input, shape index: {}]
  %s2 = inlined_call_operand.vmem [shape: f32[1,128], index: 2, kind: input, shape index: {}]
  %s3 = inlined_call_operand.vmem [shape: f32[2,1,1,128], index: 3, kind: output, shape index: {}]
  %s4 = sld [smem:[#allocation0]]
  $region45: #{advanced_phase_estimation_forward.19} parent=0
    _
  %s6 = ssub.s32 1, %s4
  %s7 = scalar_select 0, %s6, %s4
  loop: start=0, step=1, limit=4
  $region2: #{advanced_phase_estimation_forward.19} parent=0 // loop_pre_header
    _
  $region3: #{advanced_phase_estimation_forward.19} parent=0 // loop_header
    %s9 = sphi 0, %s13
    %p10 = scmp.ge.s32.totalorder %s9, 4
    %s16 = sphi 0, %s28
    %s17 = sphi 0, %s24
    %s18 = sphi 0, %s16
    %s19 = sphi 0, %s17
    %s20 = sphi 0, %s18
    %s21 = sphi 0, %s19
    %s33 = sphi 0, %s35
    %s36 = sphi 0, %s33
    %s37 = sphi 0, %s36
    %s53 = sphi 0, %s37
    %s57 = sphi 0, %s57
    %s59 = sphi 0, %s57
    %s60 = sphi 0, %s59
    %s74 = sphi 0, %s60
    %s78 = sphi 0, %s78
    %s80 = sphi 0, %s78
    %s81 = sphi 0, %s80
    %s95 = sphi 0, %s81
    %s103 = sphi 0, %s105
    %s106 = sphi 0, %s103
    %s107 = sphi 0, %s106
    %s123 = sphi 0, %s107
  $region4: #{advanced_phase_estimation_forward.19} parent=0 // loop_header_branch
    %12 = sbr.rel (%p10) target = $region8
  $region5: #{advanced_phase_estimation_forward.19} parent=0 // loop_body
    %s14 = ssub.s32 %s9, 1
    %s15 = ssub.s32 %s9, 2
    %s22 = sadd.s32 1, %s17
    %p23 = scmp.ge.s32.totalorder %s22, 1
    %s24 = scalar_select %p23, 0, %s22
    %s25 = sadd.s32 1, %s16
    %s26 = scalar_select %p23, %s25, %s16
    %p27 = scmp.ge.s32.totalorder %s26, 2
    %s28 = scalar_select %p27, 0, %s26
    %s29 = ssub.s32 %s16, %s28
    %s30 = ssub.s32 %s17, %s24
    %s31 = sor.u32 %s29, %s30
    %p32 = scmp.eq.s32.totalorder %s31, 0
    %s34 = sadd.s32 %s33, 1
    %s35 = scalar_select %p32, %s33, %s34
    %p38 = pneg %p32
    %p39 = scmp.eq.s32.totalorder %s9, 1
    %p40 = por %p38, %p39
    %p41 = scmp.ne.s32.totalorder %s33, %s36
    %p42 = scmp.eq.s32.totalorder %s9, 0
    %p43 = por %p41, %p42
    %p44 = scmp.ne.s32.totalorder %s33, %s36
    %p45 = scmp.eq.s32.totalorder %s14, 1
    %p46 = por %p44, %p45
    %p47 = scmp.ne.s32.totalorder %s36, %s37
    %p48 = scmp.eq.s32.totalorder %s14, 0
    %p49 = por %p47, %p48
    %p50 = scmp.ne.s32.totalorder %s36, %s37
    %p51 = scmp.eq.s32.totalorder %s15, 1
    %p52 = por %p50, %p51
    %p54 = scmp.ne.s32.totalorder %s37, %s53
    %p55 = scmp.eq.s32.totalorder %s15, 0
    %p56 = por %p54, %p55
    %s58 = sadd.s32 %s57, 1
    %p61 = scmp.eq.s32.totalorder %s9, 1
    %p62 = scmp.ne.s32.totalorder %s57, %s59
    %p63 = scmp.eq.s32.totalorder %s9, 0
    %p64 = por %p62, %p63
    %p65 = scmp.ne.s32.totalorder %s57, %s59
    %p66 = scmp.eq.s32.totalorder %s14, 1
    %p67 = por %p65, %p66
    %p68 = scmp.ne.s32.totalorder %s59, %s60
    %p69 = scmp.eq.s32.totalorder %s14, 0
    %p70 = por %p68, %p69
    %p71 = scmp.ne.s32.totalorder %s59, %s60
    %p72 = scmp.eq.s32.totalorder %s15, 1
    %p73 = por %p71, %p72
    %p75 = scmp.ne.s32.totalorder %s60, %s74
    %p76 = scmp.eq.s32.totalorder %s15, 0
    %p77 = por %p75, %p76
    %s79 = sadd.s32 %s78, 1
    %p82 = scmp.eq.s32.totalorder %s9, 1
    %p83 = scmp.ne.s32.totalorder %s78, %s80
    %p84 = scmp.eq.s32.totalorder %s9, 0
    %p85 = por %p83, %p84
    %p86 = scmp.ne.s32.totalorder %s78, %s80
    %p87 = scmp.eq.s32.totalorder %s14, 1
    %p88 = por %p86, %p87
    %p89 = scmp.ne.s32.totalorder %s80, %s81
    %p90 = scmp.eq.s32.totalorder %s14, 0
    %p91 = por %p89, %p90
    %p92 = scmp.ne.s32.totalorder %s80, %s81
    %p93 = scmp.eq.s32.totalorder %s15, 1
    %p94 = por %p92, %p93
    %p96 = scmp.ne.s32.totalorder %s81, %s95
    %p97 = scmp.eq.s32.totalorder %s15, 0
    %p98 = por %p96, %p97
    %s99 = ssub.s32 %s16, %s28
    %s100 = ssub.s32 %s17, %s24
    %s101 = sor.u32 %s99, %s100
    %p102 = scmp.eq.s32.totalorder %s101, 0
    %s104 = sadd.s32 %s103, 1
    %s105 = scalar_select %p102, %s103, %s104
    %p108 = pneg %p102
    %p109 = scmp.eq.s32.totalorder %s9, 1
    %p110 = por %p108, %p109
    %p111 = scmp.ne.s32.totalorder %s103, %s106
    %p112 = scmp.eq.s32.totalorder %s9, 0
    %p113 = por %p111, %p112
    %p114 = scmp.ne.s32.totalorder %s103, %s106
    %p115 = scmp.eq.s32.totalorder %s14, 1
    %p116 = por %p114, %p115
    %p117 = scmp.ne.s32.totalorder %s106, %s107
    %p118 = scmp.eq.s32.totalorder %s14, 0
    %p119 = por %p117, %p118
    %p120 = scmp.ne.s32.totalorder %s106, %s107
    %p121 = scmp.eq.s32.totalorder %s15, 1
    %p122 = por %p120, %p121
    %p124 = scmp.ne.s32.totalorder %s107, %s123
    %p125 = scmp.eq.s32.totalorder %s15, 0
    %p126 = por %p124, %p125
    %p127 = scmp.le.s32.totalorder 1, %s9
    %p128 = scmp.lt.s32.totalorder %s9, 3
    %p129 = pnand %p127, %p128
    %p130 = pneg %p129
    // Predicated region
    $region9: #{advanced_phase_estimation_forward.19} parent=5 // pred_check
      _
    $region10: #{advanced_phase_estimation_forward.19} parent=5 // pred_check_branch
      %132 = sbr.rel (%p129) target = $region12
    $region11: #{advanced_phase_estimation_forward.19} parent=5 // pred_region
      %s133 = ssub.s32 %s9, 1
      // Predicated region
      $region13: #{advanced_phase_estimation_forward.19} parent=11 // pred_check
        %p134 = pneg %p70
      $region14: #{advanced_phase_estimation_forward.19} parent=11 // pred_check_branch
        %136 = sbr.rel (%p134) target = $region16
      $region15: #{advanced_phase_estimation_forward.19} parent=11 // pred_region
        _
      $region16: #{advanced_phase_estimation_forward.19} parent=11 // pred_fallthru
        _
      // Predicated region
      $region17: #{advanced_phase_estimation_forward.19} parent=11 // pred_check
        %p137 = pneg %p91
      $region18: #{advanced_phase_estimation_forward.19} parent=11 // pred_check_branch
        %139 = sbr.rel (%p137) target = $region20
      $region19: #{advanced_phase_estimation_forward.19} parent=11 // pred_region
        _
      $region20: #{advanced_phase_estimation_forward.19} parent=11 // pred_fallthru
        _
    $region12: #{advanced_phase_estimation_forward.19} parent=5 // pred_fallthru
      _
    %p140 = scmp.lt.s32.totalorder %s9, 2
    // Predicated region
    $region21: #{advanced_phase_estimation_forward.19} parent=5 // pred_check
      %p141 = pneg %p140
    $region22: #{advanced_phase_estimation_forward.19} parent=5 // pred_check_branch
      %143 = sbr.rel (%p141) target = $region24
    $region23: #{advanced_phase_estimation_forward.19} parent=5 // pred_region
      // Predicated region
      $region25: #{advanced_phase_estimation_forward.19} parent=23 // pred_check
        %p144 = pneg %p43
      $region26: #{advanced_phase_estimation_forward.19} parent=23 // pred_check_branch
        %146 = sbr.rel (%p144) target = $region28
      $region27: #{advanced_phase_estimation_forward.19} parent=23 // pred_region
        %p147 = scmp.lt.s32.totalorder %s16, 1
        %s148 = scalar_select %p147, %s16, 1
        %p149 = scmp.lt.s32.totalorder %s17, 0
        %s150 = scalar_select %p149, %s17, 0
        %s151 = smul.addr %s150, 4
        %s152 = smul.addr %s148, 4
        %s153 = sadd.s32 %s151, %s152
        %s154 = smul.addr %s153, 2
        %s155 = scalar_lea.vmem %s0, %s154
      $region28: #{advanced_phase_estimation_forward.19} parent=23 // pred_fallthru
        _
    $region24: #{advanced_phase_estimation_forward.19} parent=5 // pred_fallthru
      _
    %p156 = scmp.le.s32.totalorder 1, %s9
    %p157 = scmp.lt.s32.totalorder %s9, 3
    %p158 = pnand %p156, %p157
    %p159 = pneg %p158
    // Predicated region
    $region29: #{advanced_phase_estimation_forward.19} parent=5 // pred_check
      _
    $region30: #{advanced_phase_estimation_forward.19} parent=5 // pred_check_branch
      %161 = sbr.rel (%p158) target = $region32
    $region31: #{advanced_phase_estimation_forward.19} parent=5 // pred_region
      %s162 = ssub.s32 %s9, 1
      %p163 = scmp.lt.s32.totalorder %s18, 1
      %s164 = scalar_select %p163, %s18, 1
      %p165 = scmp.lt.s32.totalorder %s19, 0
      %s166 = scalar_select %p165, %s19, 0
      %s167 = smul.addr %s166, 4
      %s168 = smul.addr %s164, 4
      %s169 = sadd.s32 %s167, %s168
      %s170 = smul.addr %s169, 2
      %s171 = scalar_lea.vmem %s0, %s170
      %p172 = pneg %p49
      %p173 = pneg %p46
      %p174 = pneg %p70
      %p175 = pneg %p67
      %p176 = pneg %p91
      %p177 = pneg %p88
      %p178 = pneg %p119
      %p179 = pneg %p116
      %p180 = scmp.lt.s32.totalorder %s18, 1
      %s181 = scalar_select %p180, %s18, 1
      %p182 = scmp.lt.s32.totalorder %s19, 0
      %s183 = scalar_select %p182, %s19, 0
      %s184 = sadd.s32 %s183, %s181
      %s185 = scalar_lea.vmem %s3, %s184
      %p186 = scmp.lt.s32.totalorder %s18, 1
      %s187 = scalar_select %p186, %s18, 1
      %p188 = scmp.lt.s32.totalorder %s19, 0
      %s189 = scalar_select %p188, %s19, 0
      %s190 = smul.addr %s189, 4
      %s191 = smul.addr %s187, 4
      %s192 = sadd.s32 %s190, %s191
      %s193 = smul.addr %s192, 2
      %s194 = scalar_lea.vmem %s0, %s193
      %p195 = scmp.lt.s32.totalorder %s18, 1
      %s196 = scalar_select %p195, %s18, 1
      %p197 = scmp.lt.s32.totalorder %s19, 0
      %s198 = scalar_select %p197, %s19, 0
      %s199 = sadd.s32 %s198, %s196
      %s200 = scalar_lea.vmem %s3, %s199
      %v202 = vld [vmem:[%s194] sm:$0xf]
      %v203 = vld [vmem:[%s194 + $0x4] sm:$0xf]
      %v205 = vlaneseq
      %v206 = vshrl.u32 %v205, 7
      %v207 = vsub.s32 0, %v206
      %v208 = vrot.slane %v202, %v207
      %v209 = vlaneseq
      %v210 = vshrl.u32 %v209, 7
      %v211 = vsub.s32 2, %v210
      %v212 = vrot.slane %v202, %v211
      %v215 = vlaneseq
      %v216 = vshrl.u32 %v215, 7
      %v217 = vsub.s32 1, %v216
      %v218 = vrot.slane %v202, %v217
      %v219 = vlaneseq
      %v220 = vshrl.u32 %v219, 7
      %v221 = vsub.s32 3, %v220
      %v222 = vrot.slane %v202, %v221
      %v226 = vlaneseq
      %v227 = vshrl.u32 %v226, 7
      %v228 = vsub.s32 0, %v227
      %v229 = vrot.slane %v203, %v228
      %v230 = vlaneseq
      %v231 = vshrl.u32 %v230, 7
      %v232 = vsub.s32 2, %v231
      %v233 = vrot.slane %v203, %v232
      %v236 = vlaneseq
      %v237 = vshrl.u32 %v236, 7
      %v238 = vsub.s32 1, %v237
      %v239 = vrot.slane %v203, %v238
      %v240 = vlaneseq
      %v241 = vshrl.u32 %v240, 7
      %v242 = vsub.s32 3, %v241
      %v243 = vrot.slane %v203, %v242
      %v246 = vpack.c.bf16 %v208, %v208
      %v247 = vpack.c.bf16 %v212, %v212
      %v248 = vpack.c.bf16 %v218, %v218
      %v249 = vpack.c.bf16 %v222, %v222
      %v250 = vpack.c.bf16 %v229, %v229
      %v251 = vpack.c.bf16 %v233, %v233
      %v252 = vpack.c.bf16 %v239, %v239
      %v253 = vpack.c.bf16 %v243, %v243
      %v254 = vld [vmem:[%s1] sm:$0xf]
      %v255 = vld [vmem:[%s1 + $0x4] sm:$0xf]
      %v256 = vld [vmem:[%s1 + $0x8] sm:$0xf]
      %v257 = vld [vmem:[%s1 + $0xc] sm:$0xf]
      %v258 = vld [vmem:[%s1 + $0x10] sm:$0xf]
      %v259 = vld [vmem:[%s1 + $0x14] sm:$0xf]
      %v260 = vld [vmem:[%s1 + $0x18] sm:$0xf]
      %v261 = vld [vmem:[%s1 + $0x1c] sm:$0xf]
      %v262 = vld [vmem:[%s1 + $0x20] sm:$0xf]
      %v263 = vld [vmem:[%s1 + $0x24] sm:$0xf]
      %v264 = vld [vmem:[%s1 + $0x28] sm:$0xf]
      %v265 = vld [vmem:[%s1 + $0x2c] sm:$0xf]
      %v266 = vld [vmem:[%s1 + $0x30] sm:$0xf]
      %v267 = vld [vmem:[%s1 + $0x34] sm:$0xf]
      %v268 = vld [vmem:[%s1 + $0x38] sm:$0xf]
      %v269 = vld [vmem:[%s1 + $0x3c] sm:$0xf]
      %v270 = vld [vmem:[%s1 + $0x40] sm:$0xf]
      %v271 = vld [vmem:[%s1 + $0x44] sm:$0xf]
      %v272 = vld [vmem:[%s1 + $0x48] sm:$0xf]
      %v273 = vld [vmem:[%s1 + $0x4c] sm:$0xf]
      %v274 = vld [vmem:[%s1 + $0x50] sm:$0xf]
      %v275 = vld [vmem:[%s1 + $0x54] sm:$0xf]
      %v276 = vld [vmem:[%s1 + $0x58] sm:$0xf]
      %v277 = vld [vmem:[%s1 + $0x5c] sm:$0xf]
      %v278 = vld [vmem:[%s1 + $0x60] sm:$0xf]
      %v279 = vld [vmem:[%s1 + $0x64] sm:$0xf]
      %v280 = vld [vmem:[%s1 + $0x68] sm:$0xf]
      %v281 = vld [vmem:[%s1 + $0x6c] sm:$0xf]
      %v282 = vld [vmem:[%s1 + $0x70] sm:$0xf]
      %v283 = vld [vmem:[%s1 + $0x74] sm:$0xf]
      %v284 = vld [vmem:[%s1 + $0x78] sm:$0xf]
      %v285 = vld [vmem:[%s1 + $0x7c] sm:$0xf]
      %v286 = vld [vmem:[%s1 + $0x80] sm:$0xf]
      %v287 = vld [vmem:[%s1 + $0x84] sm:$0xf]
      %v288 = vld [vmem:[%s1 + $0x88] sm:$0xf]
      %v289 = vld [vmem:[%s1 + $0x8c] sm:$0xf]
      %v290 = vld [vmem:[%s1 + $0x90] sm:$0xf]
      %v291 = vld [vmem:[%s1 + $0x94] sm:$0xf]
      %v292 = vld [vmem:[%s1 + $0x98] sm:$0xf]
      %v293 = vld [vmem:[%s1 + $0x9c] sm:$0xf]
      %v294 = vld [vmem:[%s1 + $0xa0] sm:$0xf]
      %v295 = vld [vmem:[%s1 + $0xa4] sm:$0xf]
      %v296 = vld [vmem:[%s1 + $0xa8] sm:$0xf]
      %v297 = vld [vmem:[%s1 + $0xac] sm:$0xf]
      %v298 = vld [vmem:[%s1 + $0xb0] sm:$0xf]
      %v299 = vld [vmem:[%s1 + $0xb4] sm:$0xf]
      %v300 = vld [vmem:[%s1 + $0xb8] sm:$0xf]
      %v301 = vld [vmem:[%s1 + $0xbc] sm:$0xf]
      %v302 = vld [vmem:[%s1 + $0xc0] sm:$0xf]
      %v303 = vld [vmem:[%s1 + $0xc4] sm:$0xf]
      %v304 = vld [vmem:[%s1 + $0xc8] sm:$0xf]
      %v305 = vld [vmem:[%s1 + $0xcc] sm:$0xf]
      %v306 = vld [vmem:[%s1 + $0xd0] sm:$0xf]
      %v307 = vld [vmem:[%s1 + $0xd4] sm:$0xf]
      %v308 = vld [vmem:[%s1 + $0xd8] sm:$0xf]
      %v309 = vld [vmem:[%s1 + $0xdc] sm:$0xf]
      %v310 = vld [vmem:[%s1 + $0xe0] sm:$0xf]
      %v311 = vld [vmem:[%s1 + $0xe4] sm:$0xf]
      %v312 = vld [vmem:[%s1 + $0xe8] sm:$0xf]
      %v313 = vld [vmem:[%s1 + $0xec] sm:$0xf]
      %v314 = vld [vmem:[%s1 + $0xf0] sm:$0xf]
      %v315 = vld [vmem:[%s1 + $0xf4] sm:$0xf]
      %v316 = vld [vmem:[%s1 + $0xf8] sm:$0xf]
      %v317 = vld [vmem:[%s1 + $0xfc] sm:$0xf]
      %v318 = vld [vmem:[%s1 + $0x100] sm:$0xf]
      %v319 = vld [vmem:[%s1 + $0x104] sm:$0xf]
      %v320 = vld [vmem:[%s1 + $0x108] sm:$0xf]
      %v321 = vld [vmem:[%s1 + $0x10c] sm:$0xf]
      %v322 = vld [vmem:[%s1 + $0x110] sm:$0xf]
      %v323 = vld [vmem:[%s1 + $0x114] sm:$0xf]
      %v324 = vld [vmem:[%s1 + $0x118] sm:$0xf]
      %v325 = vld [vmem:[%s1 + $0x11c] sm:$0xf]
      %v326 = vld [vmem:[%s1 + $0x120] sm:$0xf]
      %v327 = vld [vmem:[%s1 + $0x124] sm:$0xf]
      %v328 = vld [vmem:[%s1 + $0x128] sm:$0xf]
      %v329 = vld [vmem:[%s1 + $0x12c] sm:$0xf]
      %v330 = vld [vmem:[%s1 + $0x130] sm:$0xf]
      %v331 = vld [vmem:[%s1 + $0x134] sm:$0xf]
      %v332 = vld [vmem:[%s1 + $0x138] sm:$0xf]
      %v333 = vld [vmem:[%s1 + $0x13c] sm:$0xf]
      %v334 = vld [vmem:[%s1 + $0x140] sm:$0xf]
      %v335 = vld [vmem:[%s1 + $0x144] sm:$0xf]
      %v336 = vld [vmem:[%s1 + $0x148] sm:$0xf]
      %v337 = vld [vmem:[%s1 + $0x14c] sm:$0xf]
      %v338 = vld [vmem:[%s1 + $0x150] sm:$0xf]
      %v339 = vld [vmem:[%s1 + $0x154] sm:$0xf]
      %v340 = vld [vmem:[%s1 + $0x158] sm:$0xf]
      %v341 = vld [vmem:[%s1 + $0x15c] sm:$0xf]
      %v342 = vld [vmem:[%s1 + $0x160] sm:$0xf]
      %v343 = vld [vmem:[%s1 + $0x164] sm:$0xf]
      %v344 = vld [vmem:[%s1 + $0x168] sm:$0xf]
      %v345 = vld [vmem:[%s1 + $0x16c] sm:$0xf]
      %v346 = vld [vmem:[%s1 + $0x170] sm:$0xf]
      %v347 = vld [vmem:[%s1 + $0x174] sm:$0xf]
      %v348 = vld [vmem:[%s1 + $0x178] sm:$0xf]
      %v349 = vld [vmem:[%s1 + $0x17c] sm:$0xf]
      %v350 = vld [vmem:[%s1 + $0x180] sm:$0xf]
      %v351 = vld [vmem:[%s1 + $0x184] sm:$0xf]
      %v352 = vld [vmem:[%s1 + $0x188] sm:$0xf]
      %v353 = vld [vmem:[%s1 + $0x18c] sm:$0xf]
      %v354 = vld [vmem:[%s1 + $0x190] sm:$0xf]
      %v355 = vld [vmem:[%s1 + $0x194] sm:$0xf]
      %v356 = vld [vmem:[%s1 + $0x198] sm:$0xf]
      %v357 = vld [vmem:[%s1 + $0x19c] sm:$0xf]
      %v358 = vld [vmem:[%s1 + $0x1a0] sm:$0xf]
      %v359 = vld [vmem:[%s1 + $0x1a4] sm:$0xf]
      %v360 = vld [vmem:[%s1 + $0x1a8] sm:$0xf]
      %v361 = vld [vmem:[%s1 + $0x1ac] sm:$0xf]
      %v362 = vld [vmem:[%s1 + $0x1b0] sm:$0xf]
      %v363 = vld [vmem:[%s1 + $0x1b4] sm:$0xf]
      %v364 = vld [vmem:[%s1 + $0x1b8] sm:$0xf]
      %v365 = vld [vmem:[%s1 + $0x1bc] sm:$0xf]
      %v366 = vld [vmem:[%s1 + $0x1c0] sm:$0xf]
      %v367 = vld [vmem:[%s1 + $0x1c4] sm:$0xf]
      %v368 = vld [vmem:[%s1 + $0x1c8] sm:$0xf]
      %v369 = vld [vmem:[%s1 + $0x1cc] sm:$0xf]
      %v370 = vld [vmem:[%s1 + $0x1d0] sm:$0xf]
      %v371 = vld [vmem:[%s1 + $0x1d4] sm:$0xf]
      %v372 = vld [vmem:[%s1 + $0x1d8] sm:$0xf]
      %v373 = vld [vmem:[%s1 + $0x1dc] sm:$0xf]
      %v374 = vld [vmem:[%s1 + $0x1e0] sm:$0xf]
      %v375 = vld [vmem:[%s1 + $0x1e4] sm:$0xf]
      %v376 = vld [vmem:[%s1 + $0x1e8] sm:$0xf]
      %v377 = vld [vmem:[%s1 + $0x1ec] sm:$0xf]
      %v378 = vld [vmem:[%s1 + $0x1f0] sm:$0xf]
      %v379 = vld [vmem:[%s1 + $0x1f4] sm:$0xf]
      %v380 = vld [vmem:[%s1 + $0x1f8] sm:$0xf]
      %v381 = vld [vmem:[%s1 + $0x1fc] sm:$0xf]
      %v382 = vld [vmem:[%s2] sm:$0x1]
      %v511 = vunpack.c.l.b16 %v254
      %v512 = vunpack.c.l.b16 %v255
      %v513 = vunpack.c.l.b16 %v256
      %v514 = vunpack.c.l.b16 %v257
      %v515 = vunpack.c.l.b16 %v258
      %v516 = vunpack.c.l.b16 %v259
      %v517 = vunpack.c.l.b16 %v260
      %v518 = vunpack.c.l.b16 %v261
      %v519 = vunpack.c.l.b16 %v262
      %v520 = vunpack.c.l.b16 %v263
      %v521 = vunpack.c.l.b16 %v264
      %v522 = vunpack.c.l.b16 %v265
      %v523 = vunpack.c.l.b16 %v266
      %v524 = vunpack.c.l.b16 %v267
      %v525 = vunpack.c.l.b16 %v268
      %v526 = vunpack.c.l.b16 %v269
      %v527 = vunpack.c.l.b16 %v270
      %v528 = vunpack.c.l.b16 %v271
      %v529 = vunpack.c.l.b16 %v272
      %v530 = vunpack.c.l.b16 %v273
      %v531 = vunpack.c.l.b16 %v274
      %v532 = vunpack.c.l.b16 %v275
      %v533 = vunpack.c.l.b16 %v276
      %v534 = vunpack.c.l.b16 %v277
      %v535 = vunpack.c.l.b16 %v278
      %v536 = vunpack.c.l.b16 %v279
      %v537 = vunpack.c.l.b16 %v280
      %v538 = vunpack.c.l.b16 %v281
      %v539 = vunpack.c.l.b16 %v282
      %v540 = vunpack.c.l.b16 %v283
      %v541 = vunpack.c.l.b16 %v284
      %v542 = vunpack.c.l.b16 %v285
      %v543 = vunpack.c.l.b16 %v286
      %v544 = vunpack.c.l.b16 %v287
      %v545 = vunpack.c.l.b16 %v288
      %v546 = vunpack.c.l.b16 %v289
      %v547 = vunpack.c.l.b16 %v290
      %v548 = vunpack.c.l.b16 %v291
      %v549 = vunpack.c.l.b16 %v292
      %v550 = vunpack.c.l.b16 %v293
      %v551 = vunpack.c.l.b16 %v294
      %v552 = vunpack.c.l.b16 %v295
      %v553 = vunpack.c.l.b16 %v296
      %v554 = vunpack.c.l.b16 %v297
      %v555 = vunpack.c.l.b16 %v298
      %v556 = vunpack.c.l.b16 %v299
      %v557 = vunpack.c.l.b16 %v300
      %v558 = vunpack.c.l.b16 %v301
      %v559 = vunpack.c.l.b16 %v302
      %v560 = vunpack.c.l.b16 %v303
      %v561 = vunpack.c.l.b16 %v304
      %v562 = vunpack.c.l.b16 %v305
      %v563 = vunpack.c.l.b16 %v306
      %v564 = vunpack.c.l.b16 %v307
      %v565 = vunpack.c.l.b16 %v308
      %v566 = vunpack.c.l.b16 %v309
      %v567 = vunpack.c.l.b16 %v310
      %v568 = vunpack.c.l.b16 %v311
      %v569 = vunpack.c.l.b16 %v312
      %v570 = vunpack.c.l.b16 %v313
      %v571 = vunpack.c.l.b16 %v314
      %v572 = vunpack.c.l.b16 %v315
      %v573 = vunpack.c.l.b16 %v316
      %v574 = vunpack.c.l.b16 %v317
      %v575 = vunpack.c.l.b16 %v318
      %v576 = vunpack.c.l.b16 %v319
      %v577 = vunpack.c.l.b16 %v320
      %v578 = vunpack.c.l.b16 %v321
      %v579 = vunpack.c.l.b16 %v322
      %v580 = vunpack.c.l.b16 %v323
      %v581 = vunpack.c.l.b16 %v324
      %v582 = vunpack.c.l.b16 %v325
      %v583 = vunpack.c.l.b16 %v326
      %v584 = vunpack.c.l.b16 %v327
      %v585 = vunpack.c.l.b16 %v328
      %v586 = vunpack.c.l.b16 %v329
      %v587 = vunpack.c.l.b16 %v330
      %v588 = vunpack.c.l.b16 %v331
      %v589 = vunpack.c.l.b16 %v332
      %v590 = vunpack.c.l.b16 %v333
      %v591 = vunpack.c.l.b16 %v334
      %v592 = vunpack.c.l.b16 %v335
      %v593 = vunpack.c.l.b16 %v336
      %v594 = vunpack.c.l.b16 %v337
      %v595 = vunpack.c.l.b16 %v338
      %v596 = vunpack.c.l.b16 %v339
      %v597 = vunpack.c.l.b16 %v340
      %v598 = vunpack.c.l.b16 %v341
      %v599 = vunpack.c.l.b16 %v342
      %v600 = vunpack.c.l.b16 %v343
      %v601 = vunpack.c.l.b16 %v344
      %v602 = vunpack.c.l.b16 %v345
      %v603 = vunpack.c.l.b16 %v346
      %v604 = vunpack.c.l.b16 %v347
      %v605 = vunpack.c.l.b16 %v348
      %v606 = vunpack.c.l.b16 %v349
      %v607 = vunpack.c.l.b16 %v350
      %v608 = vunpack.c.l.b16 %v351
      %v609 = vunpack.c.l.b16 %v352
      %v610 = vunpack.c.l.b16 %v353
      %v611 = vunpack.c.l.b16 %v354
      %v612 = vunpack.c.l.b16 %v355
      %v613 = vunpack.c.l.b16 %v356
      %v614 = vunpack.c.l.b16 %v357
      %v615 = vunpack.c.l.b16 %v358
      %v616 = vunpack.c.l.b16 %v359
      %v617 = vunpack.c.l.b16 %v360
      %v618 = vunpack.c.l.b16 %v361
      %v619 = vunpack.c.l.b16 %v362
      %v620 = vunpack.c.l.b16 %v363
      %v621 = vunpack.c.l.b16 %v364
      %v622 = vunpack.c.l.b16 %v365
      %v623 = vunpack.c.l.b16 %v366
      %v624 = vunpack.c.l.b16 %v367
      %v625 = vunpack.c.l.b16 %v368
      %v626 = vunpack.c.l.b16 %v369
      %v627 = vunpack.c.l.b16 %v370
      %v628 = vunpack.c.l.b16 %v371
      %v629 = vunpack.c.l.b16 %v372
      %v630 = vunpack.c.l.b16 %v373
      %v631 = vunpack.c.l.b16 %v374
      %v632 = vunpack.c.l.b16 %v375
      %v633 = vunpack.c.l.b16 %v376
      %v634 = vunpack.c.l.b16 %v377
      %v635 = vunpack.c.l.b16 %v378
      %v636 = vunpack.c.l.b16 %v379
      %v637 = vunpack.c.l.b16 %v380
      %v638 = vunpack.c.l.b16 %v381
      %v639 = vpack.c.b16 %v512, %v511
      %v640 = vpack.c.b16 %v514, %v513
      %v641 = vpack.c.b16 %v516, %v515
      %v642 = vpack.c.b16 %v518, %v517
      %v643 = vpack.c.b16 %v520, %v519
      %v644 = vpack.c.b16 %v522, %v521
      %v645 = vpack.c.b16 %v524, %v523
      %v646 = vpack.c.b16 %v526, %v525
      %v647 = vpack.c.b16 %v528, %v527
      %v648 = vpack.c.b16 %v530, %v529
      %v649 = vpack.c.b16 %v532, %v531
      %v650 = vpack.c.b16 %v534, %v533
      %v651 = vpack.c.b16 %v536, %v535
      %v652 = vpack.c.b16 %v538, %v537
      %v653 = vpack.c.b16 %v540, %v539
      %v654 = vpack.c.b16 %v542, %v541
      %v655 = vpack.c.b16 %v544, %v543
      %v656 = vpack.c.b16 %v546, %v545
      %v657 = vpack.c.b16 %v548, %v547
      %v658 = vpack.c.b16 %v550, %v549
      %v659 = vpack.c.b16 %v552, %v551
      %v660 = vpack.c.b16 %v554, %v553
      %v661 = vpack.c.b16 %v556, %v555
      %v662 = vpack.c.b16 %v558, %v557
      %v663 = vpack.c.b16 %v560, %v559
      %v664 = vpack.c.b16 %v562, %v561
      %v665 = vpack.c.b16 %v564, %v563
      %v666 = vpack.c.b16 %v566, %v565
      %v667 = vpack.c.b16 %v568, %v567
      %v668 = vpack.c.b16 %v570, %v569
      %v669 = vpack.c.b16 %v572, %v571
      %v670 = vpack.c.b16 %v574, %v573
      %v671 = vpack.c.b16 %v576, %v575
      %v672 = vpack.c.b16 %v578, %v577
      %v673 = vpack.c.b16 %v580, %v579
      %v674 = vpack.c.b16 %v582, %v581
      %v675 = vpack.c.b16 %v584, %v583
      %v676 = vpack.c.b16 %v586, %v585
      %v677 = vpack.c.b16 %v588, %v587
      %v678 = vpack.c.b16 %v590, %v589
      %v679 = vpack.c.b16 %v592, %v591
      %v680 = vpack.c.b16 %v594, %v593
      %v681 = vpack.c.b16 %v596, %v595
      %v682 = vpack.c.b16 %v598, %v597
      %v683 = vpack.c.b16 %v600, %v599
      %v684 = vpack.c.b16 %v602, %v601
      %v685 = vpack.c.b16 %v604, %v603
      %v686 = vpack.c.b16 %v606, %v605
      %v687 = vpack.c.b16 %v608, %v607
      %v688 = vpack.c.b16 %v610, %v609
      %v689 = vpack.c.b16 %v612, %v611
      %v690 = vpack.c.b16 %v614, %v613
      %v691 = vpack.c.b16 %v616, %v615
      %v692 = vpack.c.b16 %v618, %v617
      %v693 = vpack.c.b16 %v620, %v619
      %v694 = vpack.c.b16 %v622, %v621
      %v695 = vpack.c.b16 %v624, %v623
      %v696 = vpack.c.b16 %v626, %v625
      %v697 = vpack.c.b16 %v628, %v627
      %v698 = vpack.c.b16 %v630, %v629
      %v699 = vpack.c.b16 %v632, %v631
      %v700 = vpack.c.b16 %v634, %v633
      %v701 = vpack.c.b16 %v636, %v635
      %v702 = vpack.c.b16 %v638, %v637
      %767 = vmatprep.subr.bf16.mxu0 0
      %768 = vmatpush1.bf16.msra.mxu0 %v646
      %769 = vmatprep.subr.bf16.mxu0 0
      %770 = vmatpush1.bf16.msra.mxu0 %v645
      %771 = vmatprep.subr.bf16.mxu0 0
      %772 = vmatpush1.bf16.msra.mxu0 %v644
      %773 = vmatprep.subr.bf16.mxu0 0
      %774 = vmatpush1.bf16.msra.mxu0 %v643
      %775 = vmatprep.subr.bf16.mxu0 0
      %776 = vmatpush1.bf16.msra.mxu0 %v642
      %777 = vmatprep.subr.bf16.mxu0 0
      %778 = vmatpush1.bf16.msra.mxu0 %v641
      %779 = vmatprep.subr.bf16.mxu0 0
      %780 = vmatpush1.bf16.msra.mxu0 %v640
      %781 = vmatprep.subr.bf16.mxu0 0
      %782 = vmatpush1.bf16.msra.mxu0 %v639
      %783 = vmatprep.subr.bf16.mxu0 0
      %784 = vmatpush2.bf16.msra.mxu0 %v654
      %785 = vmatprep.subr.bf16.mxu0 0
      %786 = vmatpush2.bf16.msra.mxu0 %v653
      %787 = vmatprep.subr.bf16.mxu0 0
      %788 = vmatpush2.bf16.msra.mxu0 %v652
      %789 = vmatprep.subr.bf16.mxu0 0
      %790 = vmatpush2.bf16.msra.mxu0 %v651
      %791 = vmatprep.subr.bf16.mxu0 0
      %792 = vmatpush2.bf16.msra.mxu0 %v650
      %793 = vmatprep.subr.bf16.mxu0 0
      %794 = vmatpush2.bf16.msra.mxu0 %v649
      %795 = vmatprep.subr.bf16.mxu0 0
      %796 = vmatpush2.bf16.msra.mxu0 %v648
      %797 = vmatprep.subr.bf16.mxu0 0
      %798 = vmatpush2.bf16.msra.mxu0 %v647
      %799 = vmatprep.mubr.bf16.mxu0 %v247
      %800 = vmatmul.mubr.bf16.gmra.mxu0 %v246
      %v801 = vpop.f32.mrf.mxu0
      %v802 = vadd.f32 %v382, %v801
      %v803 = vpop.f32.mrf.mxu0
      %v804 = vpop.f32.mrf.mxu0
      %v805 = vpop.f32.mrf.mxu0
      %806 = vdwg.mxu0
      %807 = vmatprep.subr.bf16.mxu0 0
      %808 = vmatpush1.bf16.msra.mxu0 %v662
      %809 = vmatprep.subr.bf16.mxu0 0
      %810 = vmatpush1.bf16.msra.mxu0 %v661
      %811 = vmatprep.subr.bf16.mxu0 0
      %812 = vmatpush1.bf16.msra.mxu0 %v660
      %813 = vmatprep.subr.bf16.mxu0 0
      %814 = vmatpush1.bf16.msra.mxu0 %v659
      %815 = vmatprep.subr.bf16.mxu0 0
      %816 = vmatpush1.bf16.msra.mxu0 %v658
      %817 = vmatprep.subr.bf16.mxu0 0
      %818 = vmatpush1.bf16.msra.mxu0 %v657
      %819 = vmatprep.subr.bf16.mxu0 0
      %820 = vmatpush1.bf16.msra.mxu0 %v656
      %821 = vmatprep.subr.bf16.mxu0 0
      %822 = vmatpush1.bf16.msra.mxu0 %v655
      %823 = vmatprep.subr.bf16.mxu0 0
      %824 = vmatpush2.bf16.msra.mxu0 %v670
      %825 = vmatprep.subr.bf16.mxu0 0
      %826 = vmatpush2.bf16.msra.mxu0 %v669
      %827 = vmatprep.subr.bf16.mxu0 0
      %828 = vmatpush2.bf16.msra.mxu0 %v668
      %829 = vmatprep.subr.bf16.mxu0 0
      %830 = vmatpush2.bf16.msra.mxu0 %v667
      %831 = vmatprep.subr.bf16.mxu0 0
      %832 = vmatpush2.bf16.msra.mxu0 %v666
      %833 = vmatprep.subr.bf16.mxu0 0
      %834 = vmatpush2.bf16.msra.mxu0 %v665
      %835 = vmatprep.subr.bf16.mxu0 0
      %836 = vmatpush2.bf16.msra.mxu0 %v664
      %837 = vmatprep.subr.bf16.mxu0 0
      %838 = vmatpush2.bf16.msra.mxu0 %v663
      %839 = vmatprep.mubr.bf16.mxu0 %v249
      %840 = vmatmul.mubr.bf16.gmra.mxu0 %v248
      %v841 = vpop.f32.mrf.mxu0
      %v842 = vadd.f32 %v802, %v841
      %v843 = vpop.f32.mrf.mxu0
      %v844 = vpop.f32.mrf.mxu0
      %v845 = vpop.f32.mrf.mxu0
      %846 = vdwg.mxu0
      %847 = vmatprep.subr.bf16.mxu0 0
      %848 = vmatpush1.bf16.msra.mxu0 %v678
      %849 = vmatprep.subr.bf16.mxu0 0
      %850 = vmatpush1.bf16.msra.mxu0 %v677
      %851 = vmatprep.subr.bf16.mxu0 0
      %852 = vmatpush1.bf16.msra.mxu0 %v676
      %853 = vmatprep.subr.bf16.mxu0 0
      %854 = vmatpush1.bf16.msra.mxu0 %v675
      %855 = vmatprep.subr.bf16.mxu0 0
      %856 = vmatpush1.bf16.msra.mxu0 %v674
      %857 = vmatprep.subr.bf16.mxu0 0
      %858 = vmatpush1.bf16.msra.mxu0 %v673
      %859 = vmatprep.subr.bf16.mxu0 0
      %860 = vmatpush1.bf16.msra.mxu0 %v672
      %861 = vmatprep.subr.bf16.mxu0 0
      %862 = vmatpush1.bf16.msra.mxu0 %v671
      %863 = vmatprep.subr.bf16.mxu0 0
      %864 = vmatpush2.bf16.msra.mxu0 %v686
      %865 = vmatprep.subr.bf16.mxu0 0
      %866 = vmatpush2.bf16.msra.mxu0 %v685
      %867 = vmatprep.subr.bf16.mxu0 0
      %868 = vmatpush2.bf16.msra.mxu0 %v684
      %869 = vmatprep.subr.bf16.mxu0 0
      %870 = vmatpush2.bf16.msra.mxu0 %v683
      %871 = vmatprep.subr.bf16.mxu0 0
      %872 = vmatpush2.bf16.msra.mxu0 %v682
      %873 = vmatprep.subr.bf16.mxu0 0
      %874 = vmatpush2.bf16.msra.mxu0 %v681
      %875 = vmatprep.subr.bf16.mxu0 0
      %876 = vmatpush2.bf16.msra.mxu0 %v680
      %877 = vmatprep.subr.bf16.mxu0 0
      %878 = vmatpush2.bf16.msra.mxu0 %v679
      %879 = vmatprep.mubr.bf16.mxu0 %v251
      %880 = vmatmul.mubr.bf16.gmra.mxu0 %v250
      %v881 = vpop.f32.mrf.mxu0
      %v882 = vadd.f32 %v842, %v881
      %v883 = vpop.f32.mrf.mxu0
      %v884 = vpop.f32.mrf.mxu0
      %v885 = vpop.f32.mrf.mxu0
      %886 = vdwg.mxu0
      %887 = vmatprep.subr.bf16.mxu0 0
      %888 = vmatpush1.bf16.msra.mxu0 %v694
      %889 = vmatprep.subr.bf16.mxu0 0
      %890 = vmatpush1.bf16.msra.mxu0 %v693
      %891 = vmatprep.subr.bf16.mxu0 0
      %892 = vmatpush1.bf16.msra.mxu0 %v692
      %893 = vmatprep.subr.bf16.mxu0 0
      %894 = vmatpush1.bf16.msra.mxu0 %v691
      %895 = vmatprep.subr.bf16.mxu0 0
      %896 = vmatpush1.bf16.msra.mxu0 %v690
      %897 = vmatprep.subr.bf16.mxu0 0
      %898 = vmatpush1.bf16.msra.mxu0 %v689
      %899 = vmatprep.subr.bf16.mxu0 0
      %900 = vmatpush1.bf16.msra.mxu0 %v688
      %901 = vmatprep.subr.bf16.mxu0 0
      %902 = vmatpush1.bf16.msra.mxu0 %v687
      %903 = vmatprep.subr.bf16.mxu0 0
      %904 = vmatpush2.bf16.msra.mxu0 %v702
      %905 = vmatprep.subr.bf16.mxu0 0
      %906 = vmatpush2.bf16.msra.mxu0 %v701
      %907 = vmatprep.subr.bf16.mxu0 0
      %908 = vmatpush2.bf16.msra.mxu0 %v700
      %909 = vmatprep.subr.bf16.mxu0 0
      %910 = vmatpush2.bf16.msra.mxu0 %v699
      %911 = vmatprep.subr.bf16.mxu0 0
      %912 = vmatpush2.bf16.msra.mxu0 %v698
      %913 = vmatprep.subr.bf16.mxu0 0
      %914 = vmatpush2.bf16.msra.mxu0 %v697
      %915 = vmatprep.subr.bf16.mxu0 0
      %916 = vmatpush2.bf16.msra.mxu0 %v696
      %917 = vmatprep.subr.bf16.mxu0 0
      %918 = vmatpush2.bf16.msra.mxu0 %v695
      %919 = vmatprep.mubr.bf16.mxu0 %v253
      %920 = vmatmul.mubr.bf16.gmra.mxu0 %v252
      %v921 = vpop.f32.mrf.mxu0
      %v922 = vadd.f32 %v882, %v921
      %v923 = vpop.f32.mrf.mxu0
      %v924 = vpop.f32.mrf.mxu0
      %v925 = vpop.f32.mrf.mxu0
      %926 = vdwg.mxu0
      %v927 = vmax.f32 %v922, 0.0
      %928 = vst [vmem:[%s200] sm:$0x1] %v927
      %p929 = scmp.lt.s32.totalorder %s18, 1
      %s930 = scalar_select %p929, %s18, 1
      %p931 = scmp.lt.s32.totalorder %s19, 0
      %s932 = scalar_select %p931, %s19, 0
      %s933 = sadd.s32 %s932, %s930
      %s934 = scalar_lea.vmem %s3, %s933
      // Predicated region
      $region33: #{advanced_phase_estimation_forward.19} parent=31 // pred_check
        %p935 = pneg %p116
      $region34: #{advanced_phase_estimation_forward.19} parent=31 // pred_check_branch
        %937 = sbr.rel (%p935) target = $region36
      $region35: #{advanced_phase_estimation_forward.19} parent=31 // pred_region
        _
      $region36: #{advanced_phase_estimation_forward.19} parent=31 // pred_fallthru
        _
    $region32: #{advanced_phase_estimation_forward.19} parent=5 // pred_fallthru
      _
    %p938 = scmp.le.s32.totalorder 2, %s9
    // Predicated region
    $region37: #{advanced_phase_estimation_forward.19} parent=5 // pred_check
      %p939 = pneg %p938
    $region38: #{advanced_phase_estimation_forward.19} parent=5 // pred_check_branch
      %941 = sbr.rel (%p939) target = $region40
    $region39: #{advanced_phase_estimation_forward.19} parent=5 // pred_region
      %s942 = ssub.s32 %s9, 2
      // Predicated region
      $region41: #{advanced_phase_estimation_forward.19} parent=39 // pred_check
        %p943 = pneg %p122
      $region42: #{advanced_phase_estimation_forward.19} parent=39 // pred_check_branch
        %945 = sbr.rel (%p943) target = $region44
      $region43: #{advanced_phase_estimation_forward.19} parent=39 // pred_region
        %p946 = scmp.lt.s32.totalorder %s20, 1
        %s947 = scalar_select %p946, %s20, 1
        %p948 = scmp.lt.s32.totalorder %s21, 0
        %s949 = scalar_select %p948, %s21, 0
        %s950 = sadd.s32 %s949, %s947
        %s951 = scalar_lea.vmem %s3, %s950
      $region44: #{advanced_phase_estimation_forward.19} parent=39 // pred_fallthru
        _
    $region40: #{advanced_phase_estimation_forward.19} parent=5 // pred_fallthru
      _
  $region6: #{advanced_phase_estimation_forward.19} parent=0 // loop_footer
    %s13 = sadd.s32 1, %s9
  $region7: #{advanced_phase_estimation_forward.19} parent=0 // loop_footer_branch
    %8 = sbr.rel target = $region3
  $region8: #{advanced_phase_estimation_forward.19} parent=0 // loop_exit
    _

</llo_original>
